<compile_context>
chip_gen: v6e
topology: v6e:2x2x1
jax: 0.10.0
libtpu: 0.0.40
codegen_flags: <defaults>
</compile_context>

<pallas_src>
import jax
import jax.numpy as jnp
from jax.experimental import pallas as pl
from jax.experimental.pallas import tpu as pltpu

D = 768  # hidden size from nn.Linear(768, 768)


def attn_kernel(x1_ref, x2_ref, x3_ref,
                wqT_ref, bq_ref, wkT_ref, bk_ref, wvT_ref, bv_ref,
                out_ref):
    # ---- query(x1) followed by softmax over the last dim (single row) ----
    q = jnp.dot(x1_ref[...], wqT_ref[...],
                preferred_element_type=jnp.float32) + bq_ref[...]          # (1, D)
    q_max = jnp.max(q, axis=-1, keepdims=True)
    e = jnp.exp(q - q_max)
    denom = jnp.sum(e, axis=-1, keepdims=True)                             # (1, 1)
    inv = pl.reciprocal(denom, approx=True)       # EUP slot (cheap)
    inv = inv * (2.0 - denom * inv)               # one Newton step -> ~f32 exact
    p = e * inv                                   # softmax probabilities, row sums to 1

    # ---- re-associated key path: p @ key(x2) == (p @ x2) @ Wk^T + bk ----
    px2 = jnp.dot(p, x2_ref[...], preferred_element_type=jnp.float32)      # (1, D)
    pk = jnp.dot(px2, wkT_ref[...],
                 preferred_element_type=jnp.float32) + bk_ref[...]         # (1, D)

    # ---- re-associated value path: pk @ value(x3) ----
    pkx3 = jnp.dot(pk, x3_ref[...], preferred_element_type=jnp.float32)    # (1, D)
    out = (jnp.dot(pkx3, wvT_ref[...], preferred_element_type=jnp.float32)
           + jnp.sum(pk, axis=-1, keepdims=True) * bv_ref[...])            # (1, D)
    out_ref[...] = out.astype(out_ref.dtype)


def model_forward(x1, x2, x3, wq, bq, wk, bk, wv, bv):
    # Pre-transpose Linear weights (glue); reshape biases to (1, D) for
    # clean lane-wise broadcast inside the kernel.
    args = (
        x1, x2, x3,
        wq.T, bq.reshape(1, D),
        wk.T, bk.reshape(1, D),
        wv.T, bv.reshape(1, D),
    )

    def full_spec(shape):
        # Block shape == full array dims (satisfies the (8,128) rule even for
        # the (1, 768) row vectors).
        return pl.BlockSpec(shape, lambda i: (0, 0))

    return pl.pallas_call(
        attn_kernel,
        out_shape=jax.ShapeDtypeStruct((1, D), jnp.float32),
        grid=(1,),
        in_specs=[full_spec(a.shape) for a in args],
        out_specs=full_spec((1, D)),
        compiler_params=pltpu.CompilerParams(
            dimension_semantics=("arbitrary",),
            vmem_limit_bytes=32 << 20,   # legal on v7x (64 MiB physical)
        ),
    )(*args)


def _init_linear(key, fan_in, fan_out):
    # Deterministic init mimicking torch.nn.Linear default (uniform +-1/sqrt(fan_in)).
    kw, kb = jax.random.split(key)
    bound = 1.0 / (fan_in ** 0.5)
    w = jax.random.uniform(kw, (fan_out, fan_in), jnp.float32, -bound, bound)
    b = jax.random.uniform(kb, (fan_out,), jnp.float32, -bound, bound)
    return w, b


if __name__ == "__main__":
    root = jax.random.PRNGKey(0)
    k_x1, k_x2, k_x3, k_q, k_k, k_v = jax.random.split(root, 6)

    x1 = jax.random.normal(k_x1, (1, D), jnp.float32)
    x2 = jax.random.normal(k_x2, (D, D), jnp.float32)
    x3 = jax.random.normal(k_x3, (D, D), jnp.float32)

    wq, bq = _init_linear(k_q, D, D)
    wk, bk = _init_linear(k_k, D, D)
    wv, bv = _init_linear(k_v, D, D)

    out = model_forward(x1, x2, x3, wq, bq, wk, bk, wv, bv)
    out = jax.block_until_ready(out)

    # Plain-JAX reference (un-re-associated) for a sanity check.
    q_ref = jax.nn.softmax(x1 @ wq.T + bq, axis=-1)
    k_ref = x2 @ wk.T + bk
    v_ref = x3 @ wv.T + bv
    ref = q_ref @ k_ref @ v_ref

    assert out.shape == (1, D)
    assert jnp.allclose(out, ref, rtol=1e-4, atol=1e-4), "mismatch vs reference"
    print("KERNEL_OK")
</pallas_src>

<mosaic_0001>
module attributes {stable_mosaic.version = 11 : i64} {
  func.func @attn_kernel(%arg0: i32, %arg1: memref<1x768xf32, #tpu.memory_space<vmem>>, %arg2: memref<768x768xf32, #tpu.memory_space<vmem>>, %arg3: memref<768x768xf32, #tpu.memory_space<vmem>>, %arg4: memref<768x768xf32, #tpu.memory_space<vmem>>, %arg5: memref<1x768xf32, #tpu.memory_space<vmem>>, %arg6: memref<768x768xf32, #tpu.memory_space<vmem>>, %arg7: memref<1x768xf32, #tpu.memory_space<vmem>>, %arg8: memref<768x768xf32, #tpu.memory_space<vmem>>, %arg9: memref<1x768xf32, #tpu.memory_space<vmem>>, %arg10: memref<1x768xf32, #tpu.memory_space<vmem>>) attributes {dimension_semantics = [#tpu.dimension_semantics<arbitrary>], iteration_bounds = array<i64: 1>, scalar_prefetch = 0 : i64, scratch_operands = 0 : i64, tpu.core_type = #tpu.core_type<tc>, window_params = [{pipeline_mode = #tpu.pipeline_mode<synchronous>, transform_indices = @transform_0, window_bounds = array<i64: 1, 768>}, {pipeline_mode = #tpu.pipeline_mode<synchronous>, transform_indices = @transform_1, window_bounds = array<i64: 768, 768>}, {pipeline_mode = #tpu.pipeline_mode<synchronous>, transform_indices = @transform_2, window_bounds = array<i64: 768, 768>}, {pipeline_mode = #tpu.pipeline_mode<synchronous>, transform_indices = @transform_3, window_bounds = array<i64: 768, 768>}, {pipeline_mode = #tpu.pipeline_mode<synchronous>, transform_indices = @transform_4, window_bounds = array<i64: 1, 768>}, {pipeline_mode = #tpu.pipeline_mode<synchronous>, transform_indices = @transform_5, window_bounds = array<i64: 768, 768>}, {pipeline_mode = #tpu.pipeline_mode<synchronous>, transform_indices = @transform_6, window_bounds = array<i64: 1, 768>}, {pipeline_mode = #tpu.pipeline_mode<synchronous>, transform_indices = @transform_7, window_bounds = array<i64: 768, 768>}, {pipeline_mode = #tpu.pipeline_mode<synchronous>, transform_indices = @transform_8, window_bounds = array<i64: 1, 768>}, {pipeline_mode = #tpu.pipeline_mode<synchronous>, transform_indices = @transform_9, window_bounds = array<i64: 1, 768>}]} {
    %c0 = arith.constant 0 : index
    %c0_0 = arith.constant 0 : index
    %0 = vector.load %arg1[%c0, %c0_0] : memref<1x768xf32, #tpu.memory_space<vmem>>, vector<1x768xf32>
    %c0_1 = arith.constant 0 : index
    %c0_2 = arith.constant 0 : index
    %1 = vector.load %arg4[%c0_1, %c0_2] : memref<768x768xf32, #tpu.memory_space<vmem>>, vector<768x768xf32>
    %cst = arith.constant dense<0.000000e+00> : vector<1x768xf32>
    %2 = tpu.matmul %0, %1, %cst {dimension_numbers = #tpu.dot_dimension_numbers<[1], [0], [0], [1], [0, 0, 1, 1], [], []>} : vector<1x768xf32>, vector<768x768xf32>, vector<1x768xf32> -> vector<1x768xf32>
    %c0_3 = arith.constant 0 : index
    %c0_4 = arith.constant 0 : index
    %3 = vector.load %arg5[%c0_3, %c0_4] : memref<1x768xf32, #tpu.memory_space<vmem>>, vector<1x768xf32>
    %4 = arith.addf %2, %3 : vector<1x768xf32>
    %cst_5 = arith.constant dense<0xFF800000> : vector<1xf32>
    %5 = vector.multi_reduction <maximumf>, %4, %cst_5 [1] : vector<1x768xf32> to vector<1xf32>
    %6 = vector.shape_cast %5 : vector<1xf32> to vector<1x1xf32>
    %7 = vector.broadcast %6 : vector<1x1xf32> to vector<1x768xf32>
    %8 = arith.subf %4, %7 : vector<1x768xf32>
    %9 = math.exp %8 : vector<1x768xf32>
    %cst_6 = arith.constant dense<0.000000e+00> : vector<1xf32>
    %10 = vector.multi_reduction <add>, %9, %cst_6 [1] : vector<1x768xf32> to vector<1xf32>
    %11 = vector.shape_cast %10 : vector<1xf32> to vector<1x1xf32>
    %12 = tpu.reciprocal %11 {approx = true} : vector<1x1xf32> -> vector<1x1xf32>
    %13 = arith.mulf %11, %12 : vector<1x1xf32>
    %cst_7 = arith.constant 2.000000e+00 : f32
    %14 = vector.broadcast %cst_7 : f32 to vector<1x1xf32>
    %15 = arith.subf %14, %13 : vector<1x1xf32>
    %16 = arith.mulf %12, %15 : vector<1x1xf32>
    %17 = vector.broadcast %16 : vector<1x1xf32> to vector<1x768xf32>
    %18 = arith.mulf %9, %17 : vector<1x768xf32>
    %c0_8 = arith.constant 0 : index
    %c0_9 = arith.constant 0 : index
    %19 = vector.load %arg2[%c0_8, %c0_9] : memref<768x768xf32, #tpu.memory_space<vmem>>, vector<768x768xf32>
    %cst_10 = arith.constant dense<0.000000e+00> : vector<1x768xf32>
    %20 = tpu.matmul %18, %19, %cst_10 {dimension_numbers = #tpu.dot_dimension_numbers<[1], [0], [0], [1], [0, 0, 1, 1], [], []>} : vector<1x768xf32>, vector<768x768xf32>, vector<1x768xf32> -> vector<1x768xf32>
    %c0_11 = arith.constant 0 : index
    %c0_12 = arith.constant 0 : index
    %21 = vector.load %arg6[%c0_11, %c0_12] : memref<768x768xf32, #tpu.memory_space<vmem>>, vector<768x768xf32>
    %cst_13 = arith.constant dense<0.000000e+00> : vector<1x768xf32>
    %22 = tpu.matmul %20, %21, %cst_13 {dimension_numbers = #tpu.dot_dimension_numbers<[1], [0], [0], [1], [0, 0, 1, 1], [], []>} : vector<1x768xf32>, vector<768x768xf32>, vector<1x768xf32> -> vector<1x768xf32>
    %c0_14 = arith.constant 0 : index
    %c0_15 = arith.constant 0 : index
    %23 = vector.load %arg7[%c0_14, %c0_15] : memref<1x768xf32, #tpu.memory_space<vmem>>, vector<1x768xf32>
    %24 = arith.addf %22, %23 : vector<1x768xf32>
    %c0_16 = arith.constant 0 : index
    %c0_17 = arith.constant 0 : index
    %25 = vector.load %arg3[%c0_16, %c0_17] : memref<768x768xf32, #tpu.memory_space<vmem>>, vector<768x768xf32>
    %cst_18 = arith.constant dense<0.000000e+00> : vector<1x768xf32>
    %26 = tpu.matmul %24, %25, %cst_18 {dimension_numbers = #tpu.dot_dimension_numbers<[1], [0], [0], [1], [0, 0, 1, 1], [], []>} : vector<1x768xf32>, vector<768x768xf32>, vector<1x768xf32> -> vector<1x768xf32>
    %c0_19 = arith.constant 0 : index
    %c0_20 = arith.constant 0 : index
    %27 = vector.load %arg8[%c0_19, %c0_20] : memref<768x768xf32, #tpu.memory_space<vmem>>, vector<768x768xf32>
    %cst_21 = arith.constant dense<0.000000e+00> : vector<1x768xf32>
    %28 = tpu.matmul %26, %27, %cst_21 {dimension_numbers = #tpu.dot_dimension_numbers<[1], [0], [0], [1], [0, 0, 1, 1], [], []>} : vector<1x768xf32>, vector<768x768xf32>, vector<1x768xf32> -> vector<1x768xf32>
    %cst_22 = arith.constant dense<0.000000e+00> : vector<1xf32>
    %29 = vector.multi_reduction <add>, %24, %cst_22 [1] : vector<1x768xf32> to vector<1xf32>
    %30 = vector.shape_cast %29 : vector<1xf32> to vector<1x1xf32>
    %c0_23 = arith.constant 0 : index
    %c0_24 = arith.constant 0 : index
    %31 = vector.load %arg9[%c0_23, %c0_24] : memref<1x768xf32, #tpu.memory_space<vmem>>, vector<1x768xf32>
    %32 = vector.broadcast %30 : vector<1x1xf32> to vector<1x768xf32>
    %33 = arith.mulf %32, %31 : vector<1x768xf32>
    %34 = arith.addf %28, %33 : vector<1x768xf32>
    %c0_25 = arith.constant 0 : index
    %c0_26 = arith.constant 0 : index
    %35 = vector.load %arg10[%c0_25, %c0_26] : memref<1x768xf32, #tpu.memory_space<vmem>>, vector<1x768xf32>
    tpu.vector_store %arg10[%c0_25, %c0_26], %34 {strides = array<i32>} : memref<1x768xf32, #tpu.memory_space<vmem>>, vector<1x768xf32>,
    return
  }
  func.func @transform_0(%arg0: i32) -> (i32, i32) {
    %c0_i32 = arith.constant 0 : i32
    %c0_i32_0 = arith.constant 0 : i32
    %c0_i32_1 = arith.constant 0 : i32
    return %c0_i32, %c0_i32_0 : i32, i32
  }
  func.func @transform_1(%arg0: i32) -> (i32, i32) {
    %c0_i32 = arith.constant 0 : i32
    %c0_i32_0 = arith.constant 0 : i32
    %c0_i32_1 = arith.constant 0 : i32
    return %c0_i32, %c0_i32_0 : i32, i32
  }
  func.func @transform_2(%arg0: i32) -> (i32, i32) {
    %c0_i32 = arith.constant 0 : i32
    %c0_i32_0 = arith.constant 0 : i32
    %c0_i32_1 = arith.constant 0 : i32
    return %c0_i32, %c0_i32_0 : i32, i32
  }
  func.func @transform_3(%arg0: i32) -> (i32, i32) {
    %c0_i32 = arith.constant 0 : i32
    %c0_i32_0 = arith.constant 0 : i32
    %c0_i32_1 = arith.constant 0 : i32
    return %c0_i32, %c0_i32_0 : i32, i32
  }
  func.func @transform_4(%arg0: i32) -> (i32, i32) {
    %c0_i32 = arith.constant 0 : i32
    %c0_i32_0 = arith.constant 0 : i32
    %c0_i32_1 = arith.constant 0 : i32
    return %c0_i32, %c0_i32_0 : i32, i32
  }
  func.func @transform_5(%arg0: i32) -> (i32, i32) {
    %c0_i32 = arith.constant 0 : i32
    %c0_i32_0 = arith.constant 0 : i32
    %c0_i32_1 = arith.constant 0 : i32
    return %c0_i32, %c0_i32_0 : i32, i32
  }
  func.func @transform_6(%arg0: i32) -> (i32, i32) {
    %c0_i32 = arith.constant 0 : i32
    %c0_i32_0 = arith.constant 0 : i32
    %c0_i32_1 = arith.constant 0 : i32
    return %c0_i32, %c0_i32_0 : i32, i32
  }
  func.func @transform_7(%arg0: i32) -> (i32, i32) {
    %c0_i32 = arith.constant 0 : i32
    %c0_i32_0 = arith.constant 0 : i32
    %c0_i32_1 = arith.constant 0 : i32
    return %c0_i32, %c0_i32_0 : i32, i32
  }
  func.func @transform_8(%arg0: i32) -> (i32, i32) {
    %c0_i32 = arith.constant 0 : i32
    %c0_i32_0 = arith.constant 0 : i32
    %c0_i32_1 = arith.constant 0 : i32
    return %c0_i32, %c0_i32_0 : i32, i32
  }
  func.func @transform_9(%arg0: i32) -> (i32, i32) {
    %c0_i32 = arith.constant 0 : i32
    %c0_i32_0 = arith.constant 0 : i32
    %c0_i32_1 = arith.constant 0 : i32
    return %c0_i32, %c0_i32_0 : i32, i32
  }
}

</mosaic_0001>

<llo_original>
// kernel: tpu_custom_call.1
$region0: #{tpu_custom_call.1}
  #allocation0 [shape = 'u32[]', space=smem, size = 0x4, offset = 0x4, fixed_abs, tag = 'smem constant byte address 0x4 - core index']
  #allocation1 [shape = 'u32[144,128]{1,0:T(1,128)}', space=vmem, size = 0x12000, scoped, tag = 'internal scratch']
  %s0 = inlined_call_operand.hbm [shape: f32[1,768], index: 0, kind: input, shape index: {}]
  %s1 = inlined_call_operand.hbm [shape: f32[768,768], index: 1, kind: input, shape index: {}]
  %s2 = inlined_call_operand.hbm [shape: f32[768,768], index: 2, kind: input, shape index: {}]
  %s3 = inlined_call_operand.hbm [shape: f32[768,768], index: 3, kind: input, shape index: {}]
  %s4 = inlined_call_operand.hbm [shape: f32[1,768], index: 4, kind: input, shape index: {}]
  %s5 = inlined_call_operand.hbm [shape: f32[768,768], index: 5, kind: input, shape index: {}]
  %s6 = inlined_call_operand.hbm [shape: f32[1,768], index: 6, kind: input, shape index: {}]
  %s7 = inlined_call_operand.hbm [shape: f32[768,768], index: 7, kind: input, shape index: {}]
  %s8 = inlined_call_operand.hbm [shape: f32[1,768], index: 8, kind: input, shape index: {}]
  %s9 = inlined_call_operand.hbm [shape: f32[1,768], index: 9, kind: output, shape index: {}]
  %s10 = sld [smem:[#allocation0]]
  $region82: #{tpu_custom_call.1} parent=0
    _
  %s12 = ssub.s32 1, %s10
  %s13 = scalar_select 0, %s12, %s10
  $region1: #{tpu_custom_call.1} parent=0
    #allocation2 [shape = 'u8[3072]{0}', space=vmem, size = 0xc00, scoped, tag = 'input window, operand 0, single buffered']
    #allocation3 [shape = 's32[1]{0}', space=sflag, size = 0x4, scoped, tag = 'scoped memory for tpu_custom_call.1']
    #allocation4 [shape = 's32[1]{0}', space=sflag, size = 0x4, scoped, tag = 'scoped memory for tpu_custom_call.1']
    #allocation5 [shape = 'u8[2359296]{0}', space=vmem, size = 0x240000, scoped, tag = 'input window, operand 1, single buffered']
    #allocation6 [shape = 's32[1]{0}', space=sflag, size = 0x4, scoped, tag = 'scoped memory for tpu_custom_call.1']
    #allocation7 [shape = 'u8[2359296]{0}', space=vmem, size = 0x240000, scoped, tag = 'input window, operand 2, single buffered']
    #allocation8 [shape = 'u8[2359296]{0}', space=vmem, size = 0x240000, scoped, tag = 'input window, operand 3, single buffered']
    #allocation9 [shape = 's32[1]{0}', space=sflag, size = 0x4, scoped, tag = 'scoped memory for tpu_custom_call.1']
    #allocation10 [shape = 'u8[3072]{0}', space=vmem, size = 0xc00, scoped, tag = 'input window, operand 4, single buffered']
    #allocation11 [shape = 'u8[2359296]{0}', space=vmem, size = 0x240000, scoped, tag = 'input window, operand 5, single buffered']
    #allocation12 [shape = 's32[1]{0}', space=sflag, size = 0x4, scoped, tag = 'scoped memory for tpu_custom_call.1']
    #allocation13 [shape = 'u8[3072]{0}', space=vmem, size = 0xc00, scoped, tag = 'input window, operand 6, single buffered']
    #allocation14 [shape = 'u8[2359296]{0}', space=vmem, size = 0x240000, scoped, tag = 'input window, operand 7, single buffered']
    #allocation15 [shape = 's32[1]{0}', space=sflag, size = 0x4, scoped, tag = 'scoped memory for tpu_custom_call.1']
    #allocation16 [shape = 'u8[3072]{0}', space=vmem, size = 0xc00, scoped, tag = 'input window, operand 8, single buffered']
    #allocation17 [shape = 'u8[3072]{0}', space=vmem, size = 0xc00, scoped, tag = 'output window, operand 0, single buffered']
    %14 = vsyncpa [#allocation3], 0
    %15 = vsyncpa [#allocation6], 0
    %16 = vsyncpa [#allocation9], 0
    %17 = vsyncpa [#allocation12], 0
    %18 = vsyncpa [#allocation15], 0
    %19 = vsyncpa [#allocation4], 0
    // Predicated region
    $region2: #{tpu_custom_call.1} parent=1 // pred_check
      _
    $region3: #{tpu_custom_call.1} parent=1 // pred_check_branch
      %21 = sbr.rel (0) target = $region5
    $region4: #{tpu_custom_call.1} parent=1 // pred_region
      %s23 = ssub.s32 96, 96
      %24 = vsyncadd [#allocation3], %s23
      %s26 = sshll.u32 [#allocation2], 4
      %s27 = int_to_ptr.vmem [resolvable:$true] %s26
      %29 = dma.hbm_to_vmem [thread:$0]  %s0, 96, %s27, [#allocation3]
    $region5: #{tpu_custom_call.1} parent=1 // pred_fallthru
      _
    // Predicated region
    $region6: #{tpu_custom_call.1} parent=1 // pred_check
      _
    $region7: #{tpu_custom_call.1} parent=1 // pred_check_branch
      %31 = sbr.rel (0) target = $region9
    $region8: #{tpu_custom_call.1} parent=1 // pred_region
      %s33 = ssub.s32 73728, 73728
      %34 = vsyncadd [#allocation6], %s33
      %s35 = sshll.u32 [#allocation5], 4
      %s36 = int_to_ptr.vmem [resolvable:$true] %s35
      %41 = dma.hbm_to_vmem [thread:$0]  %s1, 73728, %s36, [#allocation6], 768, 768, 48
    $region9: #{tpu_custom_call.1} parent=1 // pred_fallthru
      _
    // Predicated region
    $region10: #{tpu_custom_call.1} parent=1 // pred_check
      _
    $region11: #{tpu_custom_call.1} parent=1 // pred_check_branch
      %43 = sbr.rel (0) target = $region13
    $region12: #{tpu_custom_call.1} parent=1 // pred_region
      %s45 = ssub.s32 73728, 73728
      %46 = vsyncadd [#allocation6], %s45
      %s47 = sshll.u32 [#allocation7], 4
      %s48 = int_to_ptr.vmem [resolvable:$true] %s47
      %53 = dma.hbm_to_vmem [thread:$0]  %s2, 73728, %s48, [#allocation6], 768, 768, 48
    $region13: #{tpu_custom_call.1} parent=1 // pred_fallthru
      _
    // Predicated region
    $region14: #{tpu_custom_call.1} parent=1 // pred_check
      _
    $region15: #{tpu_custom_call.1} parent=1 // pred_check_branch
      %55 = sbr.rel (0) target = $region17
    $region16: #{tpu_custom_call.1} parent=1 // pred_region
      %s57 = ssub.s32 73728, 73728
      %58 = vsyncadd [#allocation9], %s57
      %s59 = sshll.u32 [#allocation8], 4
      %s60 = int_to_ptr.vmem [resolvable:$true] %s59
      %65 = dma.hbm_to_vmem [thread:$0]  %s3, 73728, %s60, [#allocation9], 768, 768, 48
    $region17: #{tpu_custom_call.1} parent=1 // pred_fallthru
      _
    // Predicated region
    $region18: #{tpu_custom_call.1} parent=1 // pred_check
      _
    $region19: #{tpu_custom_call.1} parent=1 // pred_check_branch
      %67 = sbr.rel (0) target = $region21
    $region20: #{tpu_custom_call.1} parent=1 // pred_region
      %s69 = ssub.s32 96, 96
      %70 = vsyncadd [#allocation9], %s69
      %s72 = sshll.u32 [#allocation10], 4
      %s73 = int_to_ptr.vmem [resolvable:$true] %s72
      %75 = dma.hbm_to_vmem [thread:$0]  %s4, 96, %s73, [#allocation9]
    $region21: #{tpu_custom_call.1} parent=1 // pred_fallthru
      _
    // Predicated region
    $region22: #{tpu_custom_call.1} parent=1 // pred_check
      _
    $region23: #{tpu_custom_call.1} parent=1 // pred_check_branch
      %77 = sbr.rel (0) target = $region25
    $region24: #{tpu_custom_call.1} parent=1 // pred_region
      %s79 = ssub.s32 73728, 73728
      %80 = vsyncadd [#allocation12], %s79
      %s81 = sshll.u32 [#allocation11], 4
      %s82 = int_to_ptr.vmem [resolvable:$true] %s81
      %87 = dma.hbm_to_vmem [thread:$0]  %s5, 73728, %s82, [#allocation12], 768, 768, 48
    $region25: #{tpu_custom_call.1} parent=1 // pred_fallthru
      _
    // Predicated region
    $region26: #{tpu_custom_call.1} parent=1 // pred_check
      _
    $region27: #{tpu_custom_call.1} parent=1 // pred_check_branch
      %89 = sbr.rel (0) target = $region29
    $region28: #{tpu_custom_call.1} parent=1 // pred_region
      %s91 = ssub.s32 96, 96
      %92 = vsyncadd [#allocation12], %s91
      %s94 = sshll.u32 [#allocation13], 4
      %s95 = int_to_ptr.vmem [resolvable:$true] %s94
      %97 = dma.hbm_to_vmem [thread:$0]  %s6, 96, %s95, [#allocation12]
    $region29: #{tpu_custom_call.1} parent=1 // pred_fallthru
      _
    // Predicated region
    $region30: #{tpu_custom_call.1} parent=1 // pred_check
      _
    $region31: #{tpu_custom_call.1} parent=1 // pred_check_branch
      %99 = sbr.rel (0) target = $region33
    $region32: #{tpu_custom_call.1} parent=1 // pred_region
      %s101 = ssub.s32 73728, 73728
      %102 = vsyncadd [#allocation15], %s101
      %s103 = sshll.u32 [#allocation14], 4
      %s104 = int_to_ptr.vmem [resolvable:$true] %s103
      %109 = dma.hbm_to_vmem [thread:$0]  %s7, 73728, %s104, [#allocation15], 768, 768, 48
    $region33: #{tpu_custom_call.1} parent=1 // pred_fallthru
      _
    // Predicated region
    $region34: #{tpu_custom_call.1} parent=1 // pred_check
      _
    $region35: #{tpu_custom_call.1} parent=1 // pred_check_branch
      %111 = sbr.rel (0) target = $region37
    $region36: #{tpu_custom_call.1} parent=1 // pred_region
      %s113 = ssub.s32 96, 96
      %114 = vsyncadd [#allocation15], %s113
      %s116 = sshll.u32 [#allocation16], 4
      %s117 = int_to_ptr.vmem [resolvable:$true] %s116
      %119 = dma.hbm_to_vmem [thread:$0]  %s8, 96, %s117, [#allocation15]
    $region37: #{tpu_custom_call.1} parent=1 // pred_fallthru
      _
    // Predicated region
    $region38: #{tpu_custom_call.1} parent=1 // pred_check
      _
    $region39: #{tpu_custom_call.1} parent=1 // pred_check_branch
      %121 = sbr.rel (0) target = $region41
    $region40: #{tpu_custom_call.1} parent=1 // pred_region
      %122 = dma.done [#allocation3], 96
    $region41: #{tpu_custom_call.1} parent=1 // pred_fallthru
      _
    // Predicated region
    $region42: #{tpu_custom_call.1} parent=1 // pred_check
      _
    $region43: #{tpu_custom_call.1} parent=1 // pred_check_branch
      %124 = sbr.rel (0) target = $region45
    $region44: #{tpu_custom_call.1} parent=1 // pred_region
      %125 = dma.done [#allocation6], 73728
    $region45: #{tpu_custom_call.1} parent=1 // pred_fallthru
      _
    // Predicated region
    $region46: #{tpu_custom_call.1} parent=1 // pred_check
      _
    $region47: #{tpu_custom_call.1} parent=1 // pred_check_branch
      %127 = sbr.rel (0) target = $region49
    $region48: #{tpu_custom_call.1} parent=1 // pred_region
      %128 = dma.done [#allocation6], 73728
    $region49: #{tpu_custom_call.1} parent=1 // pred_fallthru
      _
    // Predicated region
    $region50: #{tpu_custom_call.1} parent=1 // pred_check
      _
    $region51: #{tpu_custom_call.1} parent=1 // pred_check_branch
      %130 = sbr.rel (0) target = $region53
    $region52: #{tpu_custom_call.1} parent=1 // pred_region
      %131 = dma.done [#allocation9], 73728
    $region53: #{tpu_custom_call.1} parent=1 // pred_fallthru
      _
    // Predicated region
    $region54: #{tpu_custom_call.1} parent=1 // pred_check
      _
    $region55: #{tpu_custom_call.1} parent=1 // pred_check_branch
      %133 = sbr.rel (0) target = $region57
    $region56: #{tpu_custom_call.1} parent=1 // pred_region
      %134 = dma.done [#allocation9], 96
    $region57: #{tpu_custom_call.1} parent=1 // pred_fallthru
      _
    // Predicated region
    $region58: #{tpu_custom_call.1} parent=1 // pred_check
      _
    $region59: #{tpu_custom_call.1} parent=1 // pred_check_branch
      %136 = sbr.rel (0) target = $region61
    $region60: #{tpu_custom_call.1} parent=1 // pred_region
      %137 = dma.done [#allocation12], 73728
    $region61: #{tpu_custom_call.1} parent=1 // pred_fallthru
      _
    // Predicated region
    $region62: #{tpu_custom_call.1} parent=1 // pred_check
      _
    $region63: #{tpu_custom_call.1} parent=1 // pred_check_branch
      %139 = sbr.rel (0) target = $region65
    $region64: #{tpu_custom_call.1} parent=1 // pred_region
      %140 = dma.done [#allocation12], 96
    $region65: #{tpu_custom_call.1} parent=1 // pred_fallthru
      _
    // Predicated region
    $region66: #{tpu_custom_call.1} parent=1 // pred_check
      _
    $region67: #{tpu_custom_call.1} parent=1 // pred_check_branch
      %142 = sbr.rel (0) target = $region69
    $region68: #{tpu_custom_call.1} parent=1 // pred_region
      %143 = dma.done [#allocation15], 73728
    $region69: #{tpu_custom_call.1} parent=1 // pred_fallthru
      _
    // Predicated region
    $region70: #{tpu_custom_call.1} parent=1 // pred_check
      _
    $region71: #{tpu_custom_call.1} parent=1 // pred_check_branch
      %145 = sbr.rel (0) target = $region73
    $region72: #{tpu_custom_call.1} parent=1 // pred_region
      %146 = dma.done [#allocation15], 96
    $region73: #{tpu_custom_call.1} parent=1 // pred_fallthru
      _
    %v147 = vld [vmem:[#allocation2] sm:$0x3f]
    %v148 = vld [vmem:[#allocation8] sm:$0xff]
    %v149 = vld [vmem:[#allocation8 + $0x8] sm:$0xff]
    %v150 = vld [vmem:[#allocation8 + $0x10] sm:$0xff]
    %v151 = vld [vmem:[#allocation8 + $0x18] sm:$0xff]
    %v152 = vld [vmem:[#allocation8 + $0x20] sm:$0xff]
    %v153 = vld [vmem:[#allocation8 + $0x28] sm:$0xff]
    %v154 = vld [vmem:[#allocation8 + $0x30] sm:$0xff]
    %v155 = vld [vmem:[#allocation8 + $0x38] sm:$0xff]
    %v156 = vld [vmem:[#allocation8 + $0x40] sm:$0xff]
    %v157 = vld [vmem:[#allocation8 + $0x48] sm:$0xff]
    %v158 = vld [vmem:[#allocation8 + $0x50] sm:$0xff]
    %v159 = vld [vmem:[#allocation8 + $0x58] sm:$0xff]
    %v160 = vld [vmem:[#allocation8 + $0x60] sm:$0xff]
    %v161 = vld [vmem:[#allocation8 + $0x68] sm:$0xff]
    %v162 = vld [vmem:[#allocation8 + $0x70] sm:$0xff]
    %v163 = vld [vmem:[#allocation8 + $0x78] sm:$0xff]
    %v164 = vld [vmem:[#allocation8 + $0x80] sm:$0xff]
    %v165 = vld [vmem:[#allocation8 + $0x88] sm:$0xff]
    %v166 = vld [vmem:[#allocation8 + $0x90] sm:$0xff]
    %v167 = vld [vmem:[#allocation8 + $0x98] sm:$0xff]
    %v168 = vld [vmem:[#allocation8 + $0xa0] sm:$0xff]
    %v169 = vld [vmem:[#allocation8 + $0xa8] sm:$0xff]
    %v170 = vld [vmem:[#allocation8 + $0xb0] sm:$0xff]
    %v171 = vld [vmem:[#allocation8 + $0xb8] sm:$0xff]
    %v172 = vld [vmem:[#allocation8 + $0xc0] sm:$0xff]
    %v173 = vld [vmem:[#allocation8 + $0xc8] sm:$0xff]
    %v174 = vld [vmem:[#allocation8 + $0xd0] sm:$0xff]
    %v175 = vld [vmem:[#allocation8 + $0xd8] sm:$0xff]
    %v176 = vld [vmem:[#allocation8 + $0xe0] sm:$0xff]
    %v177 = vld [vmem:[#allocation8 + $0xe8] sm:$0xff]
    %v178 = vld [vmem:[#allocation8 + $0xf0] sm:$0xff]
    %v179 = vld [vmem:[#allocation8 + $0xf8] sm:$0xff]
    %v180 = vld [vmem:[#allocation8 + $0x100] sm:$0xff]
    %v181 = vld [vmem:[#allocation8 + $0x108] sm:$0xff]
    %v182 = vld [vmem:[#allocation8 + $0x110] sm:$0xff]
    %v183 = vld [vmem:[#allocation8 + $0x118] sm:$0xff]
    %v184 = vld [vmem:[#allocation8 + $0x120] sm:$0xff]
    %v185 = vld [vmem:[#allocation8 + $0x128] sm:$0xff]
    %v186 = vld [vmem:[#allocation8 + $0x130] sm:$0xff]
    %v187 = vld [vmem:[#allocation8 + $0x138] sm:$0xff]
    %v188 = vld [vmem:[#allocation8 + $0x140] sm:$0xff]
    %v189 = vld [vmem:[#allocation8 + $0x148] sm:$0xff]
    %v190 = vld [vmem:[#allocation8 + $0x150] sm:$0xff]
    %v191 = vld [vmem:[#allocation8 + $0x158] sm:$0xff]
    %v192 = vld [vmem:[#allocation8 + $0x160] sm:$0xff]
    %v193 = vld [vmem:[#allocation8 + $0x168] sm:$0xff]
    %v194 = vld [vmem:[#allocation8 + $0x170] sm:$0xff]
    %v195 = vld [vmem:[#allocation8 + $0x178] sm:$0xff]
    %v196 = vld [vmem:[#allocation8 + $0x180] sm:$0xff]
    %v197 = vld [vmem:[#allocation8 + $0x188] sm:$0xff]
    %v198 = vld [vmem:[#allocation8 + $0x190] sm:$0xff]
    %v199 = vld [vmem:[#allocation8 + $0x198] sm:$0xff]
    %v200 = vld [vmem:[#allocation8 + $0x1a0] sm:$0xff]
    %v201 = vld [vmem:[#allocation8 + $0x1a8] sm:$0xff]
    %v202 = vld [vmem:[#allocation8 + $0x1b0] sm:$0xff]
    %v203 = vld [vmem:[#allocation8 + $0x1b8] sm:$0xff]
    %v204 = vld [vmem:[#allocation8 + $0x1c0] sm:$0xff]
    %v205 = vld [vmem:[#allocation8 + $0x1c8] sm:$0xff]
    %v206 = vld [vmem:[#allocation8 + $0x1d0] sm:$0xff]
    %v207 = vld [vmem:[#allocation8 + $0x1d8] sm:$0xff]
    %v208 = vld [vmem:[#allocation8 + $0x1e0] sm:$0xff]
    %v209 = vld [vmem:[#allocation8 + $0x1e8] sm:$0xff]
    %v210 = vld [vmem:[#allocation8 + $0x1f0] sm:$0xff]
    %v211 = vld [vmem:[#allocation8 + $0x1f8] sm:$0xff]
    %v212 = vld [vmem:[#allocation8 + $0x200] sm:$0xff]
    %v213 = vld [vmem:[#allocation8 + $0x208] sm:$0xff]
    %v214 = vld [vmem:[#allocation8 + $0x210] sm:$0xff]
    %v215 = vld [vmem:[#allocation8 + $0x218] sm:$0xff]
    %v216 = vld [vmem:[#allocation8 + $0x220] sm:$0xff]
    %v217 = vld [vmem:[#allocation8 + $0x228] sm:$0xff]
    %v218 = vld [vmem:[#allocation8 + $0x230] sm:$0xff]
    %v219 = vld [vmem:[#allocation8 + $0x238] sm:$0xff]
    %v220 = vld [vmem:[#allocation8 + $0x240] sm:$0xff]
    %v221 = vld [vmem:[#allocation8 + $0x248] sm:$0xff]
    %v222 = vld [vmem:[#allocation8 + $0x250] sm:$0xff]
    %v223 = vld [vmem:[#allocation8 + $0x258] sm:$0xff]
    %v224 = vld [vmem:[#allocation8 + $0x260] sm:$0xff]
    %v225 = vld [vmem:[#allocation8 + $0x268] sm:$0xff]
    %v226 = vld [vmem:[#allocation8 + $0x270] sm:$0xff]
    %v227 = vld [vmem:[#allocation8 + $0x278] sm:$0xff]
    %v228 = vld [vmem:[#allocation8 + $0x280] sm:$0xff]
    %v229 = vld [vmem:[#allocation8 + $0x288] sm:$0xff]
    %v230 = vld [vmem:[#allocation8 + $0x290] sm:$0xff]
    %v231 = vld [vmem:[#allocation8 + $0x298] sm:$0xff]
    %v232 = vld [vmem:[#allocation8 + $0x2a0] sm:$0xff]
    %v233 = vld [vmem:[#allocation8 + $0x2a8] sm:$0xff]
    %v234 = vld [vmem:[#allocation8 + $0x2b0] sm:$0xff]
    %v235 = vld [vmem:[#allocation8 + $0x2b8] sm:$0xff]
    %v236 = vld [vmem:[#allocation8 + $0x2c0] sm:$0xff]
    %v237 = vld [vmem:[#allocation8 + $0x2c8] sm:$0xff]
    %v238 = vld [vmem:[#allocation8 + $0x2d0] sm:$0xff]
    %v239 = vld [vmem:[#allocation8 + $0x2d8] sm:$0xff]
    %v240 = vld [vmem:[#allocation8 + $0x2e0] sm:$0xff]
    %v241 = vld [vmem:[#allocation8 + $0x2e8] sm:$0xff]
    %v242 = vld [vmem:[#allocation8 + $0x2f0] sm:$0xff]
    %v243 = vld [vmem:[#allocation8 + $0x2f8] sm:$0xff]
    %v244 = vld [vmem:[#allocation8 + $0x300] sm:$0xff]
    %v245 = vld [vmem:[#allocation8 + $0x308] sm:$0xff]
    %v246 = vld [vmem:[#allocation8 + $0x310] sm:$0xff]
    %v247 = vld [vmem:[#allocation8 + $0x318] sm:$0xff]
    %v248 = vld [vmem:[#allocation8 + $0x320] sm:$0xff]
    %v249 = vld [vmem:[#allocation8 + $0x328] sm:$0xff]
    %v250 = vld [vmem:[#allocation8 + $0x330] sm:$0xff]
    %v251 = vld [vmem:[#allocation8 + $0x338] sm:$0xff]
    %v252 = vld [vmem:[#allocation8 + $0x340] sm:$0xff]
    %v253 = vld [vmem:[#allocation8 + $0x348] sm:$0xff]
    %v254 = vld [vmem:[#allocation8 + $0x350] sm:$0xff]
    %v255 = vld [vmem:[#allocation8 + $0x358] sm:$0xff]
    %v256 = vld [vmem:[#allocation8 + $0x360] sm:$0xff]
    %v257 = vld [vmem:[#allocation8 + $0x368] sm:$0xff]
    %v258 = vld [vmem:[#allocation8 + $0x370] sm:$0xff]
    %v259 = vld [vmem:[#allocation8 + $0x378] sm:$0xff]
    %v260 = vld [vmem:[#allocation8 + $0x380] sm:$0xff]
    %v261 = vld [vmem:[#allocation8 + $0x388] sm:$0xff]
    %v262 = vld [vmem:[#allocation8 + $0x390] sm:$0xff]
    %v263 = vld [vmem:[#allocation8 + $0x398] sm:$0xff]
    %v264 = vld [vmem:[#allocation8 + $0x3a0] sm:$0xff]
    %v265 = vld [vmem:[#allocation8 + $0x3a8] sm:$0xff]
    %v266 = vld [vmem:[#allocation8 + $0x3b0] sm:$0xff]
    %v267 = vld [vmem:[#allocation8 + $0x3b8] sm:$0xff]
    %v268 = vld [vmem:[#allocation8 + $0x3c0] sm:$0xff]
    %v269 = vld [vmem:[#allocation8 + $0x3c8] sm:$0xff]
    %v270 = vld [vmem:[#allocation8 + $0x3d0] sm:$0xff]
    %v271 = vld [vmem:[#allocation8 + $0x3d8] sm:$0xff]
    %v272 = vld [vmem:[#allocation8 + $0x3e0] sm:$0xff]
    %v273 = vld [vmem:[#allocation8 + $0x3e8] sm:$0xff]
    %v274 = vld [vmem:[#allocation8 + $0x3f0] sm:$0xff]
    %v275 = vld [vmem:[#allocation8 + $0x3f8] sm:$0xff]
    %v276 = vld [vmem:[#allocation8 + $0x400] sm:$0xff]
    %v277 = vld [vmem:[#allocation8 + $0x408] sm:$0xff]
    %v278 = vld [vmem:[#allocation8 + $0x410] sm:$0xff]
    %v279 = vld [vmem:[#allocation8 + $0x418] sm:$0xff]
    %v280 = vld [vmem:[#allocation8 + $0x420] sm:$0xff]
    %v281 = vld [vmem:[#allocation8 + $0x428] sm:$0xff]
    %v282 = vld [vmem:[#allocation8 + $0x430] sm:$0xff]
    %v283 = vld [vmem:[#allocation8 + $0x438] sm:$0xff]
    %v284 = vld [vmem:[#allocation8 + $0x440] sm:$0xff]
    %v285 = vld [vmem:[#allocation8 + $0x448] sm:$0xff]
    %v286 = vld [vmem:[#allocation8 + $0x450] sm:$0xff]
    %v287 = vld [vmem:[#allocation8 + $0x458] sm:$0xff]
    %v288 = vld [vmem:[#allocation8 + $0x460] sm:$0xff]
    %v289 = vld [vmem:[#allocation8 + $0x468] sm:$0xff]
    %v290 = vld [vmem:[#allocation8 + $0x470] sm:$0xff]
    %v291 = vld [vmem:[#allocation8 + $0x478] sm:$0xff]
    %v292 = vld [vmem:[#allocation8 + $0x480] sm:$0xff]
    %v293 = vld [vmem:[#allocation8 + $0x488] sm:$0xff]
    %v294 = vld [vmem:[#allocation8 + $0x490] sm:$0xff]
    %v295 = vld [vmem:[#allocation8 + $0x498] sm:$0xff]
    %v296 = vld [vmem:[#allocation8 + $0x4a0] sm:$0xff]
    %v297 = vld [vmem:[#allocation8 + $0x4a8] sm:$0xff]
    %v298 = vld [vmem:[#allocation8 + $0x4b0] sm:$0xff]
    %v299 = vld [vmem:[#allocation8 + $0x4b8] sm:$0xff]
    %v300 = vld [vmem:[#allocation8 + $0x4c0] sm:$0xff]
    %v301 = vld [vmem:[#allocation8 + $0x4c8] sm:$0xff]
    %v302 = vld [vmem:[#allocation8 + $0x4d0] sm:$0xff]
    %v303 = vld [vmem:[#allocation8 + $0x4d8] sm:$0xff]
    %v304 = vld [vmem:[#allocation8 + $0x4e0] sm:$0xff]
    %v305 = vld [vmem:[#allocation8 + $0x4e8] sm:$0xff]
    %v306 = vld [vmem:[#allocation8 + $0x4f0] sm:$0xff]
    %v307 = vld [vmem:[#allocation8 + $0x4f8] sm:$0xff]
    %v308 = vld [vmem:[#allocation8 + $0x500] sm:$0xff]
    %v309 = vld [vmem:[#allocation8 + $0x508] sm:$0xff]
    %v310 = vld [vmem:[#allocation8 + $0x510] sm:$0xff]
    %v311 = vld [vmem:[#allocation8 + $0x518] sm:$0xff]
    %v312 = vld [vmem:[#allocation8 + $0x520] sm:$0xff]
    %v313 = vld [vmem:[#allocation8 + $0x528] sm:$0xff]
    %v314 = vld [vmem:[#allocation8 + $0x530] sm:$0xff]
    %v315 = vld [vmem:[#allocation8 + $0x538] sm:$0xff]
    %v316 = vld [vmem:[#allocation8 + $0x540] sm:$0xff]
    %v317 = vld [vmem:[#allocation8 + $0x548] sm:$0xff]
    %v318 = vld [vmem:[#allocation8 + $0x550] sm:$0xff]
    %v319 = vld [vmem:[#allocation8 + $0x558] sm:$0xff]
    %v320 = vld [vmem:[#allocation8 + $0x560] sm:$0xff]
    %v321 = vld [vmem:[#allocation8 + $0x568] sm:$0xff]
    %v322 = vld [vmem:[#allocation8 + $0x570] sm:$0xff]
    %v323 = vld [vmem:[#allocation8 + $0x578] sm:$0xff]
    %v324 = vld [vmem:[#allocation8 + $0x580] sm:$0xff]
    %v325 = vld [vmem:[#allocation8 + $0x588] sm:$0xff]
    %v326 = vld [vmem:[#allocation8 + $0x590] sm:$0xff]
    %v327 = vld [vmem:[#allocation8 + $0x598] sm:$0xff]
    %v328 = vld [vmem:[#allocation8 + $0x5a0] sm:$0xff]
    %v329 = vld [vmem:[#allocation8 + $0x5a8] sm:$0xff]
    %v330 = vld [vmem:[#allocation8 + $0x5b0] sm:$0xff]
    %v331 = vld [vmem:[#allocation8 + $0x5b8] sm:$0xff]
    %v332 = vld [vmem:[#allocation8 + $0x5c0] sm:$0xff]
    %v333 = vld [vmem:[#allocation8 + $0x5c8] sm:$0xff]
    %v334 = vld [vmem:[#allocation8 + $0x5d0] sm:$0xff]
    %v335 = vld [vmem:[#allocation8 + $0x5d8] sm:$0xff]
    %v336 = vld [vmem:[#allocation8 + $0x5e0] sm:$0xff]
    %v337 = vld [vmem:[#allocation8 + $0x5e8] sm:$0xff]
    %v338 = vld [vmem:[#allocation8 + $0x5f0] sm:$0xff]
    %v339 = vld [vmem:[#allocation8 + $0x5f8] sm:$0xff]
    %v340 = vld [vmem:[#allocation8 + $0x600] sm:$0xff]
    %v341 = vld [vmem:[#allocation8 + $0x608] sm:$0xff]
    %v342 = vld [vmem:[#allocation8 + $0x610] sm:$0xff]
    %v343 = vld [vmem:[#allocation8 + $0x618] sm:$0xff]
    %v344 = vld [vmem:[#allocation8 + $0x620] sm:$0xff]
    %v345 = vld [vmem:[#allocation8 + $0x628] sm:$0xff]
    %v346 = vld [vmem:[#allocation8 + $0x630] sm:$0xff]
    %v347 = vld [vmem:[#allocation8 + $0x638] sm:$0xff]
    %v348 = vld [vmem:[#allocation8 + $0x640] sm:$0xff]
    %v349 = vld [vmem:[#allocation8 + $0x648] sm:$0xff]
    %v350 = vld [vmem:[#allocation8 + $0x650] sm:$0xff]
    %v351 = vld [vmem:[#allocation8 + $0x658] sm:$0xff]
    %v352 = vld [vmem:[#allocation8 + $0x660] sm:$0xff]
    %v353 = vld [vmem:[#allocation8 + $0x668] sm:$0xff]
    %v354 = vld [vmem:[#allocation8 + $0x670] sm:$0xff]
    %v355 = vld [vmem:[#allocation8 + $0x678] sm:$0xff]
    %v356 = vld [vmem:[#allocation8 + $0x680] sm:$0xff]
    %v357 = vld [vmem:[#allocation8 + $0x688] sm:$0xff]
    %v358 = vld [vmem:[#allocation8 + $0x690] sm:$0xff]
    %v359 = vld [vmem:[#allocation8 + $0x698] sm:$0xff]
    %v360 = vld [vmem:[#allocation8 + $0x6a0] sm:$0xff]
    %v361 = vld [vmem:[#allocation8 + $0x6a8] sm:$0xff]
    %v362 = vld [vmem:[#allocation8 + $0x6b0] sm:$0xff]
    %v363 = vld [vmem:[#allocation8 + $0x6b8] sm:$0xff]
    %v364 = vld [vmem:[#allocation8 + $0x6c0] sm:$0xff]
    %v365 = vld [vmem:[#allocation8 + $0x6c8] sm:$0xff]
    %v366 = vld [vmem:[#allocation8 + $0x6d0] sm:$0xff]
    %v367 = vld [vmem:[#allocation8 + $0x6d8] sm:$0xff]
    %v368 = vld [vmem:[#allocation8 + $0x6e0] sm:$0xff]
    %v369 = vld [vmem:[#allocation8 + $0x6e8] sm:$0xff]
    %v370 = vld [vmem:[#allocation8 + $0x6f0] sm:$0xff]
    %v371 = vld [vmem:[#allocation8 + $0x6f8] sm:$0xff]
    %v372 = vld [vmem:[#allocation8 + $0x700] sm:$0xff]
    %v373 = vld [vmem:[#allocation8 + $0x708] sm:$0xff]
    %v374 = vld [vmem:[#allocation8 + $0x710] sm:$0xff]
    %v375 = vld [vmem:[#allocation8 + $0x718] sm:$0xff]
    %v376 = vld [vmem:[#allocation8 + $0x720] sm:$0xff]
    %v377 = vld [vmem:[#allocation8 + $0x728] sm:$0xff]
    %v378 = vld [vmem:[#allocation8 + $0x730] sm:$0xff]
    %v379 = vld [vmem:[#allocation8 + $0x738] sm:$0xff]
    %v380 = vld [vmem:[#allocation8 + $0x740] sm:$0xff]
    %v381 = vld [vmem:[#allocation8 + $0x748] sm:$0xff]
    %v382 = vld [vmem:[#allocation8 + $0x750] sm:$0xff]
    %v383 = vld [vmem:[#allocation8 + $0x758] sm:$0xff]
    %v384 = vld [vmem:[#allocation8 + $0x760] sm:$0xff]
    %v385 = vld [vmem:[#allocation8 + $0x768] sm:$0xff]
    %v386 = vld [vmem:[#allocation8 + $0x770] sm:$0xff]
    %v387 = vld [vmem:[#allocation8 + $0x778] sm:$0xff]
    %v388 = vld [vmem:[#allocation8 + $0x780] sm:$0xff]
    %v389 = vld [vmem:[#allocation8 + $0x788] sm:$0xff]
    %v390 = vld [vmem:[#allocation8 + $0x790] sm:$0xff]
    %v391 = vld [vmem:[#allocation8 + $0x798] sm:$0xff]
    %v392 = vld [vmem:[#allocation8 + $0x7a0] sm:$0xff]
    %v393 = vld [vmem:[#allocation8 + $0x7a8] sm:$0xff]
    %v394 = vld [vmem:[#allocation8 + $0x7b0] sm:$0xff]
    %v395 = vld [vmem:[#allocation8 + $0x7b8] sm:$0xff]
    %v396 = vld [vmem:[#allocation8 + $0x7c0] sm:$0xff]
    %v397 = vld [vmem:[#allocation8 + $0x7c8] sm:$0xff]
    %v398 = vld [vmem:[#allocation8 + $0x7d0] sm:$0xff]
    %v399 = vld [vmem:[#allocation8 + $0x7d8] sm:$0xff]
    %v400 = vld [vmem:[#allocation8 + $0x7e0] sm:$0xff]
    %v401 = vld [vmem:[#allocation8 + $0x7e8] sm:$0xff]
    %v402 = vld [vmem:[#allocation8 + $0x7f0] sm:$0xff]
    %v403 = vld [vmem:[#allocation8 + $0x7f8] sm:$0xff]
    %v404 = vld [vmem:[#allocation8 + $0x800] sm:$0xff]
    %v405 = vld [vmem:[#allocation8 + $0x808] sm:$0xff]
    %v406 = vld [vmem:[#allocation8 + $0x810] sm:$0xff]
    %v407 = vld [vmem:[#allocation8 + $0x818] sm:$0xff]
    %v408 = vld [vmem:[#allocation8 + $0x820] sm:$0xff]
    %v409 = vld [vmem:[#allocation8 + $0x828] sm:$0xff]
    %v410 = vld [vmem:[#allocation8 + $0x830] sm:$0xff]
    %v411 = vld [vmem:[#allocation8 + $0x838] sm:$0xff]
    %v412 = vld [vmem:[#allocation8 + $0x840] sm:$0xff]
    %v413 = vld [vmem:[#allocation8 + $0x848] sm:$0xff]
    %v414 = vld [vmem:[#allocation8 + $0x850] sm:$0xff]
    %v415 = vld [vmem:[#allocation8 + $0x858] sm:$0xff]
    %v416 = vld [vmem:[#allocation8 + $0x860] sm:$0xff]
    %v417 = vld [vmem:[#allocation8 + $0x868] sm:$0xff]
    %v418 = vld [vmem:[#allocation8 + $0x870] sm:$0xff]
    %v419 = vld [vmem:[#allocation8 + $0x878] sm:$0xff]
    %v420 = vld [vmem:[#allocation8 + $0x880] sm:$0xff]
    %v421 = vld [vmem:[#allocation8 + $0x888] sm:$0xff]
    %v422 = vld [vmem:[#allocation8 + $0x890] sm:$0xff]
    %v423 = vld [vmem:[#allocation8 + $0x898] sm:$0xff]
    %v424 = vld [vmem:[#allocation8 + $0x8a0] sm:$0xff]
    %v425 = vld [vmem:[#allocation8 + $0x8a8] sm:$0xff]
    %v426 = vld [vmem:[#allocation8 + $0x8b0] sm:$0xff]
    %v427 = vld [vmem:[#allocation8 + $0x8b8] sm:$0xff]
    %v428 = vld [vmem:[#allocation8 + $0x8c0] sm:$0xff]
    %v429 = vld [vmem:[#allocation8 + $0x8c8] sm:$0xff]
    %v430 = vld [vmem:[#allocation8 + $0x8d0] sm:$0xff]
    %v431 = vld [vmem:[#allocation8 + $0x8d8] sm:$0xff]
    %v432 = vld [vmem:[#allocation8 + $0x8e0] sm:$0xff]
    %v433 = vld [vmem:[#allocation8 + $0x8e8] sm:$0xff]
    %v434 = vld [vmem:[#allocation8 + $0x8f0] sm:$0xff]
    %v435 = vld [vmem:[#allocation8 + $0x8f8] sm:$0xff]
    %v436 = vld [vmem:[#allocation8 + $0x900] sm:$0xff]
    %v437 = vld [vmem:[#allocation8 + $0x908] sm:$0xff]
    %v438 = vld [vmem:[#allocation8 + $0x910] sm:$0xff]
    %v439 = vld [vmem:[#allocation8 + $0x918] sm:$0xff]
    %v440 = vld [vmem:[#allocation8 + $0x920] sm:$0xff]
    %v441 = vld [vmem:[#allocation8 + $0x928] sm:$0xff]
    %v442 = vld [vmem:[#allocation8 + $0x930] sm:$0xff]
    %v443 = vld [vmem:[#allocation8 + $0x938] sm:$0xff]
    %v444 = vld [vmem:[#allocation8 + $0x940] sm:$0xff]
    %v445 = vld [vmem:[#allocation8 + $0x948] sm:$0xff]
    %v446 = vld [vmem:[#allocation8 + $0x950] sm:$0xff]
    %v447 = vld [vmem:[#allocation8 + $0x958] sm:$0xff]
    %v448 = vld [vmem:[#allocation8 + $0x960] sm:$0xff]
    %v449 = vld [vmem:[#allocation8 + $0x968] sm:$0xff]
    %v450 = vld [vmem:[#allocation8 + $0x970] sm:$0xff]
    %v451 = vld [vmem:[#allocation8 + $0x978] sm:$0xff]
    %v452 = vld [vmem:[#allocation8 + $0x980] sm:$0xff]
    %v453 = vld [vmem:[#allocation8 + $0x988] sm:$0xff]
    %v454 = vld [vmem:[#allocation8 + $0x990] sm:$0xff]
    %v455 = vld [vmem:[#allocation8 + $0x998] sm:$0xff]
    %v456 = vld [vmem:[#allocation8 + $0x9a0] sm:$0xff]
    %v457 = vld [vmem:[#allocation8 + $0x9a8] sm:$0xff]
    %v458 = vld [vmem:[#allocation8 + $0x9b0] sm:$0xff]
    %v459 = vld [vmem:[#allocation8 + $0x9b8] sm:$0xff]
    %v460 = vld [vmem:[#allocation8 + $0x9c0] sm:$0xff]
    %v461 = vld [vmem:[#allocation8 + $0x9c8] sm:$0xff]
    %v462 = vld [vmem:[#allocation8 + $0x9d0] sm:$0xff]
    %v463 = vld [vmem:[#allocation8 + $0x9d8] sm:$0xff]
    %v464 = vld [vmem:[#allocation8 + $0x9e0] sm:$0xff]
    %v465 = vld [vmem:[#allocation8 + $0x9e8] sm:$0xff]
    %v466 = vld [vmem:[#allocation8 + $0x9f0] sm:$0xff]
    %v467 = vld [vmem:[#allocation8 + $0x9f8] sm:$0xff]
    %v468 = vld [vmem:[#allocation8 + $0xa00] sm:$0xff]
    %v469 = vld [vmem:[#allocation8 + $0xa08] sm:$0xff]
    %v470 = vld [vmem:[#allocation8 + $0xa10] sm:$0xff]
    %v471 = vld [vmem:[#allocation8 + $0xa18] sm:$0xff]
    %v472 = vld [vmem:[#allocation8 + $0xa20] sm:$0xff]
    %v473 = vld [vmem:[#allocation8 + $0xa28] sm:$0xff]
    %v474 = vld [vmem:[#allocation8 + $0xa30] sm:$0xff]
    %v475 = vld [vmem:[#allocation8 + $0xa38] sm:$0xff]
    %v476 = vld [vmem:[#allocation8 + $0xa40] sm:$0xff]
    %v477 = vld [vmem:[#allocation8 + $0xa48] sm:$0xff]
    %v478 = vld [vmem:[#allocation8 + $0xa50] sm:$0xff]
    %v479 = vld [vmem:[#allocation8 + $0xa58] sm:$0xff]
    %v480 = vld [vmem:[#allocation8 + $0xa60] sm:$0xff]
    %v481 = vld [vmem:[#allocation8 + $0xa68] sm:$0xff]
    %v482 = vld [vmem:[#allocation8 + $0xa70] sm:$0xff]
    %v483 = vld [vmem:[#allocation8 + $0xa78] sm:$0xff]
    %v484 = vld [vmem:[#allocation8 + $0xa80] sm:$0xff]
    %v485 = vld [vmem:[#allocation8 + $0xa88] sm:$0xff]
    %v486 = vld [vmem:[#allocation8 + $0xa90] sm:$0xff]
    %v487 = vld [vmem:[#allocation8 + $0xa98] sm:$0xff]
    %v488 = vld [vmem:[#allocation8 + $0xaa0] sm:$0xff]
    %v489 = vld [vmem:[#allocation8 + $0xaa8] sm:$0xff]
    %v490 = vld [vmem:[#allocation8 + $0xab0] sm:$0xff]
    %v491 = vld [vmem:[#allocation8 + $0xab8] sm:$0xff]
    %v492 = vld [vmem:[#allocation8 + $0xac0] sm:$0xff]
    %v493 = vld [vmem:[#allocation8 + $0xac8] sm:$0xff]
    %v494 = vld [vmem:[#allocation8 + $0xad0] sm:$0xff]
    %v495 = vld [vmem:[#allocation8 + $0xad8] sm:$0xff]
    %v496 = vld [vmem:[#allocation8 + $0xae0] sm:$0xff]
    %v497 = vld [vmem:[#allocation8 + $0xae8] sm:$0xff]
    %v498 = vld [vmem:[#allocation8 + $0xaf0] sm:$0xff]
    %v499 = vld [vmem:[#allocation8 + $0xaf8] sm:$0xff]
    %v500 = vld [vmem:[#allocation8 + $0xb00] sm:$0xff]
    %v501 = vld [vmem:[#allocation8 + $0xb08] sm:$0xff]
    %v502 = vld [vmem:[#allocation8 + $0xb10] sm:$0xff]
    %v503 = vld [vmem:[#allocation8 + $0xb18] sm:$0xff]
    %v504 = vld [vmem:[#allocation8 + $0xb20] sm:$0xff]
    %v505 = vld [vmem:[#allocation8 + $0xb28] sm:$0xff]
    %v506 = vld [vmem:[#allocation8 + $0xb30] sm:$0xff]
    %v507 = vld [vmem:[#allocation8 + $0xb38] sm:$0xff]
    %v508 = vld [vmem:[#allocation8 + $0xb40] sm:$0xff]
    %v509 = vld [vmem:[#allocation8 + $0xb48] sm:$0xff]
    %v510 = vld [vmem:[#allocation8 + $0xb50] sm:$0xff]
    %v511 = vld [vmem:[#allocation8 + $0xb58] sm:$0xff]
    %v512 = vld [vmem:[#allocation8 + $0xb60] sm:$0xff]
    %v513 = vld [vmem:[#allocation8 + $0xb68] sm:$0xff]
    %v514 = vld [vmem:[#allocation8 + $0xb70] sm:$0xff]
    %v515 = vld [vmem:[#allocation8 + $0xb78] sm:$0xff]
    %v516 = vld [vmem:[#allocation8 + $0xb80] sm:$0xff]
    %v517 = vld [vmem:[#allocation8 + $0xb88] sm:$0xff]
    %v518 = vld [vmem:[#allocation8 + $0xb90] sm:$0xff]
    %v519 = vld [vmem:[#allocation8 + $0xb98] sm:$0xff]
    %v520 = vld [vmem:[#allocation8 + $0xba0] sm:$0xff]
    %v521 = vld [vmem:[#allocation8 + $0xba8] sm:$0xff]
    %v522 = vld [vmem:[#allocation8 + $0xbb0] sm:$0xff]
    %v523 = vld [vmem:[#allocation8 + $0xbb8] sm:$0xff]
    %v524 = vld [vmem:[#allocation8 + $0xbc0] sm:$0xff]
    %v525 = vld [vmem:[#allocation8 + $0xbc8] sm:$0xff]
    %v526 = vld [vmem:[#allocation8 + $0xbd0] sm:$0xff]
    %v527 = vld [vmem:[#allocation8 + $0xbd8] sm:$0xff]
    %v528 = vld [vmem:[#allocation8 + $0xbe0] sm:$0xff]
    %v529 = vld [vmem:[#allocation8 + $0xbe8] sm:$0xff]
    %v530 = vld [vmem:[#allocation8 + $0xbf0] sm:$0xff]
    %v531 = vld [vmem:[#allocation8 + $0xbf8] sm:$0xff]
    %v532 = vld [vmem:[#allocation8 + $0xc00] sm:$0xff]
    %v533 = vld [vmem:[#allocation8 + $0xc08] sm:$0xff]
    %v534 = vld [vmem:[#allocation8 + $0xc10] sm:$0xff]
    %v535 = vld [vmem:[#allocation8 + $0xc18] sm:$0xff]
    %v536 = vld [vmem:[#allocation8 + $0xc20] sm:$0xff]
    %v537 = vld [vmem:[#allocation8 + $0xc28] sm:$0xff]
    %v538 = vld [vmem:[#allocation8 + $0xc30] sm:$0xff]
    %v539 = vld [vmem:[#allocation8 + $0xc38] sm:$0xff]
    %v540 = vld [vmem:[#allocation8 + $0xc40] sm:$0xff]
    %v541 = vld [vmem:[#allocation8 + $0xc48] sm:$0xff]
    %v542 = vld [vmem:[#allocation8 + $0xc50] sm:$0xff]
    %v543 = vld [vmem:[#allocation8 + $0xc58] sm:$0xff]
    %v544 = vld [vmem:[#allocation8 + $0xc60] sm:$0xff]
    %v545 = vld [vmem:[#allocation8 + $0xc68] sm:$0xff]
    %v546 = vld [vmem:[#allocation8 + $0xc70] sm:$0xff]
    %v547 = vld [vmem:[#allocation8 + $0xc78] sm:$0xff]
    %v548 = vld [vmem:[#allocation8 + $0xc80] sm:$0xff]
    %v549 = vld [vmem:[#allocation8 + $0xc88] sm:$0xff]
    %v550 = vld [vmem:[#allocation8 + $0xc90] sm:$0xff]
    %v551 = vld [vmem:[#allocation8 + $0xc98] sm:$0xff]
    %v552 = vld [vmem:[#allocation8 + $0xca0] sm:$0xff]
    %v553 = vld [vmem:[#allocation8 + $0xca8] sm:$0xff]
    %v554 = vld [vmem:[#allocation8 + $0xcb0] sm:$0xff]
    %v555 = vld [vmem:[#allocation8 + $0xcb8] sm:$0xff]
    %v556 = vld [vmem:[#allocation8 + $0xcc0] sm:$0xff]
    %v557 = vld [vmem:[#allocation8 + $0xcc8] sm:$0xff]
    %v558 = vld [vmem:[#allocation8 + $0xcd0] sm:$0xff]
    %v559 = vld [vmem:[#allocation8 + $0xcd8] sm:$0xff]
    %v560 = vld [vmem:[#allocation8 + $0xce0] sm:$0xff]
    %v561 = vld [vmem:[#allocation8 + $0xce8] sm:$0xff]
    %v562 = vld [vmem:[#allocation8 + $0xcf0] sm:$0xff]
    %v563 = vld [vmem:[#allocation8 + $0xcf8] sm:$0xff]
    %v564 = vld [vmem:[#allocation8 + $0xd00] sm:$0xff]
    %v565 = vld [vmem:[#allocation8 + $0xd08] sm:$0xff]
    %v566 = vld [vmem:[#allocation8 + $0xd10] sm:$0xff]
    %v567 = vld [vmem:[#allocation8 + $0xd18] sm:$0xff]
    %v568 = vld [vmem:[#allocation8 + $0xd20] sm:$0xff]
    %v569 = vld [vmem:[#allocation8 + $0xd28] sm:$0xff]
    %v570 = vld [vmem:[#allocation8 + $0xd30] sm:$0xff]
    %v571 = vld [vmem:[#allocation8 + $0xd38] sm:$0xff]
    %v572 = vld [vmem:[#allocation8 + $0xd40] sm:$0xff]
    %v573 = vld [vmem:[#allocation8 + $0xd48] sm:$0xff]
    %v574 = vld [vmem:[#allocation8 + $0xd50] sm:$0xff]
    %v575 = vld [vmem:[#allocation8 + $0xd58] sm:$0xff]
    %v576 = vld [vmem:[#allocation8 + $0xd60] sm:$0xff]
    %v577 = vld [vmem:[#allocation8 + $0xd68] sm:$0xff]
    %v578 = vld [vmem:[#allocation8 + $0xd70] sm:$0xff]
    %v579 = vld [vmem:[#allocation8 + $0xd78] sm:$0xff]
    %v580 = vld [vmem:[#allocation8 + $0xd80] sm:$0xff]
    %v581 = vld [vmem:[#allocation8 + $0xd88] sm:$0xff]
    %v582 = vld [vmem:[#allocation8 + $0xd90] sm:$0xff]
    %v583 = vld [vmem:[#allocation8 + $0xd98] sm:$0xff]
    %v584 = vld [vmem:[#allocation8 + $0xda0] sm:$0xff]
    %v585 = vld [vmem:[#allocation8 + $0xda8] sm:$0xff]
    %v586 = vld [vmem:[#allocation8 + $0xdb0] sm:$0xff]
    %v587 = vld [vmem:[#allocation8 + $0xdb8] sm:$0xff]
    %v588 = vld [vmem:[#allocation8 + $0xdc0] sm:$0xff]
    %v589 = vld [vmem:[#allocation8 + $0xdc8] sm:$0xff]
    %v590 = vld [vmem:[#allocation8 + $0xdd0] sm:$0xff]
    %v591 = vld [vmem:[#allocation8 + $0xdd8] sm:$0xff]
    %v592 = vld [vmem:[#allocation8 + $0xde0] sm:$0xff]
    %v593 = vld [vmem:[#allocation8 + $0xde8] sm:$0xff]
    %v594 = vld [vmem:[#allocation8 + $0xdf0] sm:$0xff]
    %v595 = vld [vmem:[#allocation8 + $0xdf8] sm:$0xff]
    %v596 = vld [vmem:[#allocation8 + $0xe00] sm:$0xff]
    %v597 = vld [vmem:[#allocation8 + $0xe08] sm:$0xff]
    %v598 = vld [vmem:[#allocation8 + $0xe10] sm:$0xff]
    %v599 = vld [vmem:[#allocation8 + $0xe18] sm:$0xff]
    %v600 = vld [vmem:[#allocation8 + $0xe20] sm:$0xff]
    %v601 = vld [vmem:[#allocation8 + $0xe28] sm:$0xff]
    %v602 = vld [vmem:[#allocation8 + $0xe30] sm:$0xff]
    %v603 = vld [vmem:[#allocation8 + $0xe38] sm:$0xff]
    %v604 = vld [vmem:[#allocation8 + $0xe40] sm:$0xff]
    %v605 = vld [vmem:[#allocation8 + $0xe48] sm:$0xff]
    %v606 = vld [vmem:[#allocation8 + $0xe50] sm:$0xff]
    %v607 = vld [vmem:[#allocation8 + $0xe58] sm:$0xff]
    %v608 = vld [vmem:[#allocation8 + $0xe60] sm:$0xff]
    %v609 = vld [vmem:[#allocation8 + $0xe68] sm:$0xff]
    %v610 = vld [vmem:[#allocation8 + $0xe70] sm:$0xff]
    %v611 = vld [vmem:[#allocation8 + $0xe78] sm:$0xff]
    %v612 = vld [vmem:[#allocation8 + $0xe80] sm:$0xff]
    %v613 = vld [vmem:[#allocation8 + $0xe88] sm:$0xff]
    %v614 = vld [vmem:[#allocation8 + $0xe90] sm:$0xff]
    %v615 = vld [vmem:[#allocation8 + $0xe98] sm:$0xff]
    %v616 = vld [vmem:[#allocation8 + $0xea0] sm:$0xff]
    %v617 = vld [vmem:[#allocation8 + $0xea8] sm:$0xff]
    %v618 = vld [vmem:[#allocation8 + $0xeb0] sm:$0xff]
    %v619 = vld [vmem:[#allocation8 + $0xeb8] sm:$0xff]
    %v620 = vld [vmem:[#allocation8 + $0xec0] sm:$0xff]
    %v621 = vld [vmem:[#allocation8 + $0xec8] sm:$0xff]
    %v622 = vld [vmem:[#allocation8 + $0xed0] sm:$0xff]
    %v623 = vld [vmem:[#allocation8 + $0xed8] sm:$0xff]
    %v624 = vld [vmem:[#allocation8 + $0xee0] sm:$0xff]
    %v625 = vld [vmem:[#allocation8 + $0xee8] sm:$0xff]
    %v626 = vld [vmem:[#allocation8 + $0xef0] sm:$0xff]
    %v627 = vld [vmem:[#allocation8 + $0xef8] sm:$0xff]
    %v628 = vld [vmem:[#allocation8 + $0xf00] sm:$0xff]
    %v629 = vld [vmem:[#allocation8 + $0xf08] sm:$0xff]
    %v630 = vld [vmem:[#allocation8 + $0xf10] sm:$0xff]
    %v631 = vld [vmem:[#allocation8 + $0xf18] sm:$0xff]
    %v632 = vld [vmem:[#allocation8 + $0xf20] sm:$0xff]
    %v633 = vld [vmem:[#allocation8 + $0xf28] sm:$0xff]
    %v634 = vld [vmem:[#allocation8 + $0xf30] sm:$0xff]
    %v635 = vld [vmem:[#allocation8 + $0xf38] sm:$0xff]
    %v636 = vld [vmem:[#allocation8 + $0xf40] sm:$0xff]
    %v637 = vld [vmem:[#allocation8 + $0xf48] sm:$0xff]
    %v638 = vld [vmem:[#allocation8 + $0xf50] sm:$0xff]
    %v639 = vld [vmem:[#allocation8 + $0xf58] sm:$0xff]
    %v640 = vld [vmem:[#allocation8 + $0xf60] sm:$0xff]
    %v641 = vld [vmem:[#allocation8 + $0xf68] sm:$0xff]
    %v642 = vld [vmem:[#allocation8 + $0xf70] sm:$0xff]
    %v643 = vld [vmem:[#allocation8 + $0xf78] sm:$0xff]
    %v644 = vld [vmem:[#allocation8 + $0xf80] sm:$0xff]
    %v645 = vld [vmem:[#allocation8 + $0xf88] sm:$0xff]
    %v646 = vld [vmem:[#allocation8 + $0xf90] sm:$0xff]
    %v647 = vld [vmem:[#allocation8 + $0xf98] sm:$0xff]
    %v648 = vld [vmem:[#allocation8 + $0xfa0] sm:$0xff]
    %v649 = vld [vmem:[#allocation8 + $0xfa8] sm:$0xff]
    %v650 = vld [vmem:[#allocation8 + $0xfb0] sm:$0xff]
    %v651 = vld [vmem:[#allocation8 + $0xfb8] sm:$0xff]
    %v652 = vld [vmem:[#allocation8 + $0xfc0] sm:$0xff]
    %v653 = vld [vmem:[#allocation8 + $0xfc8] sm:$0xff]
    %v654 = vld [vmem:[#allocation8 + $0xfd0] sm:$0xff]
    %v655 = vld [vmem:[#allocation8 + $0xfd8] sm:$0xff]
    %v656 = vld [vmem:[#allocation8 + $0xfe0] sm:$0xff]
    %v657 = vld [vmem:[#allocation8 + $0xfe8] sm:$0xff]
    %v658 = vld [vmem:[#allocation8 + $0xff0] sm:$0xff]
    %v659 = vld [vmem:[#allocation8 + $0xff8] sm:$0xff]
    %v660 = vld [vmem:[#allocation8 + $0x1000] sm:$0xff]
    %v661 = vld [vmem:[#allocation8 + $0x1008] sm:$0xff]
    %v662 = vld [vmem:[#allocation8 + $0x1010] sm:$0xff]
    %v663 = vld [vmem:[#allocation8 + $0x1018] sm:$0xff]
    %v664 = vld [vmem:[#allocation8 + $0x1020] sm:$0xff]
    %v665 = vld [vmem:[#allocation8 + $0x1028] sm:$0xff]
    %v666 = vld [vmem:[#allocation8 + $0x1030] sm:$0xff]
    %v667 = vld [vmem:[#allocation8 + $0x1038] sm:$0xff]
    %v668 = vld [vmem:[#allocation8 + $0x1040] sm:$0xff]
    %v669 = vld [vmem:[#allocation8 + $0x1048] sm:$0xff]
    %v670 = vld [vmem:[#allocation8 + $0x1050] sm:$0xff]
    %v671 = vld [vmem:[#allocation8 + $0x1058] sm:$0xff]
    %v672 = vld [vmem:[#allocation8 + $0x1060] sm:$0xff]
    %v673 = vld [vmem:[#allocation8 + $0x1068] sm:$0xff]
    %v674 = vld [vmem:[#allocation8 + $0x1070] sm:$0xff]
    %v675 = vld [vmem:[#allocation8 + $0x1078] sm:$0xff]
    %v676 = vld [vmem:[#allocation8 + $0x1080] sm:$0xff]
    %v677 = vld [vmem:[#allocation8 + $0x1088] sm:$0xff]
    %v678 = vld [vmem:[#allocation8 + $0x1090] sm:$0xff]
    %v679 = vld [vmem:[#allocation8 + $0x1098] sm:$0xff]
    %v680 = vld [vmem:[#allocation8 + $0x10a0] sm:$0xff]
    %v681 = vld [vmem:[#allocation8 + $0x10a8] sm:$0xff]
    %v682 = vld [vmem:[#allocation8 + $0x10b0] sm:$0xff]
    %v683 = vld [vmem:[#allocation8 + $0x10b8] sm:$0xff]
    %v684 = vld [vmem:[#allocation8 + $0x10c0] sm:$0xff]
    %v685 = vld [vmem:[#allocation8 + $0x10c8] sm:$0xff]
    %v686 = vld [vmem:[#allocation8 + $0x10d0] sm:$0xff]
    %v687 = vld [vmem:[#allocation8 + $0x10d8] sm:$0xff]
    %v688 = vld [vmem:[#allocation8 + $0x10e0] sm:$0xff]
    %v689 = vld [vmem:[#allocation8 + $0x10e8] sm:$0xff]
    %v690 = vld [vmem:[#allocation8 + $0x10f0] sm:$0xff]
    %v691 = vld [vmem:[#allocation8 + $0x10f8] sm:$0xff]
    %v692 = vld [vmem:[#allocation8 + $0x1100] sm:$0xff]
    %v693 = vld [vmem:[#allocation8 + $0x1108] sm:$0xff]
    %v694 = vld [vmem:[#allocation8 + $0x1110] sm:$0xff]
    %v695 = vld [vmem:[#allocation8 + $0x1118] sm:$0xff]
    %v696 = vld [vmem:[#allocation8 + $0x1120] sm:$0xff]
    %v697 = vld [vmem:[#allocation8 + $0x1128] sm:$0xff]
    %v698 = vld [vmem:[#allocation8 + $0x1130] sm:$0xff]
    %v699 = vld [vmem:[#allocation8 + $0x1138] sm:$0xff]
    %v700 = vld [vmem:[#allocation8 + $0x1140] sm:$0xff]
    %v701 = vld [vmem:[#allocation8 + $0x1148] sm:$0xff]
    %v702 = vld [vmem:[#allocation8 + $0x1150] sm:$0xff]
    %v703 = vld [vmem:[#allocation8 + $0x1158] sm:$0xff]
    %v704 = vld [vmem:[#allocation8 + $0x1160] sm:$0xff]
    %v705 = vld [vmem:[#allocation8 + $0x1168] sm:$0xff]
    %v706 = vld [vmem:[#allocation8 + $0x1170] sm:$0xff]
    %v707 = vld [vmem:[#allocation8 + $0x1178] sm:$0xff]
    %v708 = vld [vmem:[#allocation8 + $0x1180] sm:$0xff]
    %v709 = vld [vmem:[#allocation8 + $0x1188] sm:$0xff]
    %v710 = vld [vmem:[#allocation8 + $0x1190] sm:$0xff]
    %v711 = vld [vmem:[#allocation8 + $0x1198] sm:$0xff]
    %v712 = vld [vmem:[#allocation8 + $0x11a0] sm:$0xff]
    %v713 = vld [vmem:[#allocation8 + $0x11a8] sm:$0xff]
    %v714 = vld [vmem:[#allocation8 + $0x11b0] sm:$0xff]
    %v715 = vld [vmem:[#allocation8 + $0x11b8] sm:$0xff]
    %v716 = vld [vmem:[#allocation8 + $0x11c0] sm:$0xff]
    %v717 = vld [vmem:[#allocation8 + $0x11c8] sm:$0xff]
    %v718 = vld [vmem:[#allocation8 + $0x11d0] sm:$0xff]
    %v719 = vld [vmem:[#allocation8 + $0x11d8] sm:$0xff]
    %v720 = vld [vmem:[#allocation8 + $0x11e0] sm:$0xff]
    %v721 = vld [vmem:[#allocation8 + $0x11e8] sm:$0xff]
    %v722 = vld [vmem:[#allocation8 + $0x11f0] sm:$0xff]
    %v723 = vld [vmem:[#allocation8 + $0x11f8] sm:$0xff]
    %v724 = vld [vmem:[#allocation10] sm:$0x3f]
    %v726 = vlaneseq
    %v727 = vshrl.u32 %v726, 7
    %v728 = vsub.s32 0, %v727
    %v729 = vrot.slane %v147, %v728
    %v730 = vlaneseq
    %v731 = vshrl.u32 %v730, 7
    %v732 = vsub.s32 1, %v731
    %v733 = vrot.slane %v147, %v732
    %v734 = vlaneseq
    %v735 = vshrl.u32 %v734, 7
    %v736 = vsub.s32 2, %v735
    %v737 = vrot.slane %v147, %v736
    %v738 = vlaneseq
    %v739 = vshrl.u32 %v738, 7
    %v740 = vsub.s32 3, %v739
    %v741 = vrot.slane %v147, %v740
    %v742 = vlaneseq
    %v743 = vshrl.u32 %v742, 7
    %v744 = vsub.s32 4, %v743
    %v745 = vrot.slane %v147, %v744
    %v746 = vlaneseq
    %v747 = vshrl.u32 %v746, 7
    %v748 = vsub.s32 5, %v747
    %v749 = vrot.slane %v147, %v748
    %v757 = vlaneseq
    %v758 = vshrl.u32 %v757, 7
    %v759 = vsub.s32 0, %v758
    %v760 = vrot.slane %v724, %v759
    %v761 = vlaneseq
    %v762 = vshrl.u32 %v761, 7
    %v763 = vsub.s32 1, %v762
    %v764 = vrot.slane %v724, %v763
    %v765 = vlaneseq
    %v766 = vshrl.u32 %v765, 7
    %v767 = vsub.s32 2, %v766
    %v768 = vrot.slane %v724, %v767
    %v769 = vlaneseq
    %v770 = vshrl.u32 %v769, 7
    %v771 = vsub.s32 3, %v770
    %v772 = vrot.slane %v724, %v771
    %v773 = vlaneseq
    %v774 = vshrl.u32 %v773, 7
    %v775 = vsub.s32 4, %v774
    %v776 = vrot.slane %v724, %v775
    %v777 = vlaneseq
    %v778 = vshrl.u32 %v777, 7
    %v779 = vsub.s32 5, %v778
    %v780 = vrot.slane %v724, %v779
    %787 = vmatprep.subr.mxu0 %v239
    %788 = vmatpush1.msra.mxu0 %v238
    %789 = vmatprep.subr.mxu0 %v233
    %790 = vmatpush1.msra.mxu0 %v232
    %791 = vmatprep.subr.mxu0 %v227
    %792 = vmatpush1.msra.mxu0 %v226
    %793 = vmatprep.subr.mxu0 %v221
    %794 = vmatpush1.msra.mxu0 %v220
    %795 = vmatprep.subr.mxu0 %v215
    %796 = vmatpush1.msra.mxu0 %v214
    %797 = vmatprep.subr.mxu0 %v209
    %798 = vmatpush1.msra.mxu0 %v208
    %799 = vmatprep.subr.mxu0 %v203
    %800 = vmatpush1.msra.mxu0 %v202
    %801 = vmatprep.subr.mxu0 %v197
    %802 = vmatpush1.msra.mxu0 %v196
    %803 = vmatprep.subr.mxu0 %v191
    %804 = vmatpush1.msra.mxu0 %v190
    %805 = vmatprep.subr.mxu0 %v185
    %806 = vmatpush1.msra.mxu0 %v184
    %807 = vmatprep.subr.mxu0 %v179
    %808 = vmatpush1.msra.mxu0 %v178
    %809 = vmatprep.subr.mxu0 %v173
    %810 = vmatpush1.msra.mxu0 %v172
    %811 = vmatprep.subr.mxu0 %v167
    %812 = vmatpush1.msra.mxu0 %v166
    %813 = vmatprep.subr.mxu0 %v161
    %814 = vmatpush1.msra.mxu0 %v160
    %815 = vmatprep.subr.mxu0 %v155
    %816 = vmatpush1.msra.mxu0 %v154
    %817 = vmatprep.subr.mxu0 %v149
    %818 = vmatpush1.msra.mxu0 %v148
    %819 = vmatprep.subr.mxu0 %v335
    %820 = vmatpush2.msra.mxu0 %v334
    %821 = vmatprep.subr.mxu0 %v329
    %822 = vmatpush2.msra.mxu0 %v328
    %823 = vmatprep.subr.mxu0 %v323
    %824 = vmatpush2.msra.mxu0 %v322
    %825 = vmatprep.subr.mxu0 %v317
    %826 = vmatpush2.msra.mxu0 %v316
    %827 = vmatprep.subr.mxu0 %v311
    %828 = vmatpush2.msra.mxu0 %v310
    %829 = vmatprep.subr.mxu0 %v305
    %830 = vmatpush2.msra.mxu0 %v304
    %831 = vmatprep.subr.mxu0 %v299
    %832 = vmatpush2.msra.mxu0 %v298
    %833 = vmatprep.subr.mxu0 %v293
    %834 = vmatpush2.msra.mxu0 %v292
    %835 = vmatprep.subr.mxu0 %v287
    %836 = vmatpush2.msra.mxu0 %v286
    %837 = vmatprep.subr.mxu0 %v281
    %838 = vmatpush2.msra.mxu0 %v280
    %839 = vmatprep.subr.mxu0 %v275
    %840 = vmatpush2.msra.mxu0 %v274
    %841 = vmatprep.subr.mxu0 %v269
    %842 = vmatpush2.msra.mxu0 %v268
    %843 = vmatprep.subr.mxu0 %v263
    %844 = vmatpush2.msra.mxu0 %v262
    %845 = vmatprep.subr.mxu0 %v257
    %846 = vmatpush2.msra.mxu0 %v256
    %847 = vmatprep.subr.mxu0 %v251
    %848 = vmatpush2.msra.mxu0 %v250
    %849 = vmatprep.subr.mxu0 %v245
    %850 = vmatpush2.msra.mxu0 %v244
    %851 = vmatprep.mubr.f32.mxu0 %v733
    %852 = vmatmul.mubr.f32.gmra.mxu0 %v729
    %v853 = vpop.f32.mrf.mxu0
    %v854 = vadd.f32 %v760, %v853
    %v855 = vpop.f32.mrf.mxu0
    %v856 = vadd.f32 %v764, %v855
    %857 = vdwg.mxu0
    %858 = vmatprep.subr.mxu0 %v431
    %859 = vmatpush1.msra.mxu0 %v430
    %860 = vmatprep.subr.mxu0 %v425
    %861 = vmatpush1.msra.mxu0 %v424
    %862 = vmatprep.subr.mxu0 %v419
    %863 = vmatpush1.msra.mxu0 %v418
    %864 = vmatprep.subr.mxu0 %v413
    %865 = vmatpush1.msra.mxu0 %v412
    %866 = vmatprep.subr.mxu0 %v407
    %867 = vmatpush1.msra.mxu0 %v406
    %868 = vmatprep.subr.mxu0 %v401
    %869 = vmatpush1.msra.mxu0 %v400
    %870 = vmatprep.subr.mxu0 %v395
    %871 = vmatpush1.msra.mxu0 %v394
    %872 = vmatprep.subr.mxu0 %v389
    %873 = vmatpush1.msra.mxu0 %v388
    %874 = vmatprep.subr.mxu0 %v383
    %875 = vmatpush1.msra.mxu0 %v382
    %876 = vmatprep.subr.mxu0 %v377
    %877 = vmatpush1.msra.mxu0 %v376
    %878 = vmatprep.subr.mxu0 %v371
    %879 = vmatpush1.msra.mxu0 %v370
    %880 = vmatprep.subr.mxu0 %v365
    %881 = vmatpush1.msra.mxu0 %v364
    %882 = vmatprep.subr.mxu0 %v359
    %883 = vmatpush1.msra.mxu0 %v358
    %884 = vmatprep.subr.mxu0 %v353
    %885 = vmatpush1.msra.mxu0 %v352
    %886 = vmatprep.subr.mxu0 %v347
    %887 = vmatpush1.msra.mxu0 %v346
    %888 = vmatprep.subr.mxu0 %v341
    %889 = vmatpush1.msra.mxu0 %v340
    %890 = vmatprep.subr.mxu0 %v527
    %891 = vmatpush2.msra.mxu0 %v526
    %892 = vmatprep.subr.mxu0 %v521
    %893 = vmatpush2.msra.mxu0 %v520
    %894 = vmatprep.subr.mxu0 %v515
    %895 = vmatpush2.msra.mxu0 %v514
    %896 = vmatprep.subr.mxu0 %v509
    %897 = vmatpush2.msra.mxu0 %v508
    %898 = vmatprep.subr.mxu0 %v503
    %899 = vmatpush2.msra.mxu0 %v502
    %900 = vmatprep.subr.mxu0 %v497
    %901 = vmatpush2.msra.mxu0 %v496
    %902 = vmatprep.subr.mxu0 %v491
    %903 = vmatpush2.msra.mxu0 %v490
    %904 = vmatprep.subr.mxu0 %v485
    %905 = vmatpush2.msra.mxu0 %v484
    %906 = vmatprep.subr.mxu0 %v479
    %907 = vmatpush2.msra.mxu0 %v478
    %908 = vmatprep.subr.mxu0 %v473
    %909 = vmatpush2.msra.mxu0 %v472
    %910 = vmatprep.subr.mxu0 %v467
    %911 = vmatpush2.msra.mxu0 %v466
    %912 = vmatprep.subr.mxu0 %v461
    %913 = vmatpush2.msra.mxu0 %v460
    %914 = vmatprep.subr.mxu0 %v455
    %915 = vmatpush2.msra.mxu0 %v454
    %916 = vmatprep.subr.mxu0 %v449
    %917 = vmatpush2.msra.mxu0 %v448
    %918 = vmatprep.subr.mxu0 %v443
    %919 = vmatpush2.msra.mxu0 %v442
    %920 = vmatprep.subr.mxu0 %v437
    %921 = vmatpush2.msra.mxu0 %v436
    %922 = vmatprep.mubr.f32.mxu0 %v741
    %923 = vmatmul.mubr.f32.gmra.mxu0 %v737
    %v924 = vpop.f32.mrf.mxu0
    %v925 = vadd.f32 %v854, %v924
    %v926 = vpop.f32.mrf.mxu0
    %v927 = vadd.f32 %v856, %v926
    %928 = vdwg.mxu0
    %929 = vmatprep.subr.mxu0 %v623
    %930 = vmatpush1.msra.mxu0 %v622
    %931 = vmatprep.subr.mxu0 %v617
    %932 = vmatpush1.msra.mxu0 %v616
    %933 = vmatprep.subr.mxu0 %v611
    %934 = vmatpush1.msra.mxu0 %v610
    %935 = vmatprep.subr.mxu0 %v605
    %936 = vmatpush1.msra.mxu0 %v604
    %937 = vmatprep.subr.mxu0 %v599
    %938 = vmatpush1.msra.mxu0 %v598
    %939 = vmatprep.subr.mxu0 %v593
    %940 = vmatpush1.msra.mxu0 %v592
    %941 = vmatprep.subr.mxu0 %v587
    %942 = vmatpush1.msra.mxu0 %v586
    %943 = vmatprep.subr.mxu0 %v581
    %944 = vmatpush1.msra.mxu0 %v580
    %945 = vmatprep.subr.mxu0 %v575
    %946 = vmatpush1.msra.mxu0 %v574
    %947 = vmatprep.subr.mxu0 %v569
    %948 = vmatpush1.msra.mxu0 %v568
    %949 = vmatprep.subr.mxu0 %v563
    %950 = vmatpush1.msra.mxu0 %v562
    %951 = vmatprep.subr.mxu0 %v557
    %952 = vmatpush1.msra.mxu0 %v556
    %953 = vmatprep.subr.mxu0 %v551
    %954 = vmatpush1.msra.mxu0 %v550
    %955 = vmatprep.subr.mxu0 %v545
    %956 = vmatpush1.msra.mxu0 %v544
    %957 = vmatprep.subr.mxu0 %v539
    %958 = vmatpush1.msra.mxu0 %v538
    %959 = vmatprep.subr.mxu0 %v533
    %960 = vmatpush1.msra.mxu0 %v532
    %961 = vmatprep.subr.mxu0 %v719
    %962 = vmatpush2.msra.mxu0 %v718
    %963 = vmatprep.subr.mxu0 %v713
    %964 = vmatpush2.msra.mxu0 %v712
    %965 = vmatprep.subr.mxu0 %v707
    %966 = vmatpush2.msra.mxu0 %v706
    %967 = vmatprep.subr.mxu0 %v701
    %968 = vmatpush2.msra.mxu0 %v700
    %969 = vmatprep.subr.mxu0 %v695
    %970 = vmatpush2.msra.mxu0 %v694
    %971 = vmatprep.subr.mxu0 %v689
    %972 = vmatpush2.msra.mxu0 %v688
    %973 = vmatprep.subr.mxu0 %v683
    %974 = vmatpush2.msra.mxu0 %v682
    %975 = vmatprep.subr.mxu0 %v677
    %976 = vmatpush2.msra.mxu0 %v676
    %977 = vmatprep.subr.mxu0 %v671
    %978 = vmatpush2.msra.mxu0 %v670
    %979 = vmatprep.subr.mxu0 %v665
    %980 = vmatpush2.msra.mxu0 %v664
    %981 = vmatprep.subr.mxu0 %v659
    %982 = vmatpush2.msra.mxu0 %v658
    %983 = vmatprep.subr.mxu0 %v653
    %984 = vmatpush2.msra.mxu0 %v652
    %985 = vmatprep.subr.mxu0 %v647
    %986 = vmatpush2.msra.mxu0 %v646
    %987 = vmatprep.subr.mxu0 %v641
    %988 = vmatpush2.msra.mxu0 %v640
    %989 = vmatprep.subr.mxu0 %v635
    %990 = vmatpush2.msra.mxu0 %v634
    %991 = vmatprep.subr.mxu0 %v629
    %992 = vmatpush2.msra.mxu0 %v628
    %993 = vmatprep.mubr.f32.mxu0 %v749
    %994 = vmatmul.mubr.f32.gmra.mxu0 %v745
    %v995 = vpop.f32.mrf.mxu0
    %v996 = vadd.f32 %v925, %v995
    %v997 = vpop.f32.mrf.mxu0
    %v998 = vadd.f32 %v927, %v997
    %999 = vdwg.mxu0
    %1000 = vmatprep.subr.mxu0 %v241
    %1001 = vmatpush1.msra.mxu0 %v240
    %1002 = vmatprep.subr.mxu0 %v235
    %1003 = vmatpush1.msra.mxu0 %v234
    %1004 = vmatprep.subr.mxu0 %v229
    %1005 = vmatpush1.msra.mxu0 %v228
    %1006 = vmatprep.subr.mxu0 %v223
    %1007 = vmatpush1.msra.mxu0 %v222
    %1008 = vmatprep.subr.mxu0 %v217
    %1009 = vmatpush1.msra.mxu0 %v216
    %1010 = vmatprep.subr.mxu0 %v211
    %1011 = vmatpush1.msra.mxu0 %v210
    %1012 = vmatprep.subr.mxu0 %v205
    %1013 = vmatpush1.msra.mxu0 %v204
    %1014 = vmatprep.subr.mxu0 %v199
    %1015 = vmatpush1.msra.mxu0 %v198
    %1016 = vmatprep.subr.mxu0 %v193
    %1017 = vmatpush1.msra.mxu0 %v192
    %1018 = vmatprep.subr.mxu0 %v187
    %1019 = vmatpush1.msra.mxu0 %v186
    %1020 = vmatprep.subr.mxu0 %v181
    %1021 = vmatpush1.msra.mxu0 %v180
    %1022 = vmatprep.subr.mxu0 %v175
    %1023 = vmatpush1.msra.mxu0 %v174
    %1024 = vmatprep.subr.mxu0 %v169
    %1025 = vmatpush1.msra.mxu0 %v168
    %1026 = vmatprep.subr.mxu0 %v163
    %1027 = vmatpush1.msra.mxu0 %v162
    %1028 = vmatprep.subr.mxu0 %v157
    %1029 = vmatpush1.msra.mxu0 %v156
    %1030 = vmatprep.subr.mxu0 %v151
    %1031 = vmatpush1.msra.mxu0 %v150
    %1032 = vmatprep.subr.mxu0 %v337
    %1033 = vmatpush2.msra.mxu0 %v336
    %1034 = vmatprep.subr.mxu0 %v331
    %1035 = vmatpush2.msra.mxu0 %v330
    %1036 = vmatprep.subr.mxu0 %v325
    %1037 = vmatpush2.msra.mxu0 %v324
    %1038 = vmatprep.subr.mxu0 %v319
    %1039 = vmatpush2.msra.mxu0 %v318
    %1040 = vmatprep.subr.mxu0 %v313
    %1041 = vmatpush2.msra.mxu0 %v312
    %1042 = vmatprep.subr.mxu0 %v307
    %1043 = vmatpush2.msra.mxu0 %v306
    %1044 = vmatprep.subr.mxu0 %v301
    %1045 = vmatpush2.msra.mxu0 %v300
    %1046 = vmatprep.subr.mxu0 %v295
    %1047 = vmatpush2.msra.mxu0 %v294
    %1048 = vmatprep.subr.mxu0 %v289
    %1049 = vmatpush2.msra.mxu0 %v288
    %1050 = vmatprep.subr.mxu0 %v283
    %1051 = vmatpush2.msra.mxu0 %v282
    %1052 = vmatprep.subr.mxu0 %v277
    %1053 = vmatpush2.msra.mxu0 %v276
    %1054 = vmatprep.subr.mxu0 %v271
    %1055 = vmatpush2.msra.mxu0 %v270
    %1056 = vmatprep.subr.mxu0 %v265
    %1057 = vmatpush2.msra.mxu0 %v264
    %1058 = vmatprep.subr.mxu0 %v259
    %1059 = vmatpush2.msra.mxu0 %v258
    %1060 = vmatprep.subr.mxu0 %v253
    %1061 = vmatpush2.msra.mxu0 %v252
    %1062 = vmatprep.subr.mxu0 %v247
    %1063 = vmatpush2.msra.mxu0 %v246
    %1064 = vmatprep.mubr.f32.mxu0 %v733
    %1065 = vmatmul.mubr.f32.gmra.mxu0 %v729
    %v1066 = vpop.f32.mrf.mxu0
    %v1067 = vadd.f32 %v768, %v1066
    %v1068 = vpop.f32.mrf.mxu0
    %v1069 = vadd.f32 %v772, %v1068
    %1070 = vdwg.mxu0
    %1071 = vmatprep.subr.mxu0 %v433
    %1072 = vmatpush1.msra.mxu0 %v432
    %1073 = vmatprep.subr.mxu0 %v427
    %1074 = vmatpush1.msra.mxu0 %v426
    %1075 = vmatprep.subr.mxu0 %v421
    %1076 = vmatpush1.msra.mxu0 %v420
    %1077 = vmatprep.subr.mxu0 %v415
    %1078 = vmatpush1.msra.mxu0 %v414
    %1079 = vmatprep.subr.mxu0 %v409
    %1080 = vmatpush1.msra.mxu0 %v408
    %1081 = vmatprep.subr.mxu0 %v403
    %1082 = vmatpush1.msra.mxu0 %v402
    %1083 = vmatprep.subr.mxu0 %v397
    %1084 = vmatpush1.msra.mxu0 %v396
    %1085 = vmatprep.subr.mxu0 %v391
    %1086 = vmatpush1.msra.mxu0 %v390
    %1087 = vmatprep.subr.mxu0 %v385
    %1088 = vmatpush1.msra.mxu0 %v384
    %1089 = vmatprep.subr.mxu0 %v379
    %1090 = vmatpush1.msra.mxu0 %v378
    %1091 = vmatprep.subr.mxu0 %v373
    %1092 = vmatpush1.msra.mxu0 %v372
    %1093 = vmatprep.subr.mxu0 %v367
    %1094 = vmatpush1.msra.mxu0 %v366
    %1095 = vmatprep.subr.mxu0 %v361
    %1096 = vmatpush1.msra.mxu0 %v360
    %1097 = vmatprep.subr.mxu0 %v355
    %1098 = vmatpush1.msra.mxu0 %v354
    %1099 = vmatprep.subr.mxu0 %v349
    %1100 = vmatpush1.msra.mxu0 %v348
    %1101 = vmatprep.subr.mxu0 %v343
    %1102 = vmatpush1.msra.mxu0 %v342
    %1103 = vmatprep.subr.mxu0 %v529
    %1104 = vmatpush2.msra.mxu0 %v528
    %1105 = vmatprep.subr.mxu0 %v523
    %1106 = vmatpush2.msra.mxu0 %v522
    %1107 = vmatprep.subr.mxu0 %v517
    %1108 = vmatpush2.msra.mxu0 %v516
    %1109 = vmatprep.subr.mxu0 %v511
    %1110 = vmatpush2.msra.mxu0 %v510
    %1111 = vmatprep.subr.mxu0 %v505
    %1112 = vmatpush2.msra.mxu0 %v504
    %1113 = vmatprep.subr.mxu0 %v499
    %1114 = vmatpush2.msra.mxu0 %v498
    %1115 = vmatprep.subr.mxu0 %v493
    %1116 = vmatpush2.msra.mxu0 %v492
    %1117 = vmatprep.subr.mxu0 %v487
    %1118 = vmatpush2.msra.mxu0 %v486
    %1119 = vmatprep.subr.mxu0 %v481
    %1120 = vmatpush2.msra.mxu0 %v480
    %1121 = vmatprep.subr.mxu0 %v475
    %1122 = vmatpush2.msra.mxu0 %v474
    %1123 = vmatprep.subr.mxu0 %v469
    %1124 = vmatpush2.msra.mxu0 %v468
    %1125 = vmatprep.subr.mxu0 %v463
    %1126 = vmatpush2.msra.mxu0 %v462
    %1127 = vmatprep.subr.mxu0 %v457
    %1128 = vmatpush2.msra.mxu0 %v456
    %1129 = vmatprep.subr.mxu0 %v451
    %1130 = vmatpush2.msra.mxu0 %v450
    %1131 = vmatprep.subr.mxu0 %v445
    %1132 = vmatpush2.msra.mxu0 %v444
    %1133 = vmatprep.subr.mxu0 %v439
    %1134 = vmatpush2.msra.mxu0 %v438
    %1135 = vmatprep.mubr.f32.mxu0 %v741
    %1136 = vmatmul.mubr.f32.gmra.mxu0 %v737
    %v1137 = vpop.f32.mrf.mxu0
    %v1138 = vadd.f32 %v1067, %v1137
    %v1139 = vpop.f32.mrf.mxu0
    %v1140 = vadd.f32 %v1069, %v1139
    %1141 = vdwg.mxu0
    %1142 = vmatprep.subr.mxu0 %v625
    %1143 = vmatpush1.msra.mxu0 %v624
    %1144 = vmatprep.subr.mxu0 %v619
    %1145 = vmatpush1.msra.mxu0 %v618
    %1146 = vmatprep.subr.mxu0 %v613
    %1147 = vmatpush1.msra.mxu0 %v612
    %1148 = vmatprep.subr.mxu0 %v607
    %1149 = vmatpush1.msra.mxu0 %v606
    %1150 = vmatprep.subr.mxu0 %v601
    %1151 = vmatpush1.msra.mxu0 %v600
    %1152 = vmatprep.subr.mxu0 %v595
    %1153 = vmatpush1.msra.mxu0 %v594
    %1154 = vmatprep.subr.mxu0 %v589
    %1155 = vmatpush1.msra.mxu0 %v588
    %1156 = vmatprep.subr.mxu0 %v583
    %1157 = vmatpush1.msra.mxu0 %v582
    %1158 = vmatprep.subr.mxu0 %v577
    %1159 = vmatpush1.msra.mxu0 %v576
    %1160 = vmatprep.subr.mxu0 %v571
    %1161 = vmatpush1.msra.mxu0 %v570
    %1162 = vmatprep.subr.mxu0 %v565
    %1163 = vmatpush1.msra.mxu0 %v564
    %1164 = vmatprep.subr.mxu0 %v559
    %1165 = vmatpush1.msra.mxu0 %v558
    %1166 = vmatprep.subr.mxu0 %v553
    %1167 = vmatpush1.msra.mxu0 %v552
    %1168 = vmatprep.subr.mxu0 %v547
    %1169 = vmatpush1.msra.mxu0 %v546
    %1170 = vmatprep.subr.mxu0 %v541
    %1171 = vmatpush1.msra.mxu0 %v540
    %1172 = vmatprep.subr.mxu0 %v535
    %1173 = vmatpush1.msra.mxu0 %v534
    %1174 = vmatprep.subr.mxu0 %v721
    %1175 = vmatpush2.msra.mxu0 %v720
    %1176 = vmatprep.subr.mxu0 %v715
    %1177 = vmatpush2.msra.mxu0 %v714
    %1178 = vmatprep.subr.mxu0 %v709
    %1179 = vmatpush2.msra.mxu0 %v708
    %1180 = vmatprep.subr.mxu0 %v703
    %1181 = vmatpush2.msra.mxu0 %v702
    %1182 = vmatprep.subr.mxu0 %v697
    %1183 = vmatpush2.msra.mxu0 %v696
    %1184 = vmatprep.subr.mxu0 %v691
    %1185 = vmatpush2.msra.mxu0 %v690
    %1186 = vmatprep.subr.mxu0 %v685
    %1187 = vmatpush2.msra.mxu0 %v684
    %1188 = vmatprep.subr.mxu0 %v679
    %1189 = vmatpush2.msra.mxu0 %v678
    %1190 = vmatprep.subr.mxu0 %v673
    %1191 = vmatpush2.msra.mxu0 %v672
    %1192 = vmatprep.subr.mxu0 %v667
    %1193 = vmatpush2.msra.mxu0 %v666
    %1194 = vmatprep.subr.mxu0 %v661
    %1195 = vmatpush2.msra.mxu0 %v660
    %1196 = vmatprep.subr.mxu0 %v655
    %1197 = vmatpush2.msra.mxu0 %v654
    %1198 = vmatprep.subr.mxu0 %v649
    %1199 = vmatpush2.msra.mxu0 %v648
    %1200 = vmatprep.subr.mxu0 %v643
    %1201 = vmatpush2.msra.mxu0 %v642
    %1202 = vmatprep.subr.mxu0 %v637
    %1203 = vmatpush2.msra.mxu0 %v636
    %1204 = vmatprep.subr.mxu0 %v631
    %1205 = vmatpush2.msra.mxu0 %v630
    %1206 = vmatprep.mubr.f32.mxu0 %v749
    %1207 = vmatmul.mubr.f32.gmra.mxu0 %v745
    %v1208 = vpop.f32.mrf.mxu0
    %v1209 = vadd.f32 %v1138, %v1208
    %v1210 = vpop.f32.mrf.mxu0
    %v1211 = vadd.f32 %v1140, %v1210
    %1212 = vdwg.mxu0
    %1213 = vmatprep.subr.mxu0 %v243
    %1214 = vmatpush1.msra.mxu0 %v242
    %1215 = vmatprep.subr.mxu0 %v237
    %1216 = vmatpush1.msra.mxu0 %v236
    %1217 = vmatprep.subr.mxu0 %v231
    %1218 = vmatpush1.msra.mxu0 %v230
    %1219 = vmatprep.subr.mxu0 %v225
    %1220 = vmatpush1.msra.mxu0 %v224
    %1221 = vmatprep.subr.mxu0 %v219
    %1222 = vmatpush1.msra.mxu0 %v218
    %1223 = vmatprep.subr.mxu0 %v213
    %1224 = vmatpush1.msra.mxu0 %v212
    %1225 = vmatprep.subr.mxu0 %v207
    %1226 = vmatpush1.msra.mxu0 %v206
    %1227 = vmatprep.subr.mxu0 %v201
    %1228 = vmatpush1.msra.mxu0 %v200
    %1229 = vmatprep.subr.mxu0 %v195
    %1230 = vmatpush1.msra.mxu0 %v194
    %1231 = vmatprep.subr.mxu0 %v189
    %1232 = vmatpush1.msra.mxu0 %v188
    %1233 = vmatprep.subr.mxu0 %v183
    %1234 = vmatpush1.msra.mxu0 %v182
    %1235 = vmatprep.subr.mxu0 %v177
    %1236 = vmatpush1.msra.mxu0 %v176
    %1237 = vmatprep.subr.mxu0 %v171
    %1238 = vmatpush1.msra.mxu0 %v170
    %1239 = vmatprep.subr.mxu0 %v165
    %1240 = vmatpush1.msra.mxu0 %v164
    %1241 = vmatprep.subr.mxu0 %v159
    %1242 = vmatpush1.msra.mxu0 %v158
    %1243 = vmatprep.subr.mxu0 %v153
    %1244 = vmatpush1.msra.mxu0 %v152
    %1245 = vmatprep.subr.mxu0 %v339
    %1246 = vmatpush2.msra.mxu0 %v338
    %1247 = vmatprep.subr.mxu0 %v333
    %1248 = vmatpush2.msra.mxu0 %v332
    %1249 = vmatprep.subr.mxu0 %v327
    %1250 = vmatpush2.msra.mxu0 %v326
    %1251 = vmatprep.subr.mxu0 %v321
    %1252 = vmatpush2.msra.mxu0 %v320
    %1253 = vmatprep.subr.mxu0 %v315
    %1254 = vmatpush2.msra.mxu0 %v314
    %1255 = vmatprep.subr.mxu0 %v309
    %1256 = vmatpush2.msra.mxu0 %v308
    %1257 = vmatprep.subr.mxu0 %v303
    %1258 = vmatpush2.msra.mxu0 %v302
    %1259 = vmatprep.subr.mxu0 %v297
    %1260 = vmatpush2.msra.mxu0 %v296
    %1261 = vmatprep.subr.mxu0 %v291
    %1262 = vmatpush2.msra.mxu0 %v290
    %1263 = vmatprep.subr.mxu0 %v285
    %1264 = vmatpush2.msra.mxu0 %v284
    %1265 = vmatprep.subr.mxu0 %v279
    %1266 = vmatpush2.msra.mxu0 %v278
    %1267 = vmatprep.subr.mxu0 %v273
    %1268 = vmatpush2.msra.mxu0 %v272
    %1269 = vmatprep.subr.mxu0 %v267
    %1270 = vmatpush2.msra.mxu0 %v266
    %1271 = vmatprep.subr.mxu0 %v261
    %1272 = vmatpush2.msra.mxu0 %v260
    %1273 = vmatprep.subr.mxu0 %v255
    %1274 = vmatpush2.msra.mxu0 %v254
    %1275 = vmatprep.subr.mxu0 %v249
    %1276 = vmatpush2.msra.mxu0 %v248
    %1277 = vmatprep.mubr.f32.mxu0 %v733
    %1278 = vmatmul.mubr.f32.gmra.mxu0 %v729
    %v1279 = vpop.f32.mrf.mxu0
    %v1280 = vadd.f32 %v776, %v1279
    %v1281 = vpop.f32.mrf.mxu0
    %v1282 = vadd.f32 %v780, %v1281
    %1283 = vdwg.mxu0
    %1284 = vmatprep.subr.mxu0 %v435
    %1285 = vmatpush1.msra.mxu0 %v434
    %1286 = vmatprep.subr.mxu0 %v429
    %1287 = vmatpush1.msra.mxu0 %v428
    %1288 = vmatprep.subr.mxu0 %v423
    %1289 = vmatpush1.msra.mxu0 %v422
    %1290 = vmatprep.subr.mxu0 %v417
    %1291 = vmatpush1.msra.mxu0 %v416
    %1292 = vmatprep.subr.mxu0 %v411
    %1293 = vmatpush1.msra.mxu0 %v410
    %1294 = vmatprep.subr.mxu0 %v405
    %1295 = vmatpush1.msra.mxu0 %v404
    %1296 = vmatprep.subr.mxu0 %v399
    %1297 = vmatpush1.msra.mxu0 %v398
    %1298 = vmatprep.subr.mxu0 %v393
    %1299 = vmatpush1.msra.mxu0 %v392
    %1300 = vmatprep.subr.mxu0 %v387
    %1301 = vmatpush1.msra.mxu0 %v386
    %1302 = vmatprep.subr.mxu0 %v381
    %1303 = vmatpush1.msra.mxu0 %v380
    %1304 = vmatprep.subr.mxu0 %v375
    %1305 = vmatpush1.msra.mxu0 %v374
    %1306 = vmatprep.subr.mxu0 %v369
    %1307 = vmatpush1.msra.mxu0 %v368
    %1308 = vmatprep.subr.mxu0 %v363
    %1309 = vmatpush1.msra.mxu0 %v362
    %1310 = vmatprep.subr.mxu0 %v357
    %1311 = vmatpush1.msra.mxu0 %v356
    %1312 = vmatprep.subr.mxu0 %v351
    %1313 = vmatpush1.msra.mxu0 %v350
    %1314 = vmatprep.subr.mxu0 %v345
    %1315 = vmatpush1.msra.mxu0 %v344
    %1316 = vmatprep.subr.mxu0 %v531
    %1317 = vmatpush2.msra.mxu0 %v530
    %1318 = vmatprep.subr.mxu0 %v525
    %1319 = vmatpush2.msra.mxu0 %v524
    %1320 = vmatprep.subr.mxu0 %v519
    %1321 = vmatpush2.msra.mxu0 %v518
    %1322 = vmatprep.subr.mxu0 %v513
    %1323 = vmatpush2.msra.mxu0 %v512
    %1324 = vmatprep.subr.mxu0 %v507
    %1325 = vmatpush2.msra.mxu0 %v506
    %1326 = vmatprep.subr.mxu0 %v501
    %1327 = vmatpush2.msra.mxu0 %v500
    %1328 = vmatprep.subr.mxu0 %v495
    %1329 = vmatpush2.msra.mxu0 %v494
    %1330 = vmatprep.subr.mxu0 %v489
    %1331 = vmatpush2.msra.mxu0 %v488
    %1332 = vmatprep.subr.mxu0 %v483
    %1333 = vmatpush2.msra.mxu0 %v482
    %1334 = vmatprep.subr.mxu0 %v477
    %1335 = vmatpush2.msra.mxu0 %v476
    %1336 = vmatprep.subr.mxu0 %v471
    %1337 = vmatpush2.msra.mxu0 %v470
    %1338 = vmatprep.subr.mxu0 %v465
    %1339 = vmatpush2.msra.mxu0 %v464
    %1340 = vmatprep.subr.mxu0 %v459
    %1341 = vmatpush2.msra.mxu0 %v458
    %1342 = vmatprep.subr.mxu0 %v453
    %1343 = vmatpush2.msra.mxu0 %v452
    %1344 = vmatprep.subr.mxu0 %v447
    %1345 = vmatpush2.msra.mxu0 %v446
    %1346 = vmatprep.subr.mxu0 %v441
    %1347 = vmatpush2.msra.mxu0 %v440
    %1348 = vmatprep.mubr.f32.mxu0 %v741
    %1349 = vmatmul.mubr.f32.gmra.mxu0 %v737
    %v1350 = vpop.f32.mrf.mxu0
    %v1351 = vadd.f32 %v1280, %v1350
    %v1352 = vpop.f32.mrf.mxu0
    %v1353 = vadd.f32 %v1282, %v1352
    %1354 = vdwg.mxu0
    %1355 = vmatprep.subr.mxu0 %v627
    %1356 = vmatpush1.msra.mxu0 %v626
    %1357 = vmatprep.subr.mxu0 %v621
    %1358 = vmatpush1.msra.mxu0 %v620
    %1359 = vmatprep.subr.mxu0 %v615
    %1360 = vmatpush1.msra.mxu0 %v614
    %1361 = vmatprep.subr.mxu0 %v609
    %1362 = vmatpush1.msra.mxu0 %v608
    %1363 = vmatprep.subr.mxu0 %v603
    %1364 = vmatpush1.msra.mxu0 %v602
    %1365 = vmatprep.subr.mxu0 %v597
    %1366 = vmatpush1.msra.mxu0 %v596
    %1367 = vmatprep.subr.mxu0 %v591
    %1368 = vmatpush1.msra.mxu0 %v590
    %1369 = vmatprep.subr.mxu0 %v585
    %1370 = vmatpush1.msra.mxu0 %v584
    %1371 = vmatprep.subr.mxu0 %v579
    %1372 = vmatpush1.msra.mxu0 %v578
    %1373 = vmatprep.subr.mxu0 %v573
    %1374 = vmatpush1.msra.mxu0 %v572
    %1375 = vmatprep.subr.mxu0 %v567
    %1376 = vmatpush1.msra.mxu0 %v566
    %1377 = vmatprep.subr.mxu0 %v561
    %1378 = vmatpush1.msra.mxu0 %v560
    %1379 = vmatprep.subr.mxu0 %v555
    %1380 = vmatpush1.msra.mxu0 %v554
    %1381 = vmatprep.subr.mxu0 %v549
    %1382 = vmatpush1.msra.mxu0 %v548
    %1383 = vmatprep.subr.mxu0 %v543
    %1384 = vmatpush1.msra.mxu0 %v542
    %1385 = vmatprep.subr.mxu0 %v537
    %1386 = vmatpush1.msra.mxu0 %v536
    %1387 = vmatprep.subr.mxu0 %v723
    %1388 = vmatpush2.msra.mxu0 %v722
    %1389 = vmatprep.subr.mxu0 %v717
    %1390 = vmatpush2.msra.mxu0 %v716
    %1391 = vmatprep.subr.mxu0 %v711
    %1392 = vmatpush2.msra.mxu0 %v710
    %1393 = vmatprep.subr.mxu0 %v705
    %1394 = vmatpush2.msra.mxu0 %v704
    %1395 = vmatprep.subr.mxu0 %v699
    %1396 = vmatpush2.msra.mxu0 %v698
    %1397 = vmatprep.subr.mxu0 %v693
    %1398 = vmatpush2.msra.mxu0 %v692
    %1399 = vmatprep.subr.mxu0 %v687
    %1400 = vmatpush2.msra.mxu0 %v686
    %1401 = vmatprep.subr.mxu0 %v681
    %1402 = vmatpush2.msra.mxu0 %v680
    %1403 = vmatprep.subr.mxu0 %v675
    %1404 = vmatpush2.msra.mxu0 %v674
    %1405 = vmatprep.subr.mxu0 %v669
    %1406 = vmatpush2.msra.mxu0 %v668
    %1407 = vmatprep.subr.mxu0 %v663
    %1408 = vmatpush2.msra.mxu0 %v662
    %1409 = vmatprep.subr.mxu0 %v657
    %1410 = vmatpush2.msra.mxu0 %v656
    %1411 = vmatprep.subr.mxu0 %v651
    %1412 = vmatpush2.msra.mxu0 %v650
    %1413 = vmatprep.subr.mxu0 %v645
    %1414 = vmatpush2.msra.mxu0 %v644
    %1415 = vmatprep.subr.mxu0 %v639
    %1416 = vmatpush2.msra.mxu0 %v638
    %1417 = vmatprep.subr.mxu0 %v633
    %1418 = vmatpush2.msra.mxu0 %v632
    %1419 = vmatprep.mubr.f32.mxu0 %v749
    %1420 = vmatmul.mubr.f32.gmra.mxu0 %v745
    %v1421 = vpop.f32.mrf.mxu0
    %v1422 = vadd.f32 %v1351, %v1421
    %v1423 = vpop.f32.mrf.mxu0
    %v1424 = vadd.f32 %v1353, %v1423
    %1425 = vdwg.mxu0
    %vm1426 = vcmask 1040384
    %v1427 = vsel %vm1426, %v996, -inf
    %v1428 = vsel %vm1426, %v998, -inf
    %v1429 = vsel %vm1426, %v1209, -inf
    %v1430 = vsel %vm1426, %v1211, -inf
    %v1431 = vsel %vm1426, %v1422, -inf
    %v1432 = vmax.f32 %v1427, %v1431
    %v1433 = vsel %vm1426, %v1424, -inf
    %v1434 = vmax.f32 %v1428, %v1433
    %v1435 = vmax.f32 %v1432, %v1434
    %v1436 = vmax.f32 %v1429, %v1430
    %v1437 = vmax.f32 %v1435, %v1436
    %1438 = vmax.xlane.f32.xlu0 %v1437
    %v1439 = vpop.xlane.xlu0 %1438
    %v1440 = vsub.f32 %v996, %v1439
    %v1441 = vsub.f32 %v998, %v1439
    %v1442 = vsub.f32 %v1209, %v1439
    %v1443 = vsub.f32 %v1211, %v1439
    %v1444 = vsub.f32 %v1422, %v1439
    %v1445 = vsub.f32 %v1424, %v1439
    %v1446 = vmul.f32 %v1440, 1.442695
    %v1447 = vpow.pop %v1446
    %v1448 = vmul.f32 %v1441, 1.442695
    %v1449 = vpow.pop %v1448
    %v1450 = vmul.f32 %v1442, 1.442695
    %v1451 = vpow.pop %v1450
    %v1452 = vmul.f32 %v1443, 1.442695
    %v1453 = vpow.pop %v1452
    %v1454 = vmul.f32 %v1444, 1.442695
    %v1455 = vpow.pop %v1454
    %v1456 = vmul.f32 %v1445, 1.442695
    %v1457 = vpow.pop %v1456
    %v1458 = vsel %vm1426, %v1447, 0.0
    %v1459 = vsel %vm1426, %v1449, 0.0
    %v1460 = vadd.f32 %v1458, %v1459
    %v1461 = vsel %vm1426, %v1451, 0.0
    %v1462 = vadd.f32 %v1460, %v1461
    %v1463 = vsel %vm1426, %v1453, 0.0
    %v1464 = vadd.f32 %v1462, %v1463
    %v1465 = vsel %vm1426, %v1455, 0.0
    %v1466 = vadd.f32 %v1464, %v1465
    %v1467 = vsel %vm1426, %v1457, 0.0
    %v1468 = vadd.f32 %v1466, %v1467
    %1469 = vadd.xlane.f32.xlu0 %v1468
    %v1470 = vpop.xlane.xlu0 %1469
    %v1471 = vrcp.pop %v1470
    %v1472 = vmul.f32 %v1470, %v1471
    %v1473 = vsub.f32 2.0, %v1472
    %v1474 = vmul.f32 %v1471, %v1473
    %v1475 = vmul.f32 %v1447, %v1474
    %v1476 = vmul.f32 %v1449, %v1474
    %v1477 = vmul.f32 %v1451, %v1474
    %v1478 = vmul.f32 %v1453, %v1474
    %v1479 = vmul.f32 %v1455, %v1474
    %v1480 = vmul.f32 %v1457, %v1474
    %v1481 = vld [vmem:[#allocation5] sm:$0xff]
    %v1482 = vld [vmem:[#allocation5 + $0x8] sm:$0xff]
    %v1483 = vld [vmem:[#allocation5 + $0x10] sm:$0xff]
    %v1484 = vld [vmem:[#allocation5 + $0x18] sm:$0xff]
    %v1485 = vld [vmem:[#allocation5 + $0x20] sm:$0xff]
    %v1486 = vld [vmem:[#allocation5 + $0x28] sm:$0xff]
    %v1487 = vld [vmem:[#allocation5 + $0x30] sm:$0xff]
    %v1488 = vld [vmem:[#allocation5 + $0x38] sm:$0xff]
    %v1489 = vld [vmem:[#allocation5 + $0x40] sm:$0xff]
    %v1490 = vld [vmem:[#allocation5 + $0x48] sm:$0xff]
    %v1491 = vld [vmem:[#allocation5 + $0x50] sm:$0xff]
    %v1492 = vld [vmem:[#allocation5 + $0x58] sm:$0xff]
    %v1493 = vld [vmem:[#allocation5 + $0x60] sm:$0xff]
    %v1494 = vld [vmem:[#allocation5 + $0x68] sm:$0xff]
    %v1495 = vld [vmem:[#allocation5 + $0x70] sm:$0xff]
    %v1496 = vld [vmem:[#allocation5 + $0x78] sm:$0xff]
    %v1497 = vld [vmem:[#allocation5 + $0x80] sm:$0xff]
    %v1498 = vld [vmem:[#allocation5 + $0x88] sm:$0xff]
    %v1499 = vld [vmem:[#allocation5 + $0x90] sm:$0xff]
    %v1500 = vld [vmem:[#allocation5 + $0x98] sm:$0xff]
    %v1501 = vld [vmem:[#allocation5 + $0xa0] sm:$0xff]
    %v1502 = vld [vmem:[#allocation5 + $0xa8] sm:$0xff]
    %v1503 = vld [vmem:[#allocation5 + $0xb0] sm:$0xff]
    %v1504 = vld [vmem:[#allocation5 + $0xb8] sm:$0xff]
    %v1505 = vld [vmem:[#allocation5 + $0xc0] sm:$0xff]
    %v1506 = vld [vmem:[#allocation5 + $0xc8] sm:$0xff]
    %v1507 = vld [vmem:[#allocation5 + $0xd0] sm:$0xff]
    %v1508 = vld [vmem:[#allocation5 + $0xd8] sm:$0xff]
    %v1509 = vld [vmem:[#allocation5 + $0xe0] sm:$0xff]
    %v1510 = vld [vmem:[#allocation5 + $0xe8] sm:$0xff]
    %v1511 = vld [vmem:[#allocation5 + $0xf0] sm:$0xff]
    %v1512 = vld [vmem:[#allocation5 + $0xf8] sm:$0xff]
    %v1513 = vld [vmem:[#allocation5 + $0x100] sm:$0xff]
    %v1514 = vld [vmem:[#allocation5 + $0x108] sm:$0xff]
    %v1515 = vld [vmem:[#allocation5 + $0x110] sm:$0xff]
    %v1516 = vld [vmem:[#allocation5 + $0x118] sm:$0xff]
    %v1517 = vld [vmem:[#allocation5 + $0x120] sm:$0xff]
    %v1518 = vld [vmem:[#allocation5 + $0x128] sm:$0xff]
    %v1519 = vld [vmem:[#allocation5 + $0x130] sm:$0xff]
    %v1520 = vld [vmem:[#allocation5 + $0x138] sm:$0xff]
    %v1521 = vld [vmem:[#allocation5 + $0x140] sm:$0xff]
    %v1522 = vld [vmem:[#allocation5 + $0x148] sm:$0xff]
    %v1523 = vld [vmem:[#allocation5 + $0x150] sm:$0xff]
    %v1524 = vld [vmem:[#allocation5 + $0x158] sm:$0xff]
    %v1525 = vld [vmem:[#allocation5 + $0x160] sm:$0xff]
    %v1526 = vld [vmem:[#allocation5 + $0x168] sm:$0xff]
    %v1527 = vld [vmem:[#allocation5 + $0x170] sm:$0xff]
    %v1528 = vld [vmem:[#allocation5 + $0x178] sm:$0xff]
    %v1529 = vld [vmem:[#allocation5 + $0x180] sm:$0xff]
    %v1530 = vld [vmem:[#allocation5 + $0x188] sm:$0xff]
    %v1531 = vld [vmem:[#allocation5 + $0x190] sm:$0xff]
    %v1532 = vld [vmem:[#allocation5 + $0x198] sm:$0xff]
    %v1533 = vld [vmem:[#allocation5 + $0x1a0] sm:$0xff]
    %v1534 = vld [vmem:[#allocation5 + $0x1a8] sm:$0xff]
    %v1535 = vld [vmem:[#allocation5 + $0x1b0] sm:$0xff]
    %v1536 = vld [vmem:[#allocation5 + $0x1b8] sm:$0xff]
    %v1537 = vld [vmem:[#allocation5 + $0x1c0] sm:$0xff]
    %v1538 = vld [vmem:[#allocation5 + $0x1c8] sm:$0xff]
    %v1539 = vld [vmem:[#allocation5 + $0x1d0] sm:$0xff]
    %v1540 = vld [vmem:[#allocation5 + $0x1d8] sm:$0xff]
    %v1541 = vld [vmem:[#allocation5 + $0x1e0] sm:$0xff]
    %v1542 = vld [vmem:[#allocation5 + $0x1e8] sm:$0xff]
    %v1543 = vld [vmem:[#allocation5 + $0x1f0] sm:$0xff]
    %v1544 = vld [vmem:[#allocation5 + $0x1f8] sm:$0xff]
    %v1545 = vld [vmem:[#allocation5 + $0x200] sm:$0xff]
    %v1546 = vld [vmem:[#allocation5 + $0x208] sm:$0xff]
    %v1547 = vld [vmem:[#allocation5 + $0x210] sm:$0xff]
    %v1548 = vld [vmem:[#allocation5 + $0x218] sm:$0xff]
    %v1549 = vld [vmem:[#allocation5 + $0x220] sm:$0xff]
    %v1550 = vld [vmem:[#allocation5 + $0x228] sm:$0xff]
    %v1551 = vld [vmem:[#allocation5 + $0x230] sm:$0xff]
    %v1552 = vld [vmem:[#allocation5 + $0x238] sm:$0xff]
    %v1553 = vld [vmem:[#allocation5 + $0x240] sm:$0xff]
    %v1554 = vld [vmem:[#allocation5 + $0x248] sm:$0xff]
    %v1555 = vld [vmem:[#allocation5 + $0x250] sm:$0xff]
    %v1556 = vld [vmem:[#allocation5 + $0x258] sm:$0xff]
    %v1557 = vld [vmem:[#allocation5 + $0x260] sm:$0xff]
    %v1558 = vld [vmem:[#allocation5 + $0x268] sm:$0xff]
    %v1559 = vld [vmem:[#allocation5 + $0x270] sm:$0xff]
    %v1560 = vld [vmem:[#allocation5 + $0x278] sm:$0xff]
    %v1561 = vld [vmem:[#allocation5 + $0x280] sm:$0xff]
    %v1562 = vld [vmem:[#allocation5 + $0x288] sm:$0xff]
    %v1563 = vld [vmem:[#allocation5 + $0x290] sm:$0xff]
    %v1564 = vld [vmem:[#allocation5 + $0x298] sm:$0xff]
    %v1565 = vld [vmem:[#allocation5 + $0x2a0] sm:$0xff]
    %v1566 = vld [vmem:[#allocation5 + $0x2a8] sm:$0xff]
    %v1567 = vld [vmem:[#allocation5 + $0x2b0] sm:$0xff]
    %v1568 = vld [vmem:[#allocation5 + $0x2b8] sm:$0xff]
    %v1569 = vld [vmem:[#allocation5 + $0x2c0] sm:$0xff]
    %v1570 = vld [vmem:[#allocation5 + $0x2c8] sm:$0xff]
    %v1571 = vld [vmem:[#allocation5 + $0x2d0] sm:$0xff]
    %v1572 = vld [vmem:[#allocation5 + $0x2d8] sm:$0xff]
    %v1573 = vld [vmem:[#allocation5 + $0x2e0] sm:$0xff]
    %v1574 = vld [vmem:[#allocation5 + $0x2e8] sm:$0xff]
    %v1575 = vld [vmem:[#allocation5 + $0x2f0] sm:$0xff]
    %v1576 = vld [vmem:[#allocation5 + $0x2f8] sm:$0xff]
    %v1577 = vld [vmem:[#allocation5 + $0x300] sm:$0xff]
    %v1578 = vld [vmem:[#allocation5 + $0x308] sm:$0xff]
    %v1579 = vld [vmem:[#allocation5 + $0x310] sm:$0xff]
    %v1580 = vld [vmem:[#allocation5 + $0x318] sm:$0xff]
    %v1581 = vld [vmem:[#allocation5 + $0x320] sm:$0xff]
    %v1582 = vld [vmem:[#allocation5 + $0x328] sm:$0xff]
    %v1583 = vld [vmem:[#allocation5 + $0x330] sm:$0xff]
    %v1584 = vld [vmem:[#allocation5 + $0x338] sm:$0xff]
    %v1585 = vld [vmem:[#allocation5 + $0x340] sm:$0xff]
    %v1586 = vld [vmem:[#allocation5 + $0x348] sm:$0xff]
    %v1587 = vld [vmem:[#allocation5 + $0x350] sm:$0xff]
    %v1588 = vld [vmem:[#allocation5 + $0x358] sm:$0xff]
    %v1589 = vld [vmem:[#allocation5 + $0x360] sm:$0xff]
    %v1590 = vld [vmem:[#allocation5 + $0x368] sm:$0xff]
    %v1591 = vld [vmem:[#allocation5 + $0x370] sm:$0xff]
    %v1592 = vld [vmem:[#allocation5 + $0x378] sm:$0xff]
    %v1593 = vld [vmem:[#allocation5 + $0x380] sm:$0xff]
    %v1594 = vld [vmem:[#allocation5 + $0x388] sm:$0xff]
    %v1595 = vld [vmem:[#allocation5 + $0x390] sm:$0xff]
    %v1596 = vld [vmem:[#allocation5 + $0x398] sm:$0xff]
    %v1597 = vld [vmem:[#allocation5 + $0x3a0] sm:$0xff]
    %v1598 = vld [vmem:[#allocation5 + $0x3a8] sm:$0xff]
    %v1599 = vld [vmem:[#allocation5 + $0x3b0] sm:$0xff]
    %v1600 = vld [vmem:[#allocation5 + $0x3b8] sm:$0xff]
    %v1601 = vld [vmem:[#allocation5 + $0x3c0] sm:$0xff]
    %v1602 = vld [vmem:[#allocation5 + $0x3c8] sm:$0xff]
    %v1603 = vld [vmem:[#allocation5 + $0x3d0] sm:$0xff]
    %v1604 = vld [vmem:[#allocation5 + $0x3d8] sm:$0xff]
    %v1605 = vld [vmem:[#allocation5 + $0x3e0] sm:$0xff]
    %v1606 = vld [vmem:[#allocation5 + $0x3e8] sm:$0xff]
    %v1607 = vld [vmem:[#allocation5 + $0x3f0] sm:$0xff]
    %v1608 = vld [vmem:[#allocation5 + $0x3f8] sm:$0xff]
    %v1609 = vld [vmem:[#allocation5 + $0x400] sm:$0xff]
    %v1610 = vld [vmem:[#allocation5 + $0x408] sm:$0xff]
    %v1611 = vld [vmem:[#allocation5 + $0x410] sm:$0xff]
    %v1612 = vld [vmem:[#allocation5 + $0x418] sm:$0xff]
    %v1613 = vld [vmem:[#allocation5 + $0x420] sm:$0xff]
    %v1614 = vld [vmem:[#allocation5 + $0x428] sm:$0xff]
    %v1615 = vld [vmem:[#allocation5 + $0x430] sm:$0xff]
    %v1616 = vld [vmem:[#allocation5 + $0x438] sm:$0xff]
    %v1617 = vld [vmem:[#allocation5 + $0x440] sm:$0xff]
    %v1618 = vld [vmem:[#allocation5 + $0x448] sm:$0xff]
    %v1619 = vld [vmem:[#allocation5 + $0x450] sm:$0xff]
    %v1620 = vld [vmem:[#allocation5 + $0x458] sm:$0xff]
    %v1621 = vld [vmem:[#allocation5 + $0x460] sm:$0xff]
    %v1622 = vld [vmem:[#allocation5 + $0x468] sm:$0xff]
    %v1623 = vld [vmem:[#allocation5 + $0x470] sm:$0xff]
    %v1624 = vld [vmem:[#allocation5 + $0x478] sm:$0xff]
    %v1625 = vld [vmem:[#allocation5 + $0x480] sm:$0xff]
    %v1626 = vld [vmem:[#allocation5 + $0x488] sm:$0xff]
    %v1627 = vld [vmem:[#allocation5 + $0x490] sm:$0xff]
    %v1628 = vld [vmem:[#allocation5 + $0x498] sm:$0xff]
    %v1629 = vld [vmem:[#allocation5 + $0x4a0] sm:$0xff]
    %v1630 = vld [vmem:[#allocation5 + $0x4a8] sm:$0xff]
    %v1631 = vld [vmem:[#allocation5 + $0x4b0] sm:$0xff]
    %v1632 = vld [vmem:[#allocation5 + $0x4b8] sm:$0xff]
    %v1633 = vld [vmem:[#allocation5 + $0x4c0] sm:$0xff]
    %v1634 = vld [vmem:[#allocation5 + $0x4c8] sm:$0xff]
    %v1635 = vld [vmem:[#allocation5 + $0x4d0] sm:$0xff]
    %v1636 = vld [vmem:[#allocation5 + $0x4d8] sm:$0xff]
    %v1637 = vld [vmem:[#allocation5 + $0x4e0] sm:$0xff]
    %v1638 = vld [vmem:[#allocation5 + $0x4e8] sm:$0xff]
    %v1639 = vld [vmem:[#allocation5 + $0x4f0] sm:$0xff]
    %v1640 = vld [vmem:[#allocation5 + $0x4f8] sm:$0xff]
    %v1641 = vld [vmem:[#allocation5 + $0x500] sm:$0xff]
    %v1642 = vld [vmem:[#allocation5 + $0x508] sm:$0xff]
    %v1643 = vld [vmem:[#allocation5 + $0x510] sm:$0xff]
    %v1644 = vld [vmem:[#allocation5 + $0x518] sm:$0xff]
    %v1645 = vld [vmem:[#allocation5 + $0x520] sm:$0xff]
    %v1646 = vld [vmem:[#allocation5 + $0x528] sm:$0xff]
    %v1647 = vld [vmem:[#allocation5 + $0x530] sm:$0xff]
    %v1648 = vld [vmem:[#allocation5 + $0x538] sm:$0xff]
    %v1649 = vld [vmem:[#allocation5 + $0x540] sm:$0xff]
    %v1650 = vld [vmem:[#allocation5 + $0x548] sm:$0xff]
    %v1651 = vld [vmem:[#allocation5 + $0x550] sm:$0xff]
    %v1652 = vld [vmem:[#allocation5 + $0x558] sm:$0xff]
    %v1653 = vld [vmem:[#allocation5 + $0x560] sm:$0xff]
    %v1654 = vld [vmem:[#allocation5 + $0x568] sm:$0xff]
    %v1655 = vld [vmem:[#allocation5 + $0x570] sm:$0xff]
    %v1656 = vld [vmem:[#allocation5 + $0x578] sm:$0xff]
    %v1657 = vld [vmem:[#allocation5 + $0x580] sm:$0xff]
    %v1658 = vld [vmem:[#allocation5 + $0x588] sm:$0xff]
    %v1659 = vld [vmem:[#allocation5 + $0x590] sm:$0xff]
    %v1660 = vld [vmem:[#allocation5 + $0x598] sm:$0xff]
    %v1661 = vld [vmem:[#allocation5 + $0x5a0] sm:$0xff]
    %v1662 = vld [vmem:[#allocation5 + $0x5a8] sm:$0xff]
    %v1663 = vld [vmem:[#allocation5 + $0x5b0] sm:$0xff]
    %v1664 = vld [vmem:[#allocation5 + $0x5b8] sm:$0xff]
    %v1665 = vld [vmem:[#allocation5 + $0x5c0] sm:$0xff]
    %v1666 = vld [vmem:[#allocation5 + $0x5c8] sm:$0xff]
    %v1667 = vld [vmem:[#allocation5 + $0x5d0] sm:$0xff]
    %v1668 = vld [vmem:[#allocation5 + $0x5d8] sm:$0xff]
    %v1669 = vld [vmem:[#allocation5 + $0x5e0] sm:$0xff]
    %v1670 = vld [vmem:[#allocation5 + $0x5e8] sm:$0xff]
    %v1671 = vld [vmem:[#allocation5 + $0x5f0] sm:$0xff]
    %v1672 = vld [vmem:[#allocation5 + $0x5f8] sm:$0xff]
    %v1673 = vld [vmem:[#allocation5 + $0x600] sm:$0xff]
    %v1674 = vld [vmem:[#allocation5 + $0x608] sm:$0xff]
    %v1675 = vld [vmem:[#allocation5 + $0x610] sm:$0xff]
    %v1676 = vld [vmem:[#allocation5 + $0x618] sm:$0xff]
    %v1677 = vld [vmem:[#allocation5 + $0x620] sm:$0xff]
    %v1678 = vld [vmem:[#allocation5 + $0x628] sm:$0xff]
    %v1679 = vld [vmem:[#allocation5 + $0x630] sm:$0xff]
    %v1680 = vld [vmem:[#allocation5 + $0x638] sm:$0xff]
    %v1681 = vld [vmem:[#allocation5 + $0x640] sm:$0xff]
    %v1682 = vld [vmem:[#allocation5 + $0x648] sm:$0xff]
    %v1683 = vld [vmem:[#allocation5 + $0x650] sm:$0xff]
    %v1684 = vld [vmem:[#allocation5 + $0x658] sm:$0xff]
    %v1685 = vld [vmem:[#allocation5 + $0x660] sm:$0xff]
    %v1686 = vld [vmem:[#allocation5 + $0x668] sm:$0xff]
    %v1687 = vld [vmem:[#allocation5 + $0x670] sm:$0xff]
    %v1688 = vld [vmem:[#allocation5 + $0x678] sm:$0xff]
    %v1689 = vld [vmem:[#allocation5 + $0x680] sm:$0xff]
    %v1690 = vld [vmem:[#allocation5 + $0x688] sm:$0xff]
    %v1691 = vld [vmem:[#allocation5 + $0x690] sm:$0xff]
    %v1692 = vld [vmem:[#allocation5 + $0x698] sm:$0xff]
    %v1693 = vld [vmem:[#allocation5 + $0x6a0] sm:$0xff]
    %v1694 = vld [vmem:[#allocation5 + $0x6a8] sm:$0xff]
    %v1695 = vld [vmem:[#allocation5 + $0x6b0] sm:$0xff]
    %v1696 = vld [vmem:[#allocation5 + $0x6b8] sm:$0xff]
    %v1697 = vld [vmem:[#allocation5 + $0x6c0] sm:$0xff]
    %v1698 = vld [vmem:[#allocation5 + $0x6c8] sm:$0xff]
    %v1699 = vld [vmem:[#allocation5 + $0x6d0] sm:$0xff]
    %v1700 = vld [vmem:[#allocation5 + $0x6d8] sm:$0xff]
    %v1701 = vld [vmem:[#allocation5 + $0x6e0] sm:$0xff]
    %v1702 = vld [vmem:[#allocation5 + $0x6e8] sm:$0xff]
    %v1703 = vld [vmem:[#allocation5 + $0x6f0] sm:$0xff]
    %v1704 = vld [vmem:[#allocation5 + $0x6f8] sm:$0xff]
    %v1705 = vld [vmem:[#allocation5 + $0x700] sm:$0xff]
    %v1706 = vld [vmem:[#allocation5 + $0x708] sm:$0xff]
    %v1707 = vld [vmem:[#allocation5 + $0x710] sm:$0xff]
    %v1708 = vld [vmem:[#allocation5 + $0x718] sm:$0xff]
    %v1709 = vld [vmem:[#allocation5 + $0x720] sm:$0xff]
    %v1710 = vld [vmem:[#allocation5 + $0x728] sm:$0xff]
    %v1711 = vld [vmem:[#allocation5 + $0x730] sm:$0xff]
    %v1712 = vld [vmem:[#allocation5 + $0x738] sm:$0xff]
    %v1713 = vld [vmem:[#allocation5 + $0x740] sm:$0xff]
    %v1714 = vld [vmem:[#allocation5 + $0x748] sm:$0xff]
    %v1715 = vld [vmem:[#allocation5 + $0x750] sm:$0xff]
    %v1716 = vld [vmem:[#allocation5 + $0x758] sm:$0xff]
    %v1717 = vld [vmem:[#allocation5 + $0x760] sm:$0xff]
    %v1718 = vld [vmem:[#allocation5 + $0x768] sm:$0xff]
    %v1719 = vld [vmem:[#allocation5 + $0x770] sm:$0xff]
    %v1720 = vld [vmem:[#allocation5 + $0x778] sm:$0xff]
    %v1721 = vld [vmem:[#allocation5 + $0x780] sm:$0xff]
    %v1722 = vld [vmem:[#allocation5 + $0x788] sm:$0xff]
    %v1723 = vld [vmem:[#allocation5 + $0x790] sm:$0xff]
    %v1724 = vld [vmem:[#allocation5 + $0x798] sm:$0xff]
    %v1725 = vld [vmem:[#allocation5 + $0x7a0] sm:$0xff]
    %v1726 = vld [vmem:[#allocation5 + $0x7a8] sm:$0xff]
    %v1727 = vld [vmem:[#allocation5 + $0x7b0] sm:$0xff]
    %v1728 = vld [vmem:[#allocation5 + $0x7b8] sm:$0xff]
    %v1729 = vld [vmem:[#allocation5 + $0x7c0] sm:$0xff]
    %v1730 = vld [vmem:[#allocation5 + $0x7c8] sm:$0xff]
    %v1731 = vld [vmem:[#allocation5 + $0x7d0] sm:$0xff]
    %v1732 = vld [vmem:[#allocation5 + $0x7d8] sm:$0xff]
    %v1733 = vld [vmem:[#allocation5 + $0x7e0] sm:$0xff]
    %v1734 = vld [vmem:[#allocation5 + $0x7e8] sm:$0xff]
    %v1735 = vld [vmem:[#allocation5 + $0x7f0] sm:$0xff]
    %v1736 = vld [vmem:[#allocation5 + $0x7f8] sm:$0xff]
    %v1737 = vld [vmem:[#allocation5 + $0x800] sm:$0xff]
    %v1738 = vld [vmem:[#allocation5 + $0x808] sm:$0xff]
    %v1739 = vld [vmem:[#allocation5 + $0x810] sm:$0xff]
    %v1740 = vld [vmem:[#allocation5 + $0x818] sm:$0xff]
    %v1741 = vld [vmem:[#allocation5 + $0x820] sm:$0xff]
    %v1742 = vld [vmem:[#allocation5 + $0x828] sm:$0xff]
    %v1743 = vld [vmem:[#allocation5 + $0x830] sm:$0xff]
    %v1744 = vld [vmem:[#allocation5 + $0x838] sm:$0xff]
    %v1745 = vld [vmem:[#allocation5 + $0x840] sm:$0xff]
    %v1746 = vld [vmem:[#allocation5 + $0x848] sm:$0xff]
    %v1747 = vld [vmem:[#allocation5 + $0x850] sm:$0xff]
    %v1748 = vld [vmem:[#allocation5 + $0x858] sm:$0xff]
    %v1749 = vld [vmem:[#allocation5 + $0x860] sm:$0xff]
    %v1750 = vld [vmem:[#allocation5 + $0x868] sm:$0xff]
    %v1751 = vld [vmem:[#allocation5 + $0x870] sm:$0xff]
    %v1752 = vld [vmem:[#allocation5 + $0x878] sm:$0xff]
    %v1753 = vld [vmem:[#allocation5 + $0x880] sm:$0xff]
    %v1754 = vld [vmem:[#allocation5 + $0x888] sm:$0xff]
    %v1755 = vld [vmem:[#allocation5 + $0x890] sm:$0xff]
    %v1756 = vld [vmem:[#allocation5 + $0x898] sm:$0xff]
    %v1757 = vld [vmem:[#allocation5 + $0x8a0] sm:$0xff]
    %v1758 = vld [vmem:[#allocation5 + $0x8a8] sm:$0xff]
    %v1759 = vld [vmem:[#allocation5 + $0x8b0] sm:$0xff]
    %v1760 = vld [vmem:[#allocation5 + $0x8b8] sm:$0xff]
    %v1761 = vld [vmem:[#allocation5 + $0x8c0] sm:$0xff]
    %v1762 = vld [vmem:[#allocation5 + $0x8c8] sm:$0xff]
    %v1763 = vld [vmem:[#allocation5 + $0x8d0] sm:$0xff]
    %v1764 = vld [vmem:[#allocation5 + $0x8d8] sm:$0xff]
    %v1765 = vld [vmem:[#allocation5 + $0x8e0] sm:$0xff]
    %v1766 = vld [vmem:[#allocation5 + $0x8e8] sm:$0xff]
    %v1767 = vld [vmem:[#allocation5 + $0x8f0] sm:$0xff]
    %v1768 = vld [vmem:[#allocation5 + $0x8f8] sm:$0xff]
    %v1769 = vld [vmem:[#allocation5 + $0x900] sm:$0xff]
    %v1770 = vld [vmem:[#allocation5 + $0x908] sm:$0xff]
    %v1771 = vld [vmem:[#allocation5 + $0x910] sm:$0xff]
    %v1772 = vld [vmem:[#allocation5 + $0x918] sm:$0xff]
    %v1773 = vld [vmem:[#allocation5 + $0x920] sm:$0xff]
    %v1774 = vld [vmem:[#allocation5 + $0x928] sm:$0xff]
    %v1775 = vld [vmem:[#allocation5 + $0x930] sm:$0xff]
    %v1776 = vld [vmem:[#allocation5 + $0x938] sm:$0xff]
    %v1777 = vld [vmem:[#allocation5 + $0x940] sm:$0xff]
    %v1778 = vld [vmem:[#allocation5 + $0x948] sm:$0xff]
    %v1779 = vld [vmem:[#allocation5 + $0x950] sm:$0xff]
    %v1780 = vld [vmem:[#allocation5 + $0x958] sm:$0xff]
    %v1781 = vld [vmem:[#allocation5 + $0x960] sm:$0xff]
    %v1782 = vld [vmem:[#allocation5 + $0x968] sm:$0xff]
    %v1783 = vld [vmem:[#allocation5 + $0x970] sm:$0xff]
    %v1784 = vld [vmem:[#allocation5 + $0x978] sm:$0xff]
    %v1785 = vld [vmem:[#allocation5 + $0x980] sm:$0xff]
    %v1786 = vld [vmem:[#allocation5 + $0x988] sm:$0xff]
    %v1787 = vld [vmem:[#allocation5 + $0x990] sm:$0xff]
    %v1788 = vld [vmem:[#allocation5 + $0x998] sm:$0xff]
    %v1789 = vld [vmem:[#allocation5 + $0x9a0] sm:$0xff]
    %v1790 = vld [vmem:[#allocation5 + $0x9a8] sm:$0xff]
    %v1791 = vld [vmem:[#allocation5 + $0x9b0] sm:$0xff]
    %v1792 = vld [vmem:[#allocation5 + $0x9b8] sm:$0xff]
    %v1793 = vld [vmem:[#allocation5 + $0x9c0] sm:$0xff]
    %v1794 = vld [vmem:[#allocation5 + $0x9c8] sm:$0xff]
    %v1795 = vld [vmem:[#allocation5 + $0x9d0] sm:$0xff]
    %v1796 = vld [vmem:[#allocation5 + $0x9d8] sm:$0xff]
    %v1797 = vld [vmem:[#allocation5 + $0x9e0] sm:$0xff]
    %v1798 = vld [vmem:[#allocation5 + $0x9e8] sm:$0xff]
    %v1799 = vld [vmem:[#allocation5 + $0x9f0] sm:$0xff]
    %v1800 = vld [vmem:[#allocation5 + $0x9f8] sm:$0xff]
    %v1801 = vld [vmem:[#allocation5 + $0xa00] sm:$0xff]
    %v1802 = vld [vmem:[#allocation5 + $0xa08] sm:$0xff]
    %v1803 = vld [vmem:[#allocation5 + $0xa10] sm:$0xff]
    %v1804 = vld [vmem:[#allocation5 + $0xa18] sm:$0xff]
    %v1805 = vld [vmem:[#allocation5 + $0xa20] sm:$0xff]
    %v1806 = vld [vmem:[#allocation5 + $0xa28] sm:$0xff]
    %v1807 = vld [vmem:[#allocation5 + $0xa30] sm:$0xff]
    %v1808 = vld [vmem:[#allocation5 + $0xa38] sm:$0xff]
    %v1809 = vld [vmem:[#allocation5 + $0xa40] sm:$0xff]
    %v1810 = vld [vmem:[#allocation5 + $0xa48] sm:$0xff]
    %v1811 = vld [vmem:[#allocation5 + $0xa50] sm:$0xff]
    %v1812 = vld [vmem:[#allocation5 + $0xa58] sm:$0xff]
    %v1813 = vld [vmem:[#allocation5 + $0xa60] sm:$0xff]
    %v1814 = vld [vmem:[#allocation5 + $0xa68] sm:$0xff]
    %v1815 = vld [vmem:[#allocation5 + $0xa70] sm:$0xff]
    %v1816 = vld [vmem:[#allocation5 + $0xa78] sm:$0xff]
    %v1817 = vld [vmem:[#allocation5 + $0xa80] sm:$0xff]
    %v1818 = vld [vmem:[#allocation5 + $0xa88] sm:$0xff]
    %v1819 = vld [vmem:[#allocation5 + $0xa90] sm:$0xff]
    %v1820 = vld [vmem:[#allocation5 + $0xa98] sm:$0xff]
    %v1821 = vld [vmem:[#allocation5 + $0xaa0] sm:$0xff]
    %v1822 = vld [vmem:[#allocation5 + $0xaa8] sm:$0xff]
    %v1823 = vld [vmem:[#allocation5 + $0xab0] sm:$0xff]
    %v1824 = vld [vmem:[#allocation5 + $0xab8] sm:$0xff]
    %v1825 = vld [vmem:[#allocation5 + $0xac0] sm:$0xff]
    %v1826 = vld [vmem:[#allocation5 + $0xac8] sm:$0xff]
    %v1827 = vld [vmem:[#allocation5 + $0xad0] sm:$0xff]
    %v1828 = vld [vmem:[#allocation5 + $0xad8] sm:$0xff]
    %v1829 = vld [vmem:[#allocation5 + $0xae0] sm:$0xff]
    %v1830 = vld [vmem:[#allocation5 + $0xae8] sm:$0xff]
    %v1831 = vld [vmem:[#allocation5 + $0xaf0] sm:$0xff]
    %v1832 = vld [vmem:[#allocation5 + $0xaf8] sm:$0xff]
    %v1833 = vld [vmem:[#allocation5 + $0xb00] sm:$0xff]
    %v1834 = vld [vmem:[#allocation5 + $0xb08] sm:$0xff]
    %v1835 = vld [vmem:[#allocation5 + $0xb10] sm:$0xff]
    %v1836 = vld [vmem:[#allocation5 + $0xb18] sm:$0xff]
    %v1837 = vld [vmem:[#allocation5 + $0xb20] sm:$0xff]
    %v1838 = vld [vmem:[#allocation5 + $0xb28] sm:$0xff]
    %v1839 = vld [vmem:[#allocation5 + $0xb30] sm:$0xff]
    %v1840 = vld [vmem:[#allocation5 + $0xb38] sm:$0xff]
    %v1841 = vld [vmem:[#allocation5 + $0xb40] sm:$0xff]
    %v1842 = vld [vmem:[#allocation5 + $0xb48] sm:$0xff]
    %v1843 = vld [vmem:[#allocation5 + $0xb50] sm:$0xff]
    %v1844 = vld [vmem:[#allocation5 + $0xb58] sm:$0xff]
    %v1845 = vld [vmem:[#allocation5 + $0xb60] sm:$0xff]
    %v1846 = vld [vmem:[#allocation5 + $0xb68] sm:$0xff]
    %v1847 = vld [vmem:[#allocation5 + $0xb70] sm:$0xff]
    %v1848 = vld [vmem:[#allocation5 + $0xb78] sm:$0xff]
    %v1849 = vld [vmem:[#allocation5 + $0xb80] sm:$0xff]
    %v1850 = vld [vmem:[#allocation5 + $0xb88] sm:$0xff]
    %v1851 = vld [vmem:[#allocation5 + $0xb90] sm:$0xff]
    %v1852 = vld [vmem:[#allocation5 + $0xb98] sm:$0xff]
    %v1853 = vld [vmem:[#allocation5 + $0xba0] sm:$0xff]
    %v1854 = vld [vmem:[#allocation5 + $0xba8] sm:$0xff]
    %v1855 = vld [vmem:[#allocation5 + $0xbb0] sm:$0xff]
    %v1856 = vld [vmem:[#allocation5 + $0xbb8] sm:$0xff]
    %v1857 = vld [vmem:[#allocation5 + $0xbc0] sm:$0xff]
    %v1858 = vld [vmem:[#allocation5 + $0xbc8] sm:$0xff]
    %v1859 = vld [vmem:[#allocation5 + $0xbd0] sm:$0xff]
    %v1860 = vld [vmem:[#allocation5 + $0xbd8] sm:$0xff]
    %v1861 = vld [vmem:[#allocation5 + $0xbe0] sm:$0xff]
    %v1862 = vld [vmem:[#allocation5 + $0xbe8] sm:$0xff]
    %v1863 = vld [vmem:[#allocation5 + $0xbf0] sm:$0xff]
    %v1864 = vld [vmem:[#allocation5 + $0xbf8] sm:$0xff]
    %v1865 = vld [vmem:[#allocation5 + $0xc00] sm:$0xff]
    %v1866 = vld [vmem:[#allocation5 + $0xc08] sm:$0xff]
    %v1867 = vld [vmem:[#allocation5 + $0xc10] sm:$0xff]
    %v1868 = vld [vmem:[#allocation5 + $0xc18] sm:$0xff]
    %v1869 = vld [vmem:[#allocation5 + $0xc20] sm:$0xff]
    %v1870 = vld [vmem:[#allocation5 + $0xc28] sm:$0xff]
    %v1871 = vld [vmem:[#allocation5 + $0xc30] sm:$0xff]
    %v1872 = vld [vmem:[#allocation5 + $0xc38] sm:$0xff]
    %v1873 = vld [vmem:[#allocation5 + $0xc40] sm:$0xff]
    %v1874 = vld [vmem:[#allocation5 + $0xc48] sm:$0xff]
    %v1875 = vld [vmem:[#allocation5 + $0xc50] sm:$0xff]
    %v1876 = vld [vmem:[#allocation5 + $0xc58] sm:$0xff]
    %v1877 = vld [vmem:[#allocation5 + $0xc60] sm:$0xff]
    %v1878 = vld [vmem:[#allocation5 + $0xc68] sm:$0xff]
    %v1879 = vld [vmem:[#allocation5 + $0xc70] sm:$0xff]
    %v1880 = vld [vmem:[#allocation5 + $0xc78] sm:$0xff]
    %v1881 = vld [vmem:[#allocation5 + $0xc80] sm:$0xff]
    %v1882 = vld [vmem:[#allocation5 + $0xc88] sm:$0xff]
    %v1883 = vld [vmem:[#allocation5 + $0xc90] sm:$0xff]
    %v1884 = vld [vmem:[#allocation5 + $0xc98] sm:$0xff]
    %v1885 = vld [vmem:[#allocation5 + $0xca0] sm:$0xff]
    %v1886 = vld [vmem:[#allocation5 + $0xca8] sm:$0xff]
    %v1887 = vld [vmem:[#allocation5 + $0xcb0] sm:$0xff]
    %v1888 = vld [vmem:[#allocation5 + $0xcb8] sm:$0xff]
    %v1889 = vld [vmem:[#allocation5 + $0xcc0] sm:$0xff]
    %v1890 = vld [vmem:[#allocation5 + $0xcc8] sm:$0xff]
    %v1891 = vld [vmem:[#allocation5 + $0xcd0] sm:$0xff]
    %v1892 = vld [vmem:[#allocation5 + $0xcd8] sm:$0xff]
    %v1893 = vld [vmem:[#allocation5 + $0xce0] sm:$0xff]
    %v1894 = vld [vmem:[#allocation5 + $0xce8] sm:$0xff]
    %v1895 = vld [vmem:[#allocation5 + $0xcf0] sm:$0xff]
    %v1896 = vld [vmem:[#allocation5 + $0xcf8] sm:$0xff]
    %v1897 = vld [vmem:[#allocation5 + $0xd00] sm:$0xff]
    %v1898 = vld [vmem:[#allocation5 + $0xd08] sm:$0xff]
    %v1899 = vld [vmem:[#allocation5 + $0xd10] sm:$0xff]
    %v1900 = vld [vmem:[#allocation5 + $0xd18] sm:$0xff]
    %v1901 = vld [vmem:[#allocation5 + $0xd20] sm:$0xff]
    %v1902 = vld [vmem:[#allocation5 + $0xd28] sm:$0xff]
    %v1903 = vld [vmem:[#allocation5 + $0xd30] sm:$0xff]
    %v1904 = vld [vmem:[#allocation5 + $0xd38] sm:$0xff]
    %v1905 = vld [vmem:[#allocation5 + $0xd40] sm:$0xff]
    %v1906 = vld [vmem:[#allocation5 + $0xd48] sm:$0xff]
    %v1907 = vld [vmem:[#allocation5 + $0xd50] sm:$0xff]
    %v1908 = vld [vmem:[#allocation5 + $0xd58] sm:$0xff]
    %v1909 = vld [vmem:[#allocation5 + $0xd60] sm:$0xff]
    %v1910 = vld [vmem:[#allocation5 + $0xd68] sm:$0xff]
    %v1911 = vld [vmem:[#allocation5 + $0xd70] sm:$0xff]
    %v1912 = vld [vmem:[#allocation5 + $0xd78] sm:$0xff]
    %v1913 = vld [vmem:[#allocation5 + $0xd80] sm:$0xff]
    %v1914 = vld [vmem:[#allocation5 + $0xd88] sm:$0xff]
    %v1915 = vld [vmem:[#allocation5 + $0xd90] sm:$0xff]
    %v1916 = vld [vmem:[#allocation5 + $0xd98] sm:$0xff]
    %v1917 = vld [vmem:[#allocation5 + $0xda0] sm:$0xff]
    %v1918 = vld [vmem:[#allocation5 + $0xda8] sm:$0xff]
    %v1919 = vld [vmem:[#allocation5 + $0xdb0] sm:$0xff]
    %v1920 = vld [vmem:[#allocation5 + $0xdb8] sm:$0xff]
    %v1921 = vld [vmem:[#allocation5 + $0xdc0] sm:$0xff]
    %v1922 = vld [vmem:[#allocation5 + $0xdc8] sm:$0xff]
    %v1923 = vld [vmem:[#allocation5 + $0xdd0] sm:$0xff]
    %v1924 = vld [vmem:[#allocation5 + $0xdd8] sm:$0xff]
    %v1925 = vld [vmem:[#allocation5 + $0xde0] sm:$0xff]
    %v1926 = vld [vmem:[#allocation5 + $0xde8] sm:$0xff]
    %v1927 = vld [vmem:[#allocation5 + $0xdf0] sm:$0xff]
    %v1928 = vld [vmem:[#allocation5 + $0xdf8] sm:$0xff]
    %v1929 = vld [vmem:[#allocation5 + $0xe00] sm:$0xff]
    %v1930 = vld [vmem:[#allocation5 + $0xe08] sm:$0xff]
    %v1931 = vld [vmem:[#allocation5 + $0xe10] sm:$0xff]
    %v1932 = vld [vmem:[#allocation5 + $0xe18] sm:$0xff]
    %v1933 = vld [vmem:[#allocation5 + $0xe20] sm:$0xff]
    %v1934 = vld [vmem:[#allocation5 + $0xe28] sm:$0xff]
    %v1935 = vld [vmem:[#allocation5 + $0xe30] sm:$0xff]
    %v1936 = vld [vmem:[#allocation5 + $0xe38] sm:$0xff]
    %v1937 = vld [vmem:[#allocation5 + $0xe40] sm:$0xff]
    %v1938 = vld [vmem:[#allocation5 + $0xe48] sm:$0xff]
    %v1939 = vld [vmem:[#allocation5 + $0xe50] sm:$0xff]
    %v1940 = vld [vmem:[#allocation5 + $0xe58] sm:$0xff]
    %v1941 = vld [vmem:[#allocation5 + $0xe60] sm:$0xff]
    %v1942 = vld [vmem:[#allocation5 + $0xe68] sm:$0xff]
    %v1943 = vld [vmem:[#allocation5 + $0xe70] sm:$0xff]
    %v1944 = vld [vmem:[#allocation5 + $0xe78] sm:$0xff]
    %v1945 = vld [vmem:[#allocation5 + $0xe80] sm:$0xff]
    %v1946 = vld [vmem:[#allocation5 + $0xe88] sm:$0xff]
    %v1947 = vld [vmem:[#allocation5 + $0xe90] sm:$0xff]
    %v1948 = vld [vmem:[#allocation5 + $0xe98] sm:$0xff]
    %v1949 = vld [vmem:[#allocation5 + $0xea0] sm:$0xff]
    %v1950 = vld [vmem:[#allocation5 + $0xea8] sm:$0xff]
    %v1951 = vld [vmem:[#allocation5 + $0xeb0] sm:$0xff]
    %v1952 = vld [vmem:[#allocation5 + $0xeb8] sm:$0xff]
    %v1953 = vld [vmem:[#allocation5 + $0xec0] sm:$0xff]
    %v1954 = vld [vmem:[#allocation5 + $0xec8] sm:$0xff]
    %v1955 = vld [vmem:[#allocation5 + $0xed0] sm:$0xff]
    %v1956 = vld [vmem:[#allocation5 + $0xed8] sm:$0xff]
    %v1957 = vld [vmem:[#allocation5 + $0xee0] sm:$0xff]
    %v1958 = vld [vmem:[#allocation5 + $0xee8] sm:$0xff]
    %v1959 = vld [vmem:[#allocation5 + $0xef0] sm:$0xff]
    %v1960 = vld [vmem:[#allocation5 + $0xef8] sm:$0xff]
    %v1961 = vld [vmem:[#allocation5 + $0xf00] sm:$0xff]
    %v1962 = vld [vmem:[#allocation5 + $0xf08] sm:$0xff]
    %v1963 = vld [vmem:[#allocation5 + $0xf10] sm:$0xff]
    %v1964 = vld [vmem:[#allocation5 + $0xf18] sm:$0xff]
    %v1965 = vld [vmem:[#allocation5 + $0xf20] sm:$0xff]
    %v1966 = vld [vmem:[#allocation5 + $0xf28] sm:$0xff]
    %v1967 = vld [vmem:[#allocation5 + $0xf30] sm:$0xff]
    %v1968 = vld [vmem:[#allocation5 + $0xf38] sm:$0xff]
    %v1969 = vld [vmem:[#allocation5 + $0xf40] sm:$0xff]
    %v1970 = vld [vmem:[#allocation5 + $0xf48] sm:$0xff]
    %v1971 = vld [vmem:[#allocation5 + $0xf50] sm:$0xff]
    %v1972 = vld [vmem:[#allocation5 + $0xf58] sm:$0xff]
    %v1973 = vld [vmem:[#allocation5 + $0xf60] sm:$0xff]
    %v1974 = vld [vmem:[#allocation5 + $0xf68] sm:$0xff]
    %v1975 = vld [vmem:[#allocation5 + $0xf70] sm:$0xff]
    %v1976 = vld [vmem:[#allocation5 + $0xf78] sm:$0xff]
    %v1977 = vld [vmem:[#allocation5 + $0xf80] sm:$0xff]
    %v1978 = vld [vmem:[#allocation5 + $0xf88] sm:$0xff]
    %v1979 = vld [vmem:[#allocation5 + $0xf90] sm:$0xff]
    %v1980 = vld [vmem:[#allocation5 + $0xf98] sm:$0xff]
    %v1981 = vld [vmem:[#allocation5 + $0xfa0] sm:$0xff]
    %v1982 = vld [vmem:[#allocation5 + $0xfa8] sm:$0xff]
    %v1983 = vld [vmem:[#allocation5 + $0xfb0] sm:$0xff]
    %v1984 = vld [vmem:[#allocation5 + $0xfb8] sm:$0xff]
    %v1985 = vld [vmem:[#allocation5 + $0xfc0] sm:$0xff]
    %v1986 = vld [vmem:[#allocation5 + $0xfc8] sm:$0xff]
    %v1987 = vld [vmem:[#allocation5 + $0xfd0] sm:$0xff]
    %v1988 = vld [vmem:[#allocation5 + $0xfd8] sm:$0xff]
    %v1989 = vld [vmem:[#allocation5 + $0xfe0] sm:$0xff]
    %v1990 = vld [vmem:[#allocation5 + $0xfe8] sm:$0xff]
    %v1991 = vld [vmem:[#allocation5 + $0xff0] sm:$0xff]
    %v1992 = vld [vmem:[#allocation5 + $0xff8] sm:$0xff]
    %v1993 = vld [vmem:[#allocation5 + $0x1000] sm:$0xff]
    %v1994 = vld [vmem:[#allocation5 + $0x1008] sm:$0xff]
    %v1995 = vld [vmem:[#allocation5 + $0x1010] sm:$0xff]
    %v1996 = vld [vmem:[#allocation5 + $0x1018] sm:$0xff]
    %v1997 = vld [vmem:[#allocation5 + $0x1020] sm:$0xff]
    %v1998 = vld [vmem:[#allocation5 + $0x1028] sm:$0xff]
    %v1999 = vld [vmem:[#allocation5 + $0x1030] sm:$0xff]
    %v2000 = vld [vmem:[#allocation5 + $0x1038] sm:$0xff]
    %v2001 = vld [vmem:[#allocation5 + $0x1040] sm:$0xff]
    %v2002 = vld [vmem:[#allocation5 + $0x1048] sm:$0xff]
    %v2003 = vld [vmem:[#allocation5 + $0x1050] sm:$0xff]
    %v2004 = vld [vmem:[#allocation5 + $0x1058] sm:$0xff]
    %v2005 = vld [vmem:[#allocation5 + $0x1060] sm:$0xff]
    %v2006 = vld [vmem:[#allocation5 + $0x1068] sm:$0xff]
    %v2007 = vld [vmem:[#allocation5 + $0x1070] sm:$0xff]
    %v2008 = vld [vmem:[#allocation5 + $0x1078] sm:$0xff]
    %v2009 = vld [vmem:[#allocation5 + $0x1080] sm:$0xff]
    %v2010 = vld [vmem:[#allocation5 + $0x1088] sm:$0xff]
    %v2011 = vld [vmem:[#allocation5 + $0x1090] sm:$0xff]
    %v2012 = vld [vmem:[#allocation5 + $0x1098] sm:$0xff]
    %v2013 = vld [vmem:[#allocation5 + $0x10a0] sm:$0xff]
    %v2014 = vld [vmem:[#allocation5 + $0x10a8] sm:$0xff]
    %v2015 = vld [vmem:[#allocation5 + $0x10b0] sm:$0xff]
    %v2016 = vld [vmem:[#allocation5 + $0x10b8] sm:$0xff]
    %v2017 = vld [vmem:[#allocation5 + $0x10c0] sm:$0xff]
    %v2018 = vld [vmem:[#allocation5 + $0x10c8] sm:$0xff]
    %v2019 = vld [vmem:[#allocation5 + $0x10d0] sm:$0xff]
    %v2020 = vld [vmem:[#allocation5 + $0x10d8] sm:$0xff]
    %v2021 = vld [vmem:[#allocation5 + $0x10e0] sm:$0xff]
    %v2022 = vld [vmem:[#allocation5 + $0x10e8] sm:$0xff]
    %v2023 = vld [vmem:[#allocation5 + $0x10f0] sm:$0xff]
    %v2024 = vld [vmem:[#allocation5 + $0x10f8] sm:$0xff]
    %v2025 = vld [vmem:[#allocation5 + $0x1100] sm:$0xff]
    %v2026 = vld [vmem:[#allocation5 + $0x1108] sm:$0xff]
    %v2027 = vld [vmem:[#allocation5 + $0x1110] sm:$0xff]
    %v2028 = vld [vmem:[#allocation5 + $0x1118] sm:$0xff]
    %v2029 = vld [vmem:[#allocation5 + $0x1120] sm:$0xff]
    %v2030 = vld [vmem:[#allocation5 + $0x1128] sm:$0xff]
    %v2031 = vld [vmem:[#allocation5 + $0x1130] sm:$0xff]
    %v2032 = vld [vmem:[#allocation5 + $0x1138] sm:$0xff]
    %v2033 = vld [vmem:[#allocation5 + $0x1140] sm:$0xff]
    %v2034 = vld [vmem:[#allocation5 + $0x1148] sm:$0xff]
    %v2035 = vld [vmem:[#allocation5 + $0x1150] sm:$0xff]
    %v2036 = vld [vmem:[#allocation5 + $0x1158] sm:$0xff]
    %v2037 = vld [vmem:[#allocation5 + $0x1160] sm:$0xff]
    %v2038 = vld [vmem:[#allocation5 + $0x1168] sm:$0xff]
    %v2039 = vld [vmem:[#allocation5 + $0x1170] sm:$0xff]
    %v2040 = vld [vmem:[#allocation5 + $0x1178] sm:$0xff]
    %v2041 = vld [vmem:[#allocation5 + $0x1180] sm:$0xff]
    %v2042 = vld [vmem:[#allocation5 + $0x1188] sm:$0xff]
    %v2043 = vld [vmem:[#allocation5 + $0x1190] sm:$0xff]
    %v2044 = vld [vmem:[#allocation5 + $0x1198] sm:$0xff]
    %v2045 = vld [vmem:[#allocation5 + $0x11a0] sm:$0xff]
    %v2046 = vld [vmem:[#allocation5 + $0x11a8] sm:$0xff]
    %v2047 = vld [vmem:[#allocation5 + $0x11b0] sm:$0xff]
    %v2048 = vld [vmem:[#allocation5 + $0x11b8] sm:$0xff]
    %v2049 = vld [vmem:[#allocation5 + $0x11c0] sm:$0xff]
    %v2050 = vld [vmem:[#allocation5 + $0x11c8] sm:$0xff]
    %v2051 = vld [vmem:[#allocation5 + $0x11d0] sm:$0xff]
    %v2052 = vld [vmem:[#allocation5 + $0x11d8] sm:$0xff]
    %v2053 = vld [vmem:[#allocation5 + $0x11e0] sm:$0xff]
    %v2054 = vld [vmem:[#allocation5 + $0x11e8] sm:$0xff]
    %v2055 = vld [vmem:[#allocation5 + $0x11f0] sm:$0xff]
    %v2056 = vld [vmem:[#allocation5 + $0x11f8] sm:$0xff]
    %2057 = vmatprep.subr.mxu0 %v1572
    %2058 = vmatpush1.msra.mxu0 %v1571
    %2059 = vmatprep.subr.mxu0 %v1566
    %2060 = vmatpush1.msra.mxu0 %v1565
    %2061 = vmatprep.subr.mxu0 %v1560
    %2062 = vmatpush1.msra.mxu0 %v1559
    %2063 = vmatprep.subr.mxu0 %v1554
    %2064 = vmatpush1.msra.mxu0 %v1553
    %2065 = vmatprep.subr.mxu0 %v1548
    %2066 = vmatpush1.msra.mxu0 %v1547
    %2067 = vmatprep.subr.mxu0 %v1542
    %2068 = vmatpush1.msra.mxu0 %v1541
    %2069 = vmatprep.subr.mxu0 %v1536
    %2070 = vmatpush1.msra.mxu0 %v1535
    %2071 = vmatprep.subr.mxu0 %v1530
    %2072 = vmatpush1.msra.mxu0 %v1529
    %2073 = vmatprep.subr.mxu0 %v1524
    %2074 = vmatpush1.msra.mxu0 %v1523
    %2075 = vmatprep.subr.mxu0 %v1518
    %2076 = vmatpush1.msra.mxu0 %v1517
    %2077 = vmatprep.subr.mxu0 %v1512
    %2078 = vmatpush1.msra.mxu0 %v1511
    %2079 = vmatprep.subr.mxu0 %v1506
    %2080 = vmatpush1.msra.mxu0 %v1505
    %2081 = vmatprep.subr.mxu0 %v1500
    %2082 = vmatpush1.msra.mxu0 %v1499
    %2083 = vmatprep.subr.mxu0 %v1494
    %2084 = vmatpush1.msra.mxu0 %v1493
    %2085 = vmatprep.subr.mxu0 %v1488
    %2086 = vmatpush1.msra.mxu0 %v1487
    %2087 = vmatprep.subr.mxu0 %v1482
    %2088 = vmatpush1.msra.mxu0 %v1481
    %2089 = vmatprep.subr.mxu0 %v1668
    %2090 = vmatpush2.msra.mxu0 %v1667
    %2091 = vmatprep.subr.mxu0 %v1662
    %2092 = vmatpush2.msra.mxu0 %v1661
    %2093 = vmatprep.subr.mxu0 %v1656
    %2094 = vmatpush2.msra.mxu0 %v1655
    %2095 = vmatprep.subr.mxu0 %v1650
    %2096 = vmatpush2.msra.mxu0 %v1649
    %2097 = vmatprep.subr.mxu0 %v1644
    %2098 = vmatpush2.msra.mxu0 %v1643
    %2099 = vmatprep.subr.mxu0 %v1638
    %2100 = vmatpush2.msra.mxu0 %v1637
    %2101 = vmatprep.subr.mxu0 %v1632
    %2102 = vmatpush2.msra.mxu0 %v1631
    %2103 = vmatprep.subr.mxu0 %v1626
    %2104 = vmatpush2.msra.mxu0 %v1625
    %2105 = vmatprep.subr.mxu0 %v1620
    %2106 = vmatpush2.msra.mxu0 %v1619
    %2107 = vmatprep.subr.mxu0 %v1614
    %2108 = vmatpush2.msra.mxu0 %v1613
    %2109 = vmatprep.subr.mxu0 %v1608
    %2110 = vmatpush2.msra.mxu0 %v1607
    %2111 = vmatprep.subr.mxu0 %v1602
    %2112 = vmatpush2.msra.mxu0 %v1601
    %2113 = vmatprep.subr.mxu0 %v1596
    %2114 = vmatpush2.msra.mxu0 %v1595
    %2115 = vmatprep.subr.mxu0 %v1590
    %2116 = vmatpush2.msra.mxu0 %v1589
    %2117 = vmatprep.subr.mxu0 %v1584
    %2118 = vmatpush2.msra.mxu0 %v1583
    %2119 = vmatprep.subr.mxu0 %v1578
    %2120 = vmatpush2.msra.mxu0 %v1577
    %2121 = vmatprep.mubr.f32.mxu0 %v1476
    %2122 = vmatmul.mubr.f32.gmra.mxu0 %v1475
    %v2123 = vpop.f32.mrf.mxu0
    %v2124 = vadd.f32 0.0, %v2123
    %v2125 = vpop.f32.mrf.mxu0
    %v2126 = vadd.f32 0.0, %v2125
    %2127 = vdwg.mxu0
    %2128 = vmatprep.subr.mxu0 %v1764
    %2129 = vmatpush1.msra.mxu0 %v1763
    %2130 = vmatprep.subr.mxu0 %v1758
    %2131 = vmatpush1.msra.mxu0 %v1757
    %2132 = vmatprep.subr.mxu0 %v1752
    %2133 = vmatpush1.msra.mxu0 %v1751
    %2134 = vmatprep.subr.mxu0 %v1746
    %2135 = vmatpush1.msra.mxu0 %v1745
    %2136 = vmatprep.subr.mxu0 %v1740
    %2137 = vmatpush1.msra.mxu0 %v1739
    %2138 = vmatprep.subr.mxu0 %v1734
    %2139 = vmatpush1.msra.mxu0 %v1733
    %2140 = vmatprep.subr.mxu0 %v1728
    %2141 = vmatpush1.msra.mxu0 %v1727
    %2142 = vmatprep.subr.mxu0 %v1722
    %2143 = vmatpush1.msra.mxu0 %v1721
    %2144 = vmatprep.subr.mxu0 %v1716
    %2145 = vmatpush1.msra.mxu0 %v1715
    %2146 = vmatprep.subr.mxu0 %v1710
    %2147 = vmatpush1.msra.mxu0 %v1709
    %2148 = vmatprep.subr.mxu0 %v1704
    %2149 = vmatpush1.msra.mxu0 %v1703
    %2150 = vmatprep.subr.mxu0 %v1698
    %2151 = vmatpush1.msra.mxu0 %v1697
    %2152 = vmatprep.subr.mxu0 %v1692
    %2153 = vmatpush1.msra.mxu0 %v1691
    %2154 = vmatprep.subr.mxu0 %v1686
    %2155 = vmatpush1.msra.mxu0 %v1685
    %2156 = vmatprep.subr.mxu0 %v1680
    %2157 = vmatpush1.msra.mxu0 %v1679
    %2158 = vmatprep.subr.mxu0 %v1674
    %2159 = vmatpush1.msra.mxu0 %v1673
    %2160 = vmatprep.subr.mxu0 %v1860
    %2161 = vmatpush2.msra.mxu0 %v1859
    %2162 = vmatprep.subr.mxu0 %v1854
    %2163 = vmatpush2.msra.mxu0 %v1853
    %2164 = vmatprep.subr.mxu0 %v1848
    %2165 = vmatpush2.msra.mxu0 %v1847
    %2166 = vmatprep.subr.mxu0 %v1842
    %2167 = vmatpush2.msra.mxu0 %v1841
    %2168 = vmatprep.subr.mxu0 %v1836
    %2169 = vmatpush2.msra.mxu0 %v1835
    %2170 = vmatprep.subr.mxu0 %v1830
    %2171 = vmatpush2.msra.mxu0 %v1829
    %2172 = vmatprep.subr.mxu0 %v1824
    %2173 = vmatpush2.msra.mxu0 %v1823
    %2174 = vmatprep.subr.mxu0 %v1818
    %2175 = vmatpush2.msra.mxu0 %v1817
    %2176 = vmatprep.subr.mxu0 %v1812
    %2177 = vmatpush2.msra.mxu0 %v1811
    %2178 = vmatprep.subr.mxu0 %v1806
    %2179 = vmatpush2.msra.mxu0 %v1805
    %2180 = vmatprep.subr.mxu0 %v1800
    %2181 = vmatpush2.msra.mxu0 %v1799
    %2182 = vmatprep.subr.mxu0 %v1794
    %2183 = vmatpush2.msra.mxu0 %v1793
    %2184 = vmatprep.subr.mxu0 %v1788
    %2185 = vmatpush2.msra.mxu0 %v1787
    %2186 = vmatprep.subr.mxu0 %v1782
    %2187 = vmatpush2.msra.mxu0 %v1781
    %2188 = vmatprep.subr.mxu0 %v1776
    %2189 = vmatpush2.msra.mxu0 %v1775
    %2190 = vmatprep.subr.mxu0 %v1770
    %2191 = vmatpush2.msra.mxu0 %v1769
    %2192 = vmatprep.mubr.f32.mxu0 %v1478
    %2193 = vmatmul.mubr.f32.gmra.mxu0 %v1477
    %v2194 = vpop.f32.mrf.mxu0
    %v2195 = vadd.f32 %v2124, %v2194
    %v2196 = vpop.f32.mrf.mxu0
    %v2197 = vadd.f32 %v2126, %v2196
    %2198 = vdwg.mxu0
    %2199 = vmatprep.subr.mxu0 %v1956
    %2200 = vmatpush1.msra.mxu0 %v1955
    %2201 = vmatprep.subr.mxu0 %v1950
    %2202 = vmatpush1.msra.mxu0 %v1949
    %2203 = vmatprep.subr.mxu0 %v1944
    %2204 = vmatpush1.msra.mxu0 %v1943
    %2205 = vmatprep.subr.mxu0 %v1938
    %2206 = vmatpush1.msra.mxu0 %v1937
    %2207 = vmatprep.subr.mxu0 %v1932
    %2208 = vmatpush1.msra.mxu0 %v1931
    %2209 = vmatprep.subr.mxu0 %v1926
    %2210 = vmatpush1.msra.mxu0 %v1925
    %2211 = vmatprep.subr.mxu0 %v1920
    %2212 = vmatpush1.msra.mxu0 %v1919
    %2213 = vmatprep.subr.mxu0 %v1914
    %2214 = vmatpush1.msra.mxu0 %v1913
    %2215 = vmatprep.subr.mxu0 %v1908
    %2216 = vmatpush1.msra.mxu0 %v1907
    %2217 = vmatprep.subr.mxu0 %v1902
    %2218 = vmatpush1.msra.mxu0 %v1901
    %2219 = vmatprep.subr.mxu0 %v1896
    %2220 = vmatpush1.msra.mxu0 %v1895
    %2221 = vmatprep.subr.mxu0 %v1890
    %2222 = vmatpush1.msra.mxu0 %v1889
    %2223 = vmatprep.subr.mxu0 %v1884
    %2224 = vmatpush1.msra.mxu0 %v1883
    %2225 = vmatprep.subr.mxu0 %v1878
    %2226 = vmatpush1.msra.mxu0 %v1877
    %2227 = vmatprep.subr.mxu0 %v1872
    %2228 = vmatpush1.msra.mxu0 %v1871
    %2229 = vmatprep.subr.mxu0 %v1866
    %2230 = vmatpush1.msra.mxu0 %v1865
    %2231 = vmatprep.subr.mxu0 %v2052
    %2232 = vmatpush2.msra.mxu0 %v2051
    %2233 = vmatprep.subr.mxu0 %v2046
    %2234 = vmatpush2.msra.mxu0 %v2045
    %2235 = vmatprep.subr.mxu0 %v2040
    %2236 = vmatpush2.msra.mxu0 %v2039
    %2237 = vmatprep.subr.mxu0 %v2034
    %2238 = vmatpush2.msra.mxu0 %v2033
    %2239 = vmatprep.subr.mxu0 %v2028
    %2240 = vmatpush2.msra.mxu0 %v2027
    %2241 = vmatprep.subr.mxu0 %v2022
    %2242 = vmatpush2.msra.mxu0 %v2021
    %2243 = vmatprep.subr.mxu0 %v2016
    %2244 = vmatpush2.msra.mxu0 %v2015
    %2245 = vmatprep.subr.mxu0 %v2010
    %2246 = vmatpush2.msra.mxu0 %v2009
    %2247 = vmatprep.subr.mxu0 %v2004
    %2248 = vmatpush2.msra.mxu0 %v2003
    %2249 = vmatprep.subr.mxu0 %v1998
    %2250 = vmatpush2.msra.mxu0 %v1997
    %2251 = vmatprep.subr.mxu0 %v1992
    %2252 = vmatpush2.msra.mxu0 %v1991
    %2253 = vmatprep.subr.mxu0 %v1986
    %2254 = vmatpush2.msra.mxu0 %v1985
    %2255 = vmatprep.subr.mxu0 %v1980
    %2256 = vmatpush2.msra.mxu0 %v1979
    %2257 = vmatprep.subr.mxu0 %v1974
    %2258 = vmatpush2.msra.mxu0 %v1973
    %2259 = vmatprep.subr.mxu0 %v1968
    %2260 = vmatpush2.msra.mxu0 %v1967
    %2261 = vmatprep.subr.mxu0 %v1962
    %2262 = vmatpush2.msra.mxu0 %v1961
    %2263 = vmatprep.mubr.f32.mxu0 %v1480
    %2264 = vmatmul.mubr.f32.gmra.mxu0 %v1479
    %v2265 = vpop.f32.mrf.mxu0
    %v2266 = vadd.f32 %v2195, %v2265
    %v2267 = vpop.f32.mrf.mxu0
    %v2268 = vadd.f32 %v2197, %v2267
    %2269 = vdwg.mxu0
    %2270 = vmatprep.subr.mxu0 %v1574
    %2271 = vmatpush1.msra.mxu0 %v1573
    %2272 = vmatprep.subr.mxu0 %v1568
    %2273 = vmatpush1.msra.mxu0 %v1567
    %2274 = vmatprep.subr.mxu0 %v1562
    %2275 = vmatpush1.msra.mxu0 %v1561
    %2276 = vmatprep.subr.mxu0 %v1556
    %2277 = vmatpush1.msra.mxu0 %v1555
    %2278 = vmatprep.subr.mxu0 %v1550
    %2279 = vmatpush1.msra.mxu0 %v1549
    %2280 = vmatprep.subr.mxu0 %v1544
    %2281 = vmatpush1.msra.mxu0 %v1543
    %2282 = vmatprep.subr.mxu0 %v1538
    %2283 = vmatpush1.msra.mxu0 %v1537
    %2284 = vmatprep.subr.mxu0 %v1532
    %2285 = vmatpush1.msra.mxu0 %v1531
    %2286 = vmatprep.subr.mxu0 %v1526
    %2287 = vmatpush1.msra.mxu0 %v1525
    %2288 = vmatprep.subr.mxu0 %v1520
    %2289 = vmatpush1.msra.mxu0 %v1519
    %2290 = vmatprep.subr.mxu0 %v1514
    %2291 = vmatpush1.msra.mxu0 %v1513
    %2292 = vmatprep.subr.mxu0 %v1508
    %2293 = vmatpush1.msra.mxu0 %v1507
    %2294 = vmatprep.subr.mxu0 %v1502
    %2295 = vmatpush1.msra.mxu0 %v1501
    %2296 = vmatprep.subr.mxu0 %v1496
    %2297 = vmatpush1.msra.mxu0 %v1495
    %2298 = vmatprep.subr.mxu0 %v1490
    %2299 = vmatpush1.msra.mxu0 %v1489
    %2300 = vmatprep.subr.mxu0 %v1484
    %2301 = vmatpush1.msra.mxu0 %v1483
    %2302 = vmatprep.subr.mxu0 %v1670
    %2303 = vmatpush2.msra.mxu0 %v1669
    %2304 = vmatprep.subr.mxu0 %v1664
    %2305 = vmatpush2.msra.mxu0 %v1663
    %2306 = vmatprep.subr.mxu0 %v1658
    %2307 = vmatpush2.msra.mxu0 %v1657
    %2308 = vmatprep.subr.mxu0 %v1652
    %2309 = vmatpush2.msra.mxu0 %v1651
    %2310 = vmatprep.subr.mxu0 %v1646
    %2311 = vmatpush2.msra.mxu0 %v1645
    %2312 = vmatprep.subr.mxu0 %v1640
    %2313 = vmatpush2.msra.mxu0 %v1639
    %2314 = vmatprep.subr.mxu0 %v1634
    %2315 = vmatpush2.msra.mxu0 %v1633
    %2316 = vmatprep.subr.mxu0 %v1628
    %2317 = vmatpush2.msra.mxu0 %v1627
    %2318 = vmatprep.subr.mxu0 %v1622
    %2319 = vmatpush2.msra.mxu0 %v1621
    %2320 = vmatprep.subr.mxu0 %v1616
    %2321 = vmatpush2.msra.mxu0 %v1615
    %2322 = vmatprep.subr.mxu0 %v1610
    %2323 = vmatpush2.msra.mxu0 %v1609
    %2324 = vmatprep.subr.mxu0 %v1604
    %2325 = vmatpush2.msra.mxu0 %v1603
    %2326 = vmatprep.subr.mxu0 %v1598
    %2327 = vmatpush2.msra.mxu0 %v1597
    %2328 = vmatprep.subr.mxu0 %v1592
    %2329 = vmatpush2.msra.mxu0 %v1591
    %2330 = vmatprep.subr.mxu0 %v1586
    %2331 = vmatpush2.msra.mxu0 %v1585
    %2332 = vmatprep.subr.mxu0 %v1580
    %2333 = vmatpush2.msra.mxu0 %v1579
    %2334 = vmatprep.mubr.f32.mxu0 %v1476
    %2335 = vmatmul.mubr.f32.gmra.mxu0 %v1475
    %v2336 = vpop.f32.mrf.mxu0
    %v2337 = vadd.f32 0.0, %v2336
    %v2338 = vpop.f32.mrf.mxu0
    %v2339 = vadd.f32 0.0, %v2338
    %2340 = vdwg.mxu0
    %2341 = vmatprep.subr.mxu0 %v1766
    %2342 = vmatpush1.msra.mxu0 %v1765
    %2343 = vmatprep.subr.mxu0 %v1760
    %2344 = vmatpush1.msra.mxu0 %v1759
    %2345 = vmatprep.subr.mxu0 %v1754
    %2346 = vmatpush1.msra.mxu0 %v1753
    %2347 = vmatprep.subr.mxu0 %v1748
    %2348 = vmatpush1.msra.mxu0 %v1747
    %2349 = vmatprep.subr.mxu0 %v1742
    %2350 = vmatpush1.msra.mxu0 %v1741
    %2351 = vmatprep.subr.mxu0 %v1736
    %2352 = vmatpush1.msra.mxu0 %v1735
    %2353 = vmatprep.subr.mxu0 %v1730
    %2354 = vmatpush1.msra.mxu0 %v1729
    %2355 = vmatprep.subr.mxu0 %v1724
    %2356 = vmatpush1.msra.mxu0 %v1723
    %2357 = vmatprep.subr.mxu0 %v1718
    %2358 = vmatpush1.msra.mxu0 %v1717
    %2359 = vmatprep.subr.mxu0 %v1712
    %2360 = vmatpush1.msra.mxu0 %v1711
    %2361 = vmatprep.subr.mxu0 %v1706
    %2362 = vmatpush1.msra.mxu0 %v1705
    %2363 = vmatprep.subr.mxu0 %v1700
    %2364 = vmatpush1.msra.mxu0 %v1699
    %2365 = vmatprep.subr.mxu0 %v1694
    %2366 = vmatpush1.msra.mxu0 %v1693
    %2367 = vmatprep.subr.mxu0 %v1688
    %2368 = vmatpush1.msra.mxu0 %v1687
    %2369 = vmatprep.subr.mxu0 %v1682
    %2370 = vmatpush1.msra.mxu0 %v1681
    %2371 = vmatprep.subr.mxu0 %v1676
    %2372 = vmatpush1.msra.mxu0 %v1675
    %2373 = vmatprep.subr.mxu0 %v1862
    %2374 = vmatpush2.msra.mxu0 %v1861
    %2375 = vmatprep.subr.mxu0 %v1856
    %2376 = vmatpush2.msra.mxu0 %v1855
    %2377 = vmatprep.subr.mxu0 %v1850
    %2378 = vmatpush2.msra.mxu0 %v1849
    %2379 = vmatprep.subr.mxu0 %v1844
    %2380 = vmatpush2.msra.mxu0 %v1843
    %2381 = vmatprep.subr.mxu0 %v1838
    %2382 = vmatpush2.msra.mxu0 %v1837
    %2383 = vmatprep.subr.mxu0 %v1832
    %2384 = vmatpush2.msra.mxu0 %v1831
    %2385 = vmatprep.subr.mxu0 %v1826
    %2386 = vmatpush2.msra.mxu0 %v1825
    %2387 = vmatprep.subr.mxu0 %v1820
    %2388 = vmatpush2.msra.mxu0 %v1819
    %2389 = vmatprep.subr.mxu0 %v1814
    %2390 = vmatpush2.msra.mxu0 %v1813
    %2391 = vmatprep.subr.mxu0 %v1808
    %2392 = vmatpush2.msra.mxu0 %v1807
    %2393 = vmatprep.subr.mxu0 %v1802
    %2394 = vmatpush2.msra.mxu0 %v1801
    %2395 = vmatprep.subr.mxu0 %v1796
    %2396 = vmatpush2.msra.mxu0 %v1795
    %2397 = vmatprep.subr.mxu0 %v1790
    %2398 = vmatpush2.msra.mxu0 %v1789
    %2399 = vmatprep.subr.mxu0 %v1784
    %2400 = vmatpush2.msra.mxu0 %v1783
    %2401 = vmatprep.subr.mxu0 %v1778
    %2402 = vmatpush2.msra.mxu0 %v1777
    %2403 = vmatprep.subr.mxu0 %v1772
    %2404 = vmatpush2.msra.mxu0 %v1771
    %2405 = vmatprep.mubr.f32.mxu0 %v1478
    %2406 = vmatmul.mubr.f32.gmra.mxu0 %v1477
    %v2407 = vpop.f32.mrf.mxu0
    %v2408 = vadd.f32 %v2337, %v2407
    %v2409 = vpop.f32.mrf.mxu0
    %v2410 = vadd.f32 %v2339, %v2409
    %2411 = vdwg.mxu0
    %2412 = vmatprep.subr.mxu0 %v1958
    %2413 = vmatpush1.msra.mxu0 %v1957
    %2414 = vmatprep.subr.mxu0 %v1952
    %2415 = vmatpush1.msra.mxu0 %v1951
    %2416 = vmatprep.subr.mxu0 %v1946
    %2417 = vmatpush1.msra.mxu0 %v1945
    %2418 = vmatprep.subr.mxu0 %v1940
    %2419 = vmatpush1.msra.mxu0 %v1939
    %2420 = vmatprep.subr.mxu0 %v1934
    %2421 = vmatpush1.msra.mxu0 %v1933
    %2422 = vmatprep.subr.mxu0 %v1928
    %2423 = vmatpush1.msra.mxu0 %v1927
    %2424 = vmatprep.subr.mxu0 %v1922
    %2425 = vmatpush1.msra.mxu0 %v1921
    %2426 = vmatprep.subr.mxu0 %v1916
    %2427 = vmatpush1.msra.mxu0 %v1915
    %2428 = vmatprep.subr.mxu0 %v1910
    %2429 = vmatpush1.msra.mxu0 %v1909
    %2430 = vmatprep.subr.mxu0 %v1904
    %2431 = vmatpush1.msra.mxu0 %v1903
    %2432 = vmatprep.subr.mxu0 %v1898
    %2433 = vmatpush1.msra.mxu0 %v1897
    %2434 = vmatprep.subr.mxu0 %v1892
    %2435 = vmatpush1.msra.mxu0 %v1891
    %2436 = vmatprep.subr.mxu0 %v1886
    %2437 = vmatpush1.msra.mxu0 %v1885
    %2438 = vmatprep.subr.mxu0 %v1880
    %2439 = vmatpush1.msra.mxu0 %v1879
    %2440 = vmatprep.subr.mxu0 %v1874
    %2441 = vmatpush1.msra.mxu0 %v1873
    %2442 = vmatprep.subr.mxu0 %v1868
    %2443 = vmatpush1.msra.mxu0 %v1867
    %2444 = vmatprep.subr.mxu0 %v2054
    %2445 = vmatpush2.msra.mxu0 %v2053
    %2446 = vmatprep.subr.mxu0 %v2048
    %2447 = vmatpush2.msra.mxu0 %v2047
    %2448 = vmatprep.subr.mxu0 %v2042
    %2449 = vmatpush2.msra.mxu0 %v2041
    %2450 = vmatprep.subr.mxu0 %v2036
    %2451 = vmatpush2.msra.mxu0 %v2035
    %2452 = vmatprep.subr.mxu0 %v2030
    %2453 = vmatpush2.msra.mxu0 %v2029
    %2454 = vmatprep.subr.mxu0 %v2024
    %2455 = vmatpush2.msra.mxu0 %v2023
    %2456 = vmatprep.subr.mxu0 %v2018
    %2457 = vmatpush2.msra.mxu0 %v2017
    %2458 = vmatprep.subr.mxu0 %v2012
    %2459 = vmatpush2.msra.mxu0 %v2011
    %2460 = vmatprep.subr.mxu0 %v2006
    %2461 = vmatpush2.msra.mxu0 %v2005
    %2462 = vmatprep.subr.mxu0 %v2000
    %2463 = vmatpush2.msra.mxu0 %v1999
    %2464 = vmatprep.subr.mxu0 %v1994
    %2465 = vmatpush2.msra.mxu0 %v1993
    %2466 = vmatprep.subr.mxu0 %v1988
    %2467 = vmatpush2.msra.mxu0 %v1987
    %2468 = vmatprep.subr.mxu0 %v1982
    %2469 = vmatpush2.msra.mxu0 %v1981
    %2470 = vmatprep.subr.mxu0 %v1976
    %2471 = vmatpush2.msra.mxu0 %v1975
    %2472 = vmatprep.subr.mxu0 %v1970
    %2473 = vmatpush2.msra.mxu0 %v1969
    %2474 = vmatprep.subr.mxu0 %v1964
    %2475 = vmatpush2.msra.mxu0 %v1963
    %2476 = vmatprep.mubr.f32.mxu0 %v1480
    %2477 = vmatmul.mubr.f32.gmra.mxu0 %v1479
    %v2478 = vpop.f32.mrf.mxu0
    %v2479 = vadd.f32 %v2408, %v2478
    %v2480 = vpop.f32.mrf.mxu0
    %v2481 = vadd.f32 %v2410, %v2480
    %2482 = vdwg.mxu0
    %2483 = vmatprep.subr.mxu0 %v1576
    %2484 = vmatpush1.msra.mxu0 %v1575
    %2485 = vmatprep.subr.mxu0 %v1570
    %2486 = vmatpush1.msra.mxu0 %v1569
    %2487 = vmatprep.subr.mxu0 %v1564
    %2488 = vmatpush1.msra.mxu0 %v1563
    %2489 = vmatprep.subr.mxu0 %v1558
    %2490 = vmatpush1.msra.mxu0 %v1557
    %2491 = vmatprep.subr.mxu0 %v1552
    %2492 = vmatpush1.msra.mxu0 %v1551
    %2493 = vmatprep.subr.mxu0 %v1546
    %2494 = vmatpush1.msra.mxu0 %v1545
    %2495 = vmatprep.subr.mxu0 %v1540
    %2496 = vmatpush1.msra.mxu0 %v1539
    %2497 = vmatprep.subr.mxu0 %v1534
    %2498 = vmatpush1.msra.mxu0 %v1533
    %2499 = vmatprep.subr.mxu0 %v1528
    %2500 = vmatpush1.msra.mxu0 %v1527
    %2501 = vmatprep.subr.mxu0 %v1522
    %2502 = vmatpush1.msra.mxu0 %v1521
    %2503 = vmatprep.subr.mxu0 %v1516
    %2504 = vmatpush1.msra.mxu0 %v1515
    %2505 = vmatprep.subr.mxu0 %v1510
    %2506 = vmatpush1.msra.mxu0 %v1509
    %2507 = vmatprep.subr.mxu0 %v1504
    %2508 = vmatpush1.msra.mxu0 %v1503
    %2509 = vmatprep.subr.mxu0 %v1498
    %2510 = vmatpush1.msra.mxu0 %v1497
    %2511 = vmatprep.subr.mxu0 %v1492
    %2512 = vmatpush1.msra.mxu0 %v1491
    %2513 = vmatprep.subr.mxu0 %v1486
    %2514 = vmatpush1.msra.mxu0 %v1485
    %2515 = vmatprep.subr.mxu0 %v1672
    %2516 = vmatpush2.msra.mxu0 %v1671
    %2517 = vmatprep.subr.mxu0 %v1666
    %2518 = vmatpush2.msra.mxu0 %v1665
    %2519 = vmatprep.subr.mxu0 %v1660
    %2520 = vmatpush2.msra.mxu0 %v1659
    %2521 = vmatprep.subr.mxu0 %v1654
    %2522 = vmatpush2.msra.mxu0 %v1653
    %2523 = vmatprep.subr.mxu0 %v1648
    %2524 = vmatpush2.msra.mxu0 %v1647
    %2525 = vmatprep.subr.mxu0 %v1642
    %2526 = vmatpush2.msra.mxu0 %v1641
    %2527 = vmatprep.subr.mxu0 %v1636
    %2528 = vmatpush2.msra.mxu0 %v1635
    %2529 = vmatprep.subr.mxu0 %v1630
    %2530 = vmatpush2.msra.mxu0 %v1629
    %2531 = vmatprep.subr.mxu0 %v1624
    %2532 = vmatpush2.msra.mxu0 %v1623
    %2533 = vmatprep.subr.mxu0 %v1618
    %2534 = vmatpush2.msra.mxu0 %v1617
    %2535 = vmatprep.subr.mxu0 %v1612
    %2536 = vmatpush2.msra.mxu0 %v1611
    %2537 = vmatprep.subr.mxu0 %v1606
    %2538 = vmatpush2.msra.mxu0 %v1605
    %2539 = vmatprep.subr.mxu0 %v1600
    %2540 = vmatpush2.msra.mxu0 %v1599
    %2541 = vmatprep.subr.mxu0 %v1594
    %2542 = vmatpush2.msra.mxu0 %v1593
    %2543 = vmatprep.subr.mxu0 %v1588
    %2544 = vmatpush2.msra.mxu0 %v1587
    %2545 = vmatprep.subr.mxu0 %v1582
    %2546 = vmatpush2.msra.mxu0 %v1581
    %2547 = vmatprep.mubr.f32.mxu0 %v1476
    %2548 = vmatmul.mubr.f32.gmra.mxu0 %v1475
    %v2549 = vpop.f32.mrf.mxu0
    %v2550 = vadd.f32 0.0, %v2549
    %v2551 = vpop.f32.mrf.mxu0
    %v2552 = vadd.f32 0.0, %v2551
    %2553 = vdwg.mxu0
    %2554 = vmatprep.subr.mxu0 %v1768
    %2555 = vmatpush1.msra.mxu0 %v1767
    %2556 = vmatprep.subr.mxu0 %v1762
    %2557 = vmatpush1.msra.mxu0 %v1761
    %2558 = vmatprep.subr.mxu0 %v1756
    %2559 = vmatpush1.msra.mxu0 %v1755
    %2560 = vmatprep.subr.mxu0 %v1750
    %2561 = vmatpush1.msra.mxu0 %v1749
    %2562 = vmatprep.subr.mxu0 %v1744
    %2563 = vmatpush1.msra.mxu0 %v1743
    %2564 = vmatprep.subr.mxu0 %v1738
    %2565 = vmatpush1.msra.mxu0 %v1737
    %2566 = vmatprep.subr.mxu0 %v1732
    %2567 = vmatpush1.msra.mxu0 %v1731
    %2568 = vmatprep.subr.mxu0 %v1726
    %2569 = vmatpush1.msra.mxu0 %v1725
    %2570 = vmatprep.subr.mxu0 %v1720
    %2571 = vmatpush1.msra.mxu0 %v1719
    %2572 = vmatprep.subr.mxu0 %v1714
    %2573 = vmatpush1.msra.mxu0 %v1713
    %2574 = vmatprep.subr.mxu0 %v1708
    %2575 = vmatpush1.msra.mxu0 %v1707
    %2576 = vmatprep.subr.mxu0 %v1702
    %2577 = vmatpush1.msra.mxu0 %v1701
    %2578 = vmatprep.subr.mxu0 %v1696
    %2579 = vmatpush1.msra.mxu0 %v1695
    %2580 = vmatprep.subr.mxu0 %v1690
    %2581 = vmatpush1.msra.mxu0 %v1689
    %2582 = vmatprep.subr.mxu0 %v1684
    %2583 = vmatpush1.msra.mxu0 %v1683
    %2584 = vmatprep.subr.mxu0 %v1678
    %2585 = vmatpush1.msra.mxu0 %v1677
    %2586 = vmatprep.subr.mxu0 %v1864
    %2587 = vmatpush2.msra.mxu0 %v1863
    %2588 = vmatprep.subr.mxu0 %v1858
    %2589 = vmatpush2.msra.mxu0 %v1857
    %2590 = vmatprep.subr.mxu0 %v1852
    %2591 = vmatpush2.msra.mxu0 %v1851
    %2592 = vmatprep.subr.mxu0 %v1846
    %2593 = vmatpush2.msra.mxu0 %v1845
    %2594 = vmatprep.subr.mxu0 %v1840
    %2595 = vmatpush2.msra.mxu0 %v1839
    %2596 = vmatprep.subr.mxu0 %v1834
    %2597 = vmatpush2.msra.mxu0 %v1833
    %2598 = vmatprep.subr.mxu0 %v1828
    %2599 = vmatpush2.msra.mxu0 %v1827
    %2600 = vmatprep.subr.mxu0 %v1822
    %2601 = vmatpush2.msra.mxu0 %v1821
    %2602 = vmatprep.subr.mxu0 %v1816
    %2603 = vmatpush2.msra.mxu0 %v1815
    %2604 = vmatprep.subr.mxu0 %v1810
    %2605 = vmatpush2.msra.mxu0 %v1809
    %2606 = vmatprep.subr.mxu0 %v1804
    %2607 = vmatpush2.msra.mxu0 %v1803
    %2608 = vmatprep.subr.mxu0 %v1798
    %2609 = vmatpush2.msra.mxu0 %v1797
    %2610 = vmatprep.subr.mxu0 %v1792
    %2611 = vmatpush2.msra.mxu0 %v1791
    %2612 = vmatprep.subr.mxu0 %v1786
    %2613 = vmatpush2.msra.mxu0 %v1785
    %2614 = vmatprep.subr.mxu0 %v1780
    %2615 = vmatpush2.msra.mxu0 %v1779
    %2616 = vmatprep.subr.mxu0 %v1774
    %2617 = vmatpush2.msra.mxu0 %v1773
    %2618 = vmatprep.mubr.f32.mxu0 %v1478
    %2619 = vmatmul.mubr.f32.gmra.mxu0 %v1477
    %v2620 = vpop.f32.mrf.mxu0
    %v2621 = vadd.f32 %v2550, %v2620
    %v2622 = vpop.f32.mrf.mxu0
    %v2623 = vadd.f32 %v2552, %v2622
    %2624 = vdwg.mxu0
    %2625 = vmatprep.subr.mxu0 %v1960
    %2626 = vmatpush1.msra.mxu0 %v1959
    %2627 = vmatprep.subr.mxu0 %v1954
    %2628 = vmatpush1.msra.mxu0 %v1953
    %2629 = vmatprep.subr.mxu0 %v1948
    %2630 = vmatpush1.msra.mxu0 %v1947
    %2631 = vmatprep.subr.mxu0 %v1942
    %2632 = vmatpush1.msra.mxu0 %v1941
    %2633 = vmatprep.subr.mxu0 %v1936
    %2634 = vmatpush1.msra.mxu0 %v1935
    %2635 = vmatprep.subr.mxu0 %v1930
    %2636 = vmatpush1.msra.mxu0 %v1929
    %2637 = vmatprep.subr.mxu0 %v1924
    %2638 = vmatpush1.msra.mxu0 %v1923
    %2639 = vmatprep.subr.mxu0 %v1918
    %2640 = vmatpush1.msra.mxu0 %v1917
    %2641 = vmatprep.subr.mxu0 %v1912
    %2642 = vmatpush1.msra.mxu0 %v1911
    %2643 = vmatprep.subr.mxu0 %v1906
    %2644 = vmatpush1.msra.mxu0 %v1905
    %2645 = vmatprep.subr.mxu0 %v1900
    %2646 = vmatpush1.msra.mxu0 %v1899
    %2647 = vmatprep.subr.mxu0 %v1894
    %2648 = vmatpush1.msra.mxu0 %v1893
    %2649 = vmatprep.subr.mxu0 %v1888
    %2650 = vmatpush1.msra.mxu0 %v1887
    %2651 = vmatprep.subr.mxu0 %v1882
    %2652 = vmatpush1.msra.mxu0 %v1881
    %2653 = vmatprep.subr.mxu0 %v1876
    %2654 = vmatpush1.msra.mxu0 %v1875
    %2655 = vmatprep.subr.mxu0 %v1870
    %2656 = vmatpush1.msra.mxu0 %v1869
    %2657 = vmatprep.subr.mxu0 %v2056
    %2658 = vmatpush2.msra.mxu0 %v2055
    %2659 = vmatprep.subr.mxu0 %v2050
    %2660 = vmatpush2.msra.mxu0 %v2049
    %2661 = vmatprep.subr.mxu0 %v2044
    %2662 = vmatpush2.msra.mxu0 %v2043
    %2663 = vmatprep.subr.mxu0 %v2038
    %2664 = vmatpush2.msra.mxu0 %v2037
    %2665 = vmatprep.subr.mxu0 %v2032
    %2666 = vmatpush2.msra.mxu0 %v2031
    %2667 = vmatprep.subr.mxu0 %v2026
    %2668 = vmatpush2.msra.mxu0 %v2025
    %2669 = vmatprep.subr.mxu0 %v2020
    %2670 = vmatpush2.msra.mxu0 %v2019
    %2671 = vmatprep.subr.mxu0 %v2014
    %2672 = vmatpush2.msra.mxu0 %v2013
    %2673 = vmatprep.subr.mxu0 %v2008
    %2674 = vmatpush2.msra.mxu0 %v2007
    %2675 = vmatprep.subr.mxu0 %v2002
    %2676 = vmatpush2.msra.mxu0 %v2001
    %2677 = vmatprep.subr.mxu0 %v1996
    %2678 = vmatpush2.msra.mxu0 %v1995
    %2679 = vmatprep.subr.mxu0 %v1990
    %2680 = vmatpush2.msra.mxu0 %v1989
    %2681 = vmatprep.subr.mxu0 %v1984
    %2682 = vmatpush2.msra.mxu0 %v1983
    %2683 = vmatprep.subr.mxu0 %v1978
    %2684 = vmatpush2.msra.mxu0 %v1977
    %2685 = vmatprep.subr.mxu0 %v1972
    %2686 = vmatpush2.msra.mxu0 %v1971
    %2687 = vmatprep.subr.mxu0 %v1966
    %2688 = vmatpush2.msra.mxu0 %v1965
    %2689 = vmatprep.mubr.f32.mxu0 %v1480
    %2690 = vmatmul.mubr.f32.gmra.mxu0 %v1479
    %v2691 = vpop.f32.mrf.mxu0
    %v2692 = vadd.f32 %v2621, %v2691
    %v2693 = vpop.f32.mrf.mxu0
    %v2694 = vadd.f32 %v2623, %v2693
    %2695 = vdwg.mxu0
    %v2696 = vld [vmem:[#allocation11] sm:$0xff]
    %v2697 = vld [vmem:[#allocation11 + $0x8] sm:$0xff]
    %v2698 = vld [vmem:[#allocation11 + $0x10] sm:$0xff]
    %v2699 = vld [vmem:[#allocation11 + $0x18] sm:$0xff]
    %v2700 = vld [vmem:[#allocation11 + $0x20] sm:$0xff]
    %v2701 = vld [vmem:[#allocation11 + $0x28] sm:$0xff]
    %v2702 = vld [vmem:[#allocation11 + $0x30] sm:$0xff]
    %v2703 = vld [vmem:[#allocation11 + $0x38] sm:$0xff]
    %v2704 = vld [vmem:[#allocation11 + $0x40] sm:$0xff]
    %v2705 = vld [vmem:[#allocation11 + $0x48] sm:$0xff]
    %v2706 = vld [vmem:[#allocation11 + $0x50] sm:$0xff]
    %v2707 = vld [vmem:[#allocation11 + $0x58] sm:$0xff]
    %v2708 = vld [vmem:[#allocation11 + $0x60] sm:$0xff]
    %v2709 = vld [vmem:[#allocation11 + $0x68] sm:$0xff]
    %v2710 = vld [vmem:[#allocation11 + $0x70] sm:$0xff]
    %v2711 = vld [vmem:[#allocation11 + $0x78] sm:$0xff]
    %v2712 = vld [vmem:[#allocation11 + $0x80] sm:$0xff]
    %v2713 = vld [vmem:[#allocation11 + $0x88] sm:$0xff]
    %v2714 = vld [vmem:[#allocation11 + $0x90] sm:$0xff]
    %v2715 = vld [vmem:[#allocation11 + $0x98] sm:$0xff]
    %v2716 = vld [vmem:[#allocation11 + $0xa0] sm:$0xff]
    %v2717 = vld [vmem:[#allocation11 + $0xa8] sm:$0xff]
    %v2718 = vld [vmem:[#allocation11 + $0xb0] sm:$0xff]
    %v2719 = vld [vmem:[#allocation11 + $0xb8] sm:$0xff]
    %v2720 = vld [vmem:[#allocation11 + $0xc0] sm:$0xff]
    %v2721 = vld [vmem:[#allocation11 + $0xc8] sm:$0xff]
    %v2722 = vld [vmem:[#allocation11 + $0xd0] sm:$0xff]
    %v2723 = vld [vmem:[#allocation11 + $0xd8] sm:$0xff]
    %v2724 = vld [vmem:[#allocation11 + $0xe0] sm:$0xff]
    %v2725 = vld [vmem:[#allocation11 + $0xe8] sm:$0xff]
    %v2726 = vld [vmem:[#allocation11 + $0xf0] sm:$0xff]
    %v2727 = vld [vmem:[#allocation11 + $0xf8] sm:$0xff]
    %v2728 = vld [vmem:[#allocation11 + $0x100] sm:$0xff]
    %v2729 = vld [vmem:[#allocation11 + $0x108] sm:$0xff]
    %v2730 = vld [vmem:[#allocation11 + $0x110] sm:$0xff]
    %v2731 = vld [vmem:[#allocation11 + $0x118] sm:$0xff]
    %v2732 = vld [vmem:[#allocation11 + $0x120] sm:$0xff]
    %v2733 = vld [vmem:[#allocation11 + $0x128] sm:$0xff]
    %v2734 = vld [vmem:[#allocation11 + $0x130] sm:$0xff]
    %v2735 = vld [vmem:[#allocation11 + $0x138] sm:$0xff]
    %v2736 = vld [vmem:[#allocation11 + $0x140] sm:$0xff]
    %v2737 = vld [vmem:[#allocation11 + $0x148] sm:$0xff]
    %v2738 = vld [vmem:[#allocation11 + $0x150] sm:$0xff]
    %v2739 = vld [vmem:[#allocation11 + $0x158] sm:$0xff]
    %v2740 = vld [vmem:[#allocation11 + $0x160] sm:$0xff]
    %v2741 = vld [vmem:[#allocation11 + $0x168] sm:$0xff]
    %v2742 = vld [vmem:[#allocation11 + $0x170] sm:$0xff]
    %v2743 = vld [vmem:[#allocation11 + $0x178] sm:$0xff]
    %v2744 = vld [vmem:[#allocation11 + $0x180] sm:$0xff]
    %v2745 = vld [vmem:[#allocation11 + $0x188] sm:$0xff]
    %v2746 = vld [vmem:[#allocation11 + $0x190] sm:$0xff]
    %v2747 = vld [vmem:[#allocation11 + $0x198] sm:$0xff]
    %v2748 = vld [vmem:[#allocation11 + $0x1a0] sm:$0xff]
    %v2749 = vld [vmem:[#allocation11 + $0x1a8] sm:$0xff]
    %v2750 = vld [vmem:[#allocation11 + $0x1b0] sm:$0xff]
    %v2751 = vld [vmem:[#allocation11 + $0x1b8] sm:$0xff]
    %v2752 = vld [vmem:[#allocation11 + $0x1c0] sm:$0xff]
    %v2753 = vld [vmem:[#allocation11 + $0x1c8] sm:$0xff]
    %v2754 = vld [vmem:[#allocation11 + $0x1d0] sm:$0xff]
    %v2755 = vld [vmem:[#allocation11 + $0x1d8] sm:$0xff]
    %v2756 = vld [vmem:[#allocation11 + $0x1e0] sm:$0xff]
    %v2757 = vld [vmem:[#allocation11 + $0x1e8] sm:$0xff]
    %v2758 = vld [vmem:[#allocation11 + $0x1f0] sm:$0xff]
    %v2759 = vld [vmem:[#allocation11 + $0x1f8] sm:$0xff]
    %v2760 = vld [vmem:[#allocation11 + $0x200] sm:$0xff]
    %v2761 = vld [vmem:[#allocation11 + $0x208] sm:$0xff]
    %v2762 = vld [vmem:[#allocation11 + $0x210] sm:$0xff]
    %v2763 = vld [vmem:[#allocation11 + $0x218] sm:$0xff]
    %v2764 = vld [vmem:[#allocation11 + $0x220] sm:$0xff]
    %v2765 = vld [vmem:[#allocation11 + $0x228] sm:$0xff]
    %v2766 = vld [vmem:[#allocation11 + $0x230] sm:$0xff]
    %v2767 = vld [vmem:[#allocation11 + $0x238] sm:$0xff]
    %v2768 = vld [vmem:[#allocation11 + $0x240] sm:$0xff]
    %v2769 = vld [vmem:[#allocation11 + $0x248] sm:$0xff]
    %v2770 = vld [vmem:[#allocation11 + $0x250] sm:$0xff]
    %v2771 = vld [vmem:[#allocation11 + $0x258] sm:$0xff]
    %v2772 = vld [vmem:[#allocation11 + $0x260] sm:$0xff]
    %v2773 = vld [vmem:[#allocation11 + $0x268] sm:$0xff]
    %v2774 = vld [vmem:[#allocation11 + $0x270] sm:$0xff]
    %v2775 = vld [vmem:[#allocation11 + $0x278] sm:$0xff]
    %v2776 = vld [vmem:[#allocation11 + $0x280] sm:$0xff]
    %v2777 = vld [vmem:[#allocation11 + $0x288] sm:$0xff]
    %v2778 = vld [vmem:[#allocation11 + $0x290] sm:$0xff]
    %v2779 = vld [vmem:[#allocation11 + $0x298] sm:$0xff]
    %v2780 = vld [vmem:[#allocation11 + $0x2a0] sm:$0xff]
    %v2781 = vld [vmem:[#allocation11 + $0x2a8] sm:$0xff]
    %v2782 = vld [vmem:[#allocation11 + $0x2b0] sm:$0xff]
    %v2783 = vld [vmem:[#allocation11 + $0x2b8] sm:$0xff]
    %v2784 = vld [vmem:[#allocation11 + $0x2c0] sm:$0xff]
    %v2785 = vld [vmem:[#allocation11 + $0x2c8] sm:$0xff]
    %v2786 = vld [vmem:[#allocation11 + $0x2d0] sm:$0xff]
    %v2787 = vld [vmem:[#allocation11 + $0x2d8] sm:$0xff]
    %v2788 = vld [vmem:[#allocation11 + $0x2e0] sm:$0xff]
    %v2789 = vld [vmem:[#allocation11 + $0x2e8] sm:$0xff]
    %v2790 = vld [vmem:[#allocation11 + $0x2f0] sm:$0xff]
    %v2791 = vld [vmem:[#allocation11 + $0x2f8] sm:$0xff]
    %v2792 = vld [vmem:[#allocation11 + $0x300] sm:$0xff]
    %v2793 = vld [vmem:[#allocation11 + $0x308] sm:$0xff]
    %v2794 = vld [vmem:[#allocation11 + $0x310] sm:$0xff]
    %v2795 = vld [vmem:[#allocation11 + $0x318] sm:$0xff]
    %v2796 = vld [vmem:[#allocation11 + $0x320] sm:$0xff]
    %v2797 = vld [vmem:[#allocation11 + $0x328] sm:$0xff]
    %v2798 = vld [vmem:[#allocation11 + $0x330] sm:$0xff]
    %v2799 = vld [vmem:[#allocation11 + $0x338] sm:$0xff]
    %v2800 = vld [vmem:[#allocation11 + $0x340] sm:$0xff]
    %v2801 = vld [vmem:[#allocation11 + $0x348] sm:$0xff]
    %v2802 = vld [vmem:[#allocation11 + $0x350] sm:$0xff]
    %v2803 = vld [vmem:[#allocation11 + $0x358] sm:$0xff]
    %v2804 = vld [vmem:[#allocation11 + $0x360] sm:$0xff]
    %v2805 = vld [vmem:[#allocation11 + $0x368] sm:$0xff]
    %v2806 = vld [vmem:[#allocation11 + $0x370] sm:$0xff]
    %v2807 = vld [vmem:[#allocation11 + $0x378] sm:$0xff]
    %v2808 = vld [vmem:[#allocation11 + $0x380] sm:$0xff]
    %v2809 = vld [vmem:[#allocation11 + $0x388] sm:$0xff]
    %v2810 = vld [vmem:[#allocation11 + $0x390] sm:$0xff]
    %v2811 = vld [vmem:[#allocation11 + $0x398] sm:$0xff]
    %v2812 = vld [vmem:[#allocation11 + $0x3a0] sm:$0xff]
    %v2813 = vld [vmem:[#allocation11 + $0x3a8] sm:$0xff]
    %v2814 = vld [vmem:[#allocation11 + $0x3b0] sm:$0xff]
    %v2815 = vld [vmem:[#allocation11 + $0x3b8] sm:$0xff]
    %v2816 = vld [vmem:[#allocation11 + $0x3c0] sm:$0xff]
    %v2817 = vld [vmem:[#allocation11 + $0x3c8] sm:$0xff]
    %v2818 = vld [vmem:[#allocation11 + $0x3d0] sm:$0xff]
    %v2819 = vld [vmem:[#allocation11 + $0x3d8] sm:$0xff]
    %v2820 = vld [vmem:[#allocation11 + $0x3e0] sm:$0xff]
    %v2821 = vld [vmem:[#allocation11 + $0x3e8] sm:$0xff]
    %v2822 = vld [vmem:[#allocation11 + $0x3f0] sm:$0xff]
    %v2823 = vld [vmem:[#allocation11 + $0x3f8] sm:$0xff]
    %v2824 = vld [vmem:[#allocation11 + $0x400] sm:$0xff]
    %v2825 = vld [vmem:[#allocation11 + $0x408] sm:$0xff]
    %v2826 = vld [vmem:[#allocation11 + $0x410] sm:$0xff]
    %v2827 = vld [vmem:[#allocation11 + $0x418] sm:$0xff]
    %v2828 = vld [vmem:[#allocation11 + $0x420] sm:$0xff]
    %v2829 = vld [vmem:[#allocation11 + $0x428] sm:$0xff]
    %v2830 = vld [vmem:[#allocation11 + $0x430] sm:$0xff]
    %v2831 = vld [vmem:[#allocation11 + $0x438] sm:$0xff]
    %v2832 = vld [vmem:[#allocation11 + $0x440] sm:$0xff]
    %v2833 = vld [vmem:[#allocation11 + $0x448] sm:$0xff]
    %v2834 = vld [vmem:[#allocation11 + $0x450] sm:$0xff]
    %v2835 = vld [vmem:[#allocation11 + $0x458] sm:$0xff]
    %v2836 = vld [vmem:[#allocation11 + $0x460] sm:$0xff]
    %v2837 = vld [vmem:[#allocation11 + $0x468] sm:$0xff]
    %v2838 = vld [vmem:[#allocation11 + $0x470] sm:$0xff]
    %v2839 = vld [vmem:[#allocation11 + $0x478] sm:$0xff]
    %v2840 = vld [vmem:[#allocation11 + $0x480] sm:$0xff]
    %v2841 = vld [vmem:[#allocation11 + $0x488] sm:$0xff]
    %v2842 = vld [vmem:[#allocation11 + $0x490] sm:$0xff]
    %v2843 = vld [vmem:[#allocation11 + $0x498] sm:$0xff]
    %v2844 = vld [vmem:[#allocation11 + $0x4a0] sm:$0xff]
    %v2845 = vld [vmem:[#allocation11 + $0x4a8] sm:$0xff]
    %v2846 = vld [vmem:[#allocation11 + $0x4b0] sm:$0xff]
    %v2847 = vld [vmem:[#allocation11 + $0x4b8] sm:$0xff]
    %v2848 = vld [vmem:[#allocation11 + $0x4c0] sm:$0xff]
    %v2849 = vld [vmem:[#allocation11 + $0x4c8] sm:$0xff]
    %v2850 = vld [vmem:[#allocation11 + $0x4d0] sm:$0xff]
    %v2851 = vld [vmem:[#allocation11 + $0x4d8] sm:$0xff]
    %v2852 = vld [vmem:[#allocation11 + $0x4e0] sm:$0xff]
    %v2853 = vld [vmem:[#allocation11 + $0x4e8] sm:$0xff]
    %v2854 = vld [vmem:[#allocation11 + $0x4f0] sm:$0xff]
    %v2855 = vld [vmem:[#allocation11 + $0x4f8] sm:$0xff]
    %v2856 = vld [vmem:[#allocation11 + $0x500] sm:$0xff]
    %v2857 = vld [vmem:[#allocation11 + $0x508] sm:$0xff]
    %v2858 = vld [vmem:[#allocation11 + $0x510] sm:$0xff]
    %v2859 = vld [vmem:[#allocation11 + $0x518] sm:$0xff]
    %v2860 = vld [vmem:[#allocation11 + $0x520] sm:$0xff]
    %v2861 = vld [vmem:[#allocation11 + $0x528] sm:$0xff]
    %v2862 = vld [vmem:[#allocation11 + $0x530] sm:$0xff]
    %v2863 = vld [vmem:[#allocation11 + $0x538] sm:$0xff]
    %v2864 = vld [vmem:[#allocation11 + $0x540] sm:$0xff]
    %v2865 = vld [vmem:[#allocation11 + $0x548] sm:$0xff]
    %v2866 = vld [vmem:[#allocation11 + $0x550] sm:$0xff]
    %v2867 = vld [vmem:[#allocation11 + $0x558] sm:$0xff]
    %v2868 = vld [vmem:[#allocation11 + $0x560] sm:$0xff]
    %v2869 = vld [vmem:[#allocation11 + $0x568] sm:$0xff]
    %v2870 = vld [vmem:[#allocation11 + $0x570] sm:$0xff]
    %v2871 = vld [vmem:[#allocation11 + $0x578] sm:$0xff]
    %v2872 = vld [vmem:[#allocation11 + $0x580] sm:$0xff]
    %v2873 = vld [vmem:[#allocation11 + $0x588] sm:$0xff]
    %v2874 = vld [vmem:[#allocation11 + $0x590] sm:$0xff]
    %v2875 = vld [vmem:[#allocation11 + $0x598] sm:$0xff]
    %v2876 = vld [vmem:[#allocation11 + $0x5a0] sm:$0xff]
    %v2877 = vld [vmem:[#allocation11 + $0x5a8] sm:$0xff]
    %v2878 = vld [vmem:[#allocation11 + $0x5b0] sm:$0xff]
    %v2879 = vld [vmem:[#allocation11 + $0x5b8] sm:$0xff]
    %v2880 = vld [vmem:[#allocation11 + $0x5c0] sm:$0xff]
    %v2881 = vld [vmem:[#allocation11 + $0x5c8] sm:$0xff]
    %v2882 = vld [vmem:[#allocation11 + $0x5d0] sm:$0xff]
    %v2883 = vld [vmem:[#allocation11 + $0x5d8] sm:$0xff]
    %v2884 = vld [vmem:[#allocation11 + $0x5e0] sm:$0xff]
    %v2885 = vld [vmem:[#allocation11 + $0x5e8] sm:$0xff]
    %v2886 = vld [vmem:[#allocation11 + $0x5f0] sm:$0xff]
    %v2887 = vld [vmem:[#allocation11 + $0x5f8] sm:$0xff]
    %v2888 = vld [vmem:[#allocation11 + $0x600] sm:$0xff]
    %v2889 = vld [vmem:[#allocation11 + $0x608] sm:$0xff]
    %v2890 = vld [vmem:[#allocation11 + $0x610] sm:$0xff]
    %v2891 = vld [vmem:[#allocation11 + $0x618] sm:$0xff]
    %v2892 = vld [vmem:[#allocation11 + $0x620] sm:$0xff]
    %v2893 = vld [vmem:[#allocation11 + $0x628] sm:$0xff]
    %v2894 = vld [vmem:[#allocation11 + $0x630] sm:$0xff]
    %v2895 = vld [vmem:[#allocation11 + $0x638] sm:$0xff]
    %v2896 = vld [vmem:[#allocation11 + $0x640] sm:$0xff]
    %v2897 = vld [vmem:[#allocation11 + $0x648] sm:$0xff]
    %v2898 = vld [vmem:[#allocation11 + $0x650] sm:$0xff]
    %v2899 = vld [vmem:[#allocation11 + $0x658] sm:$0xff]
    %v2900 = vld [vmem:[#allocation11 + $0x660] sm:$0xff]
    %v2901 = vld [vmem:[#allocation11 + $0x668] sm:$0xff]
    %v2902 = vld [vmem:[#allocation11 + $0x670] sm:$0xff]
    %v2903 = vld [vmem:[#allocation11 + $0x678] sm:$0xff]
    %v2904 = vld [vmem:[#allocation11 + $0x680] sm:$0xff]
    %v2905 = vld [vmem:[#allocation11 + $0x688] sm:$0xff]
    %v2906 = vld [vmem:[#allocation11 + $0x690] sm:$0xff]
    %v2907 = vld [vmem:[#allocation11 + $0x698] sm:$0xff]
    %v2908 = vld [vmem:[#allocation11 + $0x6a0] sm:$0xff]
    %v2909 = vld [vmem:[#allocation11 + $0x6a8] sm:$0xff]
    %v2910 = vld [vmem:[#allocation11 + $0x6b0] sm:$0xff]
    %v2911 = vld [vmem:[#allocation11 + $0x6b8] sm:$0xff]
    %v2912 = vld [vmem:[#allocation11 + $0x6c0] sm:$0xff]
    %v2913 = vld [vmem:[#allocation11 + $0x6c8] sm:$0xff]
    %v2914 = vld [vmem:[#allocation11 + $0x6d0] sm:$0xff]
    %v2915 = vld [vmem:[#allocation11 + $0x6d8] sm:$0xff]
    %v2916 = vld [vmem:[#allocation11 + $0x6e0] sm:$0xff]
    %v2917 = vld [vmem:[#allocation11 + $0x6e8] sm:$0xff]
    %v2918 = vld [vmem:[#allocation11 + $0x6f0] sm:$0xff]
    %v2919 = vld [vmem:[#allocation11 + $0x6f8] sm:$0xff]
    %v2920 = vld [vmem:[#allocation11 + $0x700] sm:$0xff]
    %v2921 = vld [vmem:[#allocation11 + $0x708] sm:$0xff]
    %v2922 = vld [vmem:[#allocation11 + $0x710] sm:$0xff]
    %v2923 = vld [vmem:[#allocation11 + $0x718] sm:$0xff]
    %v2924 = vld [vmem:[#allocation11 + $0x720] sm:$0xff]
    %v2925 = vld [vmem:[#allocation11 + $0x728] sm:$0xff]
    %v2926 = vld [vmem:[#allocation11 + $0x730] sm:$0xff]
    %v2927 = vld [vmem:[#allocation11 + $0x738] sm:$0xff]
    %v2928 = vld [vmem:[#allocation11 + $0x740] sm:$0xff]
    %v2929 = vld [vmem:[#allocation11 + $0x748] sm:$0xff]
    %v2930 = vld [vmem:[#allocation11 + $0x750] sm:$0xff]
    %v2931 = vld [vmem:[#allocation11 + $0x758] sm:$0xff]
    %v2932 = vld [vmem:[#allocation11 + $0x760] sm:$0xff]
    %v2933 = vld [vmem:[#allocation11 + $0x768] sm:$0xff]
    %v2934 = vld [vmem:[#allocation11 + $0x770] sm:$0xff]
    %v2935 = vld [vmem:[#allocation11 + $0x778] sm:$0xff]
    %v2936 = vld [vmem:[#allocation11 + $0x780] sm:$0xff]
    %v2937 = vld [vmem:[#allocation11 + $0x788] sm:$0xff]
    %v2938 = vld [vmem:[#allocation11 + $0x790] sm:$0xff]
    %v2939 = vld [vmem:[#allocation11 + $0x798] sm:$0xff]
    %v2940 = vld [vmem:[#allocation11 + $0x7a0] sm:$0xff]
    %v2941 = vld [vmem:[#allocation11 + $0x7a8] sm:$0xff]
    %v2942 = vld [vmem:[#allocation11 + $0x7b0] sm:$0xff]
    %v2943 = vld [vmem:[#allocation11 + $0x7b8] sm:$0xff]
    %v2944 = vld [vmem:[#allocation11 + $0x7c0] sm:$0xff]
    %v2945 = vld [vmem:[#allocation11 + $0x7c8] sm:$0xff]
    %v2946 = vld [vmem:[#allocation11 + $0x7d0] sm:$0xff]
    %v2947 = vld [vmem:[#allocation11 + $0x7d8] sm:$0xff]
    %v2948 = vld [vmem:[#allocation11 + $0x7e0] sm:$0xff]
    %v2949 = vld [vmem:[#allocation11 + $0x7e8] sm:$0xff]
    %v2950 = vld [vmem:[#allocation11 + $0x7f0] sm:$0xff]
    %v2951 = vld [vmem:[#allocation11 + $0x7f8] sm:$0xff]
    %v2952 = vld [vmem:[#allocation11 + $0x800] sm:$0xff]
    %v2953 = vld [vmem:[#allocation11 + $0x808] sm:$0xff]
    %v2954 = vld [vmem:[#allocation11 + $0x810] sm:$0xff]
    %v2955 = vld [vmem:[#allocation11 + $0x818] sm:$0xff]
    %v2956 = vld [vmem:[#allocation11 + $0x820] sm:$0xff]
    %v2957 = vld [vmem:[#allocation11 + $0x828] sm:$0xff]
    %v2958 = vld [vmem:[#allocation11 + $0x830] sm:$0xff]
    %v2959 = vld [vmem:[#allocation11 + $0x838] sm:$0xff]
    %v2960 = vld [vmem:[#allocation11 + $0x840] sm:$0xff]
    %v2961 = vld [vmem:[#allocation11 + $0x848] sm:$0xff]
    %v2962 = vld [vmem:[#allocation11 + $0x850] sm:$0xff]
    %v2963 = vld [vmem:[#allocation11 + $0x858] sm:$0xff]
    %v2964 = vld [vmem:[#allocation11 + $0x860] sm:$0xff]
    %v2965 = vld [vmem:[#allocation11 + $0x868] sm:$0xff]
    %v2966 = vld [vmem:[#allocation11 + $0x870] sm:$0xff]
    %v2967 = vld [vmem:[#allocation11 + $0x878] sm:$0xff]
    %v2968 = vld [vmem:[#allocation11 + $0x880] sm:$0xff]
    %v2969 = vld [vmem:[#allocation11 + $0x888] sm:$0xff]
    %v2970 = vld [vmem:[#allocation11 + $0x890] sm:$0xff]
    %v2971 = vld [vmem:[#allocation11 + $0x898] sm:$0xff]
    %v2972 = vld [vmem:[#allocation11 + $0x8a0] sm:$0xff]
    %v2973 = vld [vmem:[#allocation11 + $0x8a8] sm:$0xff]
    %v2974 = vld [vmem:[#allocation11 + $0x8b0] sm:$0xff]
    %v2975 = vld [vmem:[#allocation11 + $0x8b8] sm:$0xff]
    %v2976 = vld [vmem:[#allocation11 + $0x8c0] sm:$0xff]
    %v2977 = vld [vmem:[#allocation11 + $0x8c8] sm:$0xff]
    %v2978 = vld [vmem:[#allocation11 + $0x8d0] sm:$0xff]
    %v2979 = vld [vmem:[#allocation11 + $0x8d8] sm:$0xff]
    %v2980 = vld [vmem:[#allocation11 + $0x8e0] sm:$0xff]
    %v2981 = vld [vmem:[#allocation11 + $0x8e8] sm:$0xff]
    %v2982 = vld [vmem:[#allocation11 + $0x8f0] sm:$0xff]
    %v2983 = vld [vmem:[#allocation11 + $0x8f8] sm:$0xff]
    %v2984 = vld [vmem:[#allocation11 + $0x900] sm:$0xff]
    %v2985 = vld [vmem:[#allocation11 + $0x908] sm:$0xff]
    %v2986 = vld [vmem:[#allocation11 + $0x910] sm:$0xff]
    %v2987 = vld [vmem:[#allocation11 + $0x918] sm:$0xff]
    %v2988 = vld [vmem:[#allocation11 + $0x920] sm:$0xff]
    %v2989 = vld [vmem:[#allocation11 + $0x928] sm:$0xff]
    %v2990 = vld [vmem:[#allocation11 + $0x930] sm:$0xff]
    %v2991 = vld [vmem:[#allocation11 + $0x938] sm:$0xff]
    %v2992 = vld [vmem:[#allocation11 + $0x940] sm:$0xff]
    %v2993 = vld [vmem:[#allocation11 + $0x948] sm:$0xff]
    %v2994 = vld [vmem:[#allocation11 + $0x950] sm:$0xff]
    %v2995 = vld [vmem:[#allocation11 + $0x958] sm:$0xff]
    %v2996 = vld [vmem:[#allocation11 + $0x960] sm:$0xff]
    %v2997 = vld [vmem:[#allocation11 + $0x968] sm:$0xff]
    %v2998 = vld [vmem:[#allocation11 + $0x970] sm:$0xff]
    %v2999 = vld [vmem:[#allocation11 + $0x978] sm:$0xff]
    %v3000 = vld [vmem:[#allocation11 + $0x980] sm:$0xff]
    %v3001 = vld [vmem:[#allocation11 + $0x988] sm:$0xff]
    %v3002 = vld [vmem:[#allocation11 + $0x990] sm:$0xff]
    %v3003 = vld [vmem:[#allocation11 + $0x998] sm:$0xff]
    %v3004 = vld [vmem:[#allocation11 + $0x9a0] sm:$0xff]
    %v3005 = vld [vmem:[#allocation11 + $0x9a8] sm:$0xff]
    %v3006 = vld [vmem:[#allocation11 + $0x9b0] sm:$0xff]
    %v3007 = vld [vmem:[#allocation11 + $0x9b8] sm:$0xff]
    %v3008 = vld [vmem:[#allocation11 + $0x9c0] sm:$0xff]
    %v3009 = vld [vmem:[#allocation11 + $0x9c8] sm:$0xff]
    %v3010 = vld [vmem:[#allocation11 + $0x9d0] sm:$0xff]
    %v3011 = vld [vmem:[#allocation11 + $0x9d8] sm:$0xff]
    %v3012 = vld [vmem:[#allocation11 + $0x9e0] sm:$0xff]
    %v3013 = vld [vmem:[#allocation11 + $0x9e8] sm:$0xff]
    %v3014 = vld [vmem:[#allocation11 + $0x9f0] sm:$0xff]
    %v3015 = vld [vmem:[#allocation11 + $0x9f8] sm:$0xff]
    %v3016 = vld [vmem:[#allocation11 + $0xa00] sm:$0xff]
    %v3017 = vld [vmem:[#allocation11 + $0xa08] sm:$0xff]
    %v3018 = vld [vmem:[#allocation11 + $0xa10] sm:$0xff]
    %v3019 = vld [vmem:[#allocation11 + $0xa18] sm:$0xff]
    %v3020 = vld [vmem:[#allocation11 + $0xa20] sm:$0xff]
    %v3021 = vld [vmem:[#allocation11 + $0xa28] sm:$0xff]
    %v3022 = vld [vmem:[#allocation11 + $0xa30] sm:$0xff]
    %v3023 = vld [vmem:[#allocation11 + $0xa38] sm:$0xff]
    %v3024 = vld [vmem:[#allocation11 + $0xa40] sm:$0xff]
    %v3025 = vld [vmem:[#allocation11 + $0xa48] sm:$0xff]
    %v3026 = vld [vmem:[#allocation11 + $0xa50] sm:$0xff]
    %v3027 = vld [vmem:[#allocation11 + $0xa58] sm:$0xff]
    %v3028 = vld [vmem:[#allocation11 + $0xa60] sm:$0xff]
    %v3029 = vld [vmem:[#allocation11 + $0xa68] sm:$0xff]
    %v3030 = vld [vmem:[#allocation11 + $0xa70] sm:$0xff]
    %v3031 = vld [vmem:[#allocation11 + $0xa78] sm:$0xff]
    %v3032 = vld [vmem:[#allocation11 + $0xa80] sm:$0xff]
    %v3033 = vld [vmem:[#allocation11 + $0xa88] sm:$0xff]
    %v3034 = vld [vmem:[#allocation11 + $0xa90] sm:$0xff]
    %v3035 = vld [vmem:[#allocation11 + $0xa98] sm:$0xff]
    %v3036 = vld [vmem:[#allocation11 + $0xaa0] sm:$0xff]
    %v3037 = vld [vmem:[#allocation11 + $0xaa8] sm:$0xff]
    %v3038 = vld [vmem:[#allocation11 + $0xab0] sm:$0xff]
    %v3039 = vld [vmem:[#allocation11 + $0xab8] sm:$0xff]
    %v3040 = vld [vmem:[#allocation11 + $0xac0] sm:$0xff]
    %v3041 = vld [vmem:[#allocation11 + $0xac8] sm:$0xff]
    %v3042 = vld [vmem:[#allocation11 + $0xad0] sm:$0xff]
    %v3043 = vld [vmem:[#allocation11 + $0xad8] sm:$0xff]
    %v3044 = vld [vmem:[#allocation11 + $0xae0] sm:$0xff]
    %v3045 = vld [vmem:[#allocation11 + $0xae8] sm:$0xff]
    %v3046 = vld [vmem:[#allocation11 + $0xaf0] sm:$0xff]
    %v3047 = vld [vmem:[#allocation11 + $0xaf8] sm:$0xff]
    %v3048 = vld [vmem:[#allocation11 + $0xb00] sm:$0xff]
    %v3049 = vld [vmem:[#allocation11 + $0xb08] sm:$0xff]
    %v3050 = vld [vmem:[#allocation11 + $0xb10] sm:$0xff]
    %v3051 = vld [vmem:[#allocation11 + $0xb18] sm:$0xff]
    %v3052 = vld [vmem:[#allocation11 + $0xb20] sm:$0xff]
    %v3053 = vld [vmem:[#allocation11 + $0xb28] sm:$0xff]
    %v3054 = vld [vmem:[#allocation11 + $0xb30] sm:$0xff]
    %v3055 = vld [vmem:[#allocation11 + $0xb38] sm:$0xff]
    %v3056 = vld [vmem:[#allocation11 + $0xb40] sm:$0xff]
    %v3057 = vld [vmem:[#allocation11 + $0xb48] sm:$0xff]
    %v3058 = vld [vmem:[#allocation11 + $0xb50] sm:$0xff]
    %v3059 = vld [vmem:[#allocation11 + $0xb58] sm:$0xff]
    %v3060 = vld [vmem:[#allocation11 + $0xb60] sm:$0xff]
    %v3061 = vld [vmem:[#allocation11 + $0xb68] sm:$0xff]
    %v3062 = vld [vmem:[#allocation11 + $0xb70] sm:$0xff]
    %v3063 = vld [vmem:[#allocation11 + $0xb78] sm:$0xff]
    %v3064 = vld [vmem:[#allocation11 + $0xb80] sm:$0xff]
    %v3065 = vld [vmem:[#allocation11 + $0xb88] sm:$0xff]
    %v3066 = vld [vmem:[#allocation11 + $0xb90] sm:$0xff]
    %v3067 = vld [vmem:[#allocation11 + $0xb98] sm:$0xff]
    %v3068 = vld [vmem:[#allocation11 + $0xba0] sm:$0xff]
    %v3069 = vld [vmem:[#allocation11 + $0xba8] sm:$0xff]
    %v3070 = vld [vmem:[#allocation11 + $0xbb0] sm:$0xff]
    %v3071 = vld [vmem:[#allocation11 + $0xbb8] sm:$0xff]
    %v3072 = vld [vmem:[#allocation11 + $0xbc0] sm:$0xff]
    %v3073 = vld [vmem:[#allocation11 + $0xbc8] sm:$0xff]
    %v3074 = vld [vmem:[#allocation11 + $0xbd0] sm:$0xff]
    %v3075 = vld [vmem:[#allocation11 + $0xbd8] sm:$0xff]
    %v3076 = vld [vmem:[#allocation11 + $0xbe0] sm:$0xff]
    %v3077 = vld [vmem:[#allocation11 + $0xbe8] sm:$0xff]
    %v3078 = vld [vmem:[#allocation11 + $0xbf0] sm:$0xff]
    %v3079 = vld [vmem:[#allocation11 + $0xbf8] sm:$0xff]
    %v3080 = vld [vmem:[#allocation11 + $0xc00] sm:$0xff]
    %v3081 = vld [vmem:[#allocation11 + $0xc08] sm:$0xff]
    %v3082 = vld [vmem:[#allocation11 + $0xc10] sm:$0xff]
    %v3083 = vld [vmem:[#allocation11 + $0xc18] sm:$0xff]
    %v3084 = vld [vmem:[#allocation11 + $0xc20] sm:$0xff]
    %v3085 = vld [vmem:[#allocation11 + $0xc28] sm:$0xff]
    %v3086 = vld [vmem:[#allocation11 + $0xc30] sm:$0xff]
    %v3087 = vld [vmem:[#allocation11 + $0xc38] sm:$0xff]
    %v3088 = vld [vmem:[#allocation11 + $0xc40] sm:$0xff]
    %v3089 = vld [vmem:[#allocation11 + $0xc48] sm:$0xff]
    %v3090 = vld [vmem:[#allocation11 + $0xc50] sm:$0xff]
    %v3091 = vld [vmem:[#allocation11 + $0xc58] sm:$0xff]
    %v3092 = vld [vmem:[#allocation11 + $0xc60] sm:$0xff]
    %v3093 = vld [vmem:[#allocation11 + $0xc68] sm:$0xff]
    %v3094 = vld [vmem:[#allocation11 + $0xc70] sm:$0xff]
    %v3095 = vld [vmem:[#allocation11 + $0xc78] sm:$0xff]
    %v3096 = vld [vmem:[#allocation11 + $0xc80] sm:$0xff]
    %v3097 = vld [vmem:[#allocation11 + $0xc88] sm:$0xff]
    %v3098 = vld [vmem:[#allocation11 + $0xc90] sm:$0xff]
    %v3099 = vld [vmem:[#allocation11 + $0xc98] sm:$0xff]
    %v3100 = vld [vmem:[#allocation11 + $0xca0] sm:$0xff]
    %v3101 = vld [vmem:[#allocation11 + $0xca8] sm:$0xff]
    %v3102 = vld [vmem:[#allocation11 + $0xcb0] sm:$0xff]
    %v3103 = vld [vmem:[#allocation11 + $0xcb8] sm:$0xff]
    %v3104 = vld [vmem:[#allocation11 + $0xcc0] sm:$0xff]
    %v3105 = vld [vmem:[#allocation11 + $0xcc8] sm:$0xff]
    %v3106 = vld [vmem:[#allocation11 + $0xcd0] sm:$0xff]
    %v3107 = vld [vmem:[#allocation11 + $0xcd8] sm:$0xff]
    %v3108 = vld [vmem:[#allocation11 + $0xce0] sm:$0xff]
    %v3109 = vld [vmem:[#allocation11 + $0xce8] sm:$0xff]
    %v3110 = vld [vmem:[#allocation11 + $0xcf0] sm:$0xff]
    %v3111 = vld [vmem:[#allocation11 + $0xcf8] sm:$0xff]
    %v3112 = vld [vmem:[#allocation11 + $0xd00] sm:$0xff]
    %v3113 = vld [vmem:[#allocation11 + $0xd08] sm:$0xff]
    %v3114 = vld [vmem:[#allocation11 + $0xd10] sm:$0xff]
    %v3115 = vld [vmem:[#allocation11 + $0xd18] sm:$0xff]
    %v3116 = vld [vmem:[#allocation11 + $0xd20] sm:$0xff]
    %v3117 = vld [vmem:[#allocation11 + $0xd28] sm:$0xff]
    %v3118 = vld [vmem:[#allocation11 + $0xd30] sm:$0xff]
    %v3119 = vld [vmem:[#allocation11 + $0xd38] sm:$0xff]
    %v3120 = vld [vmem:[#allocation11 + $0xd40] sm:$0xff]
    %v3121 = vld [vmem:[#allocation11 + $0xd48] sm:$0xff]
    %v3122 = vld [vmem:[#allocation11 + $0xd50] sm:$0xff]
    %v3123 = vld [vmem:[#allocation11 + $0xd58] sm:$0xff]
    %v3124 = vld [vmem:[#allocation11 + $0xd60] sm:$0xff]
    %v3125 = vld [vmem:[#allocation11 + $0xd68] sm:$0xff]
    %v3126 = vld [vmem:[#allocation11 + $0xd70] sm:$0xff]
    %v3127 = vld [vmem:[#allocation11 + $0xd78] sm:$0xff]
    %v3128 = vld [vmem:[#allocation11 + $0xd80] sm:$0xff]
    %v3129 = vld [vmem:[#allocation11 + $0xd88] sm:$0xff]
    %v3130 = vld [vmem:[#allocation11 + $0xd90] sm:$0xff]
    %v3131 = vld [vmem:[#allocation11 + $0xd98] sm:$0xff]
    %v3132 = vld [vmem:[#allocation11 + $0xda0] sm:$0xff]
    %v3133 = vld [vmem:[#allocation11 + $0xda8] sm:$0xff]
    %v3134 = vld [vmem:[#allocation11 + $0xdb0] sm:$0xff]
    %v3135 = vld [vmem:[#allocation11 + $0xdb8] sm:$0xff]
    %v3136 = vld [vmem:[#allocation11 + $0xdc0] sm:$0xff]
    %v3137 = vld [vmem:[#allocation11 + $0xdc8] sm:$0xff]
    %v3138 = vld [vmem:[#allocation11 + $0xdd0] sm:$0xff]
    %v3139 = vld [vmem:[#allocation11 + $0xdd8] sm:$0xff]
    %v3140 = vld [vmem:[#allocation11 + $0xde0] sm:$0xff]
    %v3141 = vld [vmem:[#allocation11 + $0xde8] sm:$0xff]
    %v3142 = vld [vmem:[#allocation11 + $0xdf0] sm:$0xff]
    %v3143 = vld [vmem:[#allocation11 + $0xdf8] sm:$0xff]
    %v3144 = vld [vmem:[#allocation11 + $0xe00] sm:$0xff]
    %v3145 = vld [vmem:[#allocation11 + $0xe08] sm:$0xff]
    %v3146 = vld [vmem:[#allocation11 + $0xe10] sm:$0xff]
    %v3147 = vld [vmem:[#allocation11 + $0xe18] sm:$0xff]
    %v3148 = vld [vmem:[#allocation11 + $0xe20] sm:$0xff]
    %v3149 = vld [vmem:[#allocation11 + $0xe28] sm:$0xff]
    %v3150 = vld [vmem:[#allocation11 + $0xe30] sm:$0xff]
    %v3151 = vld [vmem:[#allocation11 + $0xe38] sm:$0xff]
    %v3152 = vld [vmem:[#allocation11 + $0xe40] sm:$0xff]
    %v3153 = vld [vmem:[#allocation11 + $0xe48] sm:$0xff]
    %v3154 = vld [vmem:[#allocation11 + $0xe50] sm:$0xff]
    %v3155 = vld [vmem:[#allocation11 + $0xe58] sm:$0xff]
    %v3156 = vld [vmem:[#allocation11 + $0xe60] sm:$0xff]
    %v3157 = vld [vmem:[#allocation11 + $0xe68] sm:$0xff]
    %v3158 = vld [vmem:[#allocation11 + $0xe70] sm:$0xff]
    %v3159 = vld [vmem:[#allocation11 + $0xe78] sm:$0xff]
    %v3160 = vld [vmem:[#allocation11 + $0xe80] sm:$0xff]
    %v3161 = vld [vmem:[#allocation11 + $0xe88] sm:$0xff]
    %v3162 = vld [vmem:[#allocation11 + $0xe90] sm:$0xff]
    %v3163 = vld [vmem:[#allocation11 + $0xe98] sm:$0xff]
    %v3164 = vld [vmem:[#allocation11 + $0xea0] sm:$0xff]
    %v3165 = vld [vmem:[#allocation11 + $0xea8] sm:$0xff]
    %v3166 = vld [vmem:[#allocation11 + $0xeb0] sm:$0xff]
    %v3167 = vld [vmem:[#allocation11 + $0xeb8] sm:$0xff]
    %v3168 = vld [vmem:[#allocation11 + $0xec0] sm:$0xff]
    %v3169 = vld [vmem:[#allocation11 + $0xec8] sm:$0xff]
    %v3170 = vld [vmem:[#allocation11 + $0xed0] sm:$0xff]
    %v3171 = vld [vmem:[#allocation11 + $0xed8] sm:$0xff]
    %v3172 = vld [vmem:[#allocation11 + $0xee0] sm:$0xff]
    %v3173 = vld [vmem:[#allocation11 + $0xee8] sm:$0xff]
    %v3174 = vld [vmem:[#allocation11 + $0xef0] sm:$0xff]
    %v3175 = vld [vmem:[#allocation11 + $0xef8] sm:$0xff]
    %v3176 = vld [vmem:[#allocation11 + $0xf00] sm:$0xff]
    %v3177 = vld [vmem:[#allocation11 + $0xf08] sm:$0xff]
    %v3178 = vld [vmem:[#allocation11 + $0xf10] sm:$0xff]
    %v3179 = vld [vmem:[#allocation11 + $0xf18] sm:$0xff]
    %v3180 = vld [vmem:[#allocation11 + $0xf20] sm:$0xff]
    %v3181 = vld [vmem:[#allocation11 + $0xf28] sm:$0xff]
    %v3182 = vld [vmem:[#allocation11 + $0xf30] sm:$0xff]
    %v3183 = vld [vmem:[#allocation11 + $0xf38] sm:$0xff]
    %v3184 = vld [vmem:[#allocation11 + $0xf40] sm:$0xff]
    %v3185 = vld [vmem:[#allocation11 + $0xf48] sm:$0xff]
    %v3186 = vld [vmem:[#allocation11 + $0xf50] sm:$0xff]
    %v3187 = vld [vmem:[#allocation11 + $0xf58] sm:$0xff]
    %v3188 = vld [vmem:[#allocation11 + $0xf60] sm:$0xff]
    %v3189 = vld [vmem:[#allocation11 + $0xf68] sm:$0xff]
    %v3190 = vld [vmem:[#allocation11 + $0xf70] sm:$0xff]
    %v3191 = vld [vmem:[#allocation11 + $0xf78] sm:$0xff]
    %v3192 = vld [vmem:[#allocation11 + $0xf80] sm:$0xff]
    %v3193 = vld [vmem:[#allocation11 + $0xf88] sm:$0xff]
    %v3194 = vld [vmem:[#allocation11 + $0xf90] sm:$0xff]
    %v3195 = vld [vmem:[#allocation11 + $0xf98] sm:$0xff]
    %v3196 = vld [vmem:[#allocation11 + $0xfa0] sm:$0xff]
    %v3197 = vld [vmem:[#allocation11 + $0xfa8] sm:$0xff]
    %v3198 = vld [vmem:[#allocation11 + $0xfb0] sm:$0xff]
    %v3199 = vld [vmem:[#allocation11 + $0xfb8] sm:$0xff]
    %v3200 = vld [vmem:[#allocation11 + $0xfc0] sm:$0xff]
    %v3201 = vld [vmem:[#allocation11 + $0xfc8] sm:$0xff]
    %v3202 = vld [vmem:[#allocation11 + $0xfd0] sm:$0xff]
    %v3203 = vld [vmem:[#allocation11 + $0xfd8] sm:$0xff]
    %v3204 = vld [vmem:[#allocation11 + $0xfe0] sm:$0xff]
    %v3205 = vld [vmem:[#allocation11 + $0xfe8] sm:$0xff]
    %v3206 = vld [vmem:[#allocation11 + $0xff0] sm:$0xff]
    %v3207 = vld [vmem:[#allocation11 + $0xff8] sm:$0xff]
    %v3208 = vld [vmem:[#allocation11 + $0x1000] sm:$0xff]
    %v3209 = vld [vmem:[#allocation11 + $0x1008] sm:$0xff]
    %v3210 = vld [vmem:[#allocation11 + $0x1010] sm:$0xff]
    %v3211 = vld [vmem:[#allocation11 + $0x1018] sm:$0xff]
    %v3212 = vld [vmem:[#allocation11 + $0x1020] sm:$0xff]
    %v3213 = vld [vmem:[#allocation11 + $0x1028] sm:$0xff]
    %v3214 = vld [vmem:[#allocation11 + $0x1030] sm:$0xff]
    %v3215 = vld [vmem:[#allocation11 + $0x1038] sm:$0xff]
    %v3216 = vld [vmem:[#allocation11 + $0x1040] sm:$0xff]
    %v3217 = vld [vmem:[#allocation11 + $0x1048] sm:$0xff]
    %v3218 = vld [vmem:[#allocation11 + $0x1050] sm:$0xff]
    %v3219 = vld [vmem:[#allocation11 + $0x1058] sm:$0xff]
    %v3220 = vld [vmem:[#allocation11 + $0x1060] sm:$0xff]
    %v3221 = vld [vmem:[#allocation11 + $0x1068] sm:$0xff]
    %v3222 = vld [vmem:[#allocation11 + $0x1070] sm:$0xff]
    %v3223 = vld [vmem:[#allocation11 + $0x1078] sm:$0xff]
    %v3224 = vld [vmem:[#allocation11 + $0x1080] sm:$0xff]
    %v3225 = vld [vmem:[#allocation11 + $0x1088] sm:$0xff]
    %v3226 = vld [vmem:[#allocation11 + $0x1090] sm:$0xff]
    %v3227 = vld [vmem:[#allocation11 + $0x1098] sm:$0xff]
    %v3228 = vld [vmem:[#allocation11 + $0x10a0] sm:$0xff]
    %v3229 = vld [vmem:[#allocation11 + $0x10a8] sm:$0xff]
    %v3230 = vld [vmem:[#allocation11 + $0x10b0] sm:$0xff]
    %v3231 = vld [vmem:[#allocation11 + $0x10b8] sm:$0xff]
    %v3232 = vld [vmem:[#allocation11 + $0x10c0] sm:$0xff]
    %v3233 = vld [vmem:[#allocation11 + $0x10c8] sm:$0xff]
    %v3234 = vld [vmem:[#allocation11 + $0x10d0] sm:$0xff]
    %v3235 = vld [vmem:[#allocation11 + $0x10d8] sm:$0xff]
    %v3236 = vld [vmem:[#allocation11 + $0x10e0] sm:$0xff]
    %v3237 = vld [vmem:[#allocation11 + $0x10e8] sm:$0xff]
    %v3238 = vld [vmem:[#allocation11 + $0x10f0] sm:$0xff]
    %v3239 = vld [vmem:[#allocation11 + $0x10f8] sm:$0xff]
    %v3240 = vld [vmem:[#allocation11 + $0x1100] sm:$0xff]
    %v3241 = vld [vmem:[#allocation11 + $0x1108] sm:$0xff]
    %v3242 = vld [vmem:[#allocation11 + $0x1110] sm:$0xff]
    %v3243 = vld [vmem:[#allocation11 + $0x1118] sm:$0xff]
    %v3244 = vld [vmem:[#allocation11 + $0x1120] sm:$0xff]
    %v3245 = vld [vmem:[#allocation11 + $0x1128] sm:$0xff]
    %v3246 = vld [vmem:[#allocation11 + $0x1130] sm:$0xff]
    %v3247 = vld [vmem:[#allocation11 + $0x1138] sm:$0xff]
    %v3248 = vld [vmem:[#allocation11 + $0x1140] sm:$0xff]
    %v3249 = vld [vmem:[#allocation11 + $0x1148] sm:$0xff]
    %v3250 = vld [vmem:[#allocation11 + $0x1150] sm:$0xff]
    %v3251 = vld [vmem:[#allocation11 + $0x1158] sm:$0xff]
    %v3252 = vld [vmem:[#allocation11 + $0x1160] sm:$0xff]
    %v3253 = vld [vmem:[#allocation11 + $0x1168] sm:$0xff]
    %v3254 = vld [vmem:[#allocation11 + $0x1170] sm:$0xff]
    %v3255 = vld [vmem:[#allocation11 + $0x1178] sm:$0xff]
    %v3256 = vld [vmem:[#allocation11 + $0x1180] sm:$0xff]
    %v3257 = vld [vmem:[#allocation11 + $0x1188] sm:$0xff]
    %v3258 = vld [vmem:[#allocation11 + $0x1190] sm:$0xff]
    %v3259 = vld [vmem:[#allocation11 + $0x1198] sm:$0xff]
    %v3260 = vld [vmem:[#allocation11 + $0x11a0] sm:$0xff]
    %v3261 = vld [vmem:[#allocation11 + $0x11a8] sm:$0xff]
    %v3262 = vld [vmem:[#allocation11 + $0x11b0] sm:$0xff]
    %v3263 = vld [vmem:[#allocation11 + $0x11b8] sm:$0xff]
    %v3264 = vld [vmem:[#allocation11 + $0x11c0] sm:$0xff]
    %v3265 = vld [vmem:[#allocation11 + $0x11c8] sm:$0xff]
    %v3266 = vld [vmem:[#allocation11 + $0x11d0] sm:$0xff]
    %v3267 = vld [vmem:[#allocation11 + $0x11d8] sm:$0xff]
    %v3268 = vld [vmem:[#allocation11 + $0x11e0] sm:$0xff]
    %v3269 = vld [vmem:[#allocation11 + $0x11e8] sm:$0xff]
    %v3270 = vld [vmem:[#allocation11 + $0x11f0] sm:$0xff]
    %v3271 = vld [vmem:[#allocation11 + $0x11f8] sm:$0xff]
    %v3272 = vld [vmem:[#allocation13] sm:$0x3f]
    %v3274 = vlaneseq
    %v3275 = vshrl.u32 %v3274, 7
    %v3276 = vsub.s32 0, %v3275
    %v3277 = vrot.slane %v3272, %v3276
    %v3278 = vlaneseq
    %v3279 = vshrl.u32 %v3278, 7
    %v3280 = vsub.s32 1, %v3279
    %v3281 = vrot.slane %v3272, %v3280
    %v3282 = vlaneseq
    %v3283 = vshrl.u32 %v3282, 7
    %v3284 = vsub.s32 2, %v3283
    %v3285 = vrot.slane %v3272, %v3284
    %v3286 = vlaneseq
    %v3287 = vshrl.u32 %v3286, 7
    %v3288 = vsub.s32 3, %v3287
    %v3289 = vrot.slane %v3272, %v3288
    %v3290 = vlaneseq
    %v3291 = vshrl.u32 %v3290, 7
    %v3292 = vsub.s32 4, %v3291
    %v3293 = vrot.slane %v3272, %v3292
    %v3294 = vlaneseq
    %v3295 = vshrl.u32 %v3294, 7
    %v3296 = vsub.s32 5, %v3295
    %v3297 = vrot.slane %v3272, %v3296
    %3304 = vmatprep.subr.mxu0 %v2787
    %3305 = vmatpush1.msra.mxu0 %v2786
    %3306 = vmatprep.subr.mxu0 %v2781
    %3307 = vmatpush1.msra.mxu0 %v2780
    %3308 = vmatprep.subr.mxu0 %v2775
    %3309 = vmatpush1.msra.mxu0 %v2774
    %3310 = vmatprep.subr.mxu0 %v2769
    %3311 = vmatpush1.msra.mxu0 %v2768
    %3312 = vmatprep.subr.mxu0 %v2763
    %3313 = vmatpush1.msra.mxu0 %v2762
    %3314 = vmatprep.subr.mxu0 %v2757
    %3315 = vmatpush1.msra.mxu0 %v2756
    %3316 = vmatprep.subr.mxu0 %v2751
    %3317 = vmatpush1.msra.mxu0 %v2750
    %3318 = vmatprep.subr.mxu0 %v2745
    %3319 = vmatpush1.msra.mxu0 %v2744
    %3320 = vmatprep.subr.mxu0 %v2739
    %3321 = vmatpush1.msra.mxu0 %v2738
    %3322 = vmatprep.subr.mxu0 %v2733
    %3323 = vmatpush1.msra.mxu0 %v2732
    %3324 = vmatprep.subr.mxu0 %v2727
    %3325 = vmatpush1.msra.mxu0 %v2726
    %3326 = vmatprep.subr.mxu0 %v2721
    %3327 = vmatpush1.msra.mxu0 %v2720
    %3328 = vmatprep.subr.mxu0 %v2715
    %3329 = vmatpush1.msra.mxu0 %v2714
    %3330 = vmatprep.subr.mxu0 %v2709
    %3331 = vmatpush1.msra.mxu0 %v2708
    %3332 = vmatprep.subr.mxu0 %v2703
    %3333 = vmatpush1.msra.mxu0 %v2702
    %3334 = vmatprep.subr.mxu0 %v2697
    %3335 = vmatpush1.msra.mxu0 %v2696
    %3336 = vmatprep.subr.mxu0 %v2883
    %3337 = vmatpush2.msra.mxu0 %v2882
    %3338 = vmatprep.subr.mxu0 %v2877
    %3339 = vmatpush2.msra.mxu0 %v2876
    %3340 = vmatprep.subr.mxu0 %v2871
    %3341 = vmatpush2.msra.mxu0 %v2870
    %3342 = vmatprep.subr.mxu0 %v2865
    %3343 = vmatpush2.msra.mxu0 %v2864
    %3344 = vmatprep.subr.mxu0 %v2859
    %3345 = vmatpush2.msra.mxu0 %v2858
    %3346 = vmatprep.subr.mxu0 %v2853
    %3347 = vmatpush2.msra.mxu0 %v2852
    %3348 = vmatprep.subr.mxu0 %v2847
    %3349 = vmatpush2.msra.mxu0 %v2846
    %3350 = vmatprep.subr.mxu0 %v2841
    %3351 = vmatpush2.msra.mxu0 %v2840
    %3352 = vmatprep.subr.mxu0 %v2835
    %3353 = vmatpush2.msra.mxu0 %v2834
    %3354 = vmatprep.subr.mxu0 %v2829
    %3355 = vmatpush2.msra.mxu0 %v2828
    %3356 = vmatprep.subr.mxu0 %v2823
    %3357 = vmatpush2.msra.mxu0 %v2822
    %3358 = vmatprep.subr.mxu0 %v2817
    %3359 = vmatpush2.msra.mxu0 %v2816
    %3360 = vmatprep.subr.mxu0 %v2811
    %3361 = vmatpush2.msra.mxu0 %v2810
    %3362 = vmatprep.subr.mxu0 %v2805
    %3363 = vmatpush2.msra.mxu0 %v2804
    %3364 = vmatprep.subr.mxu0 %v2799
    %3365 = vmatpush2.msra.mxu0 %v2798
    %3366 = vmatprep.subr.mxu0 %v2793
    %3367 = vmatpush2.msra.mxu0 %v2792
    %3368 = vmatprep.mubr.f32.mxu0 %v2268
    %3369 = vmatmul.mubr.f32.gmra.mxu0 %v2266
    %v3370 = vpop.f32.mrf.mxu0
    %v3371 = vadd.f32 %v3277, %v3370
    %v3372 = vpop.f32.mrf.mxu0
    %v3373 = vadd.f32 %v3281, %v3372
    %3374 = vdwg.mxu0
    %3375 = vmatprep.subr.mxu0 %v2979
    %3376 = vmatpush1.msra.mxu0 %v2978
    %3377 = vmatprep.subr.mxu0 %v2973
    %3378 = vmatpush1.msra.mxu0 %v2972
    %3379 = vmatprep.subr.mxu0 %v2967
    %3380 = vmatpush1.msra.mxu0 %v2966
    %3381 = vmatprep.subr.mxu0 %v2961
    %3382 = vmatpush1.msra.mxu0 %v2960
    %3383 = vmatprep.subr.mxu0 %v2955
    %3384 = vmatpush1.msra.mxu0 %v2954
    %3385 = vmatprep.subr.mxu0 %v2949
    %3386 = vmatpush1.msra.mxu0 %v2948
    %3387 = vmatprep.subr.mxu0 %v2943
    %3388 = vmatpush1.msra.mxu0 %v2942
    %3389 = vmatprep.subr.mxu0 %v2937
    %3390 = vmatpush1.msra.mxu0 %v2936
    %3391 = vmatprep.subr.mxu0 %v2931
    %3392 = vmatpush1.msra.mxu0 %v2930
    %3393 = vmatprep.subr.mxu0 %v2925
    %3394 = vmatpush1.msra.mxu0 %v2924
    %3395 = vmatprep.subr.mxu0 %v2919
    %3396 = vmatpush1.msra.mxu0 %v2918
    %3397 = vmatprep.subr.mxu0 %v2913
    %3398 = vmatpush1.msra.mxu0 %v2912
    %3399 = vmatprep.subr.mxu0 %v2907
    %3400 = vmatpush1.msra.mxu0 %v2906
    %3401 = vmatprep.subr.mxu0 %v2901
    %3402 = vmatpush1.msra.mxu0 %v2900
    %3403 = vmatprep.subr.mxu0 %v2895
    %3404 = vmatpush1.msra.mxu0 %v2894
    %3405 = vmatprep.subr.mxu0 %v2889
    %3406 = vmatpush1.msra.mxu0 %v2888
    %3407 = vmatprep.subr.mxu0 %v3075
    %3408 = vmatpush2.msra.mxu0 %v3074
    %3409 = vmatprep.subr.mxu0 %v3069
    %3410 = vmatpush2.msra.mxu0 %v3068
    %3411 = vmatprep.subr.mxu0 %v3063
    %3412 = vmatpush2.msra.mxu0 %v3062
    %3413 = vmatprep.subr.mxu0 %v3057
    %3414 = vmatpush2.msra.mxu0 %v3056
    %3415 = vmatprep.subr.mxu0 %v3051
    %3416 = vmatpush2.msra.mxu0 %v3050
    %3417 = vmatprep.subr.mxu0 %v3045
    %3418 = vmatpush2.msra.mxu0 %v3044
    %3419 = vmatprep.subr.mxu0 %v3039
    %3420 = vmatpush2.msra.mxu0 %v3038
    %3421 = vmatprep.subr.mxu0 %v3033
    %3422 = vmatpush2.msra.mxu0 %v3032
    %3423 = vmatprep.subr.mxu0 %v3027
    %3424 = vmatpush2.msra.mxu0 %v3026
    %3425 = vmatprep.subr.mxu0 %v3021
    %3426 = vmatpush2.msra.mxu0 %v3020
    %3427 = vmatprep.subr.mxu0 %v3015
    %3428 = vmatpush2.msra.mxu0 %v3014
    %3429 = vmatprep.subr.mxu0 %v3009
    %3430 = vmatpush2.msra.mxu0 %v3008
    %3431 = vmatprep.subr.mxu0 %v3003
    %3432 = vmatpush2.msra.mxu0 %v3002
    %3433 = vmatprep.subr.mxu0 %v2997
    %3434 = vmatpush2.msra.mxu0 %v2996
    %3435 = vmatprep.subr.mxu0 %v2991
    %3436 = vmatpush2.msra.mxu0 %v2990
    %3437 = vmatprep.subr.mxu0 %v2985
    %3438 = vmatpush2.msra.mxu0 %v2984
    %3439 = vmatprep.mubr.f32.mxu0 %v2481
    %3440 = vmatmul.mubr.f32.gmra.mxu0 %v2479
    %v3441 = vpop.f32.mrf.mxu0
    %v3442 = vadd.f32 %v3371, %v3441
    %v3443 = vpop.f32.mrf.mxu0
    %v3444 = vadd.f32 %v3373, %v3443
    %3445 = vdwg.mxu0
    %3446 = vmatprep.subr.mxu0 %v3171
    %3447 = vmatpush1.msra.mxu0 %v3170
    %3448 = vmatprep.subr.mxu0 %v3165
    %3449 = vmatpush1.msra.mxu0 %v3164
    %3450 = vmatprep.subr.mxu0 %v3159
    %3451 = vmatpush1.msra.mxu0 %v3158
    %3452 = vmatprep.subr.mxu0 %v3153
    %3453 = vmatpush1.msra.mxu0 %v3152
    %3454 = vmatprep.subr.mxu0 %v3147
    %3455 = vmatpush1.msra.mxu0 %v3146
    %3456 = vmatprep.subr.mxu0 %v3141
    %3457 = vmatpush1.msra.mxu0 %v3140
    %3458 = vmatprep.subr.mxu0 %v3135
    %3459 = vmatpush1.msra.mxu0 %v3134
    %3460 = vmatprep.subr.mxu0 %v3129
    %3461 = vmatpush1.msra.mxu0 %v3128
    %3462 = vmatprep.subr.mxu0 %v3123
    %3463 = vmatpush1.msra.mxu0 %v3122
    %3464 = vmatprep.subr.mxu0 %v3117
    %3465 = vmatpush1.msra.mxu0 %v3116
    %3466 = vmatprep.subr.mxu0 %v3111
    %3467 = vmatpush1.msra.mxu0 %v3110
    %3468 = vmatprep.subr.mxu0 %v3105
    %3469 = vmatpush1.msra.mxu0 %v3104
    %3470 = vmatprep.subr.mxu0 %v3099
    %3471 = vmatpush1.msra.mxu0 %v3098
    %3472 = vmatprep.subr.mxu0 %v3093
    %3473 = vmatpush1.msra.mxu0 %v3092
    %3474 = vmatprep.subr.mxu0 %v3087
    %3475 = vmatpush1.msra.mxu0 %v3086
    %3476 = vmatprep.subr.mxu0 %v3081
    %3477 = vmatpush1.msra.mxu0 %v3080
    %3478 = vmatprep.subr.mxu0 %v3267
    %3479 = vmatpush2.msra.mxu0 %v3266
    %3480 = vmatprep.subr.mxu0 %v3261
    %3481 = vmatpush2.msra.mxu0 %v3260
    %3482 = vmatprep.subr.mxu0 %v3255
    %3483 = vmatpush2.msra.mxu0 %v3254
    %3484 = vmatprep.subr.mxu0 %v3249
    %3485 = vmatpush2.msra.mxu0 %v3248
    %3486 = vmatprep.subr.mxu0 %v3243
    %3487 = vmatpush2.msra.mxu0 %v3242
    %3488 = vmatprep.subr.mxu0 %v3237
    %3489 = vmatpush2.msra.mxu0 %v3236
    %3490 = vmatprep.subr.mxu0 %v3231
    %3491 = vmatpush2.msra.mxu0 %v3230
    %3492 = vmatprep.subr.mxu0 %v3225
    %3493 = vmatpush2.msra.mxu0 %v3224
    %3494 = vmatprep.subr.mxu0 %v3219
    %3495 = vmatpush2.msra.mxu0 %v3218
    %3496 = vmatprep.subr.mxu0 %v3213
    %3497 = vmatpush2.msra.mxu0 %v3212
    %3498 = vmatprep.subr.mxu0 %v3207
    %3499 = vmatpush2.msra.mxu0 %v3206
    %3500 = vmatprep.subr.mxu0 %v3201
    %3501 = vmatpush2.msra.mxu0 %v3200
    %3502 = vmatprep.subr.mxu0 %v3195
    %3503 = vmatpush2.msra.mxu0 %v3194
    %3504 = vmatprep.subr.mxu0 %v3189
    %3505 = vmatpush2.msra.mxu0 %v3188
    %3506 = vmatprep.subr.mxu0 %v3183
    %3507 = vmatpush2.msra.mxu0 %v3182
    %3508 = vmatprep.subr.mxu0 %v3177
    %3509 = vmatpush2.msra.mxu0 %v3176
    %3510 = vmatprep.mubr.f32.mxu0 %v2694
    %3511 = vmatmul.mubr.f32.gmra.mxu0 %v2692
    %v3512 = vpop.f32.mrf.mxu0
    %v3513 = vadd.f32 %v3442, %v3512
    %v3514 = vpop.f32.mrf.mxu0
    %v3515 = vadd.f32 %v3444, %v3514
    %3516 = vdwg.mxu0
    %3517 = vmatprep.subr.mxu0 %v2789
    %3518 = vmatpush1.msra.mxu0 %v2788
    %3519 = vmatprep.subr.mxu0 %v2783
    %3520 = vmatpush1.msra.mxu0 %v2782
    %3521 = vmatprep.subr.mxu0 %v2777
    %3522 = vmatpush1.msra.mxu0 %v2776
    %3523 = vmatprep.subr.mxu0 %v2771
    %3524 = vmatpush1.msra.mxu0 %v2770
    %3525 = vmatprep.subr.mxu0 %v2765
    %3526 = vmatpush1.msra.mxu0 %v2764
    %3527 = vmatprep.subr.mxu0 %v2759
    %3528 = vmatpush1.msra.mxu0 %v2758
    %3529 = vmatprep.subr.mxu0 %v2753
    %3530 = vmatpush1.msra.mxu0 %v2752
    %3531 = vmatprep.subr.mxu0 %v2747
    %3532 = vmatpush1.msra.mxu0 %v2746
    %3533 = vmatprep.subr.mxu0 %v2741
    %3534 = vmatpush1.msra.mxu0 %v2740
    %3535 = vmatprep.subr.mxu0 %v2735
    %3536 = vmatpush1.msra.mxu0 %v2734
    %3537 = vmatprep.subr.mxu0 %v2729
    %3538 = vmatpush1.msra.mxu0 %v2728
    %3539 = vmatprep.subr.mxu0 %v2723
    %3540 = vmatpush1.msra.mxu0 %v2722
    %3541 = vmatprep.subr.mxu0 %v2717
    %3542 = vmatpush1.msra.mxu0 %v2716
    %3543 = vmatprep.subr.mxu0 %v2711
    %3544 = vmatpush1.msra.mxu0 %v2710
    %3545 = vmatprep.subr.mxu0 %v2705
    %3546 = vmatpush1.msra.mxu0 %v2704
    %3547 = vmatprep.subr.mxu0 %v2699
    %3548 = vmatpush1.msra.mxu0 %v2698
    %3549 = vmatprep.subr.mxu0 %v2885
    %3550 = vmatpush2.msra.mxu0 %v2884
    %3551 = vmatprep.subr.mxu0 %v2879
    %3552 = vmatpush2.msra.mxu0 %v2878
    %3553 = vmatprep.subr.mxu0 %v2873
    %3554 = vmatpush2.msra.mxu0 %v2872
    %3555 = vmatprep.subr.mxu0 %v2867
    %3556 = vmatpush2.msra.mxu0 %v2866
    %3557 = vmatprep.subr.mxu0 %v2861
    %3558 = vmatpush2.msra.mxu0 %v2860
    %3559 = vmatprep.subr.mxu0 %v2855
    %3560 = vmatpush2.msra.mxu0 %v2854
    %3561 = vmatprep.subr.mxu0 %v2849
    %3562 = vmatpush2.msra.mxu0 %v2848
    %3563 = vmatprep.subr.mxu0 %v2843
    %3564 = vmatpush2.msra.mxu0 %v2842
    %3565 = vmatprep.subr.mxu0 %v2837
    %3566 = vmatpush2.msra.mxu0 %v2836
    %3567 = vmatprep.subr.mxu0 %v2831
    %3568 = vmatpush2.msra.mxu0 %v2830
    %3569 = vmatprep.subr.mxu0 %v2825
    %3570 = vmatpush2.msra.mxu0 %v2824
    %3571 = vmatprep.subr.mxu0 %v2819
    %3572 = vmatpush2.msra.mxu0 %v2818
    %3573 = vmatprep.subr.mxu0 %v2813
    %3574 = vmatpush2.msra.mxu0 %v2812
    %3575 = vmatprep.subr.mxu0 %v2807
    %3576 = vmatpush2.msra.mxu0 %v2806
    %3577 = vmatprep.subr.mxu0 %v2801
    %3578 = vmatpush2.msra.mxu0 %v2800
    %3579 = vmatprep.subr.mxu0 %v2795
    %3580 = vmatpush2.msra.mxu0 %v2794
    %3581 = vmatprep.mubr.f32.mxu0 %v2268
    %3582 = vmatmul.mubr.f32.gmra.mxu0 %v2266
    %v3583 = vpop.f32.mrf.mxu0
    %v3584 = vadd.f32 %v3285, %v3583
    %v3585 = vpop.f32.mrf.mxu0
    %v3586 = vadd.f32 %v3289, %v3585
    %3587 = vdwg.mxu0
    %3588 = vmatprep.subr.mxu0 %v2981
    %3589 = vmatpush1.msra.mxu0 %v2980
    %3590 = vmatprep.subr.mxu0 %v2975
    %3591 = vmatpush1.msra.mxu0 %v2974
    %3592 = vmatprep.subr.mxu0 %v2969
    %3593 = vmatpush1.msra.mxu0 %v2968
    %3594 = vmatprep.subr.mxu0 %v2963
    %3595 = vmatpush1.msra.mxu0 %v2962
    %3596 = vmatprep.subr.mxu0 %v2957
    %3597 = vmatpush1.msra.mxu0 %v2956
    %3598 = vmatprep.subr.mxu0 %v2951
    %3599 = vmatpush1.msra.mxu0 %v2950
    %3600 = vmatprep.subr.mxu0 %v2945
    %3601 = vmatpush1.msra.mxu0 %v2944
    %3602 = vmatprep.subr.mxu0 %v2939
    %3603 = vmatpush1.msra.mxu0 %v2938
    %3604 = vmatprep.subr.mxu0 %v2933
    %3605 = vmatpush1.msra.mxu0 %v2932
    %3606 = vmatprep.subr.mxu0 %v2927
    %3607 = vmatpush1.msra.mxu0 %v2926
    %3608 = vmatprep.subr.mxu0 %v2921
    %3609 = vmatpush1.msra.mxu0 %v2920
    %3610 = vmatprep.subr.mxu0 %v2915
    %3611 = vmatpush1.msra.mxu0 %v2914
    %3612 = vmatprep.subr.mxu0 %v2909
    %3613 = vmatpush1.msra.mxu0 %v2908
    %3614 = vmatprep.subr.mxu0 %v2903
    %3615 = vmatpush1.msra.mxu0 %v2902
    %3616 = vmatprep.subr.mxu0 %v2897
    %3617 = vmatpush1.msra.mxu0 %v2896
    %3618 = vmatprep.subr.mxu0 %v2891
    %3619 = vmatpush1.msra.mxu0 %v2890
    %3620 = vmatprep.subr.mxu0 %v3077
    %3621 = vmatpush2.msra.mxu0 %v3076
    %3622 = vmatprep.subr.mxu0 %v3071
    %3623 = vmatpush2.msra.mxu0 %v3070
    %3624 = vmatprep.subr.mxu0 %v3065
    %3625 = vmatpush2.msra.mxu0 %v3064
    %3626 = vmatprep.subr.mxu0 %v3059
    %3627 = vmatpush2.msra.mxu0 %v3058
    %3628 = vmatprep.subr.mxu0 %v3053
    %3629 = vmatpush2.msra.mxu0 %v3052
    %3630 = vmatprep.subr.mxu0 %v3047
    %3631 = vmatpush2.msra.mxu0 %v3046
    %3632 = vmatprep.subr.mxu0 %v3041
    %3633 = vmatpush2.msra.mxu0 %v3040
    %3634 = vmatprep.subr.mxu0 %v3035
    %3635 = vmatpush2.msra.mxu0 %v3034
    %3636 = vmatprep.subr.mxu0 %v3029
    %3637 = vmatpush2.msra.mxu0 %v3028
    %3638 = vmatprep.subr.mxu0 %v3023
    %3639 = vmatpush2.msra.mxu0 %v3022
    %3640 = vmatprep.subr.mxu0 %v3017
    %3641 = vmatpush2.msra.mxu0 %v3016
    %3642 = vmatprep.subr.mxu0 %v3011
    %3643 = vmatpush2.msra.mxu0 %v3010
    %3644 = vmatprep.subr.mxu0 %v3005
    %3645 = vmatpush2.msra.mxu0 %v3004
    %3646 = vmatprep.subr.mxu0 %v2999
    %3647 = vmatpush2.msra.mxu0 %v2998
    %3648 = vmatprep.subr.mxu0 %v2993
    %3649 = vmatpush2.msra.mxu0 %v2992
    %3650 = vmatprep.subr.mxu0 %v2987
    %3651 = vmatpush2.msra.mxu0 %v2986
    %3652 = vmatprep.mubr.f32.mxu0 %v2481
    %3653 = vmatmul.mubr.f32.gmra.mxu0 %v2479
    %v3654 = vpop.f32.mrf.mxu0
    %v3655 = vadd.f32 %v3584, %v3654
    %v3656 = vpop.f32.mrf.mxu0
    %v3657 = vadd.f32 %v3586, %v3656
    %3658 = vdwg.mxu0
    %3659 = vmatprep.subr.mxu0 %v3173
    %3660 = vmatpush1.msra.mxu0 %v3172
    %3661 = vmatprep.subr.mxu0 %v3167
    %3662 = vmatpush1.msra.mxu0 %v3166
    %3663 = vmatprep.subr.mxu0 %v3161
    %3664 = vmatpush1.msra.mxu0 %v3160
    %3665 = vmatprep.subr.mxu0 %v3155
    %3666 = vmatpush1.msra.mxu0 %v3154
    %3667 = vmatprep.subr.mxu0 %v3149
    %3668 = vmatpush1.msra.mxu0 %v3148
    %3669 = vmatprep.subr.mxu0 %v3143
    %3670 = vmatpush1.msra.mxu0 %v3142
    %3671 = vmatprep.subr.mxu0 %v3137
    %3672 = vmatpush1.msra.mxu0 %v3136
    %3673 = vmatprep.subr.mxu0 %v3131
    %3674 = vmatpush1.msra.mxu0 %v3130
    %3675 = vmatprep.subr.mxu0 %v3125
    %3676 = vmatpush1.msra.mxu0 %v3124
    %3677 = vmatprep.subr.mxu0 %v3119
    %3678 = vmatpush1.msra.mxu0 %v3118
    %3679 = vmatprep.subr.mxu0 %v3113
    %3680 = vmatpush1.msra.mxu0 %v3112
    %3681 = vmatprep.subr.mxu0 %v3107
    %3682 = vmatpush1.msra.mxu0 %v3106
    %3683 = vmatprep.subr.mxu0 %v3101
    %3684 = vmatpush1.msra.mxu0 %v3100
    %3685 = vmatprep.subr.mxu0 %v3095
    %3686 = vmatpush1.msra.mxu0 %v3094
    %3687 = vmatprep.subr.mxu0 %v3089
    %3688 = vmatpush1.msra.mxu0 %v3088
    %3689 = vmatprep.subr.mxu0 %v3083
    %3690 = vmatpush1.msra.mxu0 %v3082
    %3691 = vmatprep.subr.mxu0 %v3269
    %3692 = vmatpush2.msra.mxu0 %v3268
    %3693 = vmatprep.subr.mxu0 %v3263
    %3694 = vmatpush2.msra.mxu0 %v3262
    %3695 = vmatprep.subr.mxu0 %v3257
    %3696 = vmatpush2.msra.mxu0 %v3256
    %3697 = vmatprep.subr.mxu0 %v3251
    %3698 = vmatpush2.msra.mxu0 %v3250
    %3699 = vmatprep.subr.mxu0 %v3245
    %3700 = vmatpush2.msra.mxu0 %v3244
    %3701 = vmatprep.subr.mxu0 %v3239
    %3702 = vmatpush2.msra.mxu0 %v3238
    %3703 = vmatprep.subr.mxu0 %v3233
    %3704 = vmatpush2.msra.mxu0 %v3232
    %3705 = vmatprep.subr.mxu0 %v3227
    %3706 = vmatpush2.msra.mxu0 %v3226
    %3707 = vmatprep.subr.mxu0 %v3221
    %3708 = vmatpush2.msra.mxu0 %v3220
    %3709 = vmatprep.subr.mxu0 %v3215
    %3710 = vmatpush2.msra.mxu0 %v3214
    %3711 = vmatprep.subr.mxu0 %v3209
    %3712 = vmatpush2.msra.mxu0 %v3208
    %3713 = vmatprep.subr.mxu0 %v3203
    %3714 = vmatpush2.msra.mxu0 %v3202
    %3715 = vmatprep.subr.mxu0 %v3197
    %3716 = vmatpush2.msra.mxu0 %v3196
    %3717 = vmatprep.subr.mxu0 %v3191
    %3718 = vmatpush2.msra.mxu0 %v3190
    %3719 = vmatprep.subr.mxu0 %v3185
    %3720 = vmatpush2.msra.mxu0 %v3184
    %3721 = vmatprep.subr.mxu0 %v3179
    %3722 = vmatpush2.msra.mxu0 %v3178
    %3723 = vmatprep.mubr.f32.mxu0 %v2694
    %3724 = vmatmul.mubr.f32.gmra.mxu0 %v2692
    %v3725 = vpop.f32.mrf.mxu0
    %v3726 = vadd.f32 %v3655, %v3725
    %v3727 = vpop.f32.mrf.mxu0
    %v3728 = vadd.f32 %v3657, %v3727
    %3729 = vdwg.mxu0
    %3730 = vmatprep.subr.mxu0 %v2791
    %3731 = vmatpush1.msra.mxu0 %v2790
    %3732 = vmatprep.subr.mxu0 %v2785
    %3733 = vmatpush1.msra.mxu0 %v2784
    %3734 = vmatprep.subr.mxu0 %v2779
    %3735 = vmatpush1.msra.mxu0 %v2778
    %3736 = vmatprep.subr.mxu0 %v2773
    %3737 = vmatpush1.msra.mxu0 %v2772
    %3738 = vmatprep.subr.mxu0 %v2767
    %3739 = vmatpush1.msra.mxu0 %v2766
    %3740 = vmatprep.subr.mxu0 %v2761
    %3741 = vmatpush1.msra.mxu0 %v2760
    %3742 = vmatprep.subr.mxu0 %v2755
    %3743 = vmatpush1.msra.mxu0 %v2754
    %3744 = vmatprep.subr.mxu0 %v2749
    %3745 = vmatpush1.msra.mxu0 %v2748
    %3746 = vmatprep.subr.mxu0 %v2743
    %3747 = vmatpush1.msra.mxu0 %v2742
    %3748 = vmatprep.subr.mxu0 %v2737
    %3749 = vmatpush1.msra.mxu0 %v2736
    %3750 = vmatprep.subr.mxu0 %v2731
    %3751 = vmatpush1.msra.mxu0 %v2730
    %3752 = vmatprep.subr.mxu0 %v2725
    %3753 = vmatpush1.msra.mxu0 %v2724
    %3754 = vmatprep.subr.mxu0 %v2719
    %3755 = vmatpush1.msra.mxu0 %v2718
    %3756 = vmatprep.subr.mxu0 %v2713
    %3757 = vmatpush1.msra.mxu0 %v2712
    %3758 = vmatprep.subr.mxu0 %v2707
    %3759 = vmatpush1.msra.mxu0 %v2706
    %3760 = vmatprep.subr.mxu0 %v2701
    %3761 = vmatpush1.msra.mxu0 %v2700
    %3762 = vmatprep.subr.mxu0 %v2887
    %3763 = vmatpush2.msra.mxu0 %v2886
    %3764 = vmatprep.subr.mxu0 %v2881
    %3765 = vmatpush2.msra.mxu0 %v2880
    %3766 = vmatprep.subr.mxu0 %v2875
    %3767 = vmatpush2.msra.mxu0 %v2874
    %3768 = vmatprep.subr.mxu0 %v2869
    %3769 = vmatpush2.msra.mxu0 %v2868
    %3770 = vmatprep.subr.mxu0 %v2863
    %3771 = vmatpush2.msra.mxu0 %v2862
    %3772 = vmatprep.subr.mxu0 %v2857
    %3773 = vmatpush2.msra.mxu0 %v2856
    %3774 = vmatprep.subr.mxu0 %v2851
    %3775 = vmatpush2.msra.mxu0 %v2850
    %3776 = vmatprep.subr.mxu0 %v2845
    %3777 = vmatpush2.msra.mxu0 %v2844
    %3778 = vmatprep.subr.mxu0 %v2839
    %3779 = vmatpush2.msra.mxu0 %v2838
    %3780 = vmatprep.subr.mxu0 %v2833
    %3781 = vmatpush2.msra.mxu0 %v2832
    %3782 = vmatprep.subr.mxu0 %v2827
    %3783 = vmatpush2.msra.mxu0 %v2826
    %3784 = vmatprep.subr.mxu0 %v2821
    %3785 = vmatpush2.msra.mxu0 %v2820
    %3786 = vmatprep.subr.mxu0 %v2815
    %3787 = vmatpush2.msra.mxu0 %v2814
    %3788 = vmatprep.subr.mxu0 %v2809
    %3789 = vmatpush2.msra.mxu0 %v2808
    %3790 = vmatprep.subr.mxu0 %v2803
    %3791 = vmatpush2.msra.mxu0 %v2802
    %3792 = vmatprep.subr.mxu0 %v2797
    %3793 = vmatpush2.msra.mxu0 %v2796
    %3794 = vmatprep.mubr.f32.mxu0 %v2268
    %3795 = vmatmul.mubr.f32.gmra.mxu0 %v2266
    %v3796 = vpop.f32.mrf.mxu0
    %v3797 = vadd.f32 %v3293, %v3796
    %v3798 = vpop.f32.mrf.mxu0
    %v3799 = vadd.f32 %v3297, %v3798
    %3800 = vdwg.mxu0
    %3801 = vmatprep.subr.mxu0 %v2983
    %3802 = vmatpush1.msra.mxu0 %v2982
    %3803 = vmatprep.subr.mxu0 %v2977
    %3804 = vmatpush1.msra.mxu0 %v2976
    %3805 = vmatprep.subr.mxu0 %v2971
    %3806 = vmatpush1.msra.mxu0 %v2970
    %3807 = vmatprep.subr.mxu0 %v2965
    %3808 = vmatpush1.msra.mxu0 %v2964
    %3809 = vmatprep.subr.mxu0 %v2959
    %3810 = vmatpush1.msra.mxu0 %v2958
    %3811 = vmatprep.subr.mxu0 %v2953
    %3812 = vmatpush1.msra.mxu0 %v2952
    %3813 = vmatprep.subr.mxu0 %v2947
    %3814 = vmatpush1.msra.mxu0 %v2946
    %3815 = vmatprep.subr.mxu0 %v2941
    %3816 = vmatpush1.msra.mxu0 %v2940
    %3817 = vmatprep.subr.mxu0 %v2935
    %3818 = vmatpush1.msra.mxu0 %v2934
    %3819 = vmatprep.subr.mxu0 %v2929
    %3820 = vmatpush1.msra.mxu0 %v2928
    %3821 = vmatprep.subr.mxu0 %v2923
    %3822 = vmatpush1.msra.mxu0 %v2922
    %3823 = vmatprep.subr.mxu0 %v2917
    %3824 = vmatpush1.msra.mxu0 %v2916
    %3825 = vmatprep.subr.mxu0 %v2911
    %3826 = vmatpush1.msra.mxu0 %v2910
    %3827 = vmatprep.subr.mxu0 %v2905
    %3828 = vmatpush1.msra.mxu0 %v2904
    %3829 = vmatprep.subr.mxu0 %v2899
    %3830 = vmatpush1.msra.mxu0 %v2898
    %3831 = vmatprep.subr.mxu0 %v2893
    %3832 = vmatpush1.msra.mxu0 %v2892
    %3833 = vmatprep.subr.mxu0 %v3079
    %3834 = vmatpush2.msra.mxu0 %v3078
    %3835 = vmatprep.subr.mxu0 %v3073
    %3836 = vmatpush2.msra.mxu0 %v3072
    %3837 = vmatprep.subr.mxu0 %v3067
    %3838 = vmatpush2.msra.mxu0 %v3066
    %3839 = vmatprep.subr.mxu0 %v3061
    %3840 = vmatpush2.msra.mxu0 %v3060
    %3841 = vmatprep.subr.mxu0 %v3055
    %3842 = vmatpush2.msra.mxu0 %v3054
    %3843 = vmatprep.subr.mxu0 %v3049
    %3844 = vmatpush2.msra.mxu0 %v3048
    %3845 = vmatprep.subr.mxu0 %v3043
    %3846 = vmatpush2.msra.mxu0 %v3042
    %3847 = vmatprep.subr.mxu0 %v3037
    %3848 = vmatpush2.msra.mxu0 %v3036
    %3849 = vmatprep.subr.mxu0 %v3031
    %3850 = vmatpush2.msra.mxu0 %v3030
    %3851 = vmatprep.subr.mxu0 %v3025
    %3852 = vmatpush2.msra.mxu0 %v3024
    %3853 = vmatprep.subr.mxu0 %v3019
    %3854 = vmatpush2.msra.mxu0 %v3018
    %3855 = vmatprep.subr.mxu0 %v3013
    %3856 = vmatpush2.msra.mxu0 %v3012
    %3857 = vmatprep.subr.mxu0 %v3007
    %3858 = vmatpush2.msra.mxu0 %v3006
    %3859 = vmatprep.subr.mxu0 %v3001
    %3860 = vmatpush2.msra.mxu0 %v3000
    %3861 = vmatprep.subr.mxu0 %v2995
    %3862 = vmatpush2.msra.mxu0 %v2994
    %3863 = vmatprep.subr.mxu0 %v2989
    %3864 = vmatpush2.msra.mxu0 %v2988
    %3865 = vmatprep.mubr.f32.mxu0 %v2481
    %3866 = vmatmul.mubr.f32.gmra.mxu0 %v2479
    %v3867 = vpop.f32.mrf.mxu0
    %v3868 = vadd.f32 %v3797, %v3867
    %v3869 = vpop.f32.mrf.mxu0
    %v3870 = vadd.f32 %v3799, %v3869
    %3871 = vdwg.mxu0
    %3872 = vmatprep.subr.mxu0 %v3175
    %3873 = vmatpush1.msra.mxu0 %v3174
    %3874 = vmatprep.subr.mxu0 %v3169
    %3875 = vmatpush1.msra.mxu0 %v3168
    %3876 = vmatprep.subr.mxu0 %v3163
    %3877 = vmatpush1.msra.mxu0 %v3162
    %3878 = vmatprep.subr.mxu0 %v3157
    %3879 = vmatpush1.msra.mxu0 %v3156
    %3880 = vmatprep.subr.mxu0 %v3151
    %3881 = vmatpush1.msra.mxu0 %v3150
    %3882 = vmatprep.subr.mxu0 %v3145
    %3883 = vmatpush1.msra.mxu0 %v3144
    %3884 = vmatprep.subr.mxu0 %v3139
    %3885 = vmatpush1.msra.mxu0 %v3138
    %3886 = vmatprep.subr.mxu0 %v3133
    %3887 = vmatpush1.msra.mxu0 %v3132
    %3888 = vmatprep.subr.mxu0 %v3127
    %3889 = vmatpush1.msra.mxu0 %v3126
    %3890 = vmatprep.subr.mxu0 %v3121
    %3891 = vmatpush1.msra.mxu0 %v3120
    %3892 = vmatprep.subr.mxu0 %v3115
    %3893 = vmatpush1.msra.mxu0 %v3114
    %3894 = vmatprep.subr.mxu0 %v3109
    %3895 = vmatpush1.msra.mxu0 %v3108
    %3896 = vmatprep.subr.mxu0 %v3103
    %3897 = vmatpush1.msra.mxu0 %v3102
    %3898 = vmatprep.subr.mxu0 %v3097
    %3899 = vmatpush1.msra.mxu0 %v3096
    %3900 = vmatprep.subr.mxu0 %v3091
    %3901 = vmatpush1.msra.mxu0 %v3090
    %3902 = vmatprep.subr.mxu0 %v3085
    %3903 = vmatpush1.msra.mxu0 %v3084
    %3904 = vmatprep.subr.mxu0 %v3271
    %3905 = vmatpush2.msra.mxu0 %v3270
    %3906 = vmatprep.subr.mxu0 %v3265
    %3907 = vmatpush2.msra.mxu0 %v3264
    %3908 = vmatprep.subr.mxu0 %v3259
    %3909 = vmatpush2.msra.mxu0 %v3258
    %3910 = vmatprep.subr.mxu0 %v3253
    %3911 = vmatpush2.msra.mxu0 %v3252
    %3912 = vmatprep.subr.mxu0 %v3247
    %3913 = vmatpush2.msra.mxu0 %v3246
    %3914 = vmatprep.subr.mxu0 %v3241
    %3915 = vmatpush2.msra.mxu0 %v3240
    %3916 = vmatprep.subr.mxu0 %v3235
    %3917 = vmatpush2.msra.mxu0 %v3234
    %3918 = vmatprep.subr.mxu0 %v3229
    %3919 = vmatpush2.msra.mxu0 %v3228
    %3920 = vmatprep.subr.mxu0 %v3223
    %3921 = vmatpush2.msra.mxu0 %v3222
    %3922 = vmatprep.subr.mxu0 %v3217
    %3923 = vmatpush2.msra.mxu0 %v3216
    %3924 = vmatprep.subr.mxu0 %v3211
    %3925 = vmatpush2.msra.mxu0 %v3210
    %3926 = vmatprep.subr.mxu0 %v3205
    %3927 = vmatpush2.msra.mxu0 %v3204
    %3928 = vmatprep.subr.mxu0 %v3199
    %3929 = vmatpush2.msra.mxu0 %v3198
    %3930 = vmatprep.subr.mxu0 %v3193
    %3931 = vmatpush2.msra.mxu0 %v3192
    %3932 = vmatprep.subr.mxu0 %v3187
    %3933 = vmatpush2.msra.mxu0 %v3186
    %3934 = vmatprep.subr.mxu0 %v3181
    %3935 = vmatpush2.msra.mxu0 %v3180
    %3936 = vmatprep.mubr.f32.mxu0 %v2694
    %3937 = vmatmul.mubr.f32.gmra.mxu0 %v2692
    %v3938 = vpop.f32.mrf.mxu0
    %v3939 = vadd.f32 %v3868, %v3938
    %v3940 = vpop.f32.mrf.mxu0
    %v3941 = vadd.f32 %v3870, %v3940
    %3942 = vdwg.mxu0
    %v3943 = vld [vmem:[#allocation7] sm:$0xff]
    %v3944 = vld [vmem:[#allocation7 + $0x8] sm:$0xff]
    %v3945 = vld [vmem:[#allocation7 + $0x10] sm:$0xff]
    %v3946 = vld [vmem:[#allocation7 + $0x18] sm:$0xff]
    %v3947 = vld [vmem:[#allocation7 + $0x20] sm:$0xff]
    %v3948 = vld [vmem:[#allocation7 + $0x28] sm:$0xff]
    %v3949 = vld [vmem:[#allocation7 + $0x30] sm:$0xff]
    %v3950 = vld [vmem:[#allocation7 + $0x38] sm:$0xff]
    %v3951 = vld [vmem:[#allocation7 + $0x40] sm:$0xff]
    %v3952 = vld [vmem:[#allocation7 + $0x48] sm:$0xff]
    %v3953 = vld [vmem:[#allocation7 + $0x50] sm:$0xff]
    %v3954 = vld [vmem:[#allocation7 + $0x58] sm:$0xff]
    %v3955 = vld [vmem:[#allocation7 + $0x60] sm:$0xff]
    %v3956 = vld [vmem:[#allocation7 + $0x68] sm:$0xff]
    %v3957 = vld [vmem:[#allocation7 + $0x70] sm:$0xff]
    %v3958 = vld [vmem:[#allocation7 + $0x78] sm:$0xff]
    %v3959 = vld [vmem:[#allocation7 + $0x80] sm:$0xff]
    %v3960 = vld [vmem:[#allocation7 + $0x88] sm:$0xff]
    %v3961 = vld [vmem:[#allocation7 + $0x90] sm:$0xff]
    %v3962 = vld [vmem:[#allocation7 + $0x98] sm:$0xff]
    %v3963 = vld [vmem:[#allocation7 + $0xa0] sm:$0xff]
    %v3964 = vld [vmem:[#allocation7 + $0xa8] sm:$0xff]
    %v3965 = vld [vmem:[#allocation7 + $0xb0] sm:$0xff]
    %v3966 = vld [vmem:[#allocation7 + $0xb8] sm:$0xff]
    %v3967 = vld [vmem:[#allocation7 + $0xc0] sm:$0xff]
    %v3968 = vld [vmem:[#allocation7 + $0xc8] sm:$0xff]
    %v3969 = vld [vmem:[#allocation7 + $0xd0] sm:$0xff]
    %v3970 = vld [vmem:[#allocation7 + $0xd8] sm:$0xff]
    %v3971 = vld [vmem:[#allocation7 + $0xe0] sm:$0xff]
    %v3972 = vld [vmem:[#allocation7 + $0xe8] sm:$0xff]
    %v3973 = vld [vmem:[#allocation7 + $0xf0] sm:$0xff]
    %v3974 = vld [vmem:[#allocation7 + $0xf8] sm:$0xff]
    %v3975 = vld [vmem:[#allocation7 + $0x100] sm:$0xff]
    %v3976 = vld [vmem:[#allocation7 + $0x108] sm:$0xff]
    %v3977 = vld [vmem:[#allocation7 + $0x110] sm:$0xff]
    %v3978 = vld [vmem:[#allocation7 + $0x118] sm:$0xff]
    %v3979 = vld [vmem:[#allocation7 + $0x120] sm:$0xff]
    %v3980 = vld [vmem:[#allocation7 + $0x128] sm:$0xff]
    %v3981 = vld [vmem:[#allocation7 + $0x130] sm:$0xff]
    %v3982 = vld [vmem:[#allocation7 + $0x138] sm:$0xff]
    %v3983 = vld [vmem:[#allocation7 + $0x140] sm:$0xff]
    %v3984 = vld [vmem:[#allocation7 + $0x148] sm:$0xff]
    %v3985 = vld [vmem:[#allocation7 + $0x150] sm:$0xff]
    %v3986 = vld [vmem:[#allocation7 + $0x158] sm:$0xff]
    %v3987 = vld [vmem:[#allocation7 + $0x160] sm:$0xff]
    %v3988 = vld [vmem:[#allocation7 + $0x168] sm:$0xff]
    %v3989 = vld [vmem:[#allocation7 + $0x170] sm:$0xff]
    %v3990 = vld [vmem:[#allocation7 + $0x178] sm:$0xff]
    %v3991 = vld [vmem:[#allocation7 + $0x180] sm:$0xff]
    %v3992 = vld [vmem:[#allocation7 + $0x188] sm:$0xff]
    %v3993 = vld [vmem:[#allocation7 + $0x190] sm:$0xff]
    %v3994 = vld [vmem:[#allocation7 + $0x198] sm:$0xff]
    %v3995 = vld [vmem:[#allocation7 + $0x1a0] sm:$0xff]
    %v3996 = vld [vmem:[#allocation7 + $0x1a8] sm:$0xff]
    %v3997 = vld [vmem:[#allocation7 + $0x1b0] sm:$0xff]
    %v3998 = vld [vmem:[#allocation7 + $0x1b8] sm:$0xff]
    %v3999 = vld [vmem:[#allocation7 + $0x1c0] sm:$0xff]
    %v4000 = vld [vmem:[#allocation7 + $0x1c8] sm:$0xff]
    %v4001 = vld [vmem:[#allocation7 + $0x1d0] sm:$0xff]
    %v4002 = vld [vmem:[#allocation7 + $0x1d8] sm:$0xff]
    %v4003 = vld [vmem:[#allocation7 + $0x1e0] sm:$0xff]
    %v4004 = vld [vmem:[#allocation7 + $0x1e8] sm:$0xff]
    %v4005 = vld [vmem:[#allocation7 + $0x1f0] sm:$0xff]
    %v4006 = vld [vmem:[#allocation7 + $0x1f8] sm:$0xff]
    %v4007 = vld [vmem:[#allocation7 + $0x200] sm:$0xff]
    %v4008 = vld [vmem:[#allocation7 + $0x208] sm:$0xff]
    %v4009 = vld [vmem:[#allocation7 + $0x210] sm:$0xff]
    %v4010 = vld [vmem:[#allocation7 + $0x218] sm:$0xff]
    %v4011 = vld [vmem:[#allocation7 + $0x220] sm:$0xff]
    %v4012 = vld [vmem:[#allocation7 + $0x228] sm:$0xff]
    %v4013 = vld [vmem:[#allocation7 + $0x230] sm:$0xff]
    %v4014 = vld [vmem:[#allocation7 + $0x238] sm:$0xff]
    %v4015 = vld [vmem:[#allocation7 + $0x240] sm:$0xff]
    %v4016 = vld [vmem:[#allocation7 + $0x248] sm:$0xff]
    %v4017 = vld [vmem:[#allocation7 + $0x250] sm:$0xff]
    %v4018 = vld [vmem:[#allocation7 + $0x258] sm:$0xff]
    %v4019 = vld [vmem:[#allocation7 + $0x260] sm:$0xff]
    %v4020 = vld [vmem:[#allocation7 + $0x268] sm:$0xff]
    %v4021 = vld [vmem:[#allocation7 + $0x270] sm:$0xff]
    %v4022 = vld [vmem:[#allocation7 + $0x278] sm:$0xff]
    %v4023 = vld [vmem:[#allocation7 + $0x280] sm:$0xff]
    %v4024 = vld [vmem:[#allocation7 + $0x288] sm:$0xff]
    %v4025 = vld [vmem:[#allocation7 + $0x290] sm:$0xff]
    %v4026 = vld [vmem:[#allocation7 + $0x298] sm:$0xff]
    %v4027 = vld [vmem:[#allocation7 + $0x2a0] sm:$0xff]
    %v4028 = vld [vmem:[#allocation7 + $0x2a8] sm:$0xff]
    %v4029 = vld [vmem:[#allocation7 + $0x2b0] sm:$0xff]
    %v4030 = vld [vmem:[#allocation7 + $0x2b8] sm:$0xff]
    %v4031 = vld [vmem:[#allocation7 + $0x2c0] sm:$0xff]
    %v4032 = vld [vmem:[#allocation7 + $0x2c8] sm:$0xff]
    %v4033 = vld [vmem:[#allocation7 + $0x2d0] sm:$0xff]
    %v4034 = vld [vmem:[#allocation7 + $0x2d8] sm:$0xff]
    %v4035 = vld [vmem:[#allocation7 + $0x2e0] sm:$0xff]
    %v4036 = vld [vmem:[#allocation7 + $0x2e8] sm:$0xff]
    %v4037 = vld [vmem:[#allocation7 + $0x2f0] sm:$0xff]
    %v4038 = vld [vmem:[#allocation7 + $0x2f8] sm:$0xff]
    %v4039 = vld [vmem:[#allocation7 + $0x300] sm:$0xff]
    %v4040 = vld [vmem:[#allocation7 + $0x308] sm:$0xff]
    %v4041 = vld [vmem:[#allocation7 + $0x310] sm:$0xff]
    %v4042 = vld [vmem:[#allocation7 + $0x318] sm:$0xff]
    %v4043 = vld [vmem:[#allocation7 + $0x320] sm:$0xff]
    %v4044 = vld [vmem:[#allocation7 + $0x328] sm:$0xff]
    %v4045 = vld [vmem:[#allocation7 + $0x330] sm:$0xff]
    %v4046 = vld [vmem:[#allocation7 + $0x338] sm:$0xff]
    %v4047 = vld [vmem:[#allocation7 + $0x340] sm:$0xff]
    %v4048 = vld [vmem:[#allocation7 + $0x348] sm:$0xff]
    %v4049 = vld [vmem:[#allocation7 + $0x350] sm:$0xff]
    %v4050 = vld [vmem:[#allocation7 + $0x358] sm:$0xff]
    %v4051 = vld [vmem:[#allocation7 + $0x360] sm:$0xff]
    %v4052 = vld [vmem:[#allocation7 + $0x368] sm:$0xff]
    %v4053 = vld [vmem:[#allocation7 + $0x370] sm:$0xff]
    %v4054 = vld [vmem:[#allocation7 + $0x378] sm:$0xff]
    %v4055 = vld [vmem:[#allocation7 + $0x380] sm:$0xff]
    %v4056 = vld [vmem:[#allocation7 + $0x388] sm:$0xff]
    %v4057 = vld [vmem:[#allocation7 + $0x390] sm:$0xff]
    %v4058 = vld [vmem:[#allocation7 + $0x398] sm:$0xff]
    %v4059 = vld [vmem:[#allocation7 + $0x3a0] sm:$0xff]
    %v4060 = vld [vmem:[#allocation7 + $0x3a8] sm:$0xff]
    %v4061 = vld [vmem:[#allocation7 + $0x3b0] sm:$0xff]
    %v4062 = vld [vmem:[#allocation7 + $0x3b8] sm:$0xff]
    %v4063 = vld [vmem:[#allocation7 + $0x3c0] sm:$0xff]
    %v4064 = vld [vmem:[#allocation7 + $0x3c8] sm:$0xff]
    %v4065 = vld [vmem:[#allocation7 + $0x3d0] sm:$0xff]
    %v4066 = vld [vmem:[#allocation7 + $0x3d8] sm:$0xff]
    %v4067 = vld [vmem:[#allocation7 + $0x3e0] sm:$0xff]
    %v4068 = vld [vmem:[#allocation7 + $0x3e8] sm:$0xff]
    %v4069 = vld [vmem:[#allocation7 + $0x3f0] sm:$0xff]
    %v4070 = vld [vmem:[#allocation7 + $0x3f8] sm:$0xff]
    %v4071 = vld [vmem:[#allocation7 + $0x400] sm:$0xff]
    %v4072 = vld [vmem:[#allocation7 + $0x408] sm:$0xff]
    %v4073 = vld [vmem:[#allocation7 + $0x410] sm:$0xff]
    %v4074 = vld [vmem:[#allocation7 + $0x418] sm:$0xff]
    %v4075 = vld [vmem:[#allocation7 + $0x420] sm:$0xff]
    %v4076 = vld [vmem:[#allocation7 + $0x428] sm:$0xff]
    %v4077 = vld [vmem:[#allocation7 + $0x430] sm:$0xff]
    %v4078 = vld [vmem:[#allocation7 + $0x438] sm:$0xff]
    %v4079 = vld [vmem:[#allocation7 + $0x440] sm:$0xff]
    %v4080 = vld [vmem:[#allocation7 + $0x448] sm:$0xff]
    %v4081 = vld [vmem:[#allocation7 + $0x450] sm:$0xff]
    %v4082 = vld [vmem:[#allocation7 + $0x458] sm:$0xff]
    %v4083 = vld [vmem:[#allocation7 + $0x460] sm:$0xff]
    %v4084 = vld [vmem:[#allocation7 + $0x468] sm:$0xff]
    %v4085 = vld [vmem:[#allocation7 + $0x470] sm:$0xff]
    %v4086 = vld [vmem:[#allocation7 + $0x478] sm:$0xff]
    %v4087 = vld [vmem:[#allocation7 + $0x480] sm:$0xff]
    %v4088 = vld [vmem:[#allocation7 + $0x488] sm:$0xff]
    %v4089 = vld [vmem:[#allocation7 + $0x490] sm:$0xff]
    %v4090 = vld [vmem:[#allocation7 + $0x498] sm:$0xff]
    %v4091 = vld [vmem:[#allocation7 + $0x4a0] sm:$0xff]
    %v4092 = vld [vmem:[#allocation7 + $0x4a8] sm:$0xff]
    %v4093 = vld [vmem:[#allocation7 + $0x4b0] sm:$0xff]
    %v4094 = vld [vmem:[#allocation7 + $0x4b8] sm:$0xff]
    %v4095 = vld [vmem:[#allocation7 + $0x4c0] sm:$0xff]
    %v4096 = vld [vmem:[#allocation7 + $0x4c8] sm:$0xff]
    %v4097 = vld [vmem:[#allocation7 + $0x4d0] sm:$0xff]
    %v4098 = vld [vmem:[#allocation7 + $0x4d8] sm:$0xff]
    %v4099 = vld [vmem:[#allocation7 + $0x4e0] sm:$0xff]
    %v4100 = vld [vmem:[#allocation7 + $0x4e8] sm:$0xff]
    %v4101 = vld [vmem:[#allocation7 + $0x4f0] sm:$0xff]
    %v4102 = vld [vmem:[#allocation7 + $0x4f8] sm:$0xff]
    %v4103 = vld [vmem:[#allocation7 + $0x500] sm:$0xff]
    %v4104 = vld [vmem:[#allocation7 + $0x508] sm:$0xff]
    %v4105 = vld [vmem:[#allocation7 + $0x510] sm:$0xff]
    %v4106 = vld [vmem:[#allocation7 + $0x518] sm:$0xff]
    %v4107 = vld [vmem:[#allocation7 + $0x520] sm:$0xff]
    %v4108 = vld [vmem:[#allocation7 + $0x528] sm:$0xff]
    %v4109 = vld [vmem:[#allocation7 + $0x530] sm:$0xff]
    %v4110 = vld [vmem:[#allocation7 + $0x538] sm:$0xff]
    %v4111 = vld [vmem:[#allocation7 + $0x540] sm:$0xff]
    %v4112 = vld [vmem:[#allocation7 + $0x548] sm:$0xff]
    %v4113 = vld [vmem:[#allocation7 + $0x550] sm:$0xff]
    %v4114 = vld [vmem:[#allocation7 + $0x558] sm:$0xff]
    %v4115 = vld [vmem:[#allocation7 + $0x560] sm:$0xff]
    %v4116 = vld [vmem:[#allocation7 + $0x568] sm:$0xff]
    %v4117 = vld [vmem:[#allocation7 + $0x570] sm:$0xff]
    %v4118 = vld [vmem:[#allocation7 + $0x578] sm:$0xff]
    %v4119 = vld [vmem:[#allocation7 + $0x580] sm:$0xff]
    %v4120 = vld [vmem:[#allocation7 + $0x588] sm:$0xff]
    %v4121 = vld [vmem:[#allocation7 + $0x590] sm:$0xff]
    %v4122 = vld [vmem:[#allocation7 + $0x598] sm:$0xff]
    %v4123 = vld [vmem:[#allocation7 + $0x5a0] sm:$0xff]
    %v4124 = vld [vmem:[#allocation7 + $0x5a8] sm:$0xff]
    %v4125 = vld [vmem:[#allocation7 + $0x5b0] sm:$0xff]
    %v4126 = vld [vmem:[#allocation7 + $0x5b8] sm:$0xff]
    %v4127 = vld [vmem:[#allocation7 + $0x5c0] sm:$0xff]
    %v4128 = vld [vmem:[#allocation7 + $0x5c8] sm:$0xff]
    %v4129 = vld [vmem:[#allocation7 + $0x5d0] sm:$0xff]
    %v4130 = vld [vmem:[#allocation7 + $0x5d8] sm:$0xff]
    %v4131 = vld [vmem:[#allocation7 + $0x5e0] sm:$0xff]
    %v4132 = vld [vmem:[#allocation7 + $0x5e8] sm:$0xff]
    %v4133 = vld [vmem:[#allocation7 + $0x5f0] sm:$0xff]
    %v4134 = vld [vmem:[#allocation7 + $0x5f8] sm:$0xff]
    %v4135 = vld [vmem:[#allocation7 + $0x600] sm:$0xff]
    %v4136 = vld [vmem:[#allocation7 + $0x608] sm:$0xff]
    %v4137 = vld [vmem:[#allocation7 + $0x610] sm:$0xff]
    %v4138 = vld [vmem:[#allocation7 + $0x618] sm:$0xff]
    %v4139 = vld [vmem:[#allocation7 + $0x620] sm:$0xff]
    %v4140 = vld [vmem:[#allocation7 + $0x628] sm:$0xff]
    %v4141 = vld [vmem:[#allocation7 + $0x630] sm:$0xff]
    %v4142 = vld [vmem:[#allocation7 + $0x638] sm:$0xff]
    %v4143 = vld [vmem:[#allocation7 + $0x640] sm:$0xff]
    %v4144 = vld [vmem:[#allocation7 + $0x648] sm:$0xff]
    %v4145 = vld [vmem:[#allocation7 + $0x650] sm:$0xff]
    %v4146 = vld [vmem:[#allocation7 + $0x658] sm:$0xff]
    %v4147 = vld [vmem:[#allocation7 + $0x660] sm:$0xff]
    %v4148 = vld [vmem:[#allocation7 + $0x668] sm:$0xff]
    %v4149 = vld [vmem:[#allocation7 + $0x670] sm:$0xff]
    %v4150 = vld [vmem:[#allocation7 + $0x678] sm:$0xff]
    %v4151 = vld [vmem:[#allocation7 + $0x680] sm:$0xff]
    %v4152 = vld [vmem:[#allocation7 + $0x688] sm:$0xff]
    %v4153 = vld [vmem:[#allocation7 + $0x690] sm:$0xff]
    %v4154 = vld [vmem:[#allocation7 + $0x698] sm:$0xff]
    %v4155 = vld [vmem:[#allocation7 + $0x6a0] sm:$0xff]
    %v4156 = vld [vmem:[#allocation7 + $0x6a8] sm:$0xff]
    %v4157 = vld [vmem:[#allocation7 + $0x6b0] sm:$0xff]
    %v4158 = vld [vmem:[#allocation7 + $0x6b8] sm:$0xff]
    %v4159 = vld [vmem:[#allocation7 + $0x6c0] sm:$0xff]
    %v4160 = vld [vmem:[#allocation7 + $0x6c8] sm:$0xff]
    %v4161 = vld [vmem:[#allocation7 + $0x6d0] sm:$0xff]
    %v4162 = vld [vmem:[#allocation7 + $0x6d8] sm:$0xff]
    %v4163 = vld [vmem:[#allocation7 + $0x6e0] sm:$0xff]
    %v4164 = vld [vmem:[#allocation7 + $0x6e8] sm:$0xff]
    %v4165 = vld [vmem:[#allocation7 + $0x6f0] sm:$0xff]
    %v4166 = vld [vmem:[#allocation7 + $0x6f8] sm:$0xff]
    %v4167 = vld [vmem:[#allocation7 + $0x700] sm:$0xff]
    %v4168 = vld [vmem:[#allocation7 + $0x708] sm:$0xff]
    %v4169 = vld [vmem:[#allocation7 + $0x710] sm:$0xff]
    %v4170 = vld [vmem:[#allocation7 + $0x718] sm:$0xff]
    %v4171 = vld [vmem:[#allocation7 + $0x720] sm:$0xff]
    %v4172 = vld [vmem:[#allocation7 + $0x728] sm:$0xff]
    %v4173 = vld [vmem:[#allocation7 + $0x730] sm:$0xff]
    %v4174 = vld [vmem:[#allocation7 + $0x738] sm:$0xff]
    %v4175 = vld [vmem:[#allocation7 + $0x740] sm:$0xff]
    %v4176 = vld [vmem:[#allocation7 + $0x748] sm:$0xff]
    %v4177 = vld [vmem:[#allocation7 + $0x750] sm:$0xff]
    %v4178 = vld [vmem:[#allocation7 + $0x758] sm:$0xff]
    %v4179 = vld [vmem:[#allocation7 + $0x760] sm:$0xff]
    %v4180 = vld [vmem:[#allocation7 + $0x768] sm:$0xff]
    %v4181 = vld [vmem:[#allocation7 + $0x770] sm:$0xff]
    %v4182 = vld [vmem:[#allocation7 + $0x778] sm:$0xff]
    %v4183 = vld [vmem:[#allocation7 + $0x780] sm:$0xff]
    %v4184 = vld [vmem:[#allocation7 + $0x788] sm:$0xff]
    %v4185 = vld [vmem:[#allocation7 + $0x790] sm:$0xff]
    %v4186 = vld [vmem:[#allocation7 + $0x798] sm:$0xff]
    %v4187 = vld [vmem:[#allocation7 + $0x7a0] sm:$0xff]
    %v4188 = vld [vmem:[#allocation7 + $0x7a8] sm:$0xff]
    %v4189 = vld [vmem:[#allocation7 + $0x7b0] sm:$0xff]
    %v4190 = vld [vmem:[#allocation7 + $0x7b8] sm:$0xff]
    %v4191 = vld [vmem:[#allocation7 + $0x7c0] sm:$0xff]
    %v4192 = vld [vmem:[#allocation7 + $0x7c8] sm:$0xff]
    %v4193 = vld [vmem:[#allocation7 + $0x7d0] sm:$0xff]
    %v4194 = vld [vmem:[#allocation7 + $0x7d8] sm:$0xff]
    %v4195 = vld [vmem:[#allocation7 + $0x7e0] sm:$0xff]
    %v4196 = vld [vmem:[#allocation7 + $0x7e8] sm:$0xff]
    %v4197 = vld [vmem:[#allocation7 + $0x7f0] sm:$0xff]
    %v4198 = vld [vmem:[#allocation7 + $0x7f8] sm:$0xff]
    %v4199 = vld [vmem:[#allocation7 + $0x800] sm:$0xff]
    %v4200 = vld [vmem:[#allocation7 + $0x808] sm:$0xff]
    %v4201 = vld [vmem:[#allocation7 + $0x810] sm:$0xff]
    %v4202 = vld [vmem:[#allocation7 + $0x818] sm:$0xff]
    %v4203 = vld [vmem:[#allocation7 + $0x820] sm:$0xff]
    %v4204 = vld [vmem:[#allocation7 + $0x828] sm:$0xff]
    %v4205 = vld [vmem:[#allocation7 + $0x830] sm:$0xff]
    %v4206 = vld [vmem:[#allocation7 + $0x838] sm:$0xff]
    %v4207 = vld [vmem:[#allocation7 + $0x840] sm:$0xff]
    %v4208 = vld [vmem:[#allocation7 + $0x848] sm:$0xff]
    %v4209 = vld [vmem:[#allocation7 + $0x850] sm:$0xff]
    %v4210 = vld [vmem:[#allocation7 + $0x858] sm:$0xff]
    %v4211 = vld [vmem:[#allocation7 + $0x860] sm:$0xff]
    %v4212 = vld [vmem:[#allocation7 + $0x868] sm:$0xff]
    %v4213 = vld [vmem:[#allocation7 + $0x870] sm:$0xff]
    %v4214 = vld [vmem:[#allocation7 + $0x878] sm:$0xff]
    %v4215 = vld [vmem:[#allocation7 + $0x880] sm:$0xff]
    %v4216 = vld [vmem:[#allocation7 + $0x888] sm:$0xff]
    %v4217 = vld [vmem:[#allocation7 + $0x890] sm:$0xff]
    %v4218 = vld [vmem:[#allocation7 + $0x898] sm:$0xff]
    %v4219 = vld [vmem:[#allocation7 + $0x8a0] sm:$0xff]
    %v4220 = vld [vmem:[#allocation7 + $0x8a8] sm:$0xff]
    %v4221 = vld [vmem:[#allocation7 + $0x8b0] sm:$0xff]
    %v4222 = vld [vmem:[#allocation7 + $0x8b8] sm:$0xff]
    %v4223 = vld [vmem:[#allocation7 + $0x8c0] sm:$0xff]
    %v4224 = vld [vmem:[#allocation7 + $0x8c8] sm:$0xff]
    %v4225 = vld [vmem:[#allocation7 + $0x8d0] sm:$0xff]
    %v4226 = vld [vmem:[#allocation7 + $0x8d8] sm:$0xff]
    %v4227 = vld [vmem:[#allocation7 + $0x8e0] sm:$0xff]
    %v4228 = vld [vmem:[#allocation7 + $0x8e8] sm:$0xff]
    %v4229 = vld [vmem:[#allocation7 + $0x8f0] sm:$0xff]
    %v4230 = vld [vmem:[#allocation7 + $0x8f8] sm:$0xff]
    %v4231 = vld [vmem:[#allocation7 + $0x900] sm:$0xff]
    %v4232 = vld [vmem:[#allocation7 + $0x908] sm:$0xff]
    %v4233 = vld [vmem:[#allocation7 + $0x910] sm:$0xff]
    %v4234 = vld [vmem:[#allocation7 + $0x918] sm:$0xff]
    %v4235 = vld [vmem:[#allocation7 + $0x920] sm:$0xff]
    %v4236 = vld [vmem:[#allocation7 + $0x928] sm:$0xff]
    %v4237 = vld [vmem:[#allocation7 + $0x930] sm:$0xff]
    %v4238 = vld [vmem:[#allocation7 + $0x938] sm:$0xff]
    %v4239 = vld [vmem:[#allocation7 + $0x940] sm:$0xff]
    %v4240 = vld [vmem:[#allocation7 + $0x948] sm:$0xff]
    %v4241 = vld [vmem:[#allocation7 + $0x950] sm:$0xff]
    %v4242 = vld [vmem:[#allocation7 + $0x958] sm:$0xff]
    %v4243 = vld [vmem:[#allocation7 + $0x960] sm:$0xff]
    %v4244 = vld [vmem:[#allocation7 + $0x968] sm:$0xff]
    %v4245 = vld [vmem:[#allocation7 + $0x970] sm:$0xff]
    %v4246 = vld [vmem:[#allocation7 + $0x978] sm:$0xff]
    %v4247 = vld [vmem:[#allocation7 + $0x980] sm:$0xff]
    %v4248 = vld [vmem:[#allocation7 + $0x988] sm:$0xff]
    %v4249 = vld [vmem:[#allocation7 + $0x990] sm:$0xff]
    %v4250 = vld [vmem:[#allocation7 + $0x998] sm:$0xff]
    %v4251 = vld [vmem:[#allocation7 + $0x9a0] sm:$0xff]
    %v4252 = vld [vmem:[#allocation7 + $0x9a8] sm:$0xff]
    %v4253 = vld [vmem:[#allocation7 + $0x9b0] sm:$0xff]
    %v4254 = vld [vmem:[#allocation7 + $0x9b8] sm:$0xff]
    %v4255 = vld [vmem:[#allocation7 + $0x9c0] sm:$0xff]
    %v4256 = vld [vmem:[#allocation7 + $0x9c8] sm:$0xff]
    %v4257 = vld [vmem:[#allocation7 + $0x9d0] sm:$0xff]
    %v4258 = vld [vmem:[#allocation7 + $0x9d8] sm:$0xff]
    %v4259 = vld [vmem:[#allocation7 + $0x9e0] sm:$0xff]
    %v4260 = vld [vmem:[#allocation7 + $0x9e8] sm:$0xff]
    %v4261 = vld [vmem:[#allocation7 + $0x9f0] sm:$0xff]
    %v4262 = vld [vmem:[#allocation7 + $0x9f8] sm:$0xff]
    %v4263 = vld [vmem:[#allocation7 + $0xa00] sm:$0xff]
    %v4264 = vld [vmem:[#allocation7 + $0xa08] sm:$0xff]
    %v4265 = vld [vmem:[#allocation7 + $0xa10] sm:$0xff]
    %v4266 = vld [vmem:[#allocation7 + $0xa18] sm:$0xff]
    %v4267 = vld [vmem:[#allocation7 + $0xa20] sm:$0xff]
    %v4268 = vld [vmem:[#allocation7 + $0xa28] sm:$0xff]
    %v4269 = vld [vmem:[#allocation7 + $0xa30] sm:$0xff]
    %v4270 = vld [vmem:[#allocation7 + $0xa38] sm:$0xff]
    %v4271 = vld [vmem:[#allocation7 + $0xa40] sm:$0xff]
    %v4272 = vld [vmem:[#allocation7 + $0xa48] sm:$0xff]
    %v4273 = vld [vmem:[#allocation7 + $0xa50] sm:$0xff]
    %v4274 = vld [vmem:[#allocation7 + $0xa58] sm:$0xff]
    %v4275 = vld [vmem:[#allocation7 + $0xa60] sm:$0xff]
    %v4276 = vld [vmem:[#allocation7 + $0xa68] sm:$0xff]
    %v4277 = vld [vmem:[#allocation7 + $0xa70] sm:$0xff]
    %v4278 = vld [vmem:[#allocation7 + $0xa78] sm:$0xff]
    %v4279 = vld [vmem:[#allocation7 + $0xa80] sm:$0xff]
    %v4280 = vld [vmem:[#allocation7 + $0xa88] sm:$0xff]
    %v4281 = vld [vmem:[#allocation7 + $0xa90] sm:$0xff]
    %v4282 = vld [vmem:[#allocation7 + $0xa98] sm:$0xff]
    %v4283 = vld [vmem:[#allocation7 + $0xaa0] sm:$0xff]
    %v4284 = vld [vmem:[#allocation7 + $0xaa8] sm:$0xff]
    %v4285 = vld [vmem:[#allocation7 + $0xab0] sm:$0xff]
    %v4286 = vld [vmem:[#allocation7 + $0xab8] sm:$0xff]
    %v4287 = vld [vmem:[#allocation7 + $0xac0] sm:$0xff]
    %v4288 = vld [vmem:[#allocation7 + $0xac8] sm:$0xff]
    %v4289 = vld [vmem:[#allocation7 + $0xad0] sm:$0xff]
    %v4290 = vld [vmem:[#allocation7 + $0xad8] sm:$0xff]
    %v4291 = vld [vmem:[#allocation7 + $0xae0] sm:$0xff]
    %v4292 = vld [vmem:[#allocation7 + $0xae8] sm:$0xff]
    %v4293 = vld [vmem:[#allocation7 + $0xaf0] sm:$0xff]
    %v4294 = vld [vmem:[#allocation7 + $0xaf8] sm:$0xff]
    %v4295 = vld [vmem:[#allocation7 + $0xb00] sm:$0xff]
    %v4296 = vld [vmem:[#allocation7 + $0xb08] sm:$0xff]
    %v4297 = vld [vmem:[#allocation7 + $0xb10] sm:$0xff]
    %v4298 = vld [vmem:[#allocation7 + $0xb18] sm:$0xff]
    %v4299 = vld [vmem:[#allocation7 + $0xb20] sm:$0xff]
    %v4300 = vld [vmem:[#allocation7 + $0xb28] sm:$0xff]
    %v4301 = vld [vmem:[#allocation7 + $0xb30] sm:$0xff]
    %v4302 = vld [vmem:[#allocation7 + $0xb38] sm:$0xff]
    %v4303 = vld [vmem:[#allocation7 + $0xb40] sm:$0xff]
    %v4304 = vld [vmem:[#allocation7 + $0xb48] sm:$0xff]
    %v4305 = vld [vmem:[#allocation7 + $0xb50] sm:$0xff]
    %v4306 = vld [vmem:[#allocation7 + $0xb58] sm:$0xff]
    %v4307 = vld [vmem:[#allocation7 + $0xb60] sm:$0xff]
    %v4308 = vld [vmem:[#allocation7 + $0xb68] sm:$0xff]
    %v4309 = vld [vmem:[#allocation7 + $0xb70] sm:$0xff]
    %v4310 = vld [vmem:[#allocation7 + $0xb78] sm:$0xff]
    %v4311 = vld [vmem:[#allocation7 + $0xb80] sm:$0xff]
    %v4312 = vld [vmem:[#allocation7 + $0xb88] sm:$0xff]
    %v4313 = vld [vmem:[#allocation7 + $0xb90] sm:$0xff]
    %v4314 = vld [vmem:[#allocation7 + $0xb98] sm:$0xff]
    %v4315 = vld [vmem:[#allocation7 + $0xba0] sm:$0xff]
    %v4316 = vld [vmem:[#allocation7 + $0xba8] sm:$0xff]
    %v4317 = vld [vmem:[#allocation7 + $0xbb0] sm:$0xff]
    %v4318 = vld [vmem:[#allocation7 + $0xbb8] sm:$0xff]
    %v4319 = vld [vmem:[#allocation7 + $0xbc0] sm:$0xff]
    %v4320 = vld [vmem:[#allocation7 + $0xbc8] sm:$0xff]
    %v4321 = vld [vmem:[#allocation7 + $0xbd0] sm:$0xff]
    %v4322 = vld [vmem:[#allocation7 + $0xbd8] sm:$0xff]
    %v4323 = vld [vmem:[#allocation7 + $0xbe0] sm:$0xff]
    %v4324 = vld [vmem:[#allocation7 + $0xbe8] sm:$0xff]
    %v4325 = vld [vmem:[#allocation7 + $0xbf0] sm:$0xff]
    %v4326 = vld [vmem:[#allocation7 + $0xbf8] sm:$0xff]
    %v4327 = vld [vmem:[#allocation7 + $0xc00] sm:$0xff]
    %v4328 = vld [vmem:[#allocation7 + $0xc08] sm:$0xff]
    %v4329 = vld [vmem:[#allocation7 + $0xc10] sm:$0xff]
    %v4330 = vld [vmem:[#allocation7 + $0xc18] sm:$0xff]
    %v4331 = vld [vmem:[#allocation7 + $0xc20] sm:$0xff]
    %v4332 = vld [vmem:[#allocation7 + $0xc28] sm:$0xff]
    %v4333 = vld [vmem:[#allocation7 + $0xc30] sm:$0xff]
    %v4334 = vld [vmem:[#allocation7 + $0xc38] sm:$0xff]
    %v4335 = vld [vmem:[#allocation7 + $0xc40] sm:$0xff]
    %v4336 = vld [vmem:[#allocation7 + $0xc48] sm:$0xff]
    %v4337 = vld [vmem:[#allocation7 + $0xc50] sm:$0xff]
    %v4338 = vld [vmem:[#allocation7 + $0xc58] sm:$0xff]
    %v4339 = vld [vmem:[#allocation7 + $0xc60] sm:$0xff]
    %v4340 = vld [vmem:[#allocation7 + $0xc68] sm:$0xff]
    %v4341 = vld [vmem:[#allocation7 + $0xc70] sm:$0xff]
    %v4342 = vld [vmem:[#allocation7 + $0xc78] sm:$0xff]
    %v4343 = vld [vmem:[#allocation7 + $0xc80] sm:$0xff]
    %v4344 = vld [vmem:[#allocation7 + $0xc88] sm:$0xff]
    %v4345 = vld [vmem:[#allocation7 + $0xc90] sm:$0xff]
    %v4346 = vld [vmem:[#allocation7 + $0xc98] sm:$0xff]
    %v4347 = vld [vmem:[#allocation7 + $0xca0] sm:$0xff]
    %v4348 = vld [vmem:[#allocation7 + $0xca8] sm:$0xff]
    %v4349 = vld [vmem:[#allocation7 + $0xcb0] sm:$0xff]
    %v4350 = vld [vmem:[#allocation7 + $0xcb8] sm:$0xff]
    %v4351 = vld [vmem:[#allocation7 + $0xcc0] sm:$0xff]
    %v4352 = vld [vmem:[#allocation7 + $0xcc8] sm:$0xff]
    %v4353 = vld [vmem:[#allocation7 + $0xcd0] sm:$0xff]
    %v4354 = vld [vmem:[#allocation7 + $0xcd8] sm:$0xff]
    %v4355 = vld [vmem:[#allocation7 + $0xce0] sm:$0xff]
    %v4356 = vld [vmem:[#allocation7 + $0xce8] sm:$0xff]
    %v4357 = vld [vmem:[#allocation7 + $0xcf0] sm:$0xff]
    %v4358 = vld [vmem:[#allocation7 + $0xcf8] sm:$0xff]
    %v4359 = vld [vmem:[#allocation7 + $0xd00] sm:$0xff]
    %v4360 = vld [vmem:[#allocation7 + $0xd08] sm:$0xff]
    %v4361 = vld [vmem:[#allocation7 + $0xd10] sm:$0xff]
    %v4362 = vld [vmem:[#allocation7 + $0xd18] sm:$0xff]
    %v4363 = vld [vmem:[#allocation7 + $0xd20] sm:$0xff]
    %v4364 = vld [vmem:[#allocation7 + $0xd28] sm:$0xff]
    %v4365 = vld [vmem:[#allocation7 + $0xd30] sm:$0xff]
    %v4366 = vld [vmem:[#allocation7 + $0xd38] sm:$0xff]
    %v4367 = vld [vmem:[#allocation7 + $0xd40] sm:$0xff]
    %v4368 = vld [vmem:[#allocation7 + $0xd48] sm:$0xff]
    %v4369 = vld [vmem:[#allocation7 + $0xd50] sm:$0xff]
    %v4370 = vld [vmem:[#allocation7 + $0xd58] sm:$0xff]
    %v4371 = vld [vmem:[#allocation7 + $0xd60] sm:$0xff]
    %v4372 = vld [vmem:[#allocation7 + $0xd68] sm:$0xff]
    %v4373 = vld [vmem:[#allocation7 + $0xd70] sm:$0xff]
    %v4374 = vld [vmem:[#allocation7 + $0xd78] sm:$0xff]
    %v4375 = vld [vmem:[#allocation7 + $0xd80] sm:$0xff]
    %v4376 = vld [vmem:[#allocation7 + $0xd88] sm:$0xff]
    %v4377 = vld [vmem:[#allocation7 + $0xd90] sm:$0xff]
    %v4378 = vld [vmem:[#allocation7 + $0xd98] sm:$0xff]
    %v4379 = vld [vmem:[#allocation7 + $0xda0] sm:$0xff]
    %v4380 = vld [vmem:[#allocation7 + $0xda8] sm:$0xff]
    %v4381 = vld [vmem:[#allocation7 + $0xdb0] sm:$0xff]
    %v4382 = vld [vmem:[#allocation7 + $0xdb8] sm:$0xff]
    %v4383 = vld [vmem:[#allocation7 + $0xdc0] sm:$0xff]
    %v4384 = vld [vmem:[#allocation7 + $0xdc8] sm:$0xff]
    %v4385 = vld [vmem:[#allocation7 + $0xdd0] sm:$0xff]
    %v4386 = vld [vmem:[#allocation7 + $0xdd8] sm:$0xff]
    %v4387 = vld [vmem:[#allocation7 + $0xde0] sm:$0xff]
    %v4388 = vld [vmem:[#allocation7 + $0xde8] sm:$0xff]
    %v4389 = vld [vmem:[#allocation7 + $0xdf0] sm:$0xff]
    %v4390 = vld [vmem:[#allocation7 + $0xdf8] sm:$0xff]
    %v4391 = vld [vmem:[#allocation7 + $0xe00] sm:$0xff]
    %v4392 = vld [vmem:[#allocation7 + $0xe08] sm:$0xff]
    %v4393 = vld [vmem:[#allocation7 + $0xe10] sm:$0xff]
    %v4394 = vld [vmem:[#allocation7 + $0xe18] sm:$0xff]
    %v4395 = vld [vmem:[#allocation7 + $0xe20] sm:$0xff]
    %v4396 = vld [vmem:[#allocation7 + $0xe28] sm:$0xff]
    %v4397 = vld [vmem:[#allocation7 + $0xe30] sm:$0xff]
    %v4398 = vld [vmem:[#allocation7 + $0xe38] sm:$0xff]
    %v4399 = vld [vmem:[#allocation7 + $0xe40] sm:$0xff]
    %v4400 = vld [vmem:[#allocation7 + $0xe48] sm:$0xff]
    %v4401 = vld [vmem:[#allocation7 + $0xe50] sm:$0xff]
    %v4402 = vld [vmem:[#allocation7 + $0xe58] sm:$0xff]
    %v4403 = vld [vmem:[#allocation7 + $0xe60] sm:$0xff]
    %v4404 = vld [vmem:[#allocation7 + $0xe68] sm:$0xff]
    %v4405 = vld [vmem:[#allocation7 + $0xe70] sm:$0xff]
    %v4406 = vld [vmem:[#allocation7 + $0xe78] sm:$0xff]
    %v4407 = vld [vmem:[#allocation7 + $0xe80] sm:$0xff]
    %v4408 = vld [vmem:[#allocation7 + $0xe88] sm:$0xff]
    %v4409 = vld [vmem:[#allocation7 + $0xe90] sm:$0xff]
    %v4410 = vld [vmem:[#allocation7 + $0xe98] sm:$0xff]
    %v4411 = vld [vmem:[#allocation7 + $0xea0] sm:$0xff]
    %v4412 = vld [vmem:[#allocation7 + $0xea8] sm:$0xff]
    %v4413 = vld [vmem:[#allocation7 + $0xeb0] sm:$0xff]
    %v4414 = vld [vmem:[#allocation7 + $0xeb8] sm:$0xff]
    %v4415 = vld [vmem:[#allocation7 + $0xec0] sm:$0xff]
    %v4416 = vld [vmem:[#allocation7 + $0xec8] sm:$0xff]
    %v4417 = vld [vmem:[#allocation7 + $0xed0] sm:$0xff]
    %v4418 = vld [vmem:[#allocation7 + $0xed8] sm:$0xff]
    %v4419 = vld [vmem:[#allocation7 + $0xee0] sm:$0xff]
    %v4420 = vld [vmem:[#allocation7 + $0xee8] sm:$0xff]
    %v4421 = vld [vmem:[#allocation7 + $0xef0] sm:$0xff]
    %v4422 = vld [vmem:[#allocation7 + $0xef8] sm:$0xff]
    %v4423 = vld [vmem:[#allocation7 + $0xf00] sm:$0xff]
    %v4424 = vld [vmem:[#allocation7 + $0xf08] sm:$0xff]
    %v4425 = vld [vmem:[#allocation7 + $0xf10] sm:$0xff]
    %v4426 = vld [vmem:[#allocation7 + $0xf18] sm:$0xff]
    %v4427 = vld [vmem:[#allocation7 + $0xf20] sm:$0xff]
    %v4428 = vld [vmem:[#allocation7 + $0xf28] sm:$0xff]
    %v4429 = vld [vmem:[#allocation7 + $0xf30] sm:$0xff]
    %v4430 = vld [vmem:[#allocation7 + $0xf38] sm:$0xff]
    %v4431 = vld [vmem:[#allocation7 + $0xf40] sm:$0xff]
    %v4432 = vld [vmem:[#allocation7 + $0xf48] sm:$0xff]
    %v4433 = vld [vmem:[#allocation7 + $0xf50] sm:$0xff]
    %v4434 = vld [vmem:[#allocation7 + $0xf58] sm:$0xff]
    %v4435 = vld [vmem:[#allocation7 + $0xf60] sm:$0xff]
    %v4436 = vld [vmem:[#allocation7 + $0xf68] sm:$0xff]
    %v4437 = vld [vmem:[#allocation7 + $0xf70] sm:$0xff]
    %v4438 = vld [vmem:[#allocation7 + $0xf78] sm:$0xff]
    %v4439 = vld [vmem:[#allocation7 + $0xf80] sm:$0xff]
    %v4440 = vld [vmem:[#allocation7 + $0xf88] sm:$0xff]
    %v4441 = vld [vmem:[#allocation7 + $0xf90] sm:$0xff]
    %v4442 = vld [vmem:[#allocation7 + $0xf98] sm:$0xff]
    %v4443 = vld [vmem:[#allocation7 + $0xfa0] sm:$0xff]
    %v4444 = vld [vmem:[#allocation7 + $0xfa8] sm:$0xff]
    %v4445 = vld [vmem:[#allocation7 + $0xfb0] sm:$0xff]
    %v4446 = vld [vmem:[#allocation7 + $0xfb8] sm:$0xff]
    %v4447 = vld [vmem:[#allocation7 + $0xfc0] sm:$0xff]
    %v4448 = vld [vmem:[#allocation7 + $0xfc8] sm:$0xff]
    %v4449 = vld [vmem:[#allocation7 + $0xfd0] sm:$0xff]
    %v4450 = vld [vmem:[#allocation7 + $0xfd8] sm:$0xff]
    %v4451 = vld [vmem:[#allocation7 + $0xfe0] sm:$0xff]
    %v4452 = vld [vmem:[#allocation7 + $0xfe8] sm:$0xff]
    %v4453 = vld [vmem:[#allocation7 + $0xff0] sm:$0xff]
    %v4454 = vld [vmem:[#allocation7 + $0xff8] sm:$0xff]
    %v4455 = vld [vmem:[#allocation7 + $0x1000] sm:$0xff]
    %v4456 = vld [vmem:[#allocation7 + $0x1008] sm:$0xff]
    %v4457 = vld [vmem:[#allocation7 + $0x1010] sm:$0xff]
    %v4458 = vld [vmem:[#allocation7 + $0x1018] sm:$0xff]
    %v4459 = vld [vmem:[#allocation7 + $0x1020] sm:$0xff]
    %v4460 = vld [vmem:[#allocation7 + $0x1028] sm:$0xff]
    %v4461 = vld [vmem:[#allocation7 + $0x1030] sm:$0xff]
    %v4462 = vld [vmem:[#allocation7 + $0x1038] sm:$0xff]
    %v4463 = vld [vmem:[#allocation7 + $0x1040] sm:$0xff]
    %v4464 = vld [vmem:[#allocation7 + $0x1048] sm:$0xff]
    %v4465 = vld [vmem:[#allocation7 + $0x1050] sm:$0xff]
    %v4466 = vld [vmem:[#allocation7 + $0x1058] sm:$0xff]
    %v4467 = vld [vmem:[#allocation7 + $0x1060] sm:$0xff]
    %v4468 = vld [vmem:[#allocation7 + $0x1068] sm:$0xff]
    %v4469 = vld [vmem:[#allocation7 + $0x1070] sm:$0xff]
    %v4470 = vld [vmem:[#allocation7 + $0x1078] sm:$0xff]
    %v4471 = vld [vmem:[#allocation7 + $0x1080] sm:$0xff]
    %v4472 = vld [vmem:[#allocation7 + $0x1088] sm:$0xff]
    %v4473 = vld [vmem:[#allocation7 + $0x1090] sm:$0xff]
    %v4474 = vld [vmem:[#allocation7 + $0x1098] sm:$0xff]
    %v4475 = vld [vmem:[#allocation7 + $0x10a0] sm:$0xff]
    %v4476 = vld [vmem:[#allocation7 + $0x10a8] sm:$0xff]
    %v4477 = vld [vmem:[#allocation7 + $0x10b0] sm:$0xff]
    %v4478 = vld [vmem:[#allocation7 + $0x10b8] sm:$0xff]
    %v4479 = vld [vmem:[#allocation7 + $0x10c0] sm:$0xff]
    %v4480 = vld [vmem:[#allocation7 + $0x10c8] sm:$0xff]
    %v4481 = vld [vmem:[#allocation7 + $0x10d0] sm:$0xff]
    %v4482 = vld [vmem:[#allocation7 + $0x10d8] sm:$0xff]
    %v4483 = vld [vmem:[#allocation7 + $0x10e0] sm:$0xff]
    %v4484 = vld [vmem:[#allocation7 + $0x10e8] sm:$0xff]
    %v4485 = vld [vmem:[#allocation7 + $0x10f0] sm:$0xff]
    %v4486 = vld [vmem:[#allocation7 + $0x10f8] sm:$0xff]
    %v4487 = vld [vmem:[#allocation7 + $0x1100] sm:$0xff]
    %v4488 = vld [vmem:[#allocation7 + $0x1108] sm:$0xff]
    %v4489 = vld [vmem:[#allocation7 + $0x1110] sm:$0xff]
    %v4490 = vld [vmem:[#allocation7 + $0x1118] sm:$0xff]
    %v4491 = vld [vmem:[#allocation7 + $0x1120] sm:$0xff]
    %v4492 = vld [vmem:[#allocation7 + $0x1128] sm:$0xff]
    %v4493 = vld [vmem:[#allocation7 + $0x1130] sm:$0xff]
    %v4494 = vld [vmem:[#allocation7 + $0x1138] sm:$0xff]
    %v4495 = vld [vmem:[#allocation7 + $0x1140] sm:$0xff]
    %v4496 = vld [vmem:[#allocation7 + $0x1148] sm:$0xff]
    %v4497 = vld [vmem:[#allocation7 + $0x1150] sm:$0xff]
    %v4498 = vld [vmem:[#allocation7 + $0x1158] sm:$0xff]
    %v4499 = vld [vmem:[#allocation7 + $0x1160] sm:$0xff]
    %v4500 = vld [vmem:[#allocation7 + $0x1168] sm:$0xff]
    %v4501 = vld [vmem:[#allocation7 + $0x1170] sm:$0xff]
    %v4502 = vld [vmem:[#allocation7 + $0x1178] sm:$0xff]
    %v4503 = vld [vmem:[#allocation7 + $0x1180] sm:$0xff]
    %v4504 = vld [vmem:[#allocation7 + $0x1188] sm:$0xff]
    %v4505 = vld [vmem:[#allocation7 + $0x1190] sm:$0xff]
    %v4506 = vld [vmem:[#allocation7 + $0x1198] sm:$0xff]
    %v4507 = vld [vmem:[#allocation7 + $0x11a0] sm:$0xff]
    %v4508 = vld [vmem:[#allocation7 + $0x11a8] sm:$0xff]
    %v4509 = vld [vmem:[#allocation7 + $0x11b0] sm:$0xff]
    %v4510 = vld [vmem:[#allocation7 + $0x11b8] sm:$0xff]
    %v4511 = vld [vmem:[#allocation7 + $0x11c0] sm:$0xff]
    %v4512 = vld [vmem:[#allocation7 + $0x11c8] sm:$0xff]
    %v4513 = vld [vmem:[#allocation7 + $0x11d0] sm:$0xff]
    %v4514 = vld [vmem:[#allocation7 + $0x11d8] sm:$0xff]
    %v4515 = vld [vmem:[#allocation7 + $0x11e0] sm:$0xff]
    %v4516 = vld [vmem:[#allocation7 + $0x11e8] sm:$0xff]
    %v4517 = vld [vmem:[#allocation7 + $0x11f0] sm:$0xff]
    %v4518 = vld [vmem:[#allocation7 + $0x11f8] sm:$0xff]
    %4519 = vmatprep.subr.mxu0 %v4034
    %4520 = vmatpush1.msra.mxu0 %v4033
    %4521 = vmatprep.subr.mxu0 %v4028
    %4522 = vmatpush1.msra.mxu0 %v4027
    %4523 = vmatprep.subr.mxu0 %v4022
    %4524 = vmatpush1.msra.mxu0 %v4021
    %4525 = vmatprep.subr.mxu0 %v4016
    %4526 = vmatpush1.msra.mxu0 %v4015
    %4527 = vmatprep.subr.mxu0 %v4010
    %4528 = vmatpush1.msra.mxu0 %v4009
    %4529 = vmatprep.subr.mxu0 %v4004
    %4530 = vmatpush1.msra.mxu0 %v4003
    %4531 = vmatprep.subr.mxu0 %v3998
    %4532 = vmatpush1.msra.mxu0 %v3997
    %4533 = vmatprep.subr.mxu0 %v3992
    %4534 = vmatpush1.msra.mxu0 %v3991
    %4535 = vmatprep.subr.mxu0 %v3986
    %4536 = vmatpush1.msra.mxu0 %v3985
    %4537 = vmatprep.subr.mxu0 %v3980
    %4538 = vmatpush1.msra.mxu0 %v3979
    %4539 = vmatprep.subr.mxu0 %v3974
    %4540 = vmatpush1.msra.mxu0 %v3973
    %4541 = vmatprep.subr.mxu0 %v3968
    %4542 = vmatpush1.msra.mxu0 %v3967
    %4543 = vmatprep.subr.mxu0 %v3962
    %4544 = vmatpush1.msra.mxu0 %v3961
    %4545 = vmatprep.subr.mxu0 %v3956
    %4546 = vmatpush1.msra.mxu0 %v3955
    %4547 = vmatprep.subr.mxu0 %v3950
    %4548 = vmatpush1.msra.mxu0 %v3949
    %4549 = vmatprep.subr.mxu0 %v3944
    %4550 = vmatpush1.msra.mxu0 %v3943
    %4551 = vmatprep.subr.mxu0 %v4130
    %4552 = vmatpush2.msra.mxu0 %v4129
    %4553 = vmatprep.subr.mxu0 %v4124
    %4554 = vmatpush2.msra.mxu0 %v4123
    %4555 = vmatprep.subr.mxu0 %v4118
    %4556 = vmatpush2.msra.mxu0 %v4117
    %4557 = vmatprep.subr.mxu0 %v4112
    %4558 = vmatpush2.msra.mxu0 %v4111
    %4559 = vmatprep.subr.mxu0 %v4106
    %4560 = vmatpush2.msra.mxu0 %v4105
    %4561 = vmatprep.subr.mxu0 %v4100
    %4562 = vmatpush2.msra.mxu0 %v4099
    %4563 = vmatprep.subr.mxu0 %v4094
    %4564 = vmatpush2.msra.mxu0 %v4093
    %4565 = vmatprep.subr.mxu0 %v4088
    %4566 = vmatpush2.msra.mxu0 %v4087
    %4567 = vmatprep.subr.mxu0 %v4082
    %4568 = vmatpush2.msra.mxu0 %v4081
    %4569 = vmatprep.subr.mxu0 %v4076
    %4570 = vmatpush2.msra.mxu0 %v4075
    %4571 = vmatprep.subr.mxu0 %v4070
    %4572 = vmatpush2.msra.mxu0 %v4069
    %4573 = vmatprep.subr.mxu0 %v4064
    %4574 = vmatpush2.msra.mxu0 %v4063
    %4575 = vmatprep.subr.mxu0 %v4058
    %4576 = vmatpush2.msra.mxu0 %v4057
    %4577 = vmatprep.subr.mxu0 %v4052
    %4578 = vmatpush2.msra.mxu0 %v4051
    %4579 = vmatprep.subr.mxu0 %v4046
    %4580 = vmatpush2.msra.mxu0 %v4045
    %4581 = vmatprep.subr.mxu0 %v4040
    %4582 = vmatpush2.msra.mxu0 %v4039
    %4583 = vmatprep.mubr.f32.mxu0 %v3515
    %4584 = vmatmul.mubr.f32.gmra.mxu0 %v3513
    %v4585 = vpop.f32.mrf.mxu0
    %v4586 = vadd.f32 0.0, %v4585
    %v4587 = vpop.f32.mrf.mxu0
    %v4588 = vadd.f32 0.0, %v4587
    %4589 = vdwg.mxu0
    %4590 = vmatprep.subr.mxu0 %v4226
    %4591 = vmatpush1.msra.mxu0 %v4225
    %4592 = vmatprep.subr.mxu0 %v4220
    %4593 = vmatpush1.msra.mxu0 %v4219
    %4594 = vmatprep.subr.mxu0 %v4214
    %4595 = vmatpush1.msra.mxu0 %v4213
    %4596 = vmatprep.subr.mxu0 %v4208
    %4597 = vmatpush1.msra.mxu0 %v4207
    %4598 = vmatprep.subr.mxu0 %v4202
    %4599 = vmatpush1.msra.mxu0 %v4201
    %4600 = vmatprep.subr.mxu0 %v4196
    %4601 = vmatpush1.msra.mxu0 %v4195
    %4602 = vmatprep.subr.mxu0 %v4190
    %4603 = vmatpush1.msra.mxu0 %v4189
    %4604 = vmatprep.subr.mxu0 %v4184
    %4605 = vmatpush1.msra.mxu0 %v4183
    %4606 = vmatprep.subr.mxu0 %v4178
    %4607 = vmatpush1.msra.mxu0 %v4177
    %4608 = vmatprep.subr.mxu0 %v4172
    %4609 = vmatpush1.msra.mxu0 %v4171
    %4610 = vmatprep.subr.mxu0 %v4166
    %4611 = vmatpush1.msra.mxu0 %v4165
    %4612 = vmatprep.subr.mxu0 %v4160
    %4613 = vmatpush1.msra.mxu0 %v4159
    %4614 = vmatprep.subr.mxu0 %v4154
    %4615 = vmatpush1.msra.mxu0 %v4153
    %4616 = vmatprep.subr.mxu0 %v4148
    %4617 = vmatpush1.msra.mxu0 %v4147
    %4618 = vmatprep.subr.mxu0 %v4142
    %4619 = vmatpush1.msra.mxu0 %v4141
    %4620 = vmatprep.subr.mxu0 %v4136
    %4621 = vmatpush1.msra.mxu0 %v4135
    %4622 = vmatprep.subr.mxu0 %v4322
    %4623 = vmatpush2.msra.mxu0 %v4321
    %4624 = vmatprep.subr.mxu0 %v4316
    %4625 = vmatpush2.msra.mxu0 %v4315
    %4626 = vmatprep.subr.mxu0 %v4310
    %4627 = vmatpush2.msra.mxu0 %v4309
    %4628 = vmatprep.subr.mxu0 %v4304
    %4629 = vmatpush2.msra.mxu0 %v4303
    %4630 = vmatprep.subr.mxu0 %v4298
    %4631 = vmatpush2.msra.mxu0 %v4297
    %4632 = vmatprep.subr.mxu0 %v4292
    %4633 = vmatpush2.msra.mxu0 %v4291
    %4634 = vmatprep.subr.mxu0 %v4286
    %4635 = vmatpush2.msra.mxu0 %v4285
    %4636 = vmatprep.subr.mxu0 %v4280
    %4637 = vmatpush2.msra.mxu0 %v4279
    %4638 = vmatprep.subr.mxu0 %v4274
    %4639 = vmatpush2.msra.mxu0 %v4273
    %4640 = vmatprep.subr.mxu0 %v4268
    %4641 = vmatpush2.msra.mxu0 %v4267
    %4642 = vmatprep.subr.mxu0 %v4262
    %4643 = vmatpush2.msra.mxu0 %v4261
    %4644 = vmatprep.subr.mxu0 %v4256
    %4645 = vmatpush2.msra.mxu0 %v4255
    %4646 = vmatprep.subr.mxu0 %v4250
    %4647 = vmatpush2.msra.mxu0 %v4249
    %4648 = vmatprep.subr.mxu0 %v4244
    %4649 = vmatpush2.msra.mxu0 %v4243
    %4650 = vmatprep.subr.mxu0 %v4238
    %4651 = vmatpush2.msra.mxu0 %v4237
    %4652 = vmatprep.subr.mxu0 %v4232
    %4653 = vmatpush2.msra.mxu0 %v4231
    %4654 = vmatprep.mubr.f32.mxu0 %v3728
    %4655 = vmatmul.mubr.f32.gmra.mxu0 %v3726
    %v4656 = vpop.f32.mrf.mxu0
    %v4657 = vadd.f32 %v4586, %v4656
    %v4658 = vpop.f32.mrf.mxu0
    %v4659 = vadd.f32 %v4588, %v4658
    %4660 = vdwg.mxu0
    %4661 = vmatprep.subr.mxu0 %v4418
    %4662 = vmatpush1.msra.mxu0 %v4417
    %4663 = vmatprep.subr.mxu0 %v4412
    %4664 = vmatpush1.msra.mxu0 %v4411
    %4665 = vmatprep.subr.mxu0 %v4406
    %4666 = vmatpush1.msra.mxu0 %v4405
    %4667 = vmatprep.subr.mxu0 %v4400
    %4668 = vmatpush1.msra.mxu0 %v4399
    %4669 = vmatprep.subr.mxu0 %v4394
    %4670 = vmatpush1.msra.mxu0 %v4393
    %4671 = vmatprep.subr.mxu0 %v4388
    %4672 = vmatpush1.msra.mxu0 %v4387
    %4673 = vmatprep.subr.mxu0 %v4382
    %4674 = vmatpush1.msra.mxu0 %v4381
    %4675 = vmatprep.subr.mxu0 %v4376
    %4676 = vmatpush1.msra.mxu0 %v4375
    %4677 = vmatprep.subr.mxu0 %v4370
    %4678 = vmatpush1.msra.mxu0 %v4369
    %4679 = vmatprep.subr.mxu0 %v4364
    %4680 = vmatpush1.msra.mxu0 %v4363
    %4681 = vmatprep.subr.mxu0 %v4358
    %4682 = vmatpush1.msra.mxu0 %v4357
    %4683 = vmatprep.subr.mxu0 %v4352
    %4684 = vmatpush1.msra.mxu0 %v4351
    %4685 = vmatprep.subr.mxu0 %v4346
    %4686 = vmatpush1.msra.mxu0 %v4345
    %4687 = vmatprep.subr.mxu0 %v4340
    %4688 = vmatpush1.msra.mxu0 %v4339
    %4689 = vmatprep.subr.mxu0 %v4334
    %4690 = vmatpush1.msra.mxu0 %v4333
    %4691 = vmatprep.subr.mxu0 %v4328
    %4692 = vmatpush1.msra.mxu0 %v4327
    %4693 = vmatprep.subr.mxu0 %v4514
    %4694 = vmatpush2.msra.mxu0 %v4513
    %4695 = vmatprep.subr.mxu0 %v4508
    %4696 = vmatpush2.msra.mxu0 %v4507
    %4697 = vmatprep.subr.mxu0 %v4502
    %4698 = vmatpush2.msra.mxu0 %v4501
    %4699 = vmatprep.subr.mxu0 %v4496
    %4700 = vmatpush2.msra.mxu0 %v4495
    %4701 = vmatprep.subr.mxu0 %v4490
    %4702 = vmatpush2.msra.mxu0 %v4489
    %4703 = vmatprep.subr.mxu0 %v4484
    %4704 = vmatpush2.msra.mxu0 %v4483
    %4705 = vmatprep.subr.mxu0 %v4478
    %4706 = vmatpush2.msra.mxu0 %v4477
    %4707 = vmatprep.subr.mxu0 %v4472
    %4708 = vmatpush2.msra.mxu0 %v4471
    %4709 = vmatprep.subr.mxu0 %v4466
    %4710 = vmatpush2.msra.mxu0 %v4465
    %4711 = vmatprep.subr.mxu0 %v4460
    %4712 = vmatpush2.msra.mxu0 %v4459
    %4713 = vmatprep.subr.mxu0 %v4454
    %4714 = vmatpush2.msra.mxu0 %v4453
    %4715 = vmatprep.subr.mxu0 %v4448
    %4716 = vmatpush2.msra.mxu0 %v4447
    %4717 = vmatprep.subr.mxu0 %v4442
    %4718 = vmatpush2.msra.mxu0 %v4441
    %4719 = vmatprep.subr.mxu0 %v4436
    %4720 = vmatpush2.msra.mxu0 %v4435
    %4721 = vmatprep.subr.mxu0 %v4430
    %4722 = vmatpush2.msra.mxu0 %v4429
    %4723 = vmatprep.subr.mxu0 %v4424
    %4724 = vmatpush2.msra.mxu0 %v4423
    %4725 = vmatprep.mubr.f32.mxu0 %v3941
    %4726 = vmatmul.mubr.f32.gmra.mxu0 %v3939
    %v4727 = vpop.f32.mrf.mxu0
    %v4728 = vadd.f32 %v4657, %v4727
    %v4729 = vpop.f32.mrf.mxu0
    %v4730 = vadd.f32 %v4659, %v4729
    %4731 = vdwg.mxu0
    %4732 = vmatprep.subr.mxu0 %v4036
    %4733 = vmatpush1.msra.mxu0 %v4035
    %4734 = vmatprep.subr.mxu0 %v4030
    %4735 = vmatpush1.msra.mxu0 %v4029
    %4736 = vmatprep.subr.mxu0 %v4024
    %4737 = vmatpush1.msra.mxu0 %v4023
    %4738 = vmatprep.subr.mxu0 %v4018
    %4739 = vmatpush1.msra.mxu0 %v4017
    %4740 = vmatprep.subr.mxu0 %v4012
    %4741 = vmatpush1.msra.mxu0 %v4011
    %4742 = vmatprep.subr.mxu0 %v4006
    %4743 = vmatpush1.msra.mxu0 %v4005
    %4744 = vmatprep.subr.mxu0 %v4000
    %4745 = vmatpush1.msra.mxu0 %v3999
    %4746 = vmatprep.subr.mxu0 %v3994
    %4747 = vmatpush1.msra.mxu0 %v3993
    %4748 = vmatprep.subr.mxu0 %v3988
    %4749 = vmatpush1.msra.mxu0 %v3987
    %4750 = vmatprep.subr.mxu0 %v3982
    %4751 = vmatpush1.msra.mxu0 %v3981
    %4752 = vmatprep.subr.mxu0 %v3976
    %4753 = vmatpush1.msra.mxu0 %v3975
    %4754 = vmatprep.subr.mxu0 %v3970
    %4755 = vmatpush1.msra.mxu0 %v3969
    %4756 = vmatprep.subr.mxu0 %v3964
    %4757 = vmatpush1.msra.mxu0 %v3963
    %4758 = vmatprep.subr.mxu0 %v3958
    %4759 = vmatpush1.msra.mxu0 %v3957
    %4760 = vmatprep.subr.mxu0 %v3952
    %4761 = vmatpush1.msra.mxu0 %v3951
    %4762 = vmatprep.subr.mxu0 %v3946
    %4763 = vmatpush1.msra.mxu0 %v3945
    %4764 = vmatprep.subr.mxu0 %v4132
    %4765 = vmatpush2.msra.mxu0 %v4131
    %4766 = vmatprep.subr.mxu0 %v4126
    %4767 = vmatpush2.msra.mxu0 %v4125
    %4768 = vmatprep.subr.mxu0 %v4120
    %4769 = vmatpush2.msra.mxu0 %v4119
    %4770 = vmatprep.subr.mxu0 %v4114
    %4771 = vmatpush2.msra.mxu0 %v4113
    %4772 = vmatprep.subr.mxu0 %v4108
    %4773 = vmatpush2.msra.mxu0 %v4107
    %4774 = vmatprep.subr.mxu0 %v4102
    %4775 = vmatpush2.msra.mxu0 %v4101
    %4776 = vmatprep.subr.mxu0 %v4096
    %4777 = vmatpush2.msra.mxu0 %v4095
    %4778 = vmatprep.subr.mxu0 %v4090
    %4779 = vmatpush2.msra.mxu0 %v4089
    %4780 = vmatprep.subr.mxu0 %v4084
    %4781 = vmatpush2.msra.mxu0 %v4083
    %4782 = vmatprep.subr.mxu0 %v4078
    %4783 = vmatpush2.msra.mxu0 %v4077
    %4784 = vmatprep.subr.mxu0 %v4072
    %4785 = vmatpush2.msra.mxu0 %v4071
    %4786 = vmatprep.subr.mxu0 %v4066
    %4787 = vmatpush2.msra.mxu0 %v4065
    %4788 = vmatprep.subr.mxu0 %v4060
    %4789 = vmatpush2.msra.mxu0 %v4059
    %4790 = vmatprep.subr.mxu0 %v4054
    %4791 = vmatpush2.msra.mxu0 %v4053
    %4792 = vmatprep.subr.mxu0 %v4048
    %4793 = vmatpush2.msra.mxu0 %v4047
    %4794 = vmatprep.subr.mxu0 %v4042
    %4795 = vmatpush2.msra.mxu0 %v4041
    %4796 = vmatprep.mubr.f32.mxu0 %v3515
    %4797 = vmatmul.mubr.f32.gmra.mxu0 %v3513
    %v4798 = vpop.f32.mrf.mxu0
    %v4799 = vadd.f32 0.0, %v4798
    %v4800 = vpop.f32.mrf.mxu0
    %v4801 = vadd.f32 0.0, %v4800
    %4802 = vdwg.mxu0
    %4803 = vmatprep.subr.mxu0 %v4228
    %4804 = vmatpush1.msra.mxu0 %v4227
    %4805 = vmatprep.subr.mxu0 %v4222
    %4806 = vmatpush1.msra.mxu0 %v4221
    %4807 = vmatprep.subr.mxu0 %v4216
    %4808 = vmatpush1.msra.mxu0 %v4215
    %4809 = vmatprep.subr.mxu0 %v4210
    %4810 = vmatpush1.msra.mxu0 %v4209
    %4811 = vmatprep.subr.mxu0 %v4204
    %4812 = vmatpush1.msra.mxu0 %v4203
    %4813 = vmatprep.subr.mxu0 %v4198
    %4814 = vmatpush1.msra.mxu0 %v4197
    %4815 = vmatprep.subr.mxu0 %v4192
    %4816 = vmatpush1.msra.mxu0 %v4191
    %4817 = vmatprep.subr.mxu0 %v4186
    %4818 = vmatpush1.msra.mxu0 %v4185
    %4819 = vmatprep.subr.mxu0 %v4180
    %4820 = vmatpush1.msra.mxu0 %v4179
    %4821 = vmatprep.subr.mxu0 %v4174
    %4822 = vmatpush1.msra.mxu0 %v4173
    %4823 = vmatprep.subr.mxu0 %v4168
    %4824 = vmatpush1.msra.mxu0 %v4167
    %4825 = vmatprep.subr.mxu0 %v4162
    %4826 = vmatpush1.msra.mxu0 %v4161
    %4827 = vmatprep.subr.mxu0 %v4156
    %4828 = vmatpush1.msra.mxu0 %v4155
    %4829 = vmatprep.subr.mxu0 %v4150
    %4830 = vmatpush1.msra.mxu0 %v4149
    %4831 = vmatprep.subr.mxu0 %v4144
    %4832 = vmatpush1.msra.mxu0 %v4143
    %4833 = vmatprep.subr.mxu0 %v4138
    %4834 = vmatpush1.msra.mxu0 %v4137
    %4835 = vmatprep.subr.mxu0 %v4324
    %4836 = vmatpush2.msra.mxu0 %v4323
    %4837 = vmatprep.subr.mxu0 %v4318
    %4838 = vmatpush2.msra.mxu0 %v4317
    %4839 = vmatprep.subr.mxu0 %v4312
    %4840 = vmatpush2.msra.mxu0 %v4311
    %4841 = vmatprep.subr.mxu0 %v4306
    %4842 = vmatpush2.msra.mxu0 %v4305
    %4843 = vmatprep.subr.mxu0 %v4300
    %4844 = vmatpush2.msra.mxu0 %v4299
    %4845 = vmatprep.subr.mxu0 %v4294
    %4846 = vmatpush2.msra.mxu0 %v4293
    %4847 = vmatprep.subr.mxu0 %v4288
    %4848 = vmatpush2.msra.mxu0 %v4287
    %4849 = vmatprep.subr.mxu0 %v4282
    %4850 = vmatpush2.msra.mxu0 %v4281
    %4851 = vmatprep.subr.mxu0 %v4276
    %4852 = vmatpush2.msra.mxu0 %v4275
    %4853 = vmatprep.subr.mxu0 %v4270
    %4854 = vmatpush2.msra.mxu0 %v4269
    %4855 = vmatprep.subr.mxu0 %v4264
    %4856 = vmatpush2.msra.mxu0 %v4263
    %4857 = vmatprep.subr.mxu0 %v4258
    %4858 = vmatpush2.msra.mxu0 %v4257
    %4859 = vmatprep.subr.mxu0 %v4252
    %4860 = vmatpush2.msra.mxu0 %v4251
    %4861 = vmatprep.subr.mxu0 %v4246
    %4862 = vmatpush2.msra.mxu0 %v4245
    %4863 = vmatprep.subr.mxu0 %v4240
    %4864 = vmatpush2.msra.mxu0 %v4239
    %4865 = vmatprep.subr.mxu0 %v4234
    %4866 = vmatpush2.msra.mxu0 %v4233
    %4867 = vmatprep.mubr.f32.mxu0 %v3728
    %4868 = vmatmul.mubr.f32.gmra.mxu0 %v3726
    %v4869 = vpop.f32.mrf.mxu0
    %v4870 = vadd.f32 %v4799, %v4869
    %v4871 = vpop.f32.mrf.mxu0
    %v4872 = vadd.f32 %v4801, %v4871
    %4873 = vdwg.mxu0
    %4874 = vmatprep.subr.mxu0 %v4420
    %4875 = vmatpush1.msra.mxu0 %v4419
    %4876 = vmatprep.subr.mxu0 %v4414
    %4877 = vmatpush1.msra.mxu0 %v4413
    %4878 = vmatprep.subr.mxu0 %v4408
    %4879 = vmatpush1.msra.mxu0 %v4407
    %4880 = vmatprep.subr.mxu0 %v4402
    %4881 = vmatpush1.msra.mxu0 %v4401
    %4882 = vmatprep.subr.mxu0 %v4396
    %4883 = vmatpush1.msra.mxu0 %v4395
    %4884 = vmatprep.subr.mxu0 %v4390
    %4885 = vmatpush1.msra.mxu0 %v4389
    %4886 = vmatprep.subr.mxu0 %v4384
    %4887 = vmatpush1.msra.mxu0 %v4383
    %4888 = vmatprep.subr.mxu0 %v4378
    %4889 = vmatpush1.msra.mxu0 %v4377
    %4890 = vmatprep.subr.mxu0 %v4372
    %4891 = vmatpush1.msra.mxu0 %v4371
    %4892 = vmatprep.subr.mxu0 %v4366
    %4893 = vmatpush1.msra.mxu0 %v4365
    %4894 = vmatprep.subr.mxu0 %v4360
    %4895 = vmatpush1.msra.mxu0 %v4359
    %4896 = vmatprep.subr.mxu0 %v4354
    %4897 = vmatpush1.msra.mxu0 %v4353
    %4898 = vmatprep.subr.mxu0 %v4348
    %4899 = vmatpush1.msra.mxu0 %v4347
    %4900 = vmatprep.subr.mxu0 %v4342
    %4901 = vmatpush1.msra.mxu0 %v4341
    %4902 = vmatprep.subr.mxu0 %v4336
    %4903 = vmatpush1.msra.mxu0 %v4335
    %4904 = vmatprep.subr.mxu0 %v4330
    %4905 = vmatpush1.msra.mxu0 %v4329
    %4906 = vmatprep.subr.mxu0 %v4516
    %4907 = vmatpush2.msra.mxu0 %v4515
    %4908 = vmatprep.subr.mxu0 %v4510
    %4909 = vmatpush2.msra.mxu0 %v4509
    %4910 = vmatprep.subr.mxu0 %v4504
    %4911 = vmatpush2.msra.mxu0 %v4503
    %4912 = vmatprep.subr.mxu0 %v4498
    %4913 = vmatpush2.msra.mxu0 %v4497
    %4914 = vmatprep.subr.mxu0 %v4492
    %4915 = vmatpush2.msra.mxu0 %v4491
    %4916 = vmatprep.subr.mxu0 %v4486
    %4917 = vmatpush2.msra.mxu0 %v4485
    %4918 = vmatprep.subr.mxu0 %v4480
    %4919 = vmatpush2.msra.mxu0 %v4479
    %4920 = vmatprep.subr.mxu0 %v4474
    %4921 = vmatpush2.msra.mxu0 %v4473
    %4922 = vmatprep.subr.mxu0 %v4468
    %4923 = vmatpush2.msra.mxu0 %v4467
    %4924 = vmatprep.subr.mxu0 %v4462
    %4925 = vmatpush2.msra.mxu0 %v4461
    %4926 = vmatprep.subr.mxu0 %v4456
    %4927 = vmatpush2.msra.mxu0 %v4455
    %4928 = vmatprep.subr.mxu0 %v4450
    %4929 = vmatpush2.msra.mxu0 %v4449
    %4930 = vmatprep.subr.mxu0 %v4444
    %4931 = vmatpush2.msra.mxu0 %v4443
    %4932 = vmatprep.subr.mxu0 %v4438
    %4933 = vmatpush2.msra.mxu0 %v4437
    %4934 = vmatprep.subr.mxu0 %v4432
    %4935 = vmatpush2.msra.mxu0 %v4431
    %4936 = vmatprep.subr.mxu0 %v4426
    %4937 = vmatpush2.msra.mxu0 %v4425
    %4938 = vmatprep.mubr.f32.mxu0 %v3941
    %4939 = vmatmul.mubr.f32.gmra.mxu0 %v3939
    %v4940 = vpop.f32.mrf.mxu0
    %v4941 = vadd.f32 %v4870, %v4940
    %v4942 = vpop.f32.mrf.mxu0
    %v4943 = vadd.f32 %v4872, %v4942
    %4944 = vdwg.mxu0
    %4945 = vmatprep.subr.mxu0 %v4038
    %4946 = vmatpush1.msra.mxu0 %v4037
    %4947 = vmatprep.subr.mxu0 %v4032
    %4948 = vmatpush1.msra.mxu0 %v4031
    %4949 = vmatprep.subr.mxu0 %v4026
    %4950 = vmatpush1.msra.mxu0 %v4025
    %4951 = vmatprep.subr.mxu0 %v4020
    %4952 = vmatpush1.msra.mxu0 %v4019
    %4953 = vmatprep.subr.mxu0 %v4014
    %4954 = vmatpush1.msra.mxu0 %v4013
    %4955 = vmatprep.subr.mxu0 %v4008
    %4956 = vmatpush1.msra.mxu0 %v4007
    %4957 = vmatprep.subr.mxu0 %v4002
    %4958 = vmatpush1.msra.mxu0 %v4001
    %4959 = vmatprep.subr.mxu0 %v3996
    %4960 = vmatpush1.msra.mxu0 %v3995
    %4961 = vmatprep.subr.mxu0 %v3990
    %4962 = vmatpush1.msra.mxu0 %v3989
    %4963 = vmatprep.subr.mxu0 %v3984
    %4964 = vmatpush1.msra.mxu0 %v3983
    %4965 = vmatprep.subr.mxu0 %v3978
    %4966 = vmatpush1.msra.mxu0 %v3977
    %4967 = vmatprep.subr.mxu0 %v3972
    %4968 = vmatpush1.msra.mxu0 %v3971
    %4969 = vmatprep.subr.mxu0 %v3966
    %4970 = vmatpush1.msra.mxu0 %v3965
    %4971 = vmatprep.subr.mxu0 %v3960
    %4972 = vmatpush1.msra.mxu0 %v3959
    %4973 = vmatprep.subr.mxu0 %v3954
    %4974 = vmatpush1.msra.mxu0 %v3953
    %4975 = vmatprep.subr.mxu0 %v3948
    %4976 = vmatpush1.msra.mxu0 %v3947
    %4977 = vmatprep.subr.mxu0 %v4134
    %4978 = vmatpush2.msra.mxu0 %v4133
    %4979 = vmatprep.subr.mxu0 %v4128
    %4980 = vmatpush2.msra.mxu0 %v4127
    %4981 = vmatprep.subr.mxu0 %v4122
    %4982 = vmatpush2.msra.mxu0 %v4121
    %4983 = vmatprep.subr.mxu0 %v4116
    %4984 = vmatpush2.msra.mxu0 %v4115
    %4985 = vmatprep.subr.mxu0 %v4110
    %4986 = vmatpush2.msra.mxu0 %v4109
    %4987 = vmatprep.subr.mxu0 %v4104
    %4988 = vmatpush2.msra.mxu0 %v4103
    %4989 = vmatprep.subr.mxu0 %v4098
    %4990 = vmatpush2.msra.mxu0 %v4097
    %4991 = vmatprep.subr.mxu0 %v4092
    %4992 = vmatpush2.msra.mxu0 %v4091
    %4993 = vmatprep.subr.mxu0 %v4086
    %4994 = vmatpush2.msra.mxu0 %v4085
    %4995 = vmatprep.subr.mxu0 %v4080
    %4996 = vmatpush2.msra.mxu0 %v4079
    %4997 = vmatprep.subr.mxu0 %v4074
    %4998 = vmatpush2.msra.mxu0 %v4073
    %4999 = vmatprep.subr.mxu0 %v4068
    %5000 = vmatpush2.msra.mxu0 %v4067
    %5001 = vmatprep.subr.mxu0 %v4062
    %5002 = vmatpush2.msra.mxu0 %v4061
    %5003 = vmatprep.subr.mxu0 %v4056
    %5004 = vmatpush2.msra.mxu0 %v4055
    %5005 = vmatprep.subr.mxu0 %v4050
    %5006 = vmatpush2.msra.mxu0 %v4049
    %5007 = vmatprep.subr.mxu0 %v4044
    %5008 = vmatpush2.msra.mxu0 %v4043
    %5009 = vmatprep.mubr.f32.mxu0 %v3515
    %5010 = vmatmul.mubr.f32.gmra.mxu0 %v3513
    %v5011 = vpop.f32.mrf.mxu0
    %v5012 = vadd.f32 0.0, %v5011
    %v5013 = vpop.f32.mrf.mxu0
    %v5014 = vadd.f32 0.0, %v5013
    %5015 = vdwg.mxu0
    %5016 = vmatprep.subr.mxu0 %v4230
    %5017 = vmatpush1.msra.mxu0 %v4229
    %5018 = vmatprep.subr.mxu0 %v4224
    %5019 = vmatpush1.msra.mxu0 %v4223
    %5020 = vmatprep.subr.mxu0 %v4218
    %5021 = vmatpush1.msra.mxu0 %v4217
    %5022 = vmatprep.subr.mxu0 %v4212
    %5023 = vmatpush1.msra.mxu0 %v4211
    %5024 = vmatprep.subr.mxu0 %v4206
    %5025 = vmatpush1.msra.mxu0 %v4205
    %5026 = vmatprep.subr.mxu0 %v4200
    %5027 = vmatpush1.msra.mxu0 %v4199
    %5028 = vmatprep.subr.mxu0 %v4194
    %5029 = vmatpush1.msra.mxu0 %v4193
    %5030 = vmatprep.subr.mxu0 %v4188
    %5031 = vmatpush1.msra.mxu0 %v4187
    %5032 = vmatprep.subr.mxu0 %v4182
    %5033 = vmatpush1.msra.mxu0 %v4181
    %5034 = vmatprep.subr.mxu0 %v4176
    %5035 = vmatpush1.msra.mxu0 %v4175
    %5036 = vmatprep.subr.mxu0 %v4170
    %5037 = vmatpush1.msra.mxu0 %v4169
    %5038 = vmatprep.subr.mxu0 %v4164
    %5039 = vmatpush1.msra.mxu0 %v4163
    %5040 = vmatprep.subr.mxu0 %v4158
    %5041 = vmatpush1.msra.mxu0 %v4157
    %5042 = vmatprep.subr.mxu0 %v4152
    %5043 = vmatpush1.msra.mxu0 %v4151
    %5044 = vmatprep.subr.mxu0 %v4146
    %5045 = vmatpush1.msra.mxu0 %v4145
    %5046 = vmatprep.subr.mxu0 %v4140
    %5047 = vmatpush1.msra.mxu0 %v4139
    %5048 = vmatprep.subr.mxu0 %v4326
    %5049 = vmatpush2.msra.mxu0 %v4325
    %5050 = vmatprep.subr.mxu0 %v4320
    %5051 = vmatpush2.msra.mxu0 %v4319
    %5052 = vmatprep.subr.mxu0 %v4314
    %5053 = vmatpush2.msra.mxu0 %v4313
    %5054 = vmatprep.subr.mxu0 %v4308
    %5055 = vmatpush2.msra.mxu0 %v4307
    %5056 = vmatprep.subr.mxu0 %v4302
    %5057 = vmatpush2.msra.mxu0 %v4301
    %5058 = vmatprep.subr.mxu0 %v4296
    %5059 = vmatpush2.msra.mxu0 %v4295
    %5060 = vmatprep.subr.mxu0 %v4290
    %5061 = vmatpush2.msra.mxu0 %v4289
    %5062 = vmatprep.subr.mxu0 %v4284
    %5063 = vmatpush2.msra.mxu0 %v4283
    %5064 = vmatprep.subr.mxu0 %v4278
    %5065 = vmatpush2.msra.mxu0 %v4277
    %5066 = vmatprep.subr.mxu0 %v4272
    %5067 = vmatpush2.msra.mxu0 %v4271
    %5068 = vmatprep.subr.mxu0 %v4266
    %5069 = vmatpush2.msra.mxu0 %v4265
    %5070 = vmatprep.subr.mxu0 %v4260
    %5071 = vmatpush2.msra.mxu0 %v4259
    %5072 = vmatprep.subr.mxu0 %v4254
    %5073 = vmatpush2.msra.mxu0 %v4253
    %5074 = vmatprep.subr.mxu0 %v4248
    %5075 = vmatpush2.msra.mxu0 %v4247
    %5076 = vmatprep.subr.mxu0 %v4242
    %5077 = vmatpush2.msra.mxu0 %v4241
    %5078 = vmatprep.subr.mxu0 %v4236
    %5079 = vmatpush2.msra.mxu0 %v4235
    %5080 = vmatprep.mubr.f32.mxu0 %v3728
    %5081 = vmatmul.mubr.f32.gmra.mxu0 %v3726
    %v5082 = vpop.f32.mrf.mxu0
    %v5083 = vadd.f32 %v5012, %v5082
    %v5084 = vpop.f32.mrf.mxu0
    %v5085 = vadd.f32 %v5014, %v5084
    %5086 = vdwg.mxu0
    %5087 = vmatprep.subr.mxu0 %v4422
    %5088 = vmatpush1.msra.mxu0 %v4421
    %5089 = vmatprep.subr.mxu0 %v4416
    %5090 = vmatpush1.msra.mxu0 %v4415
    %5091 = vmatprep.subr.mxu0 %v4410
    %5092 = vmatpush1.msra.mxu0 %v4409
    %5093 = vmatprep.subr.mxu0 %v4404
    %5094 = vmatpush1.msra.mxu0 %v4403
    %5095 = vmatprep.subr.mxu0 %v4398
    %5096 = vmatpush1.msra.mxu0 %v4397
    %5097 = vmatprep.subr.mxu0 %v4392
    %5098 = vmatpush1.msra.mxu0 %v4391
    %5099 = vmatprep.subr.mxu0 %v4386
    %5100 = vmatpush1.msra.mxu0 %v4385
    %5101 = vmatprep.subr.mxu0 %v4380
    %5102 = vmatpush1.msra.mxu0 %v4379
    %5103 = vmatprep.subr.mxu0 %v4374
    %5104 = vmatpush1.msra.mxu0 %v4373
    %5105 = vmatprep.subr.mxu0 %v4368
    %5106 = vmatpush1.msra.mxu0 %v4367
    %5107 = vmatprep.subr.mxu0 %v4362
    %5108 = vmatpush1.msra.mxu0 %v4361
    %5109 = vmatprep.subr.mxu0 %v4356
    %5110 = vmatpush1.msra.mxu0 %v4355
    %5111 = vmatprep.subr.mxu0 %v4350
    %5112 = vmatpush1.msra.mxu0 %v4349
    %5113 = vmatprep.subr.mxu0 %v4344
    %5114 = vmatpush1.msra.mxu0 %v4343
    %5115 = vmatprep.subr.mxu0 %v4338
    %5116 = vmatpush1.msra.mxu0 %v4337
    %5117 = vmatprep.subr.mxu0 %v4332
    %5118 = vmatpush1.msra.mxu0 %v4331
    %5119 = vmatprep.subr.mxu0 %v4518
    %5120 = vmatpush2.msra.mxu0 %v4517
    %5121 = vmatprep.subr.mxu0 %v4512
    %5122 = vmatpush2.msra.mxu0 %v4511
    %5123 = vmatprep.subr.mxu0 %v4506
    %5124 = vmatpush2.msra.mxu0 %v4505
    %5125 = vmatprep.subr.mxu0 %v4500
    %5126 = vmatpush2.msra.mxu0 %v4499
    %5127 = vmatprep.subr.mxu0 %v4494
    %5128 = vmatpush2.msra.mxu0 %v4493
    %5129 = vmatprep.subr.mxu0 %v4488
    %5130 = vmatpush2.msra.mxu0 %v4487
    %5131 = vmatprep.subr.mxu0 %v4482
    %5132 = vmatpush2.msra.mxu0 %v4481
    %5133 = vmatprep.subr.mxu0 %v4476
    %5134 = vmatpush2.msra.mxu0 %v4475
    %5135 = vmatprep.subr.mxu0 %v4470
    %5136 = vmatpush2.msra.mxu0 %v4469
    %5137 = vmatprep.subr.mxu0 %v4464
    %5138 = vmatpush2.msra.mxu0 %v4463
    %5139 = vmatprep.subr.mxu0 %v4458
    %5140 = vmatpush2.msra.mxu0 %v4457
    %5141 = vmatprep.subr.mxu0 %v4452
    %5142 = vmatpush2.msra.mxu0 %v4451
    %5143 = vmatprep.subr.mxu0 %v4446
    %5144 = vmatpush2.msra.mxu0 %v4445
    %5145 = vmatprep.subr.mxu0 %v4440
    %5146 = vmatpush2.msra.mxu0 %v4439
    %5147 = vmatprep.subr.mxu0 %v4434
    %5148 = vmatpush2.msra.mxu0 %v4433
    %5149 = vmatprep.subr.mxu0 %v4428
    %5150 = vmatpush2.msra.mxu0 %v4427
    %5151 = vmatprep.mubr.f32.mxu0 %v3941
    %5152 = vmatmul.mubr.f32.gmra.mxu0 %v3939
    %v5153 = vpop.f32.mrf.mxu0
    %v5154 = vadd.f32 %v5083, %v5153
    %v5155 = vpop.f32.mrf.mxu0
    %v5156 = vadd.f32 %v5085, %v5155
    %5157 = vdwg.mxu0
    %v5158 = vld [vmem:[#allocation14] sm:$0xff]
    %v5159 = vld [vmem:[#allocation14 + $0x8] sm:$0xff]
    %v5160 = vld [vmem:[#allocation14 + $0x10] sm:$0xff]
    %v5161 = vld [vmem:[#allocation14 + $0x18] sm:$0xff]
    %v5162 = vld [vmem:[#allocation14 + $0x20] sm:$0xff]
    %v5163 = vld [vmem:[#allocation14 + $0x28] sm:$0xff]
    %v5164 = vld [vmem:[#allocation14 + $0x30] sm:$0xff]
    %v5165 = vld [vmem:[#allocation14 + $0x38] sm:$0xff]
    %v5166 = vld [vmem:[#allocation14 + $0x40] sm:$0xff]
    %v5167 = vld [vmem:[#allocation14 + $0x48] sm:$0xff]
    %v5168 = vld [vmem:[#allocation14 + $0x50] sm:$0xff]
    %v5169 = vld [vmem:[#allocation14 + $0x58] sm:$0xff]
    %v5170 = vld [vmem:[#allocation14 + $0x60] sm:$0xff]
    %v5171 = vld [vmem:[#allocation14 + $0x68] sm:$0xff]
    %v5172 = vld [vmem:[#allocation14 + $0x70] sm:$0xff]
    %v5173 = vld [vmem:[#allocation14 + $0x78] sm:$0xff]
    %v5174 = vld [vmem:[#allocation14 + $0x80] sm:$0xff]
    %v5175 = vld [vmem:[#allocation14 + $0x88] sm:$0xff]
    %v5176 = vld [vmem:[#allocation14 + $0x90] sm:$0xff]
    %v5177 = vld [vmem:[#allocation14 + $0x98] sm:$0xff]
    %v5178 = vld [vmem:[#allocation14 + $0xa0] sm:$0xff]
    %v5179 = vld [vmem:[#allocation14 + $0xa8] sm:$0xff]
    %v5180 = vld [vmem:[#allocation14 + $0xb0] sm:$0xff]
    %v5181 = vld [vmem:[#allocation14 + $0xb8] sm:$0xff]
    %v5182 = vld [vmem:[#allocation14 + $0xc0] sm:$0xff]
    %v5183 = vld [vmem:[#allocation14 + $0xc8] sm:$0xff]
    %v5184 = vld [vmem:[#allocation14 + $0xd0] sm:$0xff]
    %v5185 = vld [vmem:[#allocation14 + $0xd8] sm:$0xff]
    %v5186 = vld [vmem:[#allocation14 + $0xe0] sm:$0xff]
    %v5187 = vld [vmem:[#allocation14 + $0xe8] sm:$0xff]
    %v5188 = vld [vmem:[#allocation14 + $0xf0] sm:$0xff]
    %v5189 = vld [vmem:[#allocation14 + $0xf8] sm:$0xff]
    %v5190 = vld [vmem:[#allocation14 + $0x100] sm:$0xff]
    %v5191 = vld [vmem:[#allocation14 + $0x108] sm:$0xff]
    %v5192 = vld [vmem:[#allocation14 + $0x110] sm:$0xff]
    %v5193 = vld [vmem:[#allocation14 + $0x118] sm:$0xff]
    %v5194 = vld [vmem:[#allocation14 + $0x120] sm:$0xff]
    %v5195 = vld [vmem:[#allocation14 + $0x128] sm:$0xff]
    %v5196 = vld [vmem:[#allocation14 + $0x130] sm:$0xff]
    %v5197 = vld [vmem:[#allocation14 + $0x138] sm:$0xff]
    %v5198 = vld [vmem:[#allocation14 + $0x140] sm:$0xff]
    %v5199 = vld [vmem:[#allocation14 + $0x148] sm:$0xff]
    %v5200 = vld [vmem:[#allocation14 + $0x150] sm:$0xff]
    %v5201 = vld [vmem:[#allocation14 + $0x158] sm:$0xff]
    %v5202 = vld [vmem:[#allocation14 + $0x160] sm:$0xff]
    %v5203 = vld [vmem:[#allocation14 + $0x168] sm:$0xff]
    %v5204 = vld [vmem:[#allocation14 + $0x170] sm:$0xff]
    %v5205 = vld [vmem:[#allocation14 + $0x178] sm:$0xff]
    %v5206 = vld [vmem:[#allocation14 + $0x180] sm:$0xff]
    %v5207 = vld [vmem:[#allocation14 + $0x188] sm:$0xff]
    %v5208 = vld [vmem:[#allocation14 + $0x190] sm:$0xff]
    %v5209 = vld [vmem:[#allocation14 + $0x198] sm:$0xff]
    %v5210 = vld [vmem:[#allocation14 + $0x1a0] sm:$0xff]
    %v5211 = vld [vmem:[#allocation14 + $0x1a8] sm:$0xff]
    %v5212 = vld [vmem:[#allocation14 + $0x1b0] sm:$0xff]
    %v5213 = vld [vmem:[#allocation14 + $0x1b8] sm:$0xff]
    %v5214 = vld [vmem:[#allocation14 + $0x1c0] sm:$0xff]
    %v5215 = vld [vmem:[#allocation14 + $0x1c8] sm:$0xff]
    %v5216 = vld [vmem:[#allocation14 + $0x1d0] sm:$0xff]
    %v5217 = vld [vmem:[#allocation14 + $0x1d8] sm:$0xff]
    %v5218 = vld [vmem:[#allocation14 + $0x1e0] sm:$0xff]
    %v5219 = vld [vmem:[#allocation14 + $0x1e8] sm:$0xff]
    %v5220 = vld [vmem:[#allocation14 + $0x1f0] sm:$0xff]
    %v5221 = vld [vmem:[#allocation14 + $0x1f8] sm:$0xff]
    %v5222 = vld [vmem:[#allocation14 + $0x200] sm:$0xff]
    %v5223 = vld [vmem:[#allocation14 + $0x208] sm:$0xff]
    %v5224 = vld [vmem:[#allocation14 + $0x210] sm:$0xff]
    %v5225 = vld [vmem:[#allocation14 + $0x218] sm:$0xff]
    %v5226 = vld [vmem:[#allocation14 + $0x220] sm:$0xff]
    %v5227 = vld [vmem:[#allocation14 + $0x228] sm:$0xff]
    %v5228 = vld [vmem:[#allocation14 + $0x230] sm:$0xff]
    %v5229 = vld [vmem:[#allocation14 + $0x238] sm:$0xff]
    %v5230 = vld [vmem:[#allocation14 + $0x240] sm:$0xff]
    %v5231 = vld [vmem:[#allocation14 + $0x248] sm:$0xff]
    %v5232 = vld [vmem:[#allocation14 + $0x250] sm:$0xff]
    %v5233 = vld [vmem:[#allocation14 + $0x258] sm:$0xff]
    %v5234 = vld [vmem:[#allocation14 + $0x260] sm:$0xff]
    %v5235 = vld [vmem:[#allocation14 + $0x268] sm:$0xff]
    %v5236 = vld [vmem:[#allocation14 + $0x270] sm:$0xff]
    %v5237 = vld [vmem:[#allocation14 + $0x278] sm:$0xff]
    %v5238 = vld [vmem:[#allocation14 + $0x280] sm:$0xff]
    %v5239 = vld [vmem:[#allocation14 + $0x288] sm:$0xff]
    %v5240 = vld [vmem:[#allocation14 + $0x290] sm:$0xff]
    %v5241 = vld [vmem:[#allocation14 + $0x298] sm:$0xff]
    %v5242 = vld [vmem:[#allocation14 + $0x2a0] sm:$0xff]
    %v5243 = vld [vmem:[#allocation14 + $0x2a8] sm:$0xff]
    %v5244 = vld [vmem:[#allocation14 + $0x2b0] sm:$0xff]
    %v5245 = vld [vmem:[#allocation14 + $0x2b8] sm:$0xff]
    %v5246 = vld [vmem:[#allocation14 + $0x2c0] sm:$0xff]
    %v5247 = vld [vmem:[#allocation14 + $0x2c8] sm:$0xff]
    %v5248 = vld [vmem:[#allocation14 + $0x2d0] sm:$0xff]
    %v5249 = vld [vmem:[#allocation14 + $0x2d8] sm:$0xff]
    %v5250 = vld [vmem:[#allocation14 + $0x2e0] sm:$0xff]
    %v5251 = vld [vmem:[#allocation14 + $0x2e8] sm:$0xff]
    %v5252 = vld [vmem:[#allocation14 + $0x2f0] sm:$0xff]
    %v5253 = vld [vmem:[#allocation14 + $0x2f8] sm:$0xff]
    %v5254 = vld [vmem:[#allocation14 + $0x300] sm:$0xff]
    %v5255 = vld [vmem:[#allocation14 + $0x308] sm:$0xff]
    %v5256 = vld [vmem:[#allocation14 + $0x310] sm:$0xff]
    %v5257 = vld [vmem:[#allocation14 + $0x318] sm:$0xff]
    %v5258 = vld [vmem:[#allocation14 + $0x320] sm:$0xff]
    %v5259 = vld [vmem:[#allocation14 + $0x328] sm:$0xff]
    %v5260 = vld [vmem:[#allocation14 + $0x330] sm:$0xff]
    %v5261 = vld [vmem:[#allocation14 + $0x338] sm:$0xff]
    %v5262 = vld [vmem:[#allocation14 + $0x340] sm:$0xff]
    %v5263 = vld [vmem:[#allocation14 + $0x348] sm:$0xff]
    %v5264 = vld [vmem:[#allocation14 + $0x350] sm:$0xff]
    %v5265 = vld [vmem:[#allocation14 + $0x358] sm:$0xff]
    %v5266 = vld [vmem:[#allocation14 + $0x360] sm:$0xff]
    %v5267 = vld [vmem:[#allocation14 + $0x368] sm:$0xff]
    %v5268 = vld [vmem:[#allocation14 + $0x370] sm:$0xff]
    %v5269 = vld [vmem:[#allocation14 + $0x378] sm:$0xff]
    %v5270 = vld [vmem:[#allocation14 + $0x380] sm:$0xff]
    %v5271 = vld [vmem:[#allocation14 + $0x388] sm:$0xff]
    %v5272 = vld [vmem:[#allocation14 + $0x390] sm:$0xff]
    %v5273 = vld [vmem:[#allocation14 + $0x398] sm:$0xff]
    %v5274 = vld [vmem:[#allocation14 + $0x3a0] sm:$0xff]
    %v5275 = vld [vmem:[#allocation14 + $0x3a8] sm:$0xff]
    %v5276 = vld [vmem:[#allocation14 + $0x3b0] sm:$0xff]
    %v5277 = vld [vmem:[#allocation14 + $0x3b8] sm:$0xff]
    %v5278 = vld [vmem:[#allocation14 + $0x3c0] sm:$0xff]
    %v5279 = vld [vmem:[#allocation14 + $0x3c8] sm:$0xff]
    %v5280 = vld [vmem:[#allocation14 + $0x3d0] sm:$0xff]
    %v5281 = vld [vmem:[#allocation14 + $0x3d8] sm:$0xff]
    %v5282 = vld [vmem:[#allocation14 + $0x3e0] sm:$0xff]
    %v5283 = vld [vmem:[#allocation14 + $0x3e8] sm:$0xff]
    %v5284 = vld [vmem:[#allocation14 + $0x3f0] sm:$0xff]
    %v5285 = vld [vmem:[#allocation14 + $0x3f8] sm:$0xff]
    %v5286 = vld [vmem:[#allocation14 + $0x400] sm:$0xff]
    %v5287 = vld [vmem:[#allocation14 + $0x408] sm:$0xff]
    %v5288 = vld [vmem:[#allocation14 + $0x410] sm:$0xff]
    %v5289 = vld [vmem:[#allocation14 + $0x418] sm:$0xff]
    %v5290 = vld [vmem:[#allocation14 + $0x420] sm:$0xff]
    %v5291 = vld [vmem:[#allocation14 + $0x428] sm:$0xff]
    %v5292 = vld [vmem:[#allocation14 + $0x430] sm:$0xff]
    %v5293 = vld [vmem:[#allocation14 + $0x438] sm:$0xff]
    %v5294 = vld [vmem:[#allocation14 + $0x440] sm:$0xff]
    %v5295 = vld [vmem:[#allocation14 + $0x448] sm:$0xff]
    %v5296 = vld [vmem:[#allocation14 + $0x450] sm:$0xff]
    %v5297 = vld [vmem:[#allocation14 + $0x458] sm:$0xff]
    %v5298 = vld [vmem:[#allocation14 + $0x460] sm:$0xff]
    %v5299 = vld [vmem:[#allocation14 + $0x468] sm:$0xff]
    %v5300 = vld [vmem:[#allocation14 + $0x470] sm:$0xff]
    %v5301 = vld [vmem:[#allocation14 + $0x478] sm:$0xff]
    %v5302 = vld [vmem:[#allocation14 + $0x480] sm:$0xff]
    %v5303 = vld [vmem:[#allocation14 + $0x488] sm:$0xff]
    %v5304 = vld [vmem:[#allocation14 + $0x490] sm:$0xff]
    %v5305 = vld [vmem:[#allocation14 + $0x498] sm:$0xff]
    %v5306 = vld [vmem:[#allocation14 + $0x4a0] sm:$0xff]
    %v5307 = vld [vmem:[#allocation14 + $0x4a8] sm:$0xff]
    %v5308 = vld [vmem:[#allocation14 + $0x4b0] sm:$0xff]
    %v5309 = vld [vmem:[#allocation14 + $0x4b8] sm:$0xff]
    %v5310 = vld [vmem:[#allocation14 + $0x4c0] sm:$0xff]
    %v5311 = vld [vmem:[#allocation14 + $0x4c8] sm:$0xff]
    %v5312 = vld [vmem:[#allocation14 + $0x4d0] sm:$0xff]
    %v5313 = vld [vmem:[#allocation14 + $0x4d8] sm:$0xff]
    %v5314 = vld [vmem:[#allocation14 + $0x4e0] sm:$0xff]
    %v5315 = vld [vmem:[#allocation14 + $0x4e8] sm:$0xff]
    %v5316 = vld [vmem:[#allocation14 + $0x4f0] sm:$0xff]
    %v5317 = vld [vmem:[#allocation14 + $0x4f8] sm:$0xff]
    %v5318 = vld [vmem:[#allocation14 + $0x500] sm:$0xff]
    %v5319 = vld [vmem:[#allocation14 + $0x508] sm:$0xff]
    %v5320 = vld [vmem:[#allocation14 + $0x510] sm:$0xff]
    %v5321 = vld [vmem:[#allocation14 + $0x518] sm:$0xff]
    %v5322 = vld [vmem:[#allocation14 + $0x520] sm:$0xff]
    %v5323 = vld [vmem:[#allocation14 + $0x528] sm:$0xff]
    %v5324 = vld [vmem:[#allocation14 + $0x530] sm:$0xff]
    %v5325 = vld [vmem:[#allocation14 + $0x538] sm:$0xff]
    %v5326 = vld [vmem:[#allocation14 + $0x540] sm:$0xff]
    %v5327 = vld [vmem:[#allocation14 + $0x548] sm:$0xff]
    %v5328 = vld [vmem:[#allocation14 + $0x550] sm:$0xff]
    %v5329 = vld [vmem:[#allocation14 + $0x558] sm:$0xff]
    %v5330 = vld [vmem:[#allocation14 + $0x560] sm:$0xff]
    %v5331 = vld [vmem:[#allocation14 + $0x568] sm:$0xff]
    %v5332 = vld [vmem:[#allocation14 + $0x570] sm:$0xff]
    %v5333 = vld [vmem:[#allocation14 + $0x578] sm:$0xff]
    %v5334 = vld [vmem:[#allocation14 + $0x580] sm:$0xff]
    %v5335 = vld [vmem:[#allocation14 + $0x588] sm:$0xff]
    %v5336 = vld [vmem:[#allocation14 + $0x590] sm:$0xff]
    %v5337 = vld [vmem:[#allocation14 + $0x598] sm:$0xff]
    %v5338 = vld [vmem:[#allocation14 + $0x5a0] sm:$0xff]
    %v5339 = vld [vmem:[#allocation14 + $0x5a8] sm:$0xff]
    %v5340 = vld [vmem:[#allocation14 + $0x5b0] sm:$0xff]
    %v5341 = vld [vmem:[#allocation14 + $0x5b8] sm:$0xff]
    %v5342 = vld [vmem:[#allocation14 + $0x5c0] sm:$0xff]
    %v5343 = vld [vmem:[#allocation14 + $0x5c8] sm:$0xff]
    %v5344 = vld [vmem:[#allocation14 + $0x5d0] sm:$0xff]
    %v5345 = vld [vmem:[#allocation14 + $0x5d8] sm:$0xff]
    %v5346 = vld [vmem:[#allocation14 + $0x5e0] sm:$0xff]
    %v5347 = vld [vmem:[#allocation14 + $0x5e8] sm:$0xff]
    %v5348 = vld [vmem:[#allocation14 + $0x5f0] sm:$0xff]
    %v5349 = vld [vmem:[#allocation14 + $0x5f8] sm:$0xff]
    %v5350 = vld [vmem:[#allocation14 + $0x600] sm:$0xff]
    %v5351 = vld [vmem:[#allocation14 + $0x608] sm:$0xff]
    %v5352 = vld [vmem:[#allocation14 + $0x610] sm:$0xff]
    %v5353 = vld [vmem:[#allocation14 + $0x618] sm:$0xff]
    %v5354 = vld [vmem:[#allocation14 + $0x620] sm:$0xff]
    %v5355 = vld [vmem:[#allocation14 + $0x628] sm:$0xff]
    %v5356 = vld [vmem:[#allocation14 + $0x630] sm:$0xff]
    %v5357 = vld [vmem:[#allocation14 + $0x638] sm:$0xff]
    %v5358 = vld [vmem:[#allocation14 + $0x640] sm:$0xff]
    %v5359 = vld [vmem:[#allocation14 + $0x648] sm:$0xff]
    %v5360 = vld [vmem:[#allocation14 + $0x650] sm:$0xff]
    %v5361 = vld [vmem:[#allocation14 + $0x658] sm:$0xff]
    %v5362 = vld [vmem:[#allocation14 + $0x660] sm:$0xff]
    %v5363 = vld [vmem:[#allocation14 + $0x668] sm:$0xff]
    %v5364 = vld [vmem:[#allocation14 + $0x670] sm:$0xff]
    %v5365 = vld [vmem:[#allocation14 + $0x678] sm:$0xff]
    %v5366 = vld [vmem:[#allocation14 + $0x680] sm:$0xff]
    %v5367 = vld [vmem:[#allocation14 + $0x688] sm:$0xff]
    %v5368 = vld [vmem:[#allocation14 + $0x690] sm:$0xff]
    %v5369 = vld [vmem:[#allocation14 + $0x698] sm:$0xff]
    %v5370 = vld [vmem:[#allocation14 + $0x6a0] sm:$0xff]
    %v5371 = vld [vmem:[#allocation14 + $0x6a8] sm:$0xff]
    %v5372 = vld [vmem:[#allocation14 + $0x6b0] sm:$0xff]
    %v5373 = vld [vmem:[#allocation14 + $0x6b8] sm:$0xff]
    %v5374 = vld [vmem:[#allocation14 + $0x6c0] sm:$0xff]
    %v5375 = vld [vmem:[#allocation14 + $0x6c8] sm:$0xff]
    %v5376 = vld [vmem:[#allocation14 + $0x6d0] sm:$0xff]
    %v5377 = vld [vmem:[#allocation14 + $0x6d8] sm:$0xff]
    %v5378 = vld [vmem:[#allocation14 + $0x6e0] sm:$0xff]
    %v5379 = vld [vmem:[#allocation14 + $0x6e8] sm:$0xff]
    %v5380 = vld [vmem:[#allocation14 + $0x6f0] sm:$0xff]
    %v5381 = vld [vmem:[#allocation14 + $0x6f8] sm:$0xff]
    %v5382 = vld [vmem:[#allocation14 + $0x700] sm:$0xff]
    %v5383 = vld [vmem:[#allocation14 + $0x708] sm:$0xff]
    %v5384 = vld [vmem:[#allocation14 + $0x710] sm:$0xff]
    %v5385 = vld [vmem:[#allocation14 + $0x718] sm:$0xff]
    %v5386 = vld [vmem:[#allocation14 + $0x720] sm:$0xff]
    %v5387 = vld [vmem:[#allocation14 + $0x728] sm:$0xff]
    %v5388 = vld [vmem:[#allocation14 + $0x730] sm:$0xff]
    %v5389 = vld [vmem:[#allocation14 + $0x738] sm:$0xff]
    %v5390 = vld [vmem:[#allocation14 + $0x740] sm:$0xff]
    %v5391 = vld [vmem:[#allocation14 + $0x748] sm:$0xff]
    %v5392 = vld [vmem:[#allocation14 + $0x750] sm:$0xff]
    %v5393 = vld [vmem:[#allocation14 + $0x758] sm:$0xff]
    %v5394 = vld [vmem:[#allocation14 + $0x760] sm:$0xff]
    %v5395 = vld [vmem:[#allocation14 + $0x768] sm:$0xff]
    %v5396 = vld [vmem:[#allocation14 + $0x770] sm:$0xff]
    %v5397 = vld [vmem:[#allocation14 + $0x778] sm:$0xff]
    %v5398 = vld [vmem:[#allocation14 + $0x780] sm:$0xff]
    %v5399 = vld [vmem:[#allocation14 + $0x788] sm:$0xff]
    %v5400 = vld [vmem:[#allocation14 + $0x790] sm:$0xff]
    %v5401 = vld [vmem:[#allocation14 + $0x798] sm:$0xff]
    %v5402 = vld [vmem:[#allocation14 + $0x7a0] sm:$0xff]
    %v5403 = vld [vmem:[#allocation14 + $0x7a8] sm:$0xff]
    %v5404 = vld [vmem:[#allocation14 + $0x7b0] sm:$0xff]
    %v5405 = vld [vmem:[#allocation14 + $0x7b8] sm:$0xff]
    %v5406 = vld [vmem:[#allocation14 + $0x7c0] sm:$0xff]
    %v5407 = vld [vmem:[#allocation14 + $0x7c8] sm:$0xff]
    %v5408 = vld [vmem:[#allocation14 + $0x7d0] sm:$0xff]
    %v5409 = vld [vmem:[#allocation14 + $0x7d8] sm:$0xff]
    %v5410 = vld [vmem:[#allocation14 + $0x7e0] sm:$0xff]
    %v5411 = vld [vmem:[#allocation14 + $0x7e8] sm:$0xff]
    %v5412 = vld [vmem:[#allocation14 + $0x7f0] sm:$0xff]
    %v5413 = vld [vmem:[#allocation14 + $0x7f8] sm:$0xff]
    %v5414 = vld [vmem:[#allocation14 + $0x800] sm:$0xff]
    %v5415 = vld [vmem:[#allocation14 + $0x808] sm:$0xff]
    %v5416 = vld [vmem:[#allocation14 + $0x810] sm:$0xff]
    %v5417 = vld [vmem:[#allocation14 + $0x818] sm:$0xff]
    %v5418 = vld [vmem:[#allocation14 + $0x820] sm:$0xff]
    %v5419 = vld [vmem:[#allocation14 + $0x828] sm:$0xff]
    %v5420 = vld [vmem:[#allocation14 + $0x830] sm:$0xff]
    %v5421 = vld [vmem:[#allocation14 + $0x838] sm:$0xff]
    %v5422 = vld [vmem:[#allocation14 + $0x840] sm:$0xff]
    %v5423 = vld [vmem:[#allocation14 + $0x848] sm:$0xff]
    %v5424 = vld [vmem:[#allocation14 + $0x850] sm:$0xff]
    %v5425 = vld [vmem:[#allocation14 + $0x858] sm:$0xff]
    %v5426 = vld [vmem:[#allocation14 + $0x860] sm:$0xff]
    %v5427 = vld [vmem:[#allocation14 + $0x868] sm:$0xff]
    %v5428 = vld [vmem:[#allocation14 + $0x870] sm:$0xff]
    %v5429 = vld [vmem:[#allocation14 + $0x878] sm:$0xff]
    %v5430 = vld [vmem:[#allocation14 + $0x880] sm:$0xff]
    %v5431 = vld [vmem:[#allocation14 + $0x888] sm:$0xff]
    %v5432 = vld [vmem:[#allocation14 + $0x890] sm:$0xff]
    %v5433 = vld [vmem:[#allocation14 + $0x898] sm:$0xff]
    %v5434 = vld [vmem:[#allocation14 + $0x8a0] sm:$0xff]
    %v5435 = vld [vmem:[#allocation14 + $0x8a8] sm:$0xff]
    %v5436 = vld [vmem:[#allocation14 + $0x8b0] sm:$0xff]
    %v5437 = vld [vmem:[#allocation14 + $0x8b8] sm:$0xff]
    %v5438 = vld [vmem:[#allocation14 + $0x8c0] sm:$0xff]
    %v5439 = vld [vmem:[#allocation14 + $0x8c8] sm:$0xff]
    %v5440 = vld [vmem:[#allocation14 + $0x8d0] sm:$0xff]
    %v5441 = vld [vmem:[#allocation14 + $0x8d8] sm:$0xff]
    %v5442 = vld [vmem:[#allocation14 + $0x8e0] sm:$0xff]
    %v5443 = vld [vmem:[#allocation14 + $0x8e8] sm:$0xff]
    %v5444 = vld [vmem:[#allocation14 + $0x8f0] sm:$0xff]
    %v5445 = vld [vmem:[#allocation14 + $0x8f8] sm:$0xff]
    %v5446 = vld [vmem:[#allocation14 + $0x900] sm:$0xff]
    %v5447 = vld [vmem:[#allocation14 + $0x908] sm:$0xff]
    %v5448 = vld [vmem:[#allocation14 + $0x910] sm:$0xff]
    %v5449 = vld [vmem:[#allocation14 + $0x918] sm:$0xff]
    %v5450 = vld [vmem:[#allocation14 + $0x920] sm:$0xff]
    %v5451 = vld [vmem:[#allocation14 + $0x928] sm:$0xff]
    %v5452 = vld [vmem:[#allocation14 + $0x930] sm:$0xff]
    %v5453 = vld [vmem:[#allocation14 + $0x938] sm:$0xff]
    %v5454 = vld [vmem:[#allocation14 + $0x940] sm:$0xff]
    %v5455 = vld [vmem:[#allocation14 + $0x948] sm:$0xff]
    %v5456 = vld [vmem:[#allocation14 + $0x950] sm:$0xff]
    %v5457 = vld [vmem:[#allocation14 + $0x958] sm:$0xff]
    %v5458 = vld [vmem:[#allocation14 + $0x960] sm:$0xff]
    %v5459 = vld [vmem:[#allocation14 + $0x968] sm:$0xff]
    %v5460 = vld [vmem:[#allocation14 + $0x970] sm:$0xff]
    %v5461 = vld [vmem:[#allocation14 + $0x978] sm:$0xff]
    %v5462 = vld [vmem:[#allocation14 + $0x980] sm:$0xff]
    %v5463 = vld [vmem:[#allocation14 + $0x988] sm:$0xff]
    %v5464 = vld [vmem:[#allocation14 + $0x990] sm:$0xff]
    %v5465 = vld [vmem:[#allocation14 + $0x998] sm:$0xff]
    %v5466 = vld [vmem:[#allocation14 + $0x9a0] sm:$0xff]
    %v5467 = vld [vmem:[#allocation14 + $0x9a8] sm:$0xff]
    %v5468 = vld [vmem:[#allocation14 + $0x9b0] sm:$0xff]
    %v5469 = vld [vmem:[#allocation14 + $0x9b8] sm:$0xff]
    %v5470 = vld [vmem:[#allocation14 + $0x9c0] sm:$0xff]
    %v5471 = vld [vmem:[#allocation14 + $0x9c8] sm:$0xff]
    %v5472 = vld [vmem:[#allocation14 + $0x9d0] sm:$0xff]
    %v5473 = vld [vmem:[#allocation14 + $0x9d8] sm:$0xff]
    %v5474 = vld [vmem:[#allocation14 + $0x9e0] sm:$0xff]
    %v5475 = vld [vmem:[#allocation14 + $0x9e8] sm:$0xff]
    %v5476 = vld [vmem:[#allocation14 + $0x9f0] sm:$0xff]
    %v5477 = vld [vmem:[#allocation14 + $0x9f8] sm:$0xff]
    %v5478 = vld [vmem:[#allocation14 + $0xa00] sm:$0xff]
    %v5479 = vld [vmem:[#allocation14 + $0xa08] sm:$0xff]
    %v5480 = vld [vmem:[#allocation14 + $0xa10] sm:$0xff]
    %v5481 = vld [vmem:[#allocation14 + $0xa18] sm:$0xff]
    %v5482 = vld [vmem:[#allocation14 + $0xa20] sm:$0xff]
    %v5483 = vld [vmem:[#allocation14 + $0xa28] sm:$0xff]
    %v5484 = vld [vmem:[#allocation14 + $0xa30] sm:$0xff]
    %v5485 = vld [vmem:[#allocation14 + $0xa38] sm:$0xff]
    %v5486 = vld [vmem:[#allocation14 + $0xa40] sm:$0xff]
    %v5487 = vld [vmem:[#allocation14 + $0xa48] sm:$0xff]
    %v5488 = vld [vmem:[#allocation14 + $0xa50] sm:$0xff]
    %v5489 = vld [vmem:[#allocation14 + $0xa58] sm:$0xff]
    %v5490 = vld [vmem:[#allocation14 + $0xa60] sm:$0xff]
    %v5491 = vld [vmem:[#allocation14 + $0xa68] sm:$0xff]
    %v5492 = vld [vmem:[#allocation14 + $0xa70] sm:$0xff]
    %v5493 = vld [vmem:[#allocation14 + $0xa78] sm:$0xff]
    %v5494 = vld [vmem:[#allocation14 + $0xa80] sm:$0xff]
    %v5495 = vld [vmem:[#allocation14 + $0xa88] sm:$0xff]
    %v5496 = vld [vmem:[#allocation14 + $0xa90] sm:$0xff]
    %v5497 = vld [vmem:[#allocation14 + $0xa98] sm:$0xff]
    %v5498 = vld [vmem:[#allocation14 + $0xaa0] sm:$0xff]
    %v5499 = vld [vmem:[#allocation14 + $0xaa8] sm:$0xff]
    %v5500 = vld [vmem:[#allocation14 + $0xab0] sm:$0xff]
    %v5501 = vld [vmem:[#allocation14 + $0xab8] sm:$0xff]
    %v5502 = vld [vmem:[#allocation14 + $0xac0] sm:$0xff]
    %v5503 = vld [vmem:[#allocation14 + $0xac8] sm:$0xff]
    %v5504 = vld [vmem:[#allocation14 + $0xad0] sm:$0xff]
    %v5505 = vld [vmem:[#allocation14 + $0xad8] sm:$0xff]
    %v5506 = vld [vmem:[#allocation14 + $0xae0] sm:$0xff]
    %v5507 = vld [vmem:[#allocation14 + $0xae8] sm:$0xff]
    %v5508 = vld [vmem:[#allocation14 + $0xaf0] sm:$0xff]
    %v5509 = vld [vmem:[#allocation14 + $0xaf8] sm:$0xff]
    %v5510 = vld [vmem:[#allocation14 + $0xb00] sm:$0xff]
    %v5511 = vld [vmem:[#allocation14 + $0xb08] sm:$0xff]
    %v5512 = vld [vmem:[#allocation14 + $0xb10] sm:$0xff]
    %v5513 = vld [vmem:[#allocation14 + $0xb18] sm:$0xff]
    %v5514 = vld [vmem:[#allocation14 + $0xb20] sm:$0xff]
    %v5515 = vld [vmem:[#allocation14 + $0xb28] sm:$0xff]
    %v5516 = vld [vmem:[#allocation14 + $0xb30] sm:$0xff]
    %v5517 = vld [vmem:[#allocation14 + $0xb38] sm:$0xff]
    %v5518 = vld [vmem:[#allocation14 + $0xb40] sm:$0xff]
    %v5519 = vld [vmem:[#allocation14 + $0xb48] sm:$0xff]
    %v5520 = vld [vmem:[#allocation14 + $0xb50] sm:$0xff]
    %v5521 = vld [vmem:[#allocation14 + $0xb58] sm:$0xff]
    %v5522 = vld [vmem:[#allocation14 + $0xb60] sm:$0xff]
    %v5523 = vld [vmem:[#allocation14 + $0xb68] sm:$0xff]
    %v5524 = vld [vmem:[#allocation14 + $0xb70] sm:$0xff]
    %v5525 = vld [vmem:[#allocation14 + $0xb78] sm:$0xff]
    %v5526 = vld [vmem:[#allocation14 + $0xb80] sm:$0xff]
    %v5527 = vld [vmem:[#allocation14 + $0xb88] sm:$0xff]
    %v5528 = vld [vmem:[#allocation14 + $0xb90] sm:$0xff]
    %v5529 = vld [vmem:[#allocation14 + $0xb98] sm:$0xff]
    %v5530 = vld [vmem:[#allocation14 + $0xba0] sm:$0xff]
    %v5531 = vld [vmem:[#allocation14 + $0xba8] sm:$0xff]
    %v5532 = vld [vmem:[#allocation14 + $0xbb0] sm:$0xff]
    %v5533 = vld [vmem:[#allocation14 + $0xbb8] sm:$0xff]
    %v5534 = vld [vmem:[#allocation14 + $0xbc0] sm:$0xff]
    %v5535 = vld [vmem:[#allocation14 + $0xbc8] sm:$0xff]
    %v5536 = vld [vmem:[#allocation14 + $0xbd0] sm:$0xff]
    %v5537 = vld [vmem:[#allocation14 + $0xbd8] sm:$0xff]
    %v5538 = vld [vmem:[#allocation14 + $0xbe0] sm:$0xff]
    %v5539 = vld [vmem:[#allocation14 + $0xbe8] sm:$0xff]
    %v5540 = vld [vmem:[#allocation14 + $0xbf0] sm:$0xff]
    %v5541 = vld [vmem:[#allocation14 + $0xbf8] sm:$0xff]
    %v5542 = vld [vmem:[#allocation14 + $0xc00] sm:$0xff]
    %v5543 = vld [vmem:[#allocation14 + $0xc08] sm:$0xff]
    %v5544 = vld [vmem:[#allocation14 + $0xc10] sm:$0xff]
    %v5545 = vld [vmem:[#allocation14 + $0xc18] sm:$0xff]
    %v5546 = vld [vmem:[#allocation14 + $0xc20] sm:$0xff]
    %v5547 = vld [vmem:[#allocation14 + $0xc28] sm:$0xff]
    %v5548 = vld [vmem:[#allocation14 + $0xc30] sm:$0xff]
    %v5549 = vld [vmem:[#allocation14 + $0xc38] sm:$0xff]
    %v5550 = vld [vmem:[#allocation14 + $0xc40] sm:$0xff]
    %v5551 = vld [vmem:[#allocation14 + $0xc48] sm:$0xff]
    %v5552 = vld [vmem:[#allocation14 + $0xc50] sm:$0xff]
    %v5553 = vld [vmem:[#allocation14 + $0xc58] sm:$0xff]
    %v5554 = vld [vmem:[#allocation14 + $0xc60] sm:$0xff]
    %v5555 = vld [vmem:[#allocation14 + $0xc68] sm:$0xff]
    %v5556 = vld [vmem:[#allocation14 + $0xc70] sm:$0xff]
    %v5557 = vld [vmem:[#allocation14 + $0xc78] sm:$0xff]
    %v5558 = vld [vmem:[#allocation14 + $0xc80] sm:$0xff]
    %v5559 = vld [vmem:[#allocation14 + $0xc88] sm:$0xff]
    %v5560 = vld [vmem:[#allocation14 + $0xc90] sm:$0xff]
    %v5561 = vld [vmem:[#allocation14 + $0xc98] sm:$0xff]
    %v5562 = vld [vmem:[#allocation14 + $0xca0] sm:$0xff]
    %v5563 = vld [vmem:[#allocation14 + $0xca8] sm:$0xff]
    %v5564 = vld [vmem:[#allocation14 + $0xcb0] sm:$0xff]
    %v5565 = vld [vmem:[#allocation14 + $0xcb8] sm:$0xff]
    %v5566 = vld [vmem:[#allocation14 + $0xcc0] sm:$0xff]
    %v5567 = vld [vmem:[#allocation14 + $0xcc8] sm:$0xff]
    %v5568 = vld [vmem:[#allocation14 + $0xcd0] sm:$0xff]
    %v5569 = vld [vmem:[#allocation14 + $0xcd8] sm:$0xff]
    %v5570 = vld [vmem:[#allocation14 + $0xce0] sm:$0xff]
    %v5571 = vld [vmem:[#allocation14 + $0xce8] sm:$0xff]
    %v5572 = vld [vmem:[#allocation14 + $0xcf0] sm:$0xff]
    %v5573 = vld [vmem:[#allocation14 + $0xcf8] sm:$0xff]
    %v5574 = vld [vmem:[#allocation14 + $0xd00] sm:$0xff]
    %v5575 = vld [vmem:[#allocation14 + $0xd08] sm:$0xff]
    %v5576 = vld [vmem:[#allocation14 + $0xd10] sm:$0xff]
    %v5577 = vld [vmem:[#allocation14 + $0xd18] sm:$0xff]
    %v5578 = vld [vmem:[#allocation14 + $0xd20] sm:$0xff]
    %v5579 = vld [vmem:[#allocation14 + $0xd28] sm:$0xff]
    %v5580 = vld [vmem:[#allocation14 + $0xd30] sm:$0xff]
    %v5581 = vld [vmem:[#allocation14 + $0xd38] sm:$0xff]
    %v5582 = vld [vmem:[#allocation14 + $0xd40] sm:$0xff]
    %v5583 = vld [vmem:[#allocation14 + $0xd48] sm:$0xff]
    %v5584 = vld [vmem:[#allocation14 + $0xd50] sm:$0xff]
    %v5585 = vld [vmem:[#allocation14 + $0xd58] sm:$0xff]
    %v5586 = vld [vmem:[#allocation14 + $0xd60] sm:$0xff]
    %v5587 = vld [vmem:[#allocation14 + $0xd68] sm:$0xff]
    %v5588 = vld [vmem:[#allocation14 + $0xd70] sm:$0xff]
    %v5589 = vld [vmem:[#allocation14 + $0xd78] sm:$0xff]
    %v5590 = vld [vmem:[#allocation14 + $0xd80] sm:$0xff]
    %v5591 = vld [vmem:[#allocation14 + $0xd88] sm:$0xff]
    %v5592 = vld [vmem:[#allocation14 + $0xd90] sm:$0xff]
    %v5593 = vld [vmem:[#allocation14 + $0xd98] sm:$0xff]
    %v5594 = vld [vmem:[#allocation14 + $0xda0] sm:$0xff]
    %v5595 = vld [vmem:[#allocation14 + $0xda8] sm:$0xff]
    %v5596 = vld [vmem:[#allocation14 + $0xdb0] sm:$0xff]
    %v5597 = vld [vmem:[#allocation14 + $0xdb8] sm:$0xff]
    %v5598 = vld [vmem:[#allocation14 + $0xdc0] sm:$0xff]
    %v5599 = vld [vmem:[#allocation14 + $0xdc8] sm:$0xff]
    %v5600 = vld [vmem:[#allocation14 + $0xdd0] sm:$0xff]
    %v5601 = vld [vmem:[#allocation14 + $0xdd8] sm:$0xff]
    %v5602 = vld [vmem:[#allocation14 + $0xde0] sm:$0xff]
    %v5603 = vld [vmem:[#allocation14 + $0xde8] sm:$0xff]
    %v5604 = vld [vmem:[#allocation14 + $0xdf0] sm:$0xff]
    %v5605 = vld [vmem:[#allocation14 + $0xdf8] sm:$0xff]
    %v5606 = vld [vmem:[#allocation14 + $0xe00] sm:$0xff]
    %v5607 = vld [vmem:[#allocation14 + $0xe08] sm:$0xff]
    %v5608 = vld [vmem:[#allocation14 + $0xe10] sm:$0xff]
    %v5609 = vld [vmem:[#allocation14 + $0xe18] sm:$0xff]
    %v5610 = vld [vmem:[#allocation14 + $0xe20] sm:$0xff]
    %v5611 = vld [vmem:[#allocation14 + $0xe28] sm:$0xff]
    %v5612 = vld [vmem:[#allocation14 + $0xe30] sm:$0xff]
    %v5613 = vld [vmem:[#allocation14 + $0xe38] sm:$0xff]
    %v5614 = vld [vmem:[#allocation14 + $0xe40] sm:$0xff]
    %v5615 = vld [vmem:[#allocation14 + $0xe48] sm:$0xff]
    %v5616 = vld [vmem:[#allocation14 + $0xe50] sm:$0xff]
    %v5617 = vld [vmem:[#allocation14 + $0xe58] sm:$0xff]
    %v5618 = vld [vmem:[#allocation14 + $0xe60] sm:$0xff]
    %v5619 = vld [vmem:[#allocation14 + $0xe68] sm:$0xff]
    %v5620 = vld [vmem:[#allocation14 + $0xe70] sm:$0xff]
    %v5621 = vld [vmem:[#allocation14 + $0xe78] sm:$0xff]
    %v5622 = vld [vmem:[#allocation14 + $0xe80] sm:$0xff]
    %v5623 = vld [vmem:[#allocation14 + $0xe88] sm:$0xff]
    %v5624 = vld [vmem:[#allocation14 + $0xe90] sm:$0xff]
    %v5625 = vld [vmem:[#allocation14 + $0xe98] sm:$0xff]
    %v5626 = vld [vmem:[#allocation14 + $0xea0] sm:$0xff]
    %v5627 = vld [vmem:[#allocation14 + $0xea8] sm:$0xff]
    %v5628 = vld [vmem:[#allocation14 + $0xeb0] sm:$0xff]
    %v5629 = vld [vmem:[#allocation14 + $0xeb8] sm:$0xff]
    %v5630 = vld [vmem:[#allocation14 + $0xec0] sm:$0xff]
    %v5631 = vld [vmem:[#allocation14 + $0xec8] sm:$0xff]
    %v5632 = vld [vmem:[#allocation14 + $0xed0] sm:$0xff]
    %v5633 = vld [vmem:[#allocation14 + $0xed8] sm:$0xff]
    %v5634 = vld [vmem:[#allocation14 + $0xee0] sm:$0xff]
    %v5635 = vld [vmem:[#allocation14 + $0xee8] sm:$0xff]
    %v5636 = vld [vmem:[#allocation14 + $0xef0] sm:$0xff]
    %v5637 = vld [vmem:[#allocation14 + $0xef8] sm:$0xff]
    %v5638 = vld [vmem:[#allocation14 + $0xf00] sm:$0xff]
    %v5639 = vld [vmem:[#allocation14 + $0xf08] sm:$0xff]
    %v5640 = vld [vmem:[#allocation14 + $0xf10] sm:$0xff]
    %v5641 = vld [vmem:[#allocation14 + $0xf18] sm:$0xff]
    %v5642 = vld [vmem:[#allocation14 + $0xf20] sm:$0xff]
    %v5643 = vld [vmem:[#allocation14 + $0xf28] sm:$0xff]
    %v5644 = vld [vmem:[#allocation14 + $0xf30] sm:$0xff]
    %v5645 = vld [vmem:[#allocation14 + $0xf38] sm:$0xff]
    %v5646 = vld [vmem:[#allocation14 + $0xf40] sm:$0xff]
    %v5647 = vld [vmem:[#allocation14 + $0xf48] sm:$0xff]
    %v5648 = vld [vmem:[#allocation14 + $0xf50] sm:$0xff]
    %v5649 = vld [vmem:[#allocation14 + $0xf58] sm:$0xff]
    %v5650 = vld [vmem:[#allocation14 + $0xf60] sm:$0xff]
    %v5651 = vld [vmem:[#allocation14 + $0xf68] sm:$0xff]
    %v5652 = vld [vmem:[#allocation14 + $0xf70] sm:$0xff]
    %v5653 = vld [vmem:[#allocation14 + $0xf78] sm:$0xff]
    %v5654 = vld [vmem:[#allocation14 + $0xf80] sm:$0xff]
    %v5655 = vld [vmem:[#allocation14 + $0xf88] sm:$0xff]
    %v5656 = vld [vmem:[#allocation14 + $0xf90] sm:$0xff]
    %v5657 = vld [vmem:[#allocation14 + $0xf98] sm:$0xff]
    %v5658 = vld [vmem:[#allocation14 + $0xfa0] sm:$0xff]
    %v5659 = vld [vmem:[#allocation14 + $0xfa8] sm:$0xff]
    %v5660 = vld [vmem:[#allocation14 + $0xfb0] sm:$0xff]
    %v5661 = vld [vmem:[#allocation14 + $0xfb8] sm:$0xff]
    %v5662 = vld [vmem:[#allocation14 + $0xfc0] sm:$0xff]
    %v5663 = vld [vmem:[#allocation14 + $0xfc8] sm:$0xff]
    %v5664 = vld [vmem:[#allocation14 + $0xfd0] sm:$0xff]
    %v5665 = vld [vmem:[#allocation14 + $0xfd8] sm:$0xff]
    %v5666 = vld [vmem:[#allocation14 + $0xfe0] sm:$0xff]
    %v5667 = vld [vmem:[#allocation14 + $0xfe8] sm:$0xff]
    %v5668 = vld [vmem:[#allocation14 + $0xff0] sm:$0xff]
    %v5669 = vld [vmem:[#allocation14 + $0xff8] sm:$0xff]
    %v5670 = vld [vmem:[#allocation14 + $0x1000] sm:$0xff]
    %v5671 = vld [vmem:[#allocation14 + $0x1008] sm:$0xff]
    %v5672 = vld [vmem:[#allocation14 + $0x1010] sm:$0xff]
    %v5673 = vld [vmem:[#allocation14 + $0x1018] sm:$0xff]
    %v5674 = vld [vmem:[#allocation14 + $0x1020] sm:$0xff]
    %v5675 = vld [vmem:[#allocation14 + $0x1028] sm:$0xff]
    %v5676 = vld [vmem:[#allocation14 + $0x1030] sm:$0xff]
    %v5677 = vld [vmem:[#allocation14 + $0x1038] sm:$0xff]
    %v5678 = vld [vmem:[#allocation14 + $0x1040] sm:$0xff]
    %v5679 = vld [vmem:[#allocation14 + $0x1048] sm:$0xff]
    %v5680 = vld [vmem:[#allocation14 + $0x1050] sm:$0xff]
    %v5681 = vld [vmem:[#allocation14 + $0x1058] sm:$0xff]
    %v5682 = vld [vmem:[#allocation14 + $0x1060] sm:$0xff]
    %v5683 = vld [vmem:[#allocation14 + $0x1068] sm:$0xff]
    %v5684 = vld [vmem:[#allocation14 + $0x1070] sm:$0xff]
    %v5685 = vld [vmem:[#allocation14 + $0x1078] sm:$0xff]
    %v5686 = vld [vmem:[#allocation14 + $0x1080] sm:$0xff]
    %v5687 = vld [vmem:[#allocation14 + $0x1088] sm:$0xff]
    %v5688 = vld [vmem:[#allocation14 + $0x1090] sm:$0xff]
    %v5689 = vld [vmem:[#allocation14 + $0x1098] sm:$0xff]
    %v5690 = vld [vmem:[#allocation14 + $0x10a0] sm:$0xff]
    %v5691 = vld [vmem:[#allocation14 + $0x10a8] sm:$0xff]
    %v5692 = vld [vmem:[#allocation14 + $0x10b0] sm:$0xff]
    %v5693 = vld [vmem:[#allocation14 + $0x10b8] sm:$0xff]
    %v5694 = vld [vmem:[#allocation14 + $0x10c0] sm:$0xff]
    %v5695 = vld [vmem:[#allocation14 + $0x10c8] sm:$0xff]
    %v5696 = vld [vmem:[#allocation14 + $0x10d0] sm:$0xff]
    %v5697 = vld [vmem:[#allocation14 + $0x10d8] sm:$0xff]
    %v5698 = vld [vmem:[#allocation14 + $0x10e0] sm:$0xff]
    %v5699 = vld [vmem:[#allocation14 + $0x10e8] sm:$0xff]
    %v5700 = vld [vmem:[#allocation14 + $0x10f0] sm:$0xff]
    %v5701 = vld [vmem:[#allocation14 + $0x10f8] sm:$0xff]
    %v5702 = vld [vmem:[#allocation14 + $0x1100] sm:$0xff]
    %v5703 = vld [vmem:[#allocation14 + $0x1108] sm:$0xff]
    %v5704 = vld [vmem:[#allocation14 + $0x1110] sm:$0xff]
    %v5705 = vld [vmem:[#allocation14 + $0x1118] sm:$0xff]
    %v5706 = vld [vmem:[#allocation14 + $0x1120] sm:$0xff]
    %v5707 = vld [vmem:[#allocation14 + $0x1128] sm:$0xff]
    %v5708 = vld [vmem:[#allocation14 + $0x1130] sm:$0xff]
    %v5709 = vld [vmem:[#allocation14 + $0x1138] sm:$0xff]
    %v5710 = vld [vmem:[#allocation14 + $0x1140] sm:$0xff]
    %v5711 = vld [vmem:[#allocation14 + $0x1148] sm:$0xff]
    %v5712 = vld [vmem:[#allocation14 + $0x1150] sm:$0xff]
    %v5713 = vld [vmem:[#allocation14 + $0x1158] sm:$0xff]
    %v5714 = vld [vmem:[#allocation14 + $0x1160] sm:$0xff]
    %v5715 = vld [vmem:[#allocation14 + $0x1168] sm:$0xff]
    %v5716 = vld [vmem:[#allocation14 + $0x1170] sm:$0xff]
    %v5717 = vld [vmem:[#allocation14 + $0x1178] sm:$0xff]
    %v5718 = vld [vmem:[#allocation14 + $0x1180] sm:$0xff]
    %v5719 = vld [vmem:[#allocation14 + $0x1188] sm:$0xff]
    %v5720 = vld [vmem:[#allocation14 + $0x1190] sm:$0xff]
    %v5721 = vld [vmem:[#allocation14 + $0x1198] sm:$0xff]
    %v5722 = vld [vmem:[#allocation14 + $0x11a0] sm:$0xff]
    %v5723 = vld [vmem:[#allocation14 + $0x11a8] sm:$0xff]
    %v5724 = vld [vmem:[#allocation14 + $0x11b0] sm:$0xff]
    %v5725 = vld [vmem:[#allocation14 + $0x11b8] sm:$0xff]
    %v5726 = vld [vmem:[#allocation14 + $0x11c0] sm:$0xff]
    %v5727 = vld [vmem:[#allocation14 + $0x11c8] sm:$0xff]
    %v5728 = vld [vmem:[#allocation14 + $0x11d0] sm:$0xff]
    %v5729 = vld [vmem:[#allocation14 + $0x11d8] sm:$0xff]
    %v5730 = vld [vmem:[#allocation14 + $0x11e0] sm:$0xff]
    %v5731 = vld [vmem:[#allocation14 + $0x11e8] sm:$0xff]
    %v5732 = vld [vmem:[#allocation14 + $0x11f0] sm:$0xff]
    %v5733 = vld [vmem:[#allocation14 + $0x11f8] sm:$0xff]
    %v5734 = vsel %vm1426, %v3513, 0.0
    %v5735 = vsel %vm1426, %v3515, 0.0
    %v5736 = vadd.f32 %v5734, %v5735
    %v5737 = vsel %vm1426, %v3726, 0.0
    %v5738 = vadd.f32 %v5736, %v5737
    %v5739 = vsel %vm1426, %v3728, 0.0
    %v5740 = vadd.f32 %v5738, %v5739
    %v5741 = vsel %vm1426, %v3939, 0.0
    %v5742 = vadd.f32 %v5740, %v5741
    %v5743 = vsel %vm1426, %v3941, 0.0
    %v5744 = vadd.f32 %v5742, %v5743
    %5745 = vadd.xlane.f32.xlu0 %v5744
    %v5746 = vpop.xlane.xlu0 %5745
    %v5747 = vld [vmem:[#allocation16] sm:$0x3f]
    %v5749 = vlaneseq
    %v5750 = vshrl.u32 %v5749, 7
    %v5751 = vsub.s32 0, %v5750
    %v5752 = vrot.slane %v5747, %v5751
    %v5753 = vlaneseq
    %v5754 = vshrl.u32 %v5753, 7
    %v5755 = vsub.s32 1, %v5754
    %v5756 = vrot.slane %v5747, %v5755
    %v5757 = vlaneseq
    %v5758 = vshrl.u32 %v5757, 7
    %v5759 = vsub.s32 2, %v5758
    %v5760 = vrot.slane %v5747, %v5759
    %v5761 = vlaneseq
    %v5762 = vshrl.u32 %v5761, 7
    %v5763 = vsub.s32 3, %v5762
    %v5764 = vrot.slane %v5747, %v5763
    %v5765 = vlaneseq
    %v5766 = vshrl.u32 %v5765, 7
    %v5767 = vsub.s32 4, %v5766
    %v5768 = vrot.slane %v5747, %v5767
    %v5769 = vlaneseq
    %v5770 = vshrl.u32 %v5769, 7
    %v5771 = vsub.s32 5, %v5770
    %v5772 = vrot.slane %v5747, %v5771
    %v5779 = vmul.f32 %v5746, %v5752
    %v5780 = vmul.f32 %v5746, %v5756
    %v5781 = vmul.f32 %v5746, %v5760
    %v5782 = vmul.f32 %v5746, %v5764
    %v5783 = vmul.f32 %v5746, %v5768
    %v5784 = vmul.f32 %v5746, %v5772
    %5785 = vmatprep.subr.mxu0 %v5249
    %5786 = vmatpush1.msra.mxu0 %v5248
    %5787 = vmatprep.subr.mxu0 %v5243
    %5788 = vmatpush1.msra.mxu0 %v5242
    %5789 = vmatprep.subr.mxu0 %v5237
    %5790 = vmatpush1.msra.mxu0 %v5236
    %5791 = vmatprep.subr.mxu0 %v5231
    %5792 = vmatpush1.msra.mxu0 %v5230
    %5793 = vmatprep.subr.mxu0 %v5225
    %5794 = vmatpush1.msra.mxu0 %v5224
    %5795 = vmatprep.subr.mxu0 %v5219
    %5796 = vmatpush1.msra.mxu0 %v5218
    %5797 = vmatprep.subr.mxu0 %v5213
    %5798 = vmatpush1.msra.mxu0 %v5212
    %5799 = vmatprep.subr.mxu0 %v5207
    %5800 = vmatpush1.msra.mxu0 %v5206
    %5801 = vmatprep.subr.mxu0 %v5201
    %5802 = vmatpush1.msra.mxu0 %v5200
    %5803 = vmatprep.subr.mxu0 %v5195
    %5804 = vmatpush1.msra.mxu0 %v5194
    %5805 = vmatprep.subr.mxu0 %v5189
    %5806 = vmatpush1.msra.mxu0 %v5188
    %5807 = vmatprep.subr.mxu0 %v5183
    %5808 = vmatpush1.msra.mxu0 %v5182
    %5809 = vmatprep.subr.mxu0 %v5177
    %5810 = vmatpush1.msra.mxu0 %v5176
    %5811 = vmatprep.subr.mxu0 %v5171
    %5812 = vmatpush1.msra.mxu0 %v5170
    %5813 = vmatprep.subr.mxu0 %v5165
    %5814 = vmatpush1.msra.mxu0 %v5164
    %5815 = vmatprep.subr.mxu0 %v5159
    %5816 = vmatpush1.msra.mxu0 %v5158
    %5817 = vmatprep.subr.mxu0 %v5345
    %5818 = vmatpush2.msra.mxu0 %v5344
    %5819 = vmatprep.subr.mxu0 %v5339
    %5820 = vmatpush2.msra.mxu0 %v5338
    %5821 = vmatprep.subr.mxu0 %v5333
    %5822 = vmatpush2.msra.mxu0 %v5332
    %5823 = vmatprep.subr.mxu0 %v5327
    %5824 = vmatpush2.msra.mxu0 %v5326
    %5825 = vmatprep.subr.mxu0 %v5321
    %5826 = vmatpush2.msra.mxu0 %v5320
    %5827 = vmatprep.subr.mxu0 %v5315
    %5828 = vmatpush2.msra.mxu0 %v5314
    %5829 = vmatprep.subr.mxu0 %v5309
    %5830 = vmatpush2.msra.mxu0 %v5308
    %5831 = vmatprep.subr.mxu0 %v5303
    %5832 = vmatpush2.msra.mxu0 %v5302
    %5833 = vmatprep.subr.mxu0 %v5297
    %5834 = vmatpush2.msra.mxu0 %v5296
    %5835 = vmatprep.subr.mxu0 %v5291
    %5836 = vmatpush2.msra.mxu0 %v5290
    %5837 = vmatprep.subr.mxu0 %v5285
    %5838 = vmatpush2.msra.mxu0 %v5284
    %5839 = vmatprep.subr.mxu0 %v5279
    %5840 = vmatpush2.msra.mxu0 %v5278
    %5841 = vmatprep.subr.mxu0 %v5273
    %5842 = vmatpush2.msra.mxu0 %v5272
    %5843 = vmatprep.subr.mxu0 %v5267
    %5844 = vmatpush2.msra.mxu0 %v5266
    %5845 = vmatprep.subr.mxu0 %v5261
    %5846 = vmatpush2.msra.mxu0 %v5260
    %5847 = vmatprep.subr.mxu0 %v5255
    %5848 = vmatpush2.msra.mxu0 %v5254
    %5849 = vmatprep.mubr.f32.mxu0 %v4730
    %5850 = vmatmul.mubr.f32.gmra.mxu0 %v4728
    %v5851 = vpop.f32.mrf.mxu0
    %v5852 = vadd.f32 %v5779, %v5851
    %v5853 = vpop.f32.mrf.mxu0
    %v5854 = vadd.f32 %v5780, %v5853
    %5855 = vdwg.mxu0
    %5856 = vmatprep.subr.mxu0 %v5441
    %5857 = vmatpush1.msra.mxu0 %v5440
    %5858 = vmatprep.subr.mxu0 %v5435
    %5859 = vmatpush1.msra.mxu0 %v5434
    %5860 = vmatprep.subr.mxu0 %v5429
    %5861 = vmatpush1.msra.mxu0 %v5428
    %5862 = vmatprep.subr.mxu0 %v5423
    %5863 = vmatpush1.msra.mxu0 %v5422
    %5864 = vmatprep.subr.mxu0 %v5417
    %5865 = vmatpush1.msra.mxu0 %v5416
    %5866 = vmatprep.subr.mxu0 %v5411
    %5867 = vmatpush1.msra.mxu0 %v5410
    %5868 = vmatprep.subr.mxu0 %v5405
    %5869 = vmatpush1.msra.mxu0 %v5404
    %5870 = vmatprep.subr.mxu0 %v5399
    %5871 = vmatpush1.msra.mxu0 %v5398
    %5872 = vmatprep.subr.mxu0 %v5393
    %5873 = vmatpush1.msra.mxu0 %v5392
    %5874 = vmatprep.subr.mxu0 %v5387
    %5875 = vmatpush1.msra.mxu0 %v5386
    %5876 = vmatprep.subr.mxu0 %v5381
    %5877 = vmatpush1.msra.mxu0 %v5380
    %5878 = vmatprep.subr.mxu0 %v5375
    %5879 = vmatpush1.msra.mxu0 %v5374
    %5880 = vmatprep.subr.mxu0 %v5369
    %5881 = vmatpush1.msra.mxu0 %v5368
    %5882 = vmatprep.subr.mxu0 %v5363
    %5883 = vmatpush1.msra.mxu0 %v5362
    %5884 = vmatprep.subr.mxu0 %v5357
    %5885 = vmatpush1.msra.mxu0 %v5356
    %5886 = vmatprep.subr.mxu0 %v5351
    %5887 = vmatpush1.msra.mxu0 %v5350
    %5888 = vmatprep.subr.mxu0 %v5537
    %5889 = vmatpush2.msra.mxu0 %v5536
    %5890 = vmatprep.subr.mxu0 %v5531
    %5891 = vmatpush2.msra.mxu0 %v5530
    %5892 = vmatprep.subr.mxu0 %v5525
    %5893 = vmatpush2.msra.mxu0 %v5524
    %5894 = vmatprep.subr.mxu0 %v5519
    %5895 = vmatpush2.msra.mxu0 %v5518
    %5896 = vmatprep.subr.mxu0 %v5513
    %5897 = vmatpush2.msra.mxu0 %v5512
    %5898 = vmatprep.subr.mxu0 %v5507
    %5899 = vmatpush2.msra.mxu0 %v5506
    %5900 = vmatprep.subr.mxu0 %v5501
    %5901 = vmatpush2.msra.mxu0 %v5500
    %5902 = vmatprep.subr.mxu0 %v5495
    %5903 = vmatpush2.msra.mxu0 %v5494
    %5904 = vmatprep.subr.mxu0 %v5489
    %5905 = vmatpush2.msra.mxu0 %v5488
    %5906 = vmatprep.subr.mxu0 %v5483
    %5907 = vmatpush2.msra.mxu0 %v5482
    %5908 = vmatprep.subr.mxu0 %v5477
    %5909 = vmatpush2.msra.mxu0 %v5476
    %5910 = vmatprep.subr.mxu0 %v5471
    %5911 = vmatpush2.msra.mxu0 %v5470
    %5912 = vmatprep.subr.mxu0 %v5465
    %5913 = vmatpush2.msra.mxu0 %v5464
    %5914 = vmatprep.subr.mxu0 %v5459
    %5915 = vmatpush2.msra.mxu0 %v5458
    %5916 = vmatprep.subr.mxu0 %v5453
    %5917 = vmatpush2.msra.mxu0 %v5452
    %5918 = vmatprep.subr.mxu0 %v5447
    %5919 = vmatpush2.msra.mxu0 %v5446
    %5920 = vmatprep.mubr.f32.mxu0 %v4943
    %5921 = vmatmul.mubr.f32.gmra.mxu0 %v4941
    %v5922 = vpop.f32.mrf.mxu0
    %v5923 = vadd.f32 %v5852, %v5922
    %v5924 = vpop.f32.mrf.mxu0
    %v5925 = vadd.f32 %v5854, %v5924
    %5926 = vdwg.mxu0
    %5927 = vmatprep.subr.mxu0 %v5633
    %5928 = vmatpush1.msra.mxu0 %v5632
    %5929 = vmatprep.subr.mxu0 %v5627
    %5930 = vmatpush1.msra.mxu0 %v5626
    %5931 = vmatprep.subr.mxu0 %v5621
    %5932 = vmatpush1.msra.mxu0 %v5620
    %5933 = vmatprep.subr.mxu0 %v5615
    %5934 = vmatpush1.msra.mxu0 %v5614
    %5935 = vmatprep.subr.mxu0 %v5609
    %5936 = vmatpush1.msra.mxu0 %v5608
    %5937 = vmatprep.subr.mxu0 %v5603
    %5938 = vmatpush1.msra.mxu0 %v5602
    %5939 = vmatprep.subr.mxu0 %v5597
    %5940 = vmatpush1.msra.mxu0 %v5596
    %5941 = vmatprep.subr.mxu0 %v5591
    %5942 = vmatpush1.msra.mxu0 %v5590
    %5943 = vmatprep.subr.mxu0 %v5585
    %5944 = vmatpush1.msra.mxu0 %v5584
    %5945 = vmatprep.subr.mxu0 %v5579
    %5946 = vmatpush1.msra.mxu0 %v5578
    %5947 = vmatprep.subr.mxu0 %v5573
    %5948 = vmatpush1.msra.mxu0 %v5572
    %5949 = vmatprep.subr.mxu0 %v5567
    %5950 = vmatpush1.msra.mxu0 %v5566
    %5951 = vmatprep.subr.mxu0 %v5561
    %5952 = vmatpush1.msra.mxu0 %v5560
    %5953 = vmatprep.subr.mxu0 %v5555
    %5954 = vmatpush1.msra.mxu0 %v5554
    %5955 = vmatprep.subr.mxu0 %v5549
    %5956 = vmatpush1.msra.mxu0 %v5548
    %5957 = vmatprep.subr.mxu0 %v5543
    %5958 = vmatpush1.msra.mxu0 %v5542
    %5959 = vmatprep.subr.mxu0 %v5729
    %5960 = vmatpush2.msra.mxu0 %v5728
    %5961 = vmatprep.subr.mxu0 %v5723
    %5962 = vmatpush2.msra.mxu0 %v5722
    %5963 = vmatprep.subr.mxu0 %v5717
    %5964 = vmatpush2.msra.mxu0 %v5716
    %5965 = vmatprep.subr.mxu0 %v5711
    %5966 = vmatpush2.msra.mxu0 %v5710
    %5967 = vmatprep.subr.mxu0 %v5705
    %5968 = vmatpush2.msra.mxu0 %v5704
    %5969 = vmatprep.subr.mxu0 %v5699
    %5970 = vmatpush2.msra.mxu0 %v5698
    %5971 = vmatprep.subr.mxu0 %v5693
    %5972 = vmatpush2.msra.mxu0 %v5692
    %5973 = vmatprep.subr.mxu0 %v5687
    %5974 = vmatpush2.msra.mxu0 %v5686
    %5975 = vmatprep.subr.mxu0 %v5681
    %5976 = vmatpush2.msra.mxu0 %v5680
    %5977 = vmatprep.subr.mxu0 %v5675
    %5978 = vmatpush2.msra.mxu0 %v5674
    %5979 = vmatprep.subr.mxu0 %v5669
    %5980 = vmatpush2.msra.mxu0 %v5668
    %5981 = vmatprep.subr.mxu0 %v5663
    %5982 = vmatpush2.msra.mxu0 %v5662
    %5983 = vmatprep.subr.mxu0 %v5657
    %5984 = vmatpush2.msra.mxu0 %v5656
    %5985 = vmatprep.subr.mxu0 %v5651
    %5986 = vmatpush2.msra.mxu0 %v5650
    %5987 = vmatprep.subr.mxu0 %v5645
    %5988 = vmatpush2.msra.mxu0 %v5644
    %5989 = vmatprep.subr.mxu0 %v5639
    %5990 = vmatpush2.msra.mxu0 %v5638
    %5991 = vmatprep.mubr.f32.mxu0 %v5156
    %5992 = vmatmul.mubr.f32.gmra.mxu0 %v5154
    %v5993 = vpop.f32.mrf.mxu0
    %v5994 = vadd.f32 %v5923, %v5993
    %v5995 = vpop.f32.mrf.mxu0
    %v5996 = vadd.f32 %v5925, %v5995
    %5997 = vdwg.mxu0
    %5998 = vmatprep.subr.mxu0 %v5251
    %5999 = vmatpush1.msra.mxu0 %v5250
    %6000 = vmatprep.subr.mxu0 %v5245
    %6001 = vmatpush1.msra.mxu0 %v5244
    %6002 = vmatprep.subr.mxu0 %v5239
    %6003 = vmatpush1.msra.mxu0 %v5238
    %6004 = vmatprep.subr.mxu0 %v5233
    %6005 = vmatpush1.msra.mxu0 %v5232
    %6006 = vmatprep.subr.mxu0 %v5227
    %6007 = vmatpush1.msra.mxu0 %v5226
    %6008 = vmatprep.subr.mxu0 %v5221
    %6009 = vmatpush1.msra.mxu0 %v5220
    %6010 = vmatprep.subr.mxu0 %v5215
    %6011 = vmatpush1.msra.mxu0 %v5214
    %6012 = vmatprep.subr.mxu0 %v5209
    %6013 = vmatpush1.msra.mxu0 %v5208
    %6014 = vmatprep.subr.mxu0 %v5203
    %6015 = vmatpush1.msra.mxu0 %v5202
    %6016 = vmatprep.subr.mxu0 %v5197
    %6017 = vmatpush1.msra.mxu0 %v5196
    %6018 = vmatprep.subr.mxu0 %v5191
    %6019 = vmatpush1.msra.mxu0 %v5190
    %6020 = vmatprep.subr.mxu0 %v5185
    %6021 = vmatpush1.msra.mxu0 %v5184
    %6022 = vmatprep.subr.mxu0 %v5179
    %6023 = vmatpush1.msra.mxu0 %v5178
    %6024 = vmatprep.subr.mxu0 %v5173
    %6025 = vmatpush1.msra.mxu0 %v5172
    %6026 = vmatprep.subr.mxu0 %v5167
    %6027 = vmatpush1.msra.mxu0 %v5166
    %6028 = vmatprep.subr.mxu0 %v5161
    %6029 = vmatpush1.msra.mxu0 %v5160
    %6030 = vmatprep.subr.mxu0 %v5347
    %6031 = vmatpush2.msra.mxu0 %v5346
    %6032 = vmatprep.subr.mxu0 %v5341
    %6033 = vmatpush2.msra.mxu0 %v5340
    %6034 = vmatprep.subr.mxu0 %v5335
    %6035 = vmatpush2.msra.mxu0 %v5334
    %6036 = vmatprep.subr.mxu0 %v5329
    %6037 = vmatpush2.msra.mxu0 %v5328
    %6038 = vmatprep.subr.mxu0 %v5323
    %6039 = vmatpush2.msra.mxu0 %v5322
    %6040 = vmatprep.subr.mxu0 %v5317
    %6041 = vmatpush2.msra.mxu0 %v5316
    %6042 = vmatprep.subr.mxu0 %v5311
    %6043 = vmatpush2.msra.mxu0 %v5310
    %6044 = vmatprep.subr.mxu0 %v5305
    %6045 = vmatpush2.msra.mxu0 %v5304
    %6046 = vmatprep.subr.mxu0 %v5299
    %6047 = vmatpush2.msra.mxu0 %v5298
    %6048 = vmatprep.subr.mxu0 %v5293
    %6049 = vmatpush2.msra.mxu0 %v5292
    %6050 = vmatprep.subr.mxu0 %v5287
    %6051 = vmatpush2.msra.mxu0 %v5286
    %6052 = vmatprep.subr.mxu0 %v5281
    %6053 = vmatpush2.msra.mxu0 %v5280
    %6054 = vmatprep.subr.mxu0 %v5275
    %6055 = vmatpush2.msra.mxu0 %v5274
    %6056 = vmatprep.subr.mxu0 %v5269
    %6057 = vmatpush2.msra.mxu0 %v5268
    %6058 = vmatprep.subr.mxu0 %v5263
    %6059 = vmatpush2.msra.mxu0 %v5262
    %6060 = vmatprep.subr.mxu0 %v5257
    %6061 = vmatpush2.msra.mxu0 %v5256
    %6062 = vmatprep.mubr.f32.mxu0 %v4730
    %6063 = vmatmul.mubr.f32.gmra.mxu0 %v4728
    %v6064 = vpop.f32.mrf.mxu0
    %v6065 = vadd.f32 %v5781, %v6064
    %v6066 = vpop.f32.mrf.mxu0
    %v6067 = vadd.f32 %v5782, %v6066
    %6068 = vdwg.mxu0
    %6069 = vmatprep.subr.mxu0 %v5443
    %6070 = vmatpush1.msra.mxu0 %v5442
    %6071 = vmatprep.subr.mxu0 %v5437
    %6072 = vmatpush1.msra.mxu0 %v5436
    %6073 = vmatprep.subr.mxu0 %v5431
    %6074 = vmatpush1.msra.mxu0 %v5430
    %6075 = vmatprep.subr.mxu0 %v5425
    %6076 = vmatpush1.msra.mxu0 %v5424
    %6077 = vmatprep.subr.mxu0 %v5419
    %6078 = vmatpush1.msra.mxu0 %v5418
    %6079 = vmatprep.subr.mxu0 %v5413
    %6080 = vmatpush1.msra.mxu0 %v5412
    %6081 = vmatprep.subr.mxu0 %v5407
    %6082 = vmatpush1.msra.mxu0 %v5406
    %6083 = vmatprep.subr.mxu0 %v5401
    %6084 = vmatpush1.msra.mxu0 %v5400
    %6085 = vmatprep.subr.mxu0 %v5395
    %6086 = vmatpush1.msra.mxu0 %v5394
    %6087 = vmatprep.subr.mxu0 %v5389
    %6088 = vmatpush1.msra.mxu0 %v5388
    %6089 = vmatprep.subr.mxu0 %v5383
    %6090 = vmatpush1.msra.mxu0 %v5382
    %6091 = vmatprep.subr.mxu0 %v5377
    %6092 = vmatpush1.msra.mxu0 %v5376
    %6093 = vmatprep.subr.mxu0 %v5371
    %6094 = vmatpush1.msra.mxu0 %v5370
    %6095 = vmatprep.subr.mxu0 %v5365
    %6096 = vmatpush1.msra.mxu0 %v5364
    %6097 = vmatprep.subr.mxu0 %v5359
    %6098 = vmatpush1.msra.mxu0 %v5358
    %6099 = vmatprep.subr.mxu0 %v5353
    %6100 = vmatpush1.msra.mxu0 %v5352
    %6101 = vmatprep.subr.mxu0 %v5539
    %6102 = vmatpush2.msra.mxu0 %v5538
    %6103 = vmatprep.subr.mxu0 %v5533
    %6104 = vmatpush2.msra.mxu0 %v5532
    %6105 = vmatprep.subr.mxu0 %v5527
    %6106 = vmatpush2.msra.mxu0 %v5526
    %6107 = vmatprep.subr.mxu0 %v5521
    %6108 = vmatpush2.msra.mxu0 %v5520
    %6109 = vmatprep.subr.mxu0 %v5515
    %6110 = vmatpush2.msra.mxu0 %v5514
    %6111 = vmatprep.subr.mxu0 %v5509
    %6112 = vmatpush2.msra.mxu0 %v5508
    %6113 = vmatprep.subr.mxu0 %v5503
    %6114 = vmatpush2.msra.mxu0 %v5502
    %6115 = vmatprep.subr.mxu0 %v5497
    %6116 = vmatpush2.msra.mxu0 %v5496
    %6117 = vmatprep.subr.mxu0 %v5491
    %6118 = vmatpush2.msra.mxu0 %v5490
    %6119 = vmatprep.subr.mxu0 %v5485
    %6120 = vmatpush2.msra.mxu0 %v5484
    %6121 = vmatprep.subr.mxu0 %v5479
    %6122 = vmatpush2.msra.mxu0 %v5478
    %6123 = vmatprep.subr.mxu0 %v5473
    %6124 = vmatpush2.msra.mxu0 %v5472
    %6125 = vmatprep.subr.mxu0 %v5467
    %6126 = vmatpush2.msra.mxu0 %v5466
    %6127 = vmatprep.subr.mxu0 %v5461
    %6128 = vmatpush2.msra.mxu0 %v5460
    %6129 = vmatprep.subr.mxu0 %v5455
    %6130 = vmatpush2.msra.mxu0 %v5454
    %6131 = vmatprep.subr.mxu0 %v5449
    %6132 = vmatpush2.msra.mxu0 %v5448
    %6133 = vmatprep.mubr.f32.mxu0 %v4943
    %6134 = vmatmul.mubr.f32.gmra.mxu0 %v4941
    %v6135 = vpop.f32.mrf.mxu0
    %v6136 = vadd.f32 %v6065, %v6135
    %v6137 = vpop.f32.mrf.mxu0
    %v6138 = vadd.f32 %v6067, %v6137
    %6139 = vdwg.mxu0
    %6140 = vmatprep.subr.mxu0 %v5635
    %6141 = vmatpush1.msra.mxu0 %v5634
    %6142 = vmatprep.subr.mxu0 %v5629
    %6143 = vmatpush1.msra.mxu0 %v5628
    %6144 = vmatprep.subr.mxu0 %v5623
    %6145 = vmatpush1.msra.mxu0 %v5622
    %6146 = vmatprep.subr.mxu0 %v5617
    %6147 = vmatpush1.msra.mxu0 %v5616
    %6148 = vmatprep.subr.mxu0 %v5611
    %6149 = vmatpush1.msra.mxu0 %v5610
    %6150 = vmatprep.subr.mxu0 %v5605
    %6151 = vmatpush1.msra.mxu0 %v5604
    %6152 = vmatprep.subr.mxu0 %v5599
    %6153 = vmatpush1.msra.mxu0 %v5598
    %6154 = vmatprep.subr.mxu0 %v5593
    %6155 = vmatpush1.msra.mxu0 %v5592
    %6156 = vmatprep.subr.mxu0 %v5587
    %6157 = vmatpush1.msra.mxu0 %v5586
    %6158 = vmatprep.subr.mxu0 %v5581
    %6159 = vmatpush1.msra.mxu0 %v5580
    %6160 = vmatprep.subr.mxu0 %v5575
    %6161 = vmatpush1.msra.mxu0 %v5574
    %6162 = vmatprep.subr.mxu0 %v5569
    %6163 = vmatpush1.msra.mxu0 %v5568
    %6164 = vmatprep.subr.mxu0 %v5563
    %6165 = vmatpush1.msra.mxu0 %v5562
    %6166 = vmatprep.subr.mxu0 %v5557
    %6167 = vmatpush1.msra.mxu0 %v5556
    %6168 = vmatprep.subr.mxu0 %v5551
    %6169 = vmatpush1.msra.mxu0 %v5550
    %6170 = vmatprep.subr.mxu0 %v5545
    %6171 = vmatpush1.msra.mxu0 %v5544
    %6172 = vmatprep.subr.mxu0 %v5731
    %6173 = vmatpush2.msra.mxu0 %v5730
    %6174 = vmatprep.subr.mxu0 %v5725
    %6175 = vmatpush2.msra.mxu0 %v5724
    %6176 = vmatprep.subr.mxu0 %v5719
    %6177 = vmatpush2.msra.mxu0 %v5718
    %6178 = vmatprep.subr.mxu0 %v5713
    %6179 = vmatpush2.msra.mxu0 %v5712
    %6180 = vmatprep.subr.mxu0 %v5707
    %6181 = vmatpush2.msra.mxu0 %v5706
    %6182 = vmatprep.subr.mxu0 %v5701
    %6183 = vmatpush2.msra.mxu0 %v5700
    %6184 = vmatprep.subr.mxu0 %v5695
    %6185 = vmatpush2.msra.mxu0 %v5694
    %6186 = vmatprep.subr.mxu0 %v5689
    %6187 = vmatpush2.msra.mxu0 %v5688
    %6188 = vmatprep.subr.mxu0 %v5683
    %6189 = vmatpush2.msra.mxu0 %v5682
    %6190 = vmatprep.subr.mxu0 %v5677
    %6191 = vmatpush2.msra.mxu0 %v5676
    %6192 = vmatprep.subr.mxu0 %v5671
    %6193 = vmatpush2.msra.mxu0 %v5670
    %6194 = vmatprep.subr.mxu0 %v5665
    %6195 = vmatpush2.msra.mxu0 %v5664
    %6196 = vmatprep.subr.mxu0 %v5659
    %6197 = vmatpush2.msra.mxu0 %v5658
    %6198 = vmatprep.subr.mxu0 %v5653
    %6199 = vmatpush2.msra.mxu0 %v5652
    %6200 = vmatprep.subr.mxu0 %v5647
    %6201 = vmatpush2.msra.mxu0 %v5646
    %6202 = vmatprep.subr.mxu0 %v5641
    %6203 = vmatpush2.msra.mxu0 %v5640
    %6204 = vmatprep.mubr.f32.mxu0 %v5156
    %6205 = vmatmul.mubr.f32.gmra.mxu0 %v5154
    %v6206 = vpop.f32.mrf.mxu0
    %v6207 = vadd.f32 %v6136, %v6206
    %v6208 = vpop.f32.mrf.mxu0
    %v6209 = vadd.f32 %v6138, %v6208
    %6210 = vdwg.mxu0
    %6211 = vmatprep.subr.mxu0 %v5253
    %6212 = vmatpush1.msra.mxu0 %v5252
    %6213 = vmatprep.subr.mxu0 %v5247
    %6214 = vmatpush1.msra.mxu0 %v5246
    %6215 = vmatprep.subr.mxu0 %v5241
    %6216 = vmatpush1.msra.mxu0 %v5240
    %6217 = vmatprep.subr.mxu0 %v5235
    %6218 = vmatpush1.msra.mxu0 %v5234
    %6219 = vmatprep.subr.mxu0 %v5229
    %6220 = vmatpush1.msra.mxu0 %v5228
    %6221 = vmatprep.subr.mxu0 %v5223
    %6222 = vmatpush1.msra.mxu0 %v5222
    %6223 = vmatprep.subr.mxu0 %v5217
    %6224 = vmatpush1.msra.mxu0 %v5216
    %6225 = vmatprep.subr.mxu0 %v5211
    %6226 = vmatpush1.msra.mxu0 %v5210
    %6227 = vmatprep.subr.mxu0 %v5205
    %6228 = vmatpush1.msra.mxu0 %v5204
    %6229 = vmatprep.subr.mxu0 %v5199
    %6230 = vmatpush1.msra.mxu0 %v5198
    %6231 = vmatprep.subr.mxu0 %v5193
    %6232 = vmatpush1.msra.mxu0 %v5192
    %6233 = vmatprep.subr.mxu0 %v5187
    %6234 = vmatpush1.msra.mxu0 %v5186
    %6235 = vmatprep.subr.mxu0 %v5181
    %6236 = vmatpush1.msra.mxu0 %v5180
    %6237 = vmatprep.subr.mxu0 %v5175
    %6238 = vmatpush1.msra.mxu0 %v5174
    %6239 = vmatprep.subr.mxu0 %v5169
    %6240 = vmatpush1.msra.mxu0 %v5168
    %6241 = vmatprep.subr.mxu0 %v5163
    %6242 = vmatpush1.msra.mxu0 %v5162
    %6243 = vmatprep.subr.mxu0 %v5349
    %6244 = vmatpush2.msra.mxu0 %v5348
    %6245 = vmatprep.subr.mxu0 %v5343
    %6246 = vmatpush2.msra.mxu0 %v5342
    %6247 = vmatprep.subr.mxu0 %v5337
    %6248 = vmatpush2.msra.mxu0 %v5336
    %6249 = vmatprep.subr.mxu0 %v5331
    %6250 = vmatpush2.msra.mxu0 %v5330
    %6251 = vmatprep.subr.mxu0 %v5325
    %6252 = vmatpush2.msra.mxu0 %v5324
    %6253 = vmatprep.subr.mxu0 %v5319
    %6254 = vmatpush2.msra.mxu0 %v5318
    %6255 = vmatprep.subr.mxu0 %v5313
    %6256 = vmatpush2.msra.mxu0 %v5312
    %6257 = vmatprep.subr.mxu0 %v5307
    %6258 = vmatpush2.msra.mxu0 %v5306
    %6259 = vmatprep.subr.mxu0 %v5301
    %6260 = vmatpush2.msra.mxu0 %v5300
    %6261 = vmatprep.subr.mxu0 %v5295
    %6262 = vmatpush2.msra.mxu0 %v5294
    %6263 = vmatprep.subr.mxu0 %v5289
    %6264 = vmatpush2.msra.mxu0 %v5288
    %6265 = vmatprep.subr.mxu0 %v5283
    %6266 = vmatpush2.msra.mxu0 %v5282
    %6267 = vmatprep.subr.mxu0 %v5277
    %6268 = vmatpush2.msra.mxu0 %v5276
    %6269 = vmatprep.subr.mxu0 %v5271
    %6270 = vmatpush2.msra.mxu0 %v5270
    %6271 = vmatprep.subr.mxu0 %v5265
    %6272 = vmatpush2.msra.mxu0 %v5264
    %6273 = vmatprep.subr.mxu0 %v5259
    %6274 = vmatpush2.msra.mxu0 %v5258
    %6275 = vmatprep.mubr.f32.mxu0 %v4730
    %6276 = vmatmul.mubr.f32.gmra.mxu0 %v4728
    %v6277 = vpop.f32.mrf.mxu0
    %v6278 = vadd.f32 %v5783, %v6277
    %v6279 = vpop.f32.mrf.mxu0
    %v6280 = vadd.f32 %v5784, %v6279
    %6281 = vdwg.mxu0
    %6282 = vmatprep.subr.mxu0 %v5445
    %6283 = vmatpush1.msra.mxu0 %v5444
    %6284 = vmatprep.subr.mxu0 %v5439
    %6285 = vmatpush1.msra.mxu0 %v5438
    %6286 = vmatprep.subr.mxu0 %v5433
    %6287 = vmatpush1.msra.mxu0 %v5432
    %6288 = vmatprep.subr.mxu0 %v5427
    %6289 = vmatpush1.msra.mxu0 %v5426
    %6290 = vmatprep.subr.mxu0 %v5421
    %6291 = vmatpush1.msra.mxu0 %v5420
    %6292 = vmatprep.subr.mxu0 %v5415
    %6293 = vmatpush1.msra.mxu0 %v5414
    %6294 = vmatprep.subr.mxu0 %v5409
    %6295 = vmatpush1.msra.mxu0 %v5408
    %6296 = vmatprep.subr.mxu0 %v5403
    %6297 = vmatpush1.msra.mxu0 %v5402
    %6298 = vmatprep.subr.mxu0 %v5397
    %6299 = vmatpush1.msra.mxu0 %v5396
    %6300 = vmatprep.subr.mxu0 %v5391
    %6301 = vmatpush1.msra.mxu0 %v5390
    %6302 = vmatprep.subr.mxu0 %v5385
    %6303 = vmatpush1.msra.mxu0 %v5384
    %6304 = vmatprep.subr.mxu0 %v5379
    %6305 = vmatpush1.msra.mxu0 %v5378
    %6306 = vmatprep.subr.mxu0 %v5373
    %6307 = vmatpush1.msra.mxu0 %v5372
    %6308 = vmatprep.subr.mxu0 %v5367
    %6309 = vmatpush1.msra.mxu0 %v5366
    %6310 = vmatprep.subr.mxu0 %v5361
    %6311 = vmatpush1.msra.mxu0 %v5360
    %6312 = vmatprep.subr.mxu0 %v5355
    %6313 = vmatpush1.msra.mxu0 %v5354
    %6314 = vmatprep.subr.mxu0 %v5541
    %6315 = vmatpush2.msra.mxu0 %v5540
    %6316 = vmatprep.subr.mxu0 %v5535
    %6317 = vmatpush2.msra.mxu0 %v5534
    %6318 = vmatprep.subr.mxu0 %v5529
    %6319 = vmatpush2.msra.mxu0 %v5528
    %6320 = vmatprep.subr.mxu0 %v5523
    %6321 = vmatpush2.msra.mxu0 %v5522
    %6322 = vmatprep.subr.mxu0 %v5517
    %6323 = vmatpush2.msra.mxu0 %v5516
    %6324 = vmatprep.subr.mxu0 %v5511
    %6325 = vmatpush2.msra.mxu0 %v5510
    %6326 = vmatprep.subr.mxu0 %v5505
    %6327 = vmatpush2.msra.mxu0 %v5504
    %6328 = vmatprep.subr.mxu0 %v5499
    %6329 = vmatpush2.msra.mxu0 %v5498
    %6330 = vmatprep.subr.mxu0 %v5493
    %6331 = vmatpush2.msra.mxu0 %v5492
    %6332 = vmatprep.subr.mxu0 %v5487
    %6333 = vmatpush2.msra.mxu0 %v5486
    %6334 = vmatprep.subr.mxu0 %v5481
    %6335 = vmatpush2.msra.mxu0 %v5480
    %6336 = vmatprep.subr.mxu0 %v5475
    %6337 = vmatpush2.msra.mxu0 %v5474
    %6338 = vmatprep.subr.mxu0 %v5469
    %6339 = vmatpush2.msra.mxu0 %v5468
    %6340 = vmatprep.subr.mxu0 %v5463
    %6341 = vmatpush2.msra.mxu0 %v5462
    %6342 = vmatprep.subr.mxu0 %v5457
    %6343 = vmatpush2.msra.mxu0 %v5456
    %6344 = vmatprep.subr.mxu0 %v5451
    %6345 = vmatpush2.msra.mxu0 %v5450
    %6346 = vmatprep.mubr.f32.mxu0 %v4943
    %6347 = vmatmul.mubr.f32.gmra.mxu0 %v4941
    %v6348 = vpop.f32.mrf.mxu0
    %v6349 = vadd.f32 %v6278, %v6348
    %v6350 = vpop.f32.mrf.mxu0
    %v6351 = vadd.f32 %v6280, %v6350
    %6352 = vdwg.mxu0
    %6353 = vmatprep.subr.mxu0 %v5637
    %6354 = vmatpush1.msra.mxu0 %v5636
    %6355 = vmatprep.subr.mxu0 %v5631
    %6356 = vmatpush1.msra.mxu0 %v5630
    %6357 = vmatprep.subr.mxu0 %v5625
    %6358 = vmatpush1.msra.mxu0 %v5624
    %6359 = vmatprep.subr.mxu0 %v5619
    %6360 = vmatpush1.msra.mxu0 %v5618
    %6361 = vmatprep.subr.mxu0 %v5613
    %6362 = vmatpush1.msra.mxu0 %v5612
    %6363 = vmatprep.subr.mxu0 %v5607
    %6364 = vmatpush1.msra.mxu0 %v5606
    %6365 = vmatprep.subr.mxu0 %v5601
    %6366 = vmatpush1.msra.mxu0 %v5600
    %6367 = vmatprep.subr.mxu0 %v5595
    %6368 = vmatpush1.msra.mxu0 %v5594
    %6369 = vmatprep.subr.mxu0 %v5589
    %6370 = vmatpush1.msra.mxu0 %v5588
    %6371 = vmatprep.subr.mxu0 %v5583
    %6372 = vmatpush1.msra.mxu0 %v5582
    %6373 = vmatprep.subr.mxu0 %v5577
    %6374 = vmatpush1.msra.mxu0 %v5576
    %6375 = vmatprep.subr.mxu0 %v5571
    %6376 = vmatpush1.msra.mxu0 %v5570
    %6377 = vmatprep.subr.mxu0 %v5565
    %6378 = vmatpush1.msra.mxu0 %v5564
    %6379 = vmatprep.subr.mxu0 %v5559
    %6380 = vmatpush1.msra.mxu0 %v5558
    %6381 = vmatprep.subr.mxu0 %v5553
    %6382 = vmatpush1.msra.mxu0 %v5552
    %6383 = vmatprep.subr.mxu0 %v5547
    %6384 = vmatpush1.msra.mxu0 %v5546
    %6385 = vmatprep.subr.mxu0 %v5733
    %6386 = vmatpush2.msra.mxu0 %v5732
    %6387 = vmatprep.subr.mxu0 %v5727
    %6388 = vmatpush2.msra.mxu0 %v5726
    %6389 = vmatprep.subr.mxu0 %v5721
    %6390 = vmatpush2.msra.mxu0 %v5720
    %6391 = vmatprep.subr.mxu0 %v5715
    %6392 = vmatpush2.msra.mxu0 %v5714
    %6393 = vmatprep.subr.mxu0 %v5709
    %6394 = vmatpush2.msra.mxu0 %v5708
    %6395 = vmatprep.subr.mxu0 %v5703
    %6396 = vmatpush2.msra.mxu0 %v5702
    %6397 = vmatprep.subr.mxu0 %v5697
    %6398 = vmatpush2.msra.mxu0 %v5696
    %6399 = vmatprep.subr.mxu0 %v5691
    %6400 = vmatpush2.msra.mxu0 %v5690
    %6401 = vmatprep.subr.mxu0 %v5685
    %6402 = vmatpush2.msra.mxu0 %v5684
    %6403 = vmatprep.subr.mxu0 %v5679
    %6404 = vmatpush2.msra.mxu0 %v5678
    %6405 = vmatprep.subr.mxu0 %v5673
    %6406 = vmatpush2.msra.mxu0 %v5672
    %6407 = vmatprep.subr.mxu0 %v5667
    %6408 = vmatpush2.msra.mxu0 %v5666
    %6409 = vmatprep.subr.mxu0 %v5661
    %6410 = vmatpush2.msra.mxu0 %v5660
    %6411 = vmatprep.subr.mxu0 %v5655
    %6412 = vmatpush2.msra.mxu0 %v5654
    %6413 = vmatprep.subr.mxu0 %v5649
    %6414 = vmatpush2.msra.mxu0 %v5648
    %6415 = vmatprep.subr.mxu0 %v5643
    %6416 = vmatpush2.msra.mxu0 %v5642
    %6417 = vmatprep.mubr.f32.mxu0 %v5156
    %6418 = vmatmul.mubr.f32.gmra.mxu0 %v5154
    %v6419 = vpop.f32.mrf.mxu0
    %v6420 = vadd.f32 %v6349, %v6419
    %v6421 = vpop.f32.mrf.mxu0
    %v6422 = vadd.f32 %v6351, %v6421
    %6423 = vdwg.mxu0
    %v6430 = vcombine.low %v5994, %v5996
    %v6431 = vcombine.low %v6207, %v6209
    %v6432 = vcombine.low %v6420, %v6422
    %v6434 = vunpack.c.l.s4 1966171168
    %v6435 = vunpack.c.0.s8 %v6434
    %v6436 = vlaneseq
    %v6437 = vshrl.u32 %v6436, 7
    %v6438 = vsub.s32 %v6435, %v6437
    %v6439 = vrot.slane %v6430, %v6438
    %v6441 = vunpack.c.l.s4 1966171168
    %v6442 = vunpack.c.0.s8 %v6441
    %v6443 = vlaneseq
    %v6444 = vshrl.u32 %v6443, 7
    %v6445 = vsub.s32 %v6442, %v6444
    %v6446 = vrot.slane %v6431, %v6445
    %v6448 = vunpack.c.l.s4 1966171168
    %v6449 = vunpack.c.0.s8 %v6448
    %v6450 = vlaneseq
    %v6451 = vshrl.u32 %v6450, 7
    %v6452 = vsub.s32 %v6449, %v6451
    %v6453 = vrot.slane %v6432, %v6452
    %v6454 = vcombine.low %v6439, %v6446
    %v6456 = vunpack.c.l.s4 1966171168
    %v6457 = vunpack.c.0.s8 %v6456
    %v6458 = vlaneseq
    %v6459 = vshrl.u32 %v6458, 7
    %v6460 = vsub.s32 %v6457, %v6459
    %v6461 = vrot.slane %v6454, %v6460
    %v6463 = vunpack.c.l.s4 1966171168
    %v6464 = vunpack.c.0.s8 %v6463
    %v6465 = vlaneseq
    %v6466 = vshrl.u32 %v6465, 7
    %v6467 = vsub.s32 %v6464, %v6466
    %v6468 = vrot.slane %v6453, %v6467
    %v6469 = vcombine.low %v6461, %v6468
    %v6471 = vlaneseq
    %vm6472 = vcmp.ge.s32.totalorder %v6471, 0
    %vm6473 = vcmp.lt.s32.totalorder %v6471, 768
    %vm6474 = vmand %vm6472, %vm6473
    %6475 = vst.msk [vmem:[#allocation17] sm:$0x3f] %vm6474, %v6469
    // Predicated region
    $region74: #{tpu_custom_call.1} parent=1 // pred_check
      _
    $region75: #{tpu_custom_call.1} parent=1 // pred_check_branch
      %6477 = sbr.rel (0) target = $region77
    $region76: #{tpu_custom_call.1} parent=1 // pred_region
      %s6479 = ssub.s32 96, 96
      %6480 = vsyncadd [#allocation4], %s6479
      %s6482 = sshll.u32 [#allocation17], 4
      %s6483 = int_to_ptr.vmem [resolvable:$true] %s6482
      %6485 = dma.vmem_to_hbm [thread:$0]  %s6483, 96, %s9, [#allocation4]
    $region77: #{tpu_custom_call.1} parent=1 // pred_fallthru
      _
    // Predicated region
    $region78: #{tpu_custom_call.1} parent=1 // pred_check
      _
    $region79: #{tpu_custom_call.1} parent=1 // pred_check_branch
      %6487 = sbr.rel (0) target = $region81
    $region80: #{tpu_custom_call.1} parent=1 // pred_region
      %6488 = dma.done [#allocation4], 96
    $region81: #{tpu_custom_call.1} parent=1 // pred_fallthru
      _
    %6489 = vsyncpa [#allocation3], 1
    %6490 = vsyncpa [#allocation6], 1
    %6491 = vsyncpa [#allocation9], 1
    %6492 = vsyncpa [#allocation12], 1
    %6493 = vsyncpa [#allocation15], 1
    %6494 = vsyncpa [#allocation4], 1

</llo_original>
